<compile_context>
chip_gen: v7x
topology: tpu7x:2x2x1
jax: 0.10.0
libtpu: 0.0.40
codegen_flags: <defaults>
</compile_context>

<pallas_src>
import numpy as np

import jax
import jax.numpy as jnp
from jax.experimental import pallas as pl
from jax.experimental.pallas import tpu as pltpu

MAX_NODES = 20
_HI = jax.lax.Precision.HIGHEST


def _round_up(a, b):
    return (a + b - 1) // b * b


# ---------------------------------------------------------------------------
# Fused forward kernel: per-sample conv1+pool1+conv2+pool2 (MXU banded
# matmuls + strided-max pooling), then batched fc1+ReLU+fc2 for the tile.
# ---------------------------------------------------------------------------
def _cnn_kernel(x_ref, w1_ref, b1_ref, sel1_ref, w2_ref, b2_ref, sel2_ref,
                fw1_ref, fb1_ref, fw2_ref, fb2_ref,
                out_ref, scr1, scr2, feat):
    f32 = jnp.float32
    bt = out_ref.shape[0]

    def dot(a, b):
        return jnp.dot(a, b, precision=_HI, preferred_element_type=f32)

    def sample_body(s, carry):
        x = x_ref[s]                                              # (32, 32)

        # ---- conv1 (1->6, 5x5 valid) as 5 banded MXU matmuls + bias + ReLU
        a0 = dot(x[0:28, :], w1_ref[0])
        a1 = dot(x[1:29, :], w1_ref[1])
        a2 = dot(x[2:30, :], w1_ref[2])
        a3 = dot(x[3:31, :], w1_ref[3])
        a4 = dot(x[4:32, :], w1_ref[4])
        y1 = jnp.maximum(((a0 + a1) + (a2 + a3)) + a4 + b1_ref[...], 0.0)
        # y1: (28, 168), column index = oc*28 + j

        # ---- maxpool 2x2: one even|odd column-selector matmul, then a
        #      stride-2 sublane max for the row pairs (exact VPU selection).
        s1 = dot(y1, sel1_ref[...])                               # (28, 256)
        scr1[...] = jnp.maximum(s1[:, 0:84], s1[:, 128:212])      # (28, 84)
        m1 = jnp.maximum(scr1[pl.ds(0, 14, stride=2), :],
                         scr1[pl.ds(1, 14, stride=2), :])         # (14, 84)

        # ---- conv2 (6->10, 5x5 valid) as 5 banded MXU matmuls + bias + ReLU
        p0 = dot(m1[0:10, :], w2_ref[0])
        p1 = dot(m1[1:11, :], w2_ref[1])
        p2 = dot(m1[2:12, :], w2_ref[2])
        p3 = dot(m1[3:13, :], w2_ref[3])
        p4 = dot(m1[4:14, :], w2_ref[4])
        y2 = jnp.maximum(((p0 + p1) + (p2 + p3)) + p4 + b2_ref[...], 0.0)
        # y2: (10, 100), column index = oc*10 + j

        s2 = dot(y2, sel2_ref[...])                               # (10, 256)
        scr2[...] = jnp.maximum(s2[:, 0:50], s2[:, 128:178])      # (10, 50)
        m2 = jnp.maximum(scr2[pl.ds(0, 5, stride=2), :],
                         scr2[pl.ds(1, 5, stride=2), :])          # (5, 50)

        # Park this sample's pooled features in an 8-row-aligned slot so the
        # batched FC below can gather them with stride-8 reads.
        row0 = pl.multiple_of(s * 8, 8)
        feat[pl.ds(row0, 5), :] = m2
        return carry

    jax.lax.fori_loop(0, bt, sample_body, 0)

    # ---- batched fc1 + ReLU + fc2 for the whole sample tile (batch in M).
    # torch's channel-major flatten is folded into fw1's layout, split by the
    # pooled row index h: h_out = sum_h feat_h (bt,50) @ fw1[h] (50,20).
    h = dot(feat[pl.ds(0, bt, stride=8), :], fw1_ref[0])
    h = h + dot(feat[pl.ds(1, bt, stride=8), :], fw1_ref[1])
    h = h + dot(feat[pl.ds(2, bt, stride=8), :], fw1_ref[2])
    h = h + dot(feat[pl.ds(3, bt, stride=8), :], fw1_ref[3])
    h = h + dot(feat[pl.ds(4, bt, stride=8), :], fw1_ref[4])
    h = jnp.maximum(h + fb1_ref[...], 0.0)                        # (bt, 20)
    out_ref[...] = dot(h, fw2_ref[...]) + fb2_ref[...]            # (bt, 10)


# ---------------------------------------------------------------------------
# Host-side constants: even|odd column selectors for the 2x2 max-pools.
# The "odd" half starts at lane 128 so both result halves slice without a
# lane rotate.
# ---------------------------------------------------------------------------
def _make_col_selectors():
    sel1 = np.zeros((168, 256), np.float32)
    for oc in range(6):
        for w in range(14):
            sel1[oc * 28 + 2 * w, oc * 14 + w] = 1.0
            sel1[oc * 28 + 2 * w + 1, 128 + oc * 14 + w] = 1.0
    sel2 = np.zeros((100, 256), np.float32)
    for oc in range(10):
        for w in range(5):
            sel2[oc * 10 + 2 * w, oc * 5 + w] = 1.0
            sel2[oc * 10 + 2 * w + 1, 128 + oc * 5 + w] = 1.0
    return sel1, sel2


_SEL1, _SEL2 = _make_col_selectors()


# ---------------------------------------------------------------------------
# Parameter repacking (plain XLA, once per call): banded conv weights,
# bias rows, and fc1 weights regrouped to match the in-kernel layouts.
# ---------------------------------------------------------------------------
def _prep_params(params):
    w1, b1, w2, b2, fw1, fb1, fw2, fb2 = params

    # conv1 banded weights: W1[di, dj + j, oc*28 + j] = w1[oc, 0, di, dj]
    w1s = w1[:, 0, :, :].astype(jnp.float32)                 # (6, 5, 5)
    di = np.arange(5).reshape(5, 1, 1, 1)
    oc = np.arange(6).reshape(1, 6, 1, 1)
    dj = np.arange(5).reshape(1, 1, 5, 1)
    j = np.arange(28).reshape(1, 1, 1, 28)
    vals1 = jnp.broadcast_to(w1s[oc, di, dj], (5, 6, 5, 28))
    w1b = jnp.zeros((5, 32, 6 * 28), jnp.float32).at[
        di, dj + j, oc * 28 + j].set(vals1)

    # conv2 banded weights: W2[di, ic*14 + dj + j, oc*10 + j] = w2[oc, ic, di, dj]
    di = np.arange(5).reshape(5, 1, 1, 1, 1)
    oc = np.arange(10).reshape(1, 10, 1, 1, 1)
    ic = np.arange(6).reshape(1, 1, 6, 1, 1)
    dj = np.arange(5).reshape(1, 1, 1, 5, 1)
    j = np.arange(10).reshape(1, 1, 1, 1, 10)
    vals2 = jnp.broadcast_to(w2.astype(jnp.float32)[oc, ic, di, dj],
                             (5, 10, 6, 5, 10))
    w2b = jnp.zeros((5, 6 * 14, 10 * 10), jnp.float32).at[
        di, ic * 14 + dj + j, oc * 10 + j].set(vals2)

    b1row = jnp.repeat(b1.astype(jnp.float32), 28)[None, :]      # (1, 168)
    b2row = jnp.repeat(b2.astype(jnp.float32), 10)[None, :]      # (1, 100)

    # fc1 weights regrouped by pooled row h: fw1h[h, oc*5 + w, n]
    fw1h = (fw1.astype(jnp.float32)
               .reshape(MAX_NODES, 10, 5, 5)
               .transpose(2, 1, 3, 0)
               .reshape(5, 50, MAX_NODES))
    fb1row = fb1.reshape(1, MAX_NODES).astype(jnp.float32)
    fw2t = fw2.T.astype(jnp.float32)                             # (20, 10)
    fb2row = fb2.reshape(1, 10).astype(jnp.float32)
    return w1b, b1row, w2b, b2row, fw1h, fb1row, fw2t, fb2row


# ---------------------------------------------------------------------------
# Wrapper: one fused pallas_call, grid over batch tiles ("parallel").
# ---------------------------------------------------------------------------
@jax.jit
def cnn_forward(x, params):
    """x: (B, 1, 32, 32) float32 NCHW -> logits (B, 10)."""
    bsz = x.shape[0]
    xs = x.reshape(bsz, 32, 32).astype(jnp.float32)

    # Batch tiling: pad to a multiple of 8 samples, aim for >= 2 grid steps
    # (v7x megacore) and at most 128 samples per step.
    bp8 = _round_up(bsz, 8)
    if bp8 >= 16:
        bt = min(128, _round_up((bp8 + 1) // 2, 8))
    else:
        bt = bp8
    b_pad = _round_up(bsz, bt)
    if b_pad != bsz:
        xs = jnp.pad(xs, ((0, b_pad - bsz), (0, 0), (0, 0)))
    grid = b_pad // bt

    w1b, b1row, w2b, b2row, fw1h, fb1row, fw2t, fb2row = _prep_params(params)

    def full_spec(shape):
        n = len(shape)
        return pl.BlockSpec(shape, lambda t, _n=n: (0,) * _n)

    out = pl.pallas_call(
        _cnn_kernel,
        grid=(grid,),
        in_specs=[
            pl.BlockSpec((bt, 32, 32), lambda t: (t, 0, 0)),   # sample tile
            full_spec((5, 32, 168)),                           # conv1 banded W
            full_spec((1, 168)),                               # conv1 bias row
            full_spec((168, 256)),                             # pool1 col selector
            full_spec((5, 84, 100)),                           # conv2 banded W
            full_spec((1, 100)),                               # conv2 bias row
            full_spec((100, 256)),                             # pool2 col selector
            full_spec((5, 50, MAX_NODES)),                     # fc1 weights by h
            full_spec((1, MAX_NODES)),                         # fc1 bias row
            full_spec((MAX_NODES, 10)),                        # fc2 weights (K,N)
            full_spec((1, 10)),                                # fc2 bias row
        ],
        out_specs=pl.BlockSpec((bt, 10), lambda t: (t, 0)),
        out_shape=jax.ShapeDtypeStruct((b_pad, 10), jnp.float32),
        scratch_shapes=[
            pltpu.VMEM((28, 84), jnp.float32),      # pool1 column-max
            pltpu.VMEM((10, 50), jnp.float32),      # pool2 column-max
            pltpu.VMEM((bt * 8, 50), jnp.float32),  # pooled features, 8 rows/sample
        ],
        compiler_params=pltpu.CompilerParams(
            dimension_semantics=("parallel",)),
    )(xs, w1b, b1row, jnp.asarray(_SEL1), w2b, b2row, jnp.asarray(_SEL2),
      fw1h, fb1row, fw2t, fb2row)

    return out[:bsz]


# ---------------------------------------------------------------------------
# Deterministic parameter init (PyTorch-style U(-1/sqrt(fan_in), +1/sqrt(fan_in)))
# ---------------------------------------------------------------------------
def init_params(key):
    def uni(k, shape, fan_in):
        bound = 1.0 / jnp.sqrt(fan_in)
        return jax.random.uniform(k, shape, jnp.float32, -bound, bound)

    ks = jax.random.split(key, 8)
    w1 = uni(ks[0], (6, 1, 5, 5), 1 * 5 * 5)
    b1 = uni(ks[1], (6,), 1 * 5 * 5)
    w2 = uni(ks[2], (10, 6, 5, 5), 6 * 5 * 5)
    b2 = uni(ks[3], (10,), 6 * 5 * 5)
    fw1 = uni(ks[4], (MAX_NODES, 10 * 5 * 5), 10 * 5 * 5)
    fb1 = uni(ks[5], (MAX_NODES,), 10 * 5 * 5)
    fw2 = uni(ks[6], (10, MAX_NODES), MAX_NODES)
    fb2 = uni(ks[7], (10,), MAX_NODES)
    return (w1, b1, w2, b2, fw1, fb1, fw2, fb2)


# ---------------------------------------------------------------------------
# Pure-JAX reference (lax.conv / reduce_window) at HIGHEST precision.
# ---------------------------------------------------------------------------
def reference_forward(x, params):
    w1, b1, w2, b2, fw1, fb1, fw2, fb2 = params
    dn = ("NCHW", "OIHW", "NCHW")
    y = jax.lax.conv_general_dilated(x, w1, (1, 1), "VALID",
                                     dimension_numbers=dn, precision=_HI)
    y = jnp.maximum(y + b1.reshape(1, -1, 1, 1), 0.0)
    y = jax.lax.reduce_window(y, -jnp.inf, jax.lax.max,
                              (1, 1, 2, 2), (1, 1, 2, 2), "VALID")
    y = jax.lax.conv_general_dilated(y, w2, (1, 1), "VALID",
                                     dimension_numbers=dn, precision=_HI)
    y = jnp.maximum(y + b2.reshape(1, -1, 1, 1), 0.0)
    y = jax.lax.reduce_window(y, -jnp.inf, jax.lax.max,
                              (1, 1, 2, 2), (1, 1, 2, 2), "VALID")
    y = y.reshape(x.shape[0], -1)
    y = jnp.maximum(jnp.dot(y, fw1.T, precision=_HI) + fb1, 0.0)
    return jnp.dot(y, fw2.T, precision=_HI) + fb2


if __name__ == "__main__":
    key = jax.random.PRNGKey(0)
    pkey, xkey = jax.random.split(key)
    params = init_params(pkey)

    # batch=2, 1 channel, 32x32 (required by fc1's 10*5*5 = 250 input features)
    x = jax.random.normal(xkey, (2, 1, 32, 32), dtype=jnp.float32)

    out = jax.block_until_ready(cnn_forward(x, params))
    ref = reference_forward(x, params)

    assert out.shape == (2, 10)
    assert jnp.allclose(out, ref, rtol=1e-3, atol=1e-3), "mismatch vs reference"

    print("KERNEL_OK")
</pallas_src>

<mosaic_0001>
module attributes {stable_mosaic.version = 11 : i64} {
  func.func @_cnn_kernel(%arg0: i32, %arg1: memref<8x32x32xf32, #tpu.memory_space<vmem>>, %arg2: memref<5x32x168xf32, #tpu.memory_space<vmem>>, %arg3: memref<1x168xf32, #tpu.memory_space<vmem>>, %arg4: memref<168x256xf32, #tpu.memory_space<vmem>>, %arg5: memref<5x84x100xf32, #tpu.memory_space<vmem>>, %arg6: memref<1x100xf32, #tpu.memory_space<vmem>>, %arg7: memref<100x256xf32, #tpu.memory_space<vmem>>, %arg8: memref<5x50x20xf32, #tpu.memory_space<vmem>>, %arg9: memref<1x20xf32, #tpu.memory_space<vmem>>, %arg10: memref<20x10xf32, #tpu.memory_space<vmem>>, %arg11: memref<1x10xf32, #tpu.memory_space<vmem>>, %arg12: memref<8x10xf32, #tpu.memory_space<vmem>>, %arg13: memref<28x84xf32, #tpu.memory_space<vmem>>, %arg14: memref<10x50xf32, #tpu.memory_space<vmem>>, %arg15: memref<64x50xf32, #tpu.memory_space<vmem>>) attributes {dimension_semantics = [#tpu.dimension_semantics<parallel>], iteration_bounds = array<i64: 1>, scalar_prefetch = 0 : i64, scratch_operands = 3 : i64, tpu.core_type = #tpu.core_type<tc>, window_params = [{transform_indices = @transform_0, window_bounds = array<i64: 8, 32, 32>}, {pipeline_mode = #tpu.pipeline_mode<synchronous>, transform_indices = @transform_1, window_bounds = array<i64: 5, 32, 168>}, {pipeline_mode = #tpu.pipeline_mode<synchronous>, transform_indices = @transform_2, window_bounds = array<i64: 1, 168>}, {pipeline_mode = #tpu.pipeline_mode<synchronous>, transform_indices = @transform_3, window_bounds = array<i64: 168, 256>}, {pipeline_mode = #tpu.pipeline_mode<synchronous>, transform_indices = @transform_4, window_bounds = array<i64: 5, 84, 100>}, {pipeline_mode = #tpu.pipeline_mode<synchronous>, transform_indices = @transform_5, window_bounds = array<i64: 1, 100>}, {pipeline_mode = #tpu.pipeline_mode<synchronous>, transform_indices = @transform_6, window_bounds = array<i64: 100, 256>}, {pipeline_mode = #tpu.pipeline_mode<synchronous>, transform_indices = @transform_7, window_bounds = array<i64: 5, 50, 20>}, {pipeline_mode = #tpu.pipeline_mode<synchronous>, transform_indices = @transform_8, window_bounds = array<i64: 1, 20>}, {pipeline_mode = #tpu.pipeline_mode<synchronous>, transform_indices = @transform_9, window_bounds = array<i64: 20, 10>}, {pipeline_mode = #tpu.pipeline_mode<synchronous>, transform_indices = @transform_10, window_bounds = array<i64: 1, 10>}, {transform_indices = @transform_11, window_bounds = array<i64: 8, 10>}]} {
    %c0_i32 = arith.constant 0 : i32
    %c8_i32 = arith.constant 8 : i32
    %0 = arith.addi %c0_i32, %c8_i32 : i32
    %c1_i32 = arith.constant 1 : i32
    scf.for %arg16 = %c0_i32 to %0 step %c1_i32  : i32 {
      %36 = arith.index_cast %arg16 : i32 to index
      %c0_35 = arith.constant 0 : index
      %c0_36 = arith.constant 0 : index
      %37 = vector.load %arg1[%36, %c0_35, %c0_36] : memref<8x32x32xf32, #tpu.memory_space<vmem>>, vector<1x32x32xf32>
      %38 = vector.shape_cast %37 : vector<1x32x32xf32> to vector<32x32xf32>
      %39 = vector.extract_strided_slice %38 {offsets = [0, 0], sizes = [28, 32], strides = [1, 1]} : vector<32x32xf32> to vector<28x32xf32>
      %c0_37 = arith.constant 0 : index
      %c0_38 = arith.constant 0 : index
      %c0_39 = arith.constant 0 : index
      %40 = vector.load %arg2[%c0_37, %c0_38, %c0_39] : memref<5x32x168xf32, #tpu.memory_space<vmem>>, vector<1x32x168xf32>
      %41 = vector.shape_cast %40 : vector<1x32x168xf32> to vector<32x168xf32>
      %cst_40 = arith.constant dense<0.000000e+00> : vector<28x168xf32>
      %42 = tpu.matmul %39, %41, %cst_40 {dimension_numbers = #tpu.dot_dimension_numbers<[1], [0], [0], [1], [0, 0, 1, 1], [], []>, precision = #tpu.contract_precision<fp32>} : vector<28x32xf32>, vector<32x168xf32>, vector<28x168xf32> -> vector<28x168xf32>
      %43 = vector.extract_strided_slice %38 {offsets = [1, 0], sizes = [28, 32], strides = [1, 1]} : vector<32x32xf32> to vector<28x32xf32>
      %c1_41 = arith.constant 1 : index
      %c0_42 = arith.constant 0 : index
      %c0_43 = arith.constant 0 : index
      %44 = vector.load %arg2[%c1_41, %c0_42, %c0_43] : memref<5x32x168xf32, #tpu.memory_space<vmem>>, vector<1x32x168xf32>
      %45 = vector.shape_cast %44 : vector<1x32x168xf32> to vector<32x168xf32>
      %cst_44 = arith.constant dense<0.000000e+00> : vector<28x168xf32>
      %46 = tpu.matmul %43, %45, %cst_44 {dimension_numbers = #tpu.dot_dimension_numbers<[1], [0], [0], [1], [0, 0, 1, 1], [], []>, precision = #tpu.contract_precision<fp32>} : vector<28x32xf32>, vector<32x168xf32>, vector<28x168xf32> -> vector<28x168xf32>
      %47 = vector.extract_strided_slice %38 {offsets = [2, 0], sizes = [28, 32], strides = [1, 1]} : vector<32x32xf32> to vector<28x32xf32>
      %c2_45 = arith.constant 2 : index
      %c0_46 = arith.constant 0 : index
      %c0_47 = arith.constant 0 : index
      %48 = vector.load %arg2[%c2_45, %c0_46, %c0_47] : memref<5x32x168xf32, #tpu.memory_space<vmem>>, vector<1x32x168xf32>
      %49 = vector.shape_cast %48 : vector<1x32x168xf32> to vector<32x168xf32>
      %cst_48 = arith.constant dense<0.000000e+00> : vector<28x168xf32>
      %50 = tpu.matmul %47, %49, %cst_48 {dimension_numbers = #tpu.dot_dimension_numbers<[1], [0], [0], [1], [0, 0, 1, 1], [], []>, precision = #tpu.contract_precision<fp32>} : vector<28x32xf32>, vector<32x168xf32>, vector<28x168xf32> -> vector<28x168xf32>
      %51 = vector.extract_strided_slice %38 {offsets = [3, 0], sizes = [28, 32], strides = [1, 1]} : vector<32x32xf32> to vector<28x32xf32>
      %c3_49 = arith.constant 3 : index
      %c0_50 = arith.constant 0 : index
      %c0_51 = arith.constant 0 : index
      %52 = vector.load %arg2[%c3_49, %c0_50, %c0_51] : memref<5x32x168xf32, #tpu.memory_space<vmem>>, vector<1x32x168xf32>
      %53 = vector.shape_cast %52 : vector<1x32x168xf32> to vector<32x168xf32>
      %cst_52 = arith.constant dense<0.000000e+00> : vector<28x168xf32>
      %54 = tpu.matmul %51, %53, %cst_52 {dimension_numbers = #tpu.dot_dimension_numbers<[1], [0], [0], [1], [0, 0, 1, 1], [], []>, precision = #tpu.contract_precision<fp32>} : vector<28x32xf32>, vector<32x168xf32>, vector<28x168xf32> -> vector<28x168xf32>
      %55 = vector.extract_strided_slice %38 {offsets = [4, 0], sizes = [28, 32], strides = [1, 1]} : vector<32x32xf32> to vector<28x32xf32>
      %c4_53 = arith.constant 4 : index
      %c0_54 = arith.constant 0 : index
      %c0_55 = arith.constant 0 : index
      %56 = vector.load %arg2[%c4_53, %c0_54, %c0_55] : memref<5x32x168xf32, #tpu.memory_space<vmem>>, vector<1x32x168xf32>
      %57 = vector.shape_cast %56 : vector<1x32x168xf32> to vector<32x168xf32>
      %cst_56 = arith.constant dense<0.000000e+00> : vector<28x168xf32>
      %58 = tpu.matmul %55, %57, %cst_56 {dimension_numbers = #tpu.dot_dimension_numbers<[1], [0], [0], [1], [0, 0, 1, 1], [], []>, precision = #tpu.contract_precision<fp32>} : vector<28x32xf32>, vector<32x168xf32>, vector<28x168xf32> -> vector<28x168xf32>
      %59 = arith.addf %42, %46 : vector<28x168xf32>
      %60 = arith.addf %50, %54 : vector<28x168xf32>
      %61 = arith.addf %59, %60 : vector<28x168xf32>
      %62 = arith.addf %61, %58 : vector<28x168xf32>
      %c0_57 = arith.constant 0 : index
      %c0_58 = arith.constant 0 : index
      %63 = vector.load %arg3[%c0_57, %c0_58] : memref<1x168xf32, #tpu.memory_space<vmem>>, vector<1x168xf32>
      %64 = vector.broadcast %63 : vector<1x168xf32> to vector<28x168xf32>
      %65 = arith.addf %62, %64 : vector<28x168xf32>
      %cst_59 = arith.constant 0.000000e+00 : f32
      %66 = vector.broadcast %cst_59 : f32 to vector<28x168xf32>
      %67 = arith.maximumf %65, %66 : vector<28x168xf32>
      %c0_60 = arith.constant 0 : index
      %c0_61 = arith.constant 0 : index
      %68 = vector.load %arg4[%c0_60, %c0_61] : memref<168x256xf32, #tpu.memory_space<vmem>>, vector<168x256xf32>
      %cst_62 = arith.constant dense<0.000000e+00> : vector<28x256xf32>
      %69 = tpu.matmul %67, %68, %cst_62 {dimension_numbers = #tpu.dot_dimension_numbers<[1], [0], [0], [1], [0, 0, 1, 1], [], []>, precision = #tpu.contract_precision<fp32>} : vector<28x168xf32>, vector<168x256xf32>, vector<28x256xf32> -> vector<28x256xf32>
      %70 = vector.extract_strided_slice %69 {offsets = [0, 0], sizes = [28, 84], strides = [1, 1]} : vector<28x256xf32> to vector<28x84xf32>
      %71 = vector.extract_strided_slice %69 {offsets = [0, 128], sizes = [28, 84], strides = [1, 1]} : vector<28x256xf32> to vector<28x84xf32>
      %72 = arith.maximumf %70, %71 : vector<28x84xf32>
      %c0_63 = arith.constant 0 : index
      %c0_64 = arith.constant 0 : index
      %73 = vector.load %arg13[%c0_63, %c0_64] : memref<28x84xf32, #tpu.memory_space<vmem>>, vector<28x84xf32>
      tpu.vector_store %arg13[%c0_63, %c0_64], %72 {strides = array<i32>} : memref<28x84xf32, #tpu.memory_space<vmem>>, vector<28x84xf32>,
      %c0_65 = arith.constant 0 : index
      %c0_66 = arith.constant 0 : index
      %74 = tpu.strided_load %arg13[%c0_65, %c0_66] {strides = array<i32: 2, 1>} : memref<28x84xf32, #tpu.memory_space<vmem>>, vector<14x84xf32>
      %c1_67 = arith.constant 1 : index
      %c0_68 = arith.constant 0 : index
      %75 = tpu.strided_load %arg13[%c1_67, %c0_68] {strides = array<i32: 2, 1>} : memref<28x84xf32, #tpu.memory_space<vmem>>, vector<14x84xf32>
      %76 = arith.maximumf %74, %75 : vector<14x84xf32>
      %77 = vector.extract_strided_slice %76 {offsets = [0, 0], sizes = [10, 84], strides = [1, 1]} : vector<14x84xf32> to vector<10x84xf32>
      %c0_69 = arith.constant 0 : index
      %c0_70 = arith.constant 0 : index
      %c0_71 = arith.constant 0 : index
      %78 = vector.load %arg5[%c0_69, %c0_70, %c0_71] : memref<5x84x100xf32, #tpu.memory_space<vmem>>, vector<1x84x100xf32>
      %79 = vector.shape_cast %78 : vector<1x84x100xf32> to vector<84x100xf32>
      %cst_72 = arith.constant dense<0.000000e+00> : vector<10x100xf32>
      %80 = tpu.matmul %77, %79, %cst_72 {dimension_numbers = #tpu.dot_dimension_numbers<[1], [0], [0], [1], [0, 0, 1, 1], [], []>, precision = #tpu.contract_precision<fp32>} : vector<10x84xf32>, vector<84x100xf32>, vector<10x100xf32> -> vector<10x100xf32>
      %81 = vector.extract_strided_slice %76 {offsets = [1, 0], sizes = [10, 84], strides = [1, 1]} : vector<14x84xf32> to vector<10x84xf32>
      %c1_73 = arith.constant 1 : index
      %c0_74 = arith.constant 0 : index
      %c0_75 = arith.constant 0 : index
      %82 = vector.load %arg5[%c1_73, %c0_74, %c0_75] : memref<5x84x100xf32, #tpu.memory_space<vmem>>, vector<1x84x100xf32>
      %83 = vector.shape_cast %82 : vector<1x84x100xf32> to vector<84x100xf32>
      %cst_76 = arith.constant dense<0.000000e+00> : vector<10x100xf32>
      %84 = tpu.matmul %81, %83, %cst_76 {dimension_numbers = #tpu.dot_dimension_numbers<[1], [0], [0], [1], [0, 0, 1, 1], [], []>, precision = #tpu.contract_precision<fp32>} : vector<10x84xf32>, vector<84x100xf32>, vector<10x100xf32> -> vector<10x100xf32>
      %85 = vector.extract_strided_slice %76 {offsets = [2, 0], sizes = [10, 84], strides = [1, 1]} : vector<14x84xf32> to vector<10x84xf32>
      %c2_77 = arith.constant 2 : index
      %c0_78 = arith.constant 0 : index
      %c0_79 = arith.constant 0 : index
      %86 = vector.load %arg5[%c2_77, %c0_78, %c0_79] : memref<5x84x100xf32, #tpu.memory_space<vmem>>, vector<1x84x100xf32>
      %87 = vector.shape_cast %86 : vector<1x84x100xf32> to vector<84x100xf32>
      %cst_80 = arith.constant dense<0.000000e+00> : vector<10x100xf32>
      %88 = tpu.matmul %85, %87, %cst_80 {dimension_numbers = #tpu.dot_dimension_numbers<[1], [0], [0], [1], [0, 0, 1, 1], [], []>, precision = #tpu.contract_precision<fp32>} : vector<10x84xf32>, vector<84x100xf32>, vector<10x100xf32> -> vector<10x100xf32>
      %89 = vector.extract_strided_slice %76 {offsets = [3, 0], sizes = [10, 84], strides = [1, 1]} : vector<14x84xf32> to vector<10x84xf32>
      %c3_81 = arith.constant 3 : index
      %c0_82 = arith.constant 0 : index
      %c0_83 = arith.constant 0 : index
      %90 = vector.load %arg5[%c3_81, %c0_82, %c0_83] : memref<5x84x100xf32, #tpu.memory_space<vmem>>, vector<1x84x100xf32>
      %91 = vector.shape_cast %90 : vector<1x84x100xf32> to vector<84x100xf32>
      %cst_84 = arith.constant dense<0.000000e+00> : vector<10x100xf32>
      %92 = tpu.matmul %89, %91, %cst_84 {dimension_numbers = #tpu.dot_dimension_numbers<[1], [0], [0], [1], [0, 0, 1, 1], [], []>, precision = #tpu.contract_precision<fp32>} : vector<10x84xf32>, vector<84x100xf32>, vector<10x100xf32> -> vector<10x100xf32>
      %93 = vector.extract_strided_slice %76 {offsets = [4, 0], sizes = [10, 84], strides = [1, 1]} : vector<14x84xf32> to vector<10x84xf32>
      %c4_85 = arith.constant 4 : index
      %c0_86 = arith.constant 0 : index
      %c0_87 = arith.constant 0 : index
      %94 = vector.load %arg5[%c4_85, %c0_86, %c0_87] : memref<5x84x100xf32, #tpu.memory_space<vmem>>, vector<1x84x100xf32>
      %95 = vector.shape_cast %94 : vector<1x84x100xf32> to vector<84x100xf32>
      %cst_88 = arith.constant dense<0.000000e+00> : vector<10x100xf32>
      %96 = tpu.matmul %93, %95, %cst_88 {dimension_numbers = #tpu.dot_dimension_numbers<[1], [0], [0], [1], [0, 0, 1, 1], [], []>, precision = #tpu.contract_precision<fp32>} : vector<10x84xf32>, vector<84x100xf32>, vector<10x100xf32> -> vector<10x100xf32>
      %97 = arith.addf %80, %84 : vector<10x100xf32>
      %98 = arith.addf %88, %92 : vector<10x100xf32>
      %99 = arith.addf %97, %98 : vector<10x100xf32>
      %100 = arith.addf %99, %96 : vector<10x100xf32>
      %c0_89 = arith.constant 0 : index
      %c0_90 = arith.constant 0 : index
      %101 = vector.load %arg6[%c0_89, %c0_90] : memref<1x100xf32, #tpu.memory_space<vmem>>, vector<1x100xf32>
      %102 = vector.broadcast %101 : vector<1x100xf32> to vector<10x100xf32>
      %103 = arith.addf %100, %102 : vector<10x100xf32>
      %cst_91 = arith.constant 0.000000e+00 : f32
      %104 = vector.broadcast %cst_91 : f32 to vector<10x100xf32>
      %105 = arith.maximumf %103, %104 : vector<10x100xf32>
      %c0_92 = arith.constant 0 : index
      %c0_93 = arith.constant 0 : index
      %106 = vector.load %arg7[%c0_92, %c0_93] : memref<100x256xf32, #tpu.memory_space<vmem>>, vector<100x256xf32>
      %cst_94 = arith.constant dense<0.000000e+00> : vector<10x256xf32>
      %107 = tpu.matmul %105, %106, %cst_94 {dimension_numbers = #tpu.dot_dimension_numbers<[1], [0], [0], [1], [0, 0, 1, 1], [], []>, precision = #tpu.contract_precision<fp32>} : vector<10x100xf32>, vector<100x256xf32>, vector<10x256xf32> -> vector<10x256xf32>
      %108 = vector.extract_strided_slice %107 {offsets = [0, 0], sizes = [10, 50], strides = [1, 1]} : vector<10x256xf32> to vector<10x50xf32>
      %109 = vector.extract_strided_slice %107 {offsets = [0, 128], sizes = [10, 50], strides = [1, 1]} : vector<10x256xf32> to vector<10x50xf32>
      %110 = arith.maximumf %108, %109 : vector<10x50xf32>
      %c0_95 = arith.constant 0 : index
      %c0_96 = arith.constant 0 : index
      %111 = vector.load %arg14[%c0_95, %c0_96] : memref<10x50xf32, #tpu.memory_space<vmem>>, vector<10x50xf32>
      tpu.vector_store %arg14[%c0_95, %c0_96], %110 {strides = array<i32>} : memref<10x50xf32, #tpu.memory_space<vmem>>, vector<10x50xf32>,
      %c0_97 = arith.constant 0 : index
      %c0_98 = arith.constant 0 : index
      %112 = tpu.strided_load %arg14[%c0_97, %c0_98] {strides = array<i32: 2, 1>} : memref<10x50xf32, #tpu.memory_space<vmem>>, vector<5x50xf32>
      %c1_99 = arith.constant 1 : index
      %c0_100 = arith.constant 0 : index
      %113 = tpu.strided_load %arg14[%c1_99, %c0_100] {strides = array<i32: 2, 1>} : memref<10x50xf32, #tpu.memory_space<vmem>>, vector<5x50xf32>
      %114 = arith.maximumf %112, %113 : vector<5x50xf32>
      %c8_i32_101 = arith.constant 8 : i32
      %115 = arith.muli %arg16, %c8_i32_101 : i32
      %116 = tpu.assume_multiple %115, 8 : i32
      %117 = arith.index_cast %116 : i32 to index
      %c0_102 = arith.constant 0 : index
      %118 = vector.load %arg15[%117, %c0_102] : memref<64x50xf32, #tpu.memory_space<vmem>>, vector<5x50xf32>
      tpu.vector_store %arg15[%117, %c0_102], %114 {strides = array<i32>} : memref<64x50xf32, #tpu.memory_space<vmem>>, vector<5x50xf32>,
    }
    %c8_i32_0 = arith.constant 8 : i32
    %c0 = arith.constant 0 : index
    %c0_1 = arith.constant 0 : index
    %1 = tpu.strided_load %arg15[%c0, %c0_1] {strides = array<i32: 8, 1>} : memref<64x50xf32, #tpu.memory_space<vmem>>, vector<8x50xf32>
    %c0_2 = arith.constant 0 : index
    %c0_3 = arith.constant 0 : index
    %c0_4 = arith.constant 0 : index
    %2 = vector.load %arg8[%c0_2, %c0_3, %c0_4] : memref<5x50x20xf32, #tpu.memory_space<vmem>>, vector<1x50x20xf32>
    %3 = vector.shape_cast %2 : vector<1x50x20xf32> to vector<50x20xf32>
    %cst = arith.constant dense<0.000000e+00> : vector<8x20xf32>
    %4 = tpu.matmul %1, %3, %cst {dimension_numbers = #tpu.dot_dimension_numbers<[1], [0], [0], [1], [0, 0, 1, 1], [], []>, precision = #tpu.contract_precision<fp32>} : vector<8x50xf32>, vector<50x20xf32>, vector<8x20xf32> -> vector<8x20xf32>
    %c1 = arith.constant 1 : index
    %c0_5 = arith.constant 0 : index
    %5 = tpu.strided_load %arg15[%c1, %c0_5] {strides = array<i32: 8, 1>} : memref<64x50xf32, #tpu.memory_space<vmem>>, vector<8x50xf32>
    %c1_6 = arith.constant 1 : index
    %c0_7 = arith.constant 0 : index
    %c0_8 = arith.constant 0 : index
    %6 = vector.load %arg8[%c1_6, %c0_7, %c0_8] : memref<5x50x20xf32, #tpu.memory_space<vmem>>, vector<1x50x20xf32>
    %7 = vector.shape_cast %6 : vector<1x50x20xf32> to vector<50x20xf32>
    %cst_9 = arith.constant dense<0.000000e+00> : vector<8x20xf32>
    %8 = tpu.matmul %5, %7, %cst_9 {dimension_numbers = #tpu.dot_dimension_numbers<[1], [0], [0], [1], [0, 0, 1, 1], [], []>, precision = #tpu.contract_precision<fp32>} : vector<8x50xf32>, vector<50x20xf32>, vector<8x20xf32> -> vector<8x20xf32>
    %9 = arith.addf %4, %8 : vector<8x20xf32>
    %c2 = arith.constant 2 : index
    %c0_10 = arith.constant 0 : index
    %10 = tpu.strided_load %arg15[%c2, %c0_10] {strides = array<i32: 8, 1>} : memref<64x50xf32, #tpu.memory_space<vmem>>, vector<8x50xf32>
    %c2_11 = arith.constant 2 : index
    %c0_12 = arith.constant 0 : index
    %c0_13 = arith.constant 0 : index
    %11 = vector.load %arg8[%c2_11, %c0_12, %c0_13] : memref<5x50x20xf32, #tpu.memory_space<vmem>>, vector<1x50x20xf32>
    %12 = vector.shape_cast %11 : vector<1x50x20xf32> to vector<50x20xf32>
    %cst_14 = arith.constant dense<0.000000e+00> : vector<8x20xf32>
    %13 = tpu.matmul %10, %12, %cst_14 {dimension_numbers = #tpu.dot_dimension_numbers<[1], [0], [0], [1], [0, 0, 1, 1], [], []>, precision = #tpu.contract_precision<fp32>} : vector<8x50xf32>, vector<50x20xf32>, vector<8x20xf32> -> vector<8x20xf32>
    %14 = arith.addf %9, %13 : vector<8x20xf32>
    %c3 = arith.constant 3 : index
    %c0_15 = arith.constant 0 : index
    %15 = tpu.strided_load %arg15[%c3, %c0_15] {strides = array<i32: 8, 1>} : memref<64x50xf32, #tpu.memory_space<vmem>>, vector<8x50xf32>
    %c3_16 = arith.constant 3 : index
    %c0_17 = arith.constant 0 : index
    %c0_18 = arith.constant 0 : index
    %16 = vector.load %arg8[%c3_16, %c0_17, %c0_18] : memref<5x50x20xf32, #tpu.memory_space<vmem>>, vector<1x50x20xf32>
    %17 = vector.shape_cast %16 : vector<1x50x20xf32> to vector<50x20xf32>
    %cst_19 = arith.constant dense<0.000000e+00> : vector<8x20xf32>
    %18 = tpu.matmul %15, %17, %cst_19 {dimension_numbers = #tpu.dot_dimension_numbers<[1], [0], [0], [1], [0, 0, 1, 1], [], []>, precision = #tpu.contract_precision<fp32>} : vector<8x50xf32>, vector<50x20xf32>, vector<8x20xf32> -> vector<8x20xf32>
    %19 = arith.addf %14, %18 : vector<8x20xf32>
    %c4 = arith.constant 4 : index
    %c0_20 = arith.constant 0 : index
    %20 = tpu.strided_load %arg15[%c4, %c0_20] {strides = array<i32: 8, 1>} : memref<64x50xf32, #tpu.memory_space<vmem>>, vector<8x50xf32>
    %c4_21 = arith.constant 4 : index
    %c0_22 = arith.constant 0 : index
    %c0_23 = arith.constant 0 : index
    %21 = vector.load %arg8[%c4_21, %c0_22, %c0_23] : memref<5x50x20xf32, #tpu.memory_space<vmem>>, vector<1x50x20xf32>
    %22 = vector.shape_cast %21 : vector<1x50x20xf32> to vector<50x20xf32>
    %cst_24 = arith.constant dense<0.000000e+00> : vector<8x20xf32>
    %23 = tpu.matmul %20, %22, %cst_24 {dimension_numbers = #tpu.dot_dimension_numbers<[1], [0], [0], [1], [0, 0, 1, 1], [], []>, precision = #tpu.contract_precision<fp32>} : vector<8x50xf32>, vector<50x20xf32>, vector<8x20xf32> -> vector<8x20xf32>
    %24 = arith.addf %19, %23 : vector<8x20xf32>
    %c0_25 = arith.constant 0 : index
    %c0_26 = arith.constant 0 : index
    %25 = vector.load %arg9[%c0_25, %c0_26] : memref<1x20xf32, #tpu.memory_space<vmem>>, vector<1x20xf32>
    %26 = vector.broadcast %25 : vector<1x20xf32> to vector<8x20xf32>
    %27 = arith.addf %24, %26 : vector<8x20xf32>
    %cst_27 = arith.constant 0.000000e+00 : f32
    %28 = vector.broadcast %cst_27 : f32 to vector<8x20xf32>
    %29 = arith.maximumf %27, %28 : vector<8x20xf32>
    %c0_28 = arith.constant 0 : index
    %c0_29 = arith.constant 0 : index
    %30 = vector.load %arg10[%c0_28, %c0_29] : memref<20x10xf32, #tpu.memory_space<vmem>>, vector<20x10xf32>
    %cst_30 = arith.constant dense<0.000000e+00> : vector<8x10xf32>
    %31 = tpu.matmul %29, %30, %cst_30 {dimension_numbers = #tpu.dot_dimension_numbers<[1], [0], [0], [1], [0, 0, 1, 1], [], []>, precision = #tpu.contract_precision<fp32>} : vector<8x20xf32>, vector<20x10xf32>, vector<8x10xf32> -> vector<8x10xf32>
    %c0_31 = arith.constant 0 : index
    %c0_32 = arith.constant 0 : index
    %32 = vector.load %arg11[%c0_31, %c0_32] : memref<1x10xf32, #tpu.memory_space<vmem>>, vector<1x10xf32>
    %33 = vector.broadcast %32 : vector<1x10xf32> to vector<8x10xf32>
    %34 = arith.addf %31, %33 : vector<8x10xf32>
    %c0_33 = arith.constant 0 : index
    %c0_34 = arith.constant 0 : index
    %35 = vector.load %arg12[%c0_33, %c0_34] : memref<8x10xf32, #tpu.memory_space<vmem>>, vector<8x10xf32>
    tpu.vector_store %arg12[%c0_33, %c0_34], %34 {strides = array<i32>} : memref<8x10xf32, #tpu.memory_space<vmem>>, vector<8x10xf32>,
    return
  }
  func.func @transform_0(%arg0: i32) -> (i32, i32, i32) {
    %c0_i32 = arith.constant 0 : i32
    %c0_i32_0 = arith.constant 0 : i32
    %c0_i32_1 = arith.constant 0 : i32
    return %arg0, %c0_i32, %c0_i32_0 : i32, i32, i32
  }
  func.func @transform_1(%arg0: i32) -> (i32, i32, i32) {
    %c0_i32 = arith.constant 0 : i32
    %c0_i32_0 = arith.constant 0 : i32
    %c0_i32_1 = arith.constant 0 : i32
    %c0_i32_2 = arith.constant 0 : i32
    return %c0_i32, %c0_i32_0, %c0_i32_1 : i32, i32, i32
  }
  func.func @transform_2(%arg0: i32) -> (i32, i32) {
    %c0_i32 = arith.constant 0 : i32
    %c0_i32_0 = arith.constant 0 : i32
    %c0_i32_1 = arith.constant 0 : i32
    return %c0_i32, %c0_i32_0 : i32, i32
  }
  func.func @transform_3(%arg0: i32) -> (i32, i32) {
    %c0_i32 = arith.constant 0 : i32
    %c0_i32_0 = arith.constant 0 : i32
    %c0_i32_1 = arith.constant 0 : i32
    return %c0_i32, %c0_i32_0 : i32, i32
  }
  func.func @transform_4(%arg0: i32) -> (i32, i32, i32) {
    %c0_i32 = arith.constant 0 : i32
    %c0_i32_0 = arith.constant 0 : i32
    %c0_i32_1 = arith.constant 0 : i32
    %c0_i32_2 = arith.constant 0 : i32
    return %c0_i32, %c0_i32_0, %c0_i32_1 : i32, i32, i32
  }
  func.func @transform_5(%arg0: i32) -> (i32, i32) {
    %c0_i32 = arith.constant 0 : i32
    %c0_i32_0 = arith.constant 0 : i32
    %c0_i32_1 = arith.constant 0 : i32
    return %c0_i32, %c0_i32_0 : i32, i32
  }
  func.func @transform_6(%arg0: i32) -> (i32, i32) {
    %c0_i32 = arith.constant 0 : i32
    %c0_i32_0 = arith.constant 0 : i32
    %c0_i32_1 = arith.constant 0 : i32
    return %c0_i32, %c0_i32_0 : i32, i32
  }
  func.func @transform_7(%arg0: i32) -> (i32, i32, i32) {
    %c0_i32 = arith.constant 0 : i32
    %c0_i32_0 = arith.constant 0 : i32
    %c0_i32_1 = arith.constant 0 : i32
    %c0_i32_2 = arith.constant 0 : i32
    return %c0_i32, %c0_i32_0, %c0_i32_1 : i32, i32, i32
  }
  func.func @transform_8(%arg0: i32) -> (i32, i32) {
    %c0_i32 = arith.constant 0 : i32
    %c0_i32_0 = arith.constant 0 : i32
    %c0_i32_1 = arith.constant 0 : i32
    return %c0_i32, %c0_i32_0 : i32, i32
  }
  func.func @transform_9(%arg0: i32) -> (i32, i32) {
    %c0_i32 = arith.constant 0 : i32
    %c0_i32_0 = arith.constant 0 : i32
    %c0_i32_1 = arith.constant 0 : i32
    return %c0_i32, %c0_i32_0 : i32, i32
  }
  func.func @transform_10(%arg0: i32) -> (i32, i32) {
    %c0_i32 = arith.constant 0 : i32
    %c0_i32_0 = arith.constant 0 : i32
    %c0_i32_1 = arith.constant 0 : i32
    return %c0_i32, %c0_i32_0 : i32, i32
  }
  func.func @transform_11(%arg0: i32) -> (i32, i32) {
    %c0_i32 = arith.constant 0 : i32
    %c0_i32_0 = arith.constant 0 : i32
    return %arg0, %c0_i32 : i32, i32
  }
}

</mosaic_0001>

<llo_original>
// kernel: cnn_forward.1
$region0: #{cnn_forward.1}
  #allocation0 [shape = 'u32[]', space=smem, size = 0x4, offset = 0x4, fixed_abs, tag = 'smem constant byte address 0x4 - core index']
  #allocation1 [shape = 'u32[144,128]{1,0:T(1,128)}', space=vmem, size = 0x12000, scoped, tag = 'internal scratch']
  #allocation2 [shape = 'f32[28,84]{1,0:T(8,128)}', space=vmem, size = 0x4000, scoped, tag = 'scratch operand']
  #allocation3 [shape = 'f32[10,50]{1,0:T(8,128)}', space=vmem, size = 0x2000, scoped, tag = 'scratch operand']
  #allocation4 [shape = 'f32[64,50]{1,0:T(8,128)}', space=vmem, size = 0x8000, scoped, tag = 'scratch operand']
  %s0 = inlined_call_operand.vmem [shape: f32[8,32,32], index: 0, kind: input, shape index: {}]
  %s1 = inlined_call_operand.vmem [shape: f32[5,32,168], index: 1, kind: input, shape index: {}]
  %s2 = inlined_call_operand.vmem [shape: f32[1,168], index: 2, kind: input, shape index: {}]
  %s3 = inlined_call_operand.vmem [shape: f32[168,256], index: 3, kind: input, shape index: {}]
  %s4 = inlined_call_operand.vmem [shape: f32[5,84,100], index: 4, kind: input, shape index: {}]
  %s5 = inlined_call_operand.vmem [shape: f32[1,100], index: 5, kind: input, shape index: {}]
  %s6 = inlined_call_operand.vmem [shape: f32[100,256], index: 6, kind: input, shape index: {}]
  %s7 = inlined_call_operand.vmem [shape: f32[5,50,20], index: 7, kind: input, shape index: {}]
  %s8 = inlined_call_operand.vmem [shape: f32[1,20], index: 8, kind: input, shape index: {}]
  %s9 = inlined_call_operand.vmem [shape: f32[20,10], index: 9, kind: input, shape index: {}]
  %s10 = inlined_call_operand.vmem [shape: f32[1,10], index: 10, kind: input, shape index: {}]
  %s11 = inlined_call_operand.vmem [shape: f32[8,10], index: 11, kind: output, shape index: {}]
  %s12 = sld [smem:[#allocation0]]
  $region61: #{cnn_forward.1} parent=0
    _
  %s14 = ssub.s32 1, %s12
  %s15 = scalar_select 0, %s14, %s12
  // Predicated region
  $region2: #{cnn_forward.1} parent=0 // pred_check
    _
  $region3: #{cnn_forward.1} parent=0 // pred_check_branch
    %17 = sbr.rel (0) target = $region5
  $region4: #{cnn_forward.1} parent=0 // pred_region
    _
  $region5: #{cnn_forward.1} parent=0 // pred_fallthru
    _
  // Predicated region
  $region6: #{cnn_forward.1} parent=0 // pred_check
    _
  $region7: #{cnn_forward.1} parent=0 // pred_check_branch
    %19 = sbr.rel (0) target = $region9
  $region8: #{cnn_forward.1} parent=0 // pred_region
    _
  $region9: #{cnn_forward.1} parent=0 // pred_fallthru
    _
  // Predicated region
  $region10: #{cnn_forward.1} parent=0 // pred_check
    _
  $region11: #{cnn_forward.1} parent=0 // pred_check_branch
    %21 = sbr.rel (0) target = $region13
  $region12: #{cnn_forward.1} parent=0 // pred_region
    _
  $region13: #{cnn_forward.1} parent=0 // pred_fallthru
    _
  // Predicated region
  $region14: #{cnn_forward.1} parent=0 // pred_check
    _
  $region15: #{cnn_forward.1} parent=0 // pred_check_branch
    %23 = sbr.rel (0) target = $region17
  $region16: #{cnn_forward.1} parent=0 // pred_region
    _
  $region17: #{cnn_forward.1} parent=0 // pred_fallthru
    _
  // Predicated region
  $region18: #{cnn_forward.1} parent=0 // pred_check
    _
  $region19: #{cnn_forward.1} parent=0 // pred_check_branch
    %25 = sbr.rel (0) target = $region21
  $region20: #{cnn_forward.1} parent=0 // pred_region
    _
  $region21: #{cnn_forward.1} parent=0 // pred_fallthru
    _
  // Predicated region
  $region22: #{cnn_forward.1} parent=0 // pred_check
    _
  $region23: #{cnn_forward.1} parent=0 // pred_check_branch
    %27 = sbr.rel (0) target = $region25
  $region24: #{cnn_forward.1} parent=0 // pred_region
    _
  $region25: #{cnn_forward.1} parent=0 // pred_fallthru
    _
  // Predicated region
  $region26: #{cnn_forward.1} parent=0 // pred_check
    _
  $region27: #{cnn_forward.1} parent=0 // pred_check_branch
    %29 = sbr.rel (0) target = $region29
  $region28: #{cnn_forward.1} parent=0 // pred_region
    _
  $region29: #{cnn_forward.1} parent=0 // pred_fallthru
    _
  // Predicated region
  $region30: #{cnn_forward.1} parent=0 // pred_check
    _
  $region31: #{cnn_forward.1} parent=0 // pred_check_branch
    %31 = sbr.rel (0) target = $region33
  $region32: #{cnn_forward.1} parent=0 // pred_region
    _
  $region33: #{cnn_forward.1} parent=0 // pred_fallthru
    _
  // Predicated region
  $region34: #{cnn_forward.1} parent=0 // pred_check
    _
  $region35: #{cnn_forward.1} parent=0 // pred_check_branch
    %33 = sbr.rel (0) target = $region37
  $region36: #{cnn_forward.1} parent=0 // pred_region
    _
  $region37: #{cnn_forward.1} parent=0 // pred_fallthru
    _
  // Predicated region
  $region38: #{cnn_forward.1} parent=0 // pred_check
    _
  $region39: #{cnn_forward.1} parent=0 // pred_check_branch
    %35 = sbr.rel (0) target = $region41
  $region40: #{cnn_forward.1} parent=0 // pred_region
    _
  $region41: #{cnn_forward.1} parent=0 // pred_fallthru
    _
  // Predicated region
  $region42: #{cnn_forward.1} parent=0 // pred_check
    _
  $region43: #{cnn_forward.1} parent=0 // pred_check_branch
    %37 = sbr.rel (0) target = $region45
  $region44: #{cnn_forward.1} parent=0 // pred_region
    _
  $region45: #{cnn_forward.1} parent=0 // pred_fallthru
    _
  loop: start=0, step=1, limit=8
  $region46: #{cnn_forward.1} parent=0 // loop_pre_header
    _
  $region47: #{cnn_forward.1} parent=0 // loop_header
    %s39 = sphi 0, %s43
    %p40 = scmp.ge.s32.totalorder %s39, 8
  $region48: #{cnn_forward.1} parent=0 // loop_header_branch
    %42 = sbr.rel (%p40) target = $region52
  $region49: #{cnn_forward.1} parent=0 // loop_body
    %s44 = smul.u32 %s39, 32
    %s45 = scalar_lea.vmem %s0, %s44
    %v46 = vld [vmem:[%s45] sm:$0xff]
    %v47 = vld [vmem:[%s45 + $0x8] sm:$0xff]
    %v48 = vld [vmem:[%s45 + $0x10] sm:$0xff]
    %v49 = vld [vmem:[%s45 + $0x18] sm:$0xff]
    %v50 = vld [vmem:[%s1] sm:$0xff]
    %v51 = vld [vmem:[%s1 + $0x8] sm:$0xff]
    %v52 = vld [vmem:[%s1 + $0x10] sm:$0xff]
    %v53 = vld [vmem:[%s1 + $0x18] sm:$0xff]
    %v54 = vld [vmem:[%s1 + $0x20] sm:$0xff]
    %v55 = vld [vmem:[%s1 + $0x28] sm:$0xff]
    %v56 = vld [vmem:[%s1 + $0x30] sm:$0xff]
    %v57 = vld [vmem:[%s1 + $0x38] sm:$0xff]
    %s58 = scalar_lea.vmem %s1, 64
    %v59 = vld [vmem:[%s58] sm:$0xff]
    %v60 = vld [vmem:[%s58 + $0x8] sm:$0xff]
    %v61 = vld [vmem:[%s58 + $0x10] sm:$0xff]
    %v62 = vld [vmem:[%s58 + $0x18] sm:$0xff]
    %v63 = vld [vmem:[%s58 + $0x20] sm:$0xff]
    %v64 = vld [vmem:[%s58 + $0x28] sm:$0xff]
    %v65 = vld [vmem:[%s58 + $0x30] sm:$0xff]
    %v66 = vld [vmem:[%s58 + $0x38] sm:$0xff]
    %vm71 = vcmask 1046528
    %v72 = vrot.slane %v46, 1
    %v73 = vrot.slane %v47, 1
    %v74 = vsel %vm71, %v72, %v73
    %v75 = vrot.slane %v48, 1
    %v76 = vsel %vm71, %v73, %v75
    %v77 = vrot.slane %v49, 1
    %v78 = vsel %vm71, %v75, %v77
    %vm79 = vcmask 261120
    %v80 = vsel %vm79, %v74, 0
    %v82 = vsel %vm79, %v76, 0
    %v84 = vsel %vm79, %v78, 0
    %v86 = vsel %vm79, %v77, 0
    %v88 = vand.u32 %v60, 4294901760
    %89 = vmatprep.subr.mxu0 %v88
    %v90 = vand.u32 %v59, 4294901760
    %91 = vmatpush1.msra.mxu0 %v90
    %v92 = vand.u32 %v62, 4294901760
    %93 = vmatprep.subr.mxu0 %v92
    %v94 = vand.u32 %v61, 4294901760
    %95 = vmatpush1.msra.mxu0 %v94
    %v96 = vand.u32 %v64, 4294901760
    %97 = vmatprep.subr.mxu0 %v96
    %v98 = vand.u32 %v63, 4294901760
    %99 = vmatpush1.msra.mxu0 %v98
    %v100 = vand.u32 %v66, 4294901760
    %101 = vmatprep.subr.mxu0 %v100
    %v102 = vand.u32 %v65, 4294901760
    %103 = vmatpush1.msra.mxu0 %v102
    %104 = vmatprep.subr.mxu0 0.0
    %105 = vmatpush1.msra.mxu0 0.0
    %106 = vmatprep.subr.mxu0 0.0
    %107 = vmatpush1.msra.mxu0 0.0
    %108 = vmatprep.subr.mxu0 0.0
    %109 = vmatpush1.msra.mxu0 0.0
    %110 = vmatprep.subr.mxu0 0.0
    %111 = vmatpush1.msra.mxu0 0.0
    %112 = vmatprep.subr.mxu0 0.0
    %113 = vmatpush1.msra.mxu0 0.0
    %114 = vmatprep.subr.mxu0 0.0
    %115 = vmatpush1.msra.mxu0 0.0
    %116 = vmatprep.subr.mxu0 0.0
    %117 = vmatpush1.msra.mxu0 0.0
    %118 = vmatprep.subr.mxu0 0.0
    %119 = vmatpush1.msra.mxu0 0.0
    %120 = vmatprep.subr.mxu0 0.0
    %121 = vmatpush1.msra.mxu0 0.0
    %122 = vmatprep.subr.mxu0 0.0
    %123 = vmatpush1.msra.mxu0 0.0
    %124 = vmatprep.subr.mxu0 0.0
    %125 = vmatpush1.msra.mxu0 0.0
    %126 = vmatprep.subr.mxu0 0.0
    %127 = vmatpush1.msra.mxu0 0.0
    %128 = vmatprep.subr.mxu0 0.0
    %129 = vmatpush1.msra.mxu0 0.0
    %130 = vmatprep.subr.mxu0 0.0
    %131 = vmatpush1.msra.mxu0 0.0
    %132 = vmatprep.subr.mxu0 0.0
    %133 = vmatpush1.msra.mxu0 0.0
    %134 = vmatprep.subr.mxu0 0.0
    %135 = vmatpush1.msra.mxu0 0.0
    %136 = vmatprep.subr.mxu0 0.0
    %137 = vmatpush1.msra.mxu0 0.0
    %138 = vmatprep.subr.mxu0 0.0
    %139 = vmatpush1.msra.mxu0 0.0
    %140 = vmatprep.subr.mxu0 0.0
    %141 = vmatpush1.msra.mxu0 0.0
    %142 = vmatprep.subr.mxu0 0.0
    %143 = vmatpush1.msra.mxu0 0.0
    %144 = vmatprep.subr.mxu0 0.0
    %145 = vmatpush1.msra.mxu0 0.0
    %146 = vmatprep.subr.mxu0 0.0
    %147 = vmatpush1.msra.mxu0 0.0
    %148 = vmatprep.subr.mxu0 0.0
    %149 = vmatpush1.msra.mxu0 0.0
    %150 = vmatprep.subr.mxu0 0.0
    %151 = vmatpush1.msra.mxu0 0.0
    %152 = vmatprep.subr.mxu0 0.0
    %153 = vmatpush1.msra.mxu0 0.0
    %154 = vmatprep.subr.mxu0 0.0
    %155 = vmatpush1.msra.mxu0 0.0
    %156 = vmatprep.subr.mxu0 0.0
    %157 = vmatpush1.msra.mxu0 0.0
    %158 = vmatprep.subr.mxu0 0.0
    %159 = vmatpush1.msra.mxu0 0.0
    %160 = vmatprep.mubr.f32.mxu0 0.0
    %v161 = vand.u32 %v80, 4294901760
    %v162 = vsub.f32 %v80, %v161
    %v163 = vand.u32 %v162, 4294901760
    %v164 = vsub.f32 %v162, %v163
    %v165 = vand.u32 %v164, 4294901760
    %166 = vmatmul.mubr.f32.gmra.mrb[0].mxu0 %v165
    %v167 = vpop.f32.mrb[0].mxu0
    %v168 = vadd.f32 0.0, %v167
    %v169 = vpop.f32.mrb[0].mxu0
    %v170 = vadd.f32 0.0, %v169
    %171 = vmatprep.mubr.f32.mxu0 0.0
    %v172 = vand.u32 %v82, 4294901760
    %v173 = vsub.f32 %v82, %v172
    %v174 = vand.u32 %v173, 4294901760
    %v175 = vsub.f32 %v173, %v174
    %v176 = vand.u32 %v175, 4294901760
    %177 = vmatmul.mubr.f32.gmra.mrb[0].mxu0 %v176
    %v178 = vpop.f32.mrb[0].mxu0
    %v179 = vadd.f32 0.0, %v178
    %v180 = vpop.f32.mrb[0].mxu0
    %v181 = vadd.f32 0.0, %v180
    %182 = vmatprep.mubr.f32.mxu0 0.0
    %v183 = vand.u32 %v84, 4294901760
    %v184 = vsub.f32 %v84, %v183
    %v185 = vand.u32 %v184, 4294901760
    %v186 = vsub.f32 %v184, %v185
    %v187 = vand.u32 %v186, 4294901760
    %188 = vmatmul.mubr.f32.gmra.mrb[0].mxu0 %v187
    %v189 = vpop.f32.mrb[0].mxu0
    %v190 = vadd.f32 0.0, %v189
    %v191 = vpop.f32.mrb[0].mxu0
    %v192 = vadd.f32 0.0, %v191
    %193 = vmatprep.mubr.f32.mxu0 0.0
    %v194 = vand.u32 %v86, 4294901760
    %v195 = vsub.f32 %v86, %v194
    %v196 = vand.u32 %v195, 4294901760
    %v197 = vsub.f32 %v195, %v196
    %v198 = vand.u32 %v197, 4294901760
    %199 = vmatmul.mubr.f32.gmra.mrb[0].mxu0 %v198
    %v200 = vpop.f32.mrb[0].mxu0
    %v201 = vadd.f32 0.0, %v200
    %v202 = vpop.f32.mrb[0].mxu0
    %v203 = vadd.f32 0.0, %v202
    %204 = vdwg.mxu0
    %v205 = vand.u32 %v60, 4294901760
    %v206 = vsub.f32 %v60, %v205
    %v207 = vand.u32 %v206, 4294901760
    %v208 = vsub.f32 %v206, %v207
    %v209 = vand.u32 %v208, 4294901760
    %210 = vmatprep.subr.mxu0 %v209
    %v211 = vand.u32 %v59, 4294901760
    %v212 = vsub.f32 %v59, %v211
    %v213 = vand.u32 %v212, 4294901760
    %v214 = vsub.f32 %v212, %v213
    %v215 = vand.u32 %v214, 4294901760
    %216 = vmatpush1.msra.mxu0 %v215
    %v217 = vand.u32 %v62, 4294901760
    %v218 = vsub.f32 %v62, %v217
    %v219 = vand.u32 %v218, 4294901760
    %v220 = vsub.f32 %v218, %v219
    %v221 = vand.u32 %v220, 4294901760
    %222 = vmatprep.subr.mxu0 %v221
    %v223 = vand.u32 %v61, 4294901760
    %v224 = vsub.f32 %v61, %v223
    %v225 = vand.u32 %v224, 4294901760
    %v226 = vsub.f32 %v224, %v225
    %v227 = vand.u32 %v226, 4294901760
    %228 = vmatpush1.msra.mxu0 %v227
    %v229 = vand.u32 %v64, 4294901760
    %v230 = vsub.f32 %v64, %v229
    %v231 = vand.u32 %v230, 4294901760
    %v232 = vsub.f32 %v230, %v231
    %v233 = vand.u32 %v232, 4294901760
    %234 = vmatprep.subr.mxu0 %v233
    %v235 = vand.u32 %v63, 4294901760
    %v236 = vsub.f32 %v63, %v235
    %v237 = vand.u32 %v236, 4294901760
    %v238 = vsub.f32 %v236, %v237
    %v239 = vand.u32 %v238, 4294901760
    %240 = vmatpush1.msra.mxu0 %v239
    %v241 = vand.u32 %v66, 4294901760
    %v242 = vsub.f32 %v66, %v241
    %v243 = vand.u32 %v242, 4294901760
    %v244 = vsub.f32 %v242, %v243
    %v245 = vand.u32 %v244, 4294901760
    %246 = vmatprep.subr.mxu0 %v245
    %v247 = vand.u32 %v65, 4294901760
    %v248 = vsub.f32 %v65, %v247
    %v249 = vand.u32 %v248, 4294901760
    %v250 = vsub.f32 %v248, %v249
    %v251 = vand.u32 %v250, 4294901760
    %252 = vmatpush1.msra.mxu0 %v251
    %253 = vmatprep.subr.mxu0 0.0
    %254 = vmatpush1.msra.mxu0 0.0
    %255 = vmatprep.subr.mxu0 0.0
    %256 = vmatpush1.msra.mxu0 0.0
    %257 = vmatprep.subr.mxu0 0.0
    %258 = vmatpush1.msra.mxu0 0.0
    %259 = vmatprep.subr.mxu0 0.0
    %260 = vmatpush1.msra.mxu0 0.0
    %261 = vmatprep.subr.mxu0 0.0
    %262 = vmatpush1.msra.mxu0 0.0
    %263 = vmatprep.subr.mxu0 0.0
    %264 = vmatpush1.msra.mxu0 0.0
    %265 = vmatprep.subr.mxu0 0.0
    %266 = vmatpush1.msra.mxu0 0.0
    %267 = vmatprep.subr.mxu0 0.0
    %268 = vmatpush1.msra.mxu0 0.0
    %269 = vmatprep.subr.mxu0 0.0
    %270 = vmatpush1.msra.mxu0 0.0
    %271 = vmatprep.subr.mxu0 0.0
    %272 = vmatpush1.msra.mxu0 0.0
    %273 = vmatprep.subr.mxu0 0.0
    %274 = vmatpush1.msra.mxu0 0.0
    %275 = vmatprep.subr.mxu0 0.0
    %276 = vmatpush1.msra.mxu0 0.0
    %277 = vmatprep.subr.mxu0 0.0
    %278 = vmatpush1.msra.mxu0 0.0
    %279 = vmatprep.subr.mxu0 0.0
    %280 = vmatpush1.msra.mxu0 0.0
    %281 = vmatprep.subr.mxu0 0.0
    %282 = vmatpush1.msra.mxu0 0.0
    %283 = vmatprep.subr.mxu0 0.0
    %284 = vmatpush1.msra.mxu0 0.0
    %285 = vmatprep.subr.mxu0 0.0
    %286 = vmatpush1.msra.mxu0 0.0
    %287 = vmatprep.subr.mxu0 0.0
    %288 = vmatpush1.msra.mxu0 0.0
    %289 = vmatprep.subr.mxu0 0.0
    %290 = vmatpush1.msra.mxu0 0.0
    %291 = vmatprep.subr.mxu0 0.0
    %292 = vmatpush1.msra.mxu0 0.0
    %293 = vmatprep.subr.mxu0 0.0
    %294 = vmatpush1.msra.mxu0 0.0
    %295 = vmatprep.subr.mxu0 0.0
    %296 = vmatpush1.msra.mxu0 0.0
    %297 = vmatprep.subr.mxu0 0.0
    %298 = vmatpush1.msra.mxu0 0.0
    %299 = vmatprep.subr.mxu0 0.0
    %300 = vmatpush1.msra.mxu0 0.0
    %301 = vmatprep.subr.mxu0 0.0
    %302 = vmatpush1.msra.mxu0 0.0
    %303 = vmatprep.subr.mxu0 0.0
    %304 = vmatpush1.msra.mxu0 0.0
    %305 = vmatprep.subr.mxu0 0.0
    %306 = vmatpush1.msra.mxu0 0.0
    %307 = vmatprep.subr.mxu0 0.0
    %308 = vmatpush1.msra.mxu0 0.0
    %309 = vmatprep.mubr.f32.mxu0 0.0
    %v310 = vand.u32 %v80, 4294901760
    %311 = vmatmul.mubr.f32.gmra.mrb[0].mxu0 %v310
    %v312 = vpop.f32.mrb[0].mxu0
    %v313 = vadd.f32 %v168, %v312
    %v314 = vpop.f32.mrb[0].mxu0
    %v315 = vadd.f32 %v170, %v314
    %316 = vmatprep.mubr.f32.mxu0 0.0
    %v317 = vand.u32 %v82, 4294901760
    %318 = vmatmul.mubr.f32.gmra.mrb[0].mxu0 %v317
    %v319 = vpop.f32.mrb[0].mxu0
    %v320 = vadd.f32 %v179, %v319
    %v321 = vpop.f32.mrb[0].mxu0
    %v322 = vadd.f32 %v181, %v321
    %323 = vmatprep.mubr.f32.mxu0 0.0
    %v324 = vand.u32 %v84, 4294901760
    %325 = vmatmul.mubr.f32.gmra.mrb[0].mxu0 %v324
    %v326 = vpop.f32.mrb[0].mxu0
    %v327 = vadd.f32 %v190, %v326
    %v328 = vpop.f32.mrb[0].mxu0
    %v329 = vadd.f32 %v192, %v328
    %330 = vmatprep.mubr.f32.mxu0 0.0
    %v331 = vand.u32 %v86, 4294901760
    %332 = vmatmul.mubr.f32.gmra.mrb[0].mxu0 %v331
    %v333 = vpop.f32.mrb[0].mxu0
    %v334 = vadd.f32 %v201, %v333
    %v335 = vpop.f32.mrb[0].mxu0
    %v336 = vadd.f32 %v203, %v335
    %337 = vdwg.mxu0
    %v338 = vand.u32 %v60, 4294901760
    %v339 = vsub.f32 %v60, %v338
    %340 = vmatprep.subr.mxu0 %v339
    %v341 = vand.u32 %v59, 4294901760
    %v342 = vsub.f32 %v59, %v341
    %343 = vmatpush1.msra.mxu0 %v342
    %v344 = vand.u32 %v62, 4294901760
    %v345 = vsub.f32 %v62, %v344
    %346 = vmatprep.subr.mxu0 %v345
    %v347 = vand.u32 %v61, 4294901760
    %v348 = vsub.f32 %v61, %v347
    %349 = vmatpush1.msra.mxu0 %v348
    %v350 = vand.u32 %v64, 4294901760
    %v351 = vsub.f32 %v64, %v350
    %352 = vmatprep.subr.mxu0 %v351
    %v353 = vand.u32 %v63, 4294901760
    %v354 = vsub.f32 %v63, %v353
    %355 = vmatpush1.msra.mxu0 %v354
    %v356 = vand.u32 %v66, 4294901760
    %v357 = vsub.f32 %v66, %v356
    %358 = vmatprep.subr.mxu0 %v357
    %v359 = vand.u32 %v65, 4294901760
    %v360 = vsub.f32 %v65, %v359
    %361 = vmatpush1.msra.mxu0 %v360
    %362 = vmatprep.subr.mxu0 0.0
    %363 = vmatpush1.msra.mxu0 0.0
    %364 = vmatprep.subr.mxu0 0.0
    %365 = vmatpush1.msra.mxu0 0.0
    %366 = vmatprep.subr.mxu0 0.0
    %367 = vmatpush1.msra.mxu0 0.0
    %368 = vmatprep.subr.mxu0 0.0
    %369 = vmatpush1.msra.mxu0 0.0
    %370 = vmatprep.subr.mxu0 0.0
    %371 = vmatpush1.msra.mxu0 0.0
    %372 = vmatprep.subr.mxu0 0.0
    %373 = vmatpush1.msra.mxu0 0.0
    %374 = vmatprep.subr.mxu0 0.0
    %375 = vmatpush1.msra.mxu0 0.0
    %376 = vmatprep.subr.mxu0 0.0
    %377 = vmatpush1.msra.mxu0 0.0
    %378 = vmatprep.subr.mxu0 0.0
    %379 = vmatpush1.msra.mxu0 0.0
    %380 = vmatprep.subr.mxu0 0.0
    %381 = vmatpush1.msra.mxu0 0.0
    %382 = vmatprep.subr.mxu0 0.0
    %383 = vmatpush1.msra.mxu0 0.0
    %384 = vmatprep.subr.mxu0 0.0
    %385 = vmatpush1.msra.mxu0 0.0
    %386 = vmatprep.subr.mxu0 0.0
    %387 = vmatpush1.msra.mxu0 0.0
    %388 = vmatprep.subr.mxu0 0.0
    %389 = vmatpush1.msra.mxu0 0.0
    %390 = vmatprep.subr.mxu0 0.0
    %391 = vmatpush1.msra.mxu0 0.0
    %392 = vmatprep.subr.mxu0 0.0
    %393 = vmatpush1.msra.mxu0 0.0
    %394 = vmatprep.subr.mxu0 0.0
    %395 = vmatpush1.msra.mxu0 0.0
    %396 = vmatprep.subr.mxu0 0.0
    %397 = vmatpush1.msra.mxu0 0.0
    %398 = vmatprep.subr.mxu0 0.0
    %399 = vmatpush1.msra.mxu0 0.0
    %400 = vmatprep.subr.mxu0 0.0
    %401 = vmatpush1.msra.mxu0 0.0
    %402 = vmatprep.subr.mxu0 0.0
    %403 = vmatpush1.msra.mxu0 0.0
    %404 = vmatprep.subr.mxu0 0.0
    %405 = vmatpush1.msra.mxu0 0.0
    %406 = vmatprep.subr.mxu0 0.0
    %407 = vmatpush1.msra.mxu0 0.0
    %408 = vmatprep.subr.mxu0 0.0
    %409 = vmatpush1.msra.mxu0 0.0
    %410 = vmatprep.subr.mxu0 0.0
    %411 = vmatpush1.msra.mxu0 0.0
    %412 = vmatprep.subr.mxu0 0.0
    %413 = vmatpush1.msra.mxu0 0.0
    %414 = vmatprep.subr.mxu0 0.0
    %415 = vmatpush1.msra.mxu0 0.0
    %416 = vmatprep.subr.mxu0 0.0
    %417 = vmatpush1.msra.mxu0 0.0
    %418 = vmatprep.mubr.f32.mxu0 0.0
    %v419 = vand.u32 %v80, 4294901760
    %v420 = vsub.f32 %v80, %v419
    %421 = vmatmul.mubr.f32.gmra.mrb[0].mxu0 %v420
    %v422 = vpop.f32.mrb[0].mxu0
    %v423 = vadd.f32 %v313, %v422
    %v424 = vpop.f32.mrb[0].mxu0
    %v425 = vadd.f32 %v315, %v424
    %426 = vmatprep.mubr.f32.mxu0 0.0
    %v427 = vand.u32 %v82, 4294901760
    %v428 = vsub.f32 %v82, %v427
    %429 = vmatmul.mubr.f32.gmra.mrb[0].mxu0 %v428
    %v430 = vpop.f32.mrb[0].mxu0
    %v431 = vadd.f32 %v320, %v430
    %v432 = vpop.f32.mrb[0].mxu0
    %v433 = vadd.f32 %v322, %v432
    %434 = vmatprep.mubr.f32.mxu0 0.0
    %v435 = vand.u32 %v84, 4294901760
    %v436 = vsub.f32 %v84, %v435
    %437 = vmatmul.mubr.f32.gmra.mrb[0].mxu0 %v436
    %v438 = vpop.f32.mrb[0].mxu0
    %v439 = vadd.f32 %v327, %v438
    %v440 = vpop.f32.mrb[0].mxu0
    %v441 = vadd.f32 %v329, %v440
    %442 = vmatprep.mubr.f32.mxu0 0.0
    %v443 = vand.u32 %v86, 4294901760
    %v444 = vsub.f32 %v86, %v443
    %445 = vmatmul.mubr.f32.gmra.mrb[0].mxu0 %v444
    %v446 = vpop.f32.mrb[0].mxu0
    %v447 = vadd.f32 %v334, %v446
    %v448 = vpop.f32.mrb[0].mxu0
    %v449 = vadd.f32 %v336, %v448
    %450 = vdwg.mxu0
    %v451 = vand.u32 %v60, 4294901760
    %452 = vmatprep.subr.mxu0 %v451
    %v453 = vand.u32 %v59, 4294901760
    %454 = vmatpush1.msra.mxu0 %v453
    %v455 = vand.u32 %v62, 4294901760
    %456 = vmatprep.subr.mxu0 %v455
    %v457 = vand.u32 %v61, 4294901760
    %458 = vmatpush1.msra.mxu0 %v457
    %v459 = vand.u32 %v64, 4294901760
    %460 = vmatprep.subr.mxu0 %v459
    %v461 = vand.u32 %v63, 4294901760
    %462 = vmatpush1.msra.mxu0 %v461
    %v463 = vand.u32 %v66, 4294901760
    %464 = vmatprep.subr.mxu0 %v463
    %v465 = vand.u32 %v65, 4294901760
    %466 = vmatpush1.msra.mxu0 %v465
    %467 = vmatprep.subr.mxu0 0.0
    %468 = vmatpush1.msra.mxu0 0.0
    %469 = vmatprep.subr.mxu0 0.0
    %470 = vmatpush1.msra.mxu0 0.0
    %471 = vmatprep.subr.mxu0 0.0
    %472 = vmatpush1.msra.mxu0 0.0
    %473 = vmatprep.subr.mxu0 0.0
    %474 = vmatpush1.msra.mxu0 0.0
    %475 = vmatprep.subr.mxu0 0.0
    %476 = vmatpush1.msra.mxu0 0.0
    %477 = vmatprep.subr.mxu0 0.0
    %478 = vmatpush1.msra.mxu0 0.0
    %479 = vmatprep.subr.mxu0 0.0
    %480 = vmatpush1.msra.mxu0 0.0
    %481 = vmatprep.subr.mxu0 0.0
    %482 = vmatpush1.msra.mxu0 0.0
    %483 = vmatprep.subr.mxu0 0.0
    %484 = vmatpush1.msra.mxu0 0.0
    %485 = vmatprep.subr.mxu0 0.0
    %486 = vmatpush1.msra.mxu0 0.0
    %487 = vmatprep.subr.mxu0 0.0
    %488 = vmatpush1.msra.mxu0 0.0
    %489 = vmatprep.subr.mxu0 0.0
    %490 = vmatpush1.msra.mxu0 0.0
    %491 = vmatprep.subr.mxu0 0.0
    %492 = vmatpush1.msra.mxu0 0.0
    %493 = vmatprep.subr.mxu0 0.0
    %494 = vmatpush1.msra.mxu0 0.0
    %495 = vmatprep.subr.mxu0 0.0
    %496 = vmatpush1.msra.mxu0 0.0
    %497 = vmatprep.subr.mxu0 0.0
    %498 = vmatpush1.msra.mxu0 0.0
    %499 = vmatprep.subr.mxu0 0.0
    %500 = vmatpush1.msra.mxu0 0.0
    %501 = vmatprep.subr.mxu0 0.0
    %502 = vmatpush1.msra.mxu0 0.0
    %503 = vmatprep.subr.mxu0 0.0
    %504 = vmatpush1.msra.mxu0 0.0
    %505 = vmatprep.subr.mxu0 0.0
    %506 = vmatpush1.msra.mxu0 0.0
    %507 = vmatprep.subr.mxu0 0.0
    %508 = vmatpush1.msra.mxu0 0.0
    %509 = vmatprep.subr.mxu0 0.0
    %510 = vmatpush1.msra.mxu0 0.0
    %511 = vmatprep.subr.mxu0 0.0
    %512 = vmatpush1.msra.mxu0 0.0
    %513 = vmatprep.subr.mxu0 0.0
    %514 = vmatpush1.msra.mxu0 0.0
    %515 = vmatprep.subr.mxu0 0.0
    %516 = vmatpush1.msra.mxu0 0.0
    %517 = vmatprep.subr.mxu0 0.0
    %518 = vmatpush1.msra.mxu0 0.0
    %519 = vmatprep.subr.mxu0 0.0
    %520 = vmatpush1.msra.mxu0 0.0
    %521 = vmatprep.subr.mxu0 0.0
    %522 = vmatpush1.msra.mxu0 0.0
    %523 = vmatprep.mubr.f32.mxu0 0.0
    %v524 = vand.u32 %v80, 4294901760
    %v525 = vsub.f32 %v80, %v524
    %v526 = vand.u32 %v525, 4294901760
    %527 = vmatmul.mubr.f32.gmra.mrb[0].mxu0 %v526
    %v528 = vpop.f32.mrb[0].mxu0
    %v529 = vadd.f32 %v423, %v528
    %v530 = vpop.f32.mrb[0].mxu0
    %v531 = vadd.f32 %v425, %v530
    %532 = vmatprep.mubr.f32.mxu0 0.0
    %v533 = vand.u32 %v82, 4294901760
    %v534 = vsub.f32 %v82, %v533
    %v535 = vand.u32 %v534, 4294901760
    %536 = vmatmul.mubr.f32.gmra.mrb[0].mxu0 %v535
    %v537 = vpop.f32.mrb[0].mxu0
    %v538 = vadd.f32 %v431, %v537
    %v539 = vpop.f32.mrb[0].mxu0
    %v540 = vadd.f32 %v433, %v539
    %541 = vmatprep.mubr.f32.mxu0 0.0
    %v542 = vand.u32 %v84, 4294901760
    %v543 = vsub.f32 %v84, %v542
    %v544 = vand.u32 %v543, 4294901760
    %545 = vmatmul.mubr.f32.gmra.mrb[0].mxu0 %v544
    %v546 = vpop.f32.mrb[0].mxu0
    %v547 = vadd.f32 %v439, %v546
    %v548 = vpop.f32.mrb[0].mxu0
    %v549 = vadd.f32 %v441, %v548
    %550 = vmatprep.mubr.f32.mxu0 0.0
    %v551 = vand.u32 %v86, 4294901760
    %v552 = vsub.f32 %v86, %v551
    %v553 = vand.u32 %v552, 4294901760
    %554 = vmatmul.mubr.f32.gmra.mrb[0].mxu0 %v553
    %v555 = vpop.f32.mrb[0].mxu0
    %v556 = vadd.f32 %v447, %v555
    %v557 = vpop.f32.mrb[0].mxu0
    %v558 = vadd.f32 %v449, %v557
    %559 = vdwg.mxu0
    %v560 = vand.u32 %v60, 4294901760
    %v561 = vsub.f32 %v60, %v560
    %v562 = vand.u32 %v561, 4294901760
    %563 = vmatprep.subr.mxu0 %v562
    %v564 = vand.u32 %v59, 4294901760
    %v565 = vsub.f32 %v59, %v564
    %v566 = vand.u32 %v565, 4294901760
    %567 = vmatpush1.msra.mxu0 %v566
    %v568 = vand.u32 %v62, 4294901760
    %v569 = vsub.f32 %v62, %v568
    %v570 = vand.u32 %v569, 4294901760
    %571 = vmatprep.subr.mxu0 %v570
    %v572 = vand.u32 %v61, 4294901760
    %v573 = vsub.f32 %v61, %v572
    %v574 = vand.u32 %v573, 4294901760
    %575 = vmatpush1.msra.mxu0 %v574
    %v576 = vand.u32 %v64, 4294901760
    %v577 = vsub.f32 %v64, %v576
    %v578 = vand.u32 %v577, 4294901760
    %579 = vmatprep.subr.mxu0 %v578
    %v580 = vand.u32 %v63, 4294901760
    %v581 = vsub.f32 %v63, %v580
    %v582 = vand.u32 %v581, 4294901760
    %583 = vmatpush1.msra.mxu0 %v582
    %v584 = vand.u32 %v66, 4294901760
    %v585 = vsub.f32 %v66, %v584
    %v586 = vand.u32 %v585, 4294901760
    %587 = vmatprep.subr.mxu0 %v586
    %v588 = vand.u32 %v65, 4294901760
    %v589 = vsub.f32 %v65, %v588
    %v590 = vand.u32 %v589, 4294901760
    %591 = vmatpush1.msra.mxu0 %v590
    %592 = vmatprep.subr.mxu0 0.0
    %593 = vmatpush1.msra.mxu0 0.0
    %594 = vmatprep.subr.mxu0 0.0
    %595 = vmatpush1.msra.mxu0 0.0
    %596 = vmatprep.subr.mxu0 0.0
    %597 = vmatpush1.msra.mxu0 0.0
    %598 = vmatprep.subr.mxu0 0.0
    %599 = vmatpush1.msra.mxu0 0.0
    %600 = vmatprep.subr.mxu0 0.0
    %601 = vmatpush1.msra.mxu0 0.0
    %602 = vmatprep.subr.mxu0 0.0
    %603 = vmatpush1.msra.mxu0 0.0
    %604 = vmatprep.subr.mxu0 0.0
    %605 = vmatpush1.msra.mxu0 0.0
    %606 = vmatprep.subr.mxu0 0.0
    %607 = vmatpush1.msra.mxu0 0.0
    %608 = vmatprep.subr.mxu0 0.0
    %609 = vmatpush1.msra.mxu0 0.0
    %610 = vmatprep.subr.mxu0 0.0
    %611 = vmatpush1.msra.mxu0 0.0
    %612 = vmatprep.subr.mxu0 0.0
    %613 = vmatpush1.msra.mxu0 0.0
    %614 = vmatprep.subr.mxu0 0.0
    %615 = vmatpush1.msra.mxu0 0.0
    %616 = vmatprep.subr.mxu0 0.0
    %617 = vmatpush1.msra.mxu0 0.0
    %618 = vmatprep.subr.mxu0 0.0
    %619 = vmatpush1.msra.mxu0 0.0
    %620 = vmatprep.subr.mxu0 0.0
    %621 = vmatpush1.msra.mxu0 0.0
    %622 = vmatprep.subr.mxu0 0.0
    %623 = vmatpush1.msra.mxu0 0.0
    %624 = vmatprep.subr.mxu0 0.0
    %625 = vmatpush1.msra.mxu0 0.0
    %626 = vmatprep.subr.mxu0 0.0
    %627 = vmatpush1.msra.mxu0 0.0
    %628 = vmatprep.subr.mxu0 0.0
    %629 = vmatpush1.msra.mxu0 0.0
    %630 = vmatprep.subr.mxu0 0.0
    %631 = vmatpush1.msra.mxu0 0.0
    %632 = vmatprep.subr.mxu0 0.0
    %633 = vmatpush1.msra.mxu0 0.0
    %634 = vmatprep.subr.mxu0 0.0
    %635 = vmatpush1.msra.mxu0 0.0
    %636 = vmatprep.subr.mxu0 0.0
    %637 = vmatpush1.msra.mxu0 0.0
    %638 = vmatprep.subr.mxu0 0.0
    %639 = vmatpush1.msra.mxu0 0.0
    %640 = vmatprep.subr.mxu0 0.0
    %641 = vmatpush1.msra.mxu0 0.0
    %642 = vmatprep.subr.mxu0 0.0
    %643 = vmatpush1.msra.mxu0 0.0
    %644 = vmatprep.subr.mxu0 0.0
    %645 = vmatpush1.msra.mxu0 0.0
    %646 = vmatprep.subr.mxu0 0.0
    %647 = vmatpush1.msra.mxu0 0.0
    %648 = vmatprep.mubr.f32.mxu0 0.0
    %v649 = vand.u32 %v80, 4294901760
    %650 = vmatmul.mubr.f32.gmra.mrb[0].mxu0 %v649
    %v651 = vpop.f32.mrb[0].mxu0
    %v652 = vadd.f32 %v529, %v651
    %v653 = vpop.f32.mrb[0].mxu0
    %v654 = vadd.f32 %v531, %v653
    %655 = vmatprep.mubr.f32.mxu0 0.0
    %v656 = vand.u32 %v82, 4294901760
    %657 = vmatmul.mubr.f32.gmra.mrb[0].mxu0 %v656
    %v658 = vpop.f32.mrb[0].mxu0
    %v659 = vadd.f32 %v538, %v658
    %v660 = vpop.f32.mrb[0].mxu0
    %v661 = vadd.f32 %v540, %v660
    %662 = vmatprep.mubr.f32.mxu0 0.0
    %v663 = vand.u32 %v84, 4294901760
    %664 = vmatmul.mubr.f32.gmra.mrb[0].mxu0 %v663
    %v665 = vpop.f32.mrb[0].mxu0
    %v666 = vadd.f32 %v547, %v665
    %v667 = vpop.f32.mrb[0].mxu0
    %v668 = vadd.f32 %v549, %v667
    %669 = vmatprep.mubr.f32.mxu0 0.0
    %v670 = vand.u32 %v86, 4294901760
    %671 = vmatmul.mubr.f32.gmra.mrb[0].mxu0 %v670
    %v672 = vpop.f32.mrb[0].mxu0
    %v673 = vadd.f32 %v556, %v672
    %v674 = vpop.f32.mrb[0].mxu0
    %v675 = vadd.f32 %v558, %v674
    %676 = vdwg.mxu0
    %v677 = vand.u32 %v60, 4294901760
    %678 = vmatprep.subr.mxu0 %v677
    %v679 = vand.u32 %v59, 4294901760
    %680 = vmatpush1.msra.mxu0 %v679
    %v681 = vand.u32 %v62, 4294901760
    %682 = vmatprep.subr.mxu0 %v681
    %v683 = vand.u32 %v61, 4294901760
    %684 = vmatpush1.msra.mxu0 %v683
    %v685 = vand.u32 %v64, 4294901760
    %686 = vmatprep.subr.mxu0 %v685
    %v687 = vand.u32 %v63, 4294901760
    %688 = vmatpush1.msra.mxu0 %v687
    %v689 = vand.u32 %v66, 4294901760
    %690 = vmatprep.subr.mxu0 %v689
    %v691 = vand.u32 %v65, 4294901760
    %692 = vmatpush1.msra.mxu0 %v691
    %693 = vmatprep.subr.mxu0 0.0
    %694 = vmatpush1.msra.mxu0 0.0
    %695 = vmatprep.subr.mxu0 0.0
    %696 = vmatpush1.msra.mxu0 0.0
    %697 = vmatprep.subr.mxu0 0.0
    %698 = vmatpush1.msra.mxu0 0.0
    %699 = vmatprep.subr.mxu0 0.0
    %700 = vmatpush1.msra.mxu0 0.0
    %701 = vmatprep.subr.mxu0 0.0
    %702 = vmatpush1.msra.mxu0 0.0
    %703 = vmatprep.subr.mxu0 0.0
    %704 = vmatpush1.msra.mxu0 0.0
    %705 = vmatprep.subr.mxu0 0.0
    %706 = vmatpush1.msra.mxu0 0.0
    %707 = vmatprep.subr.mxu0 0.0
    %708 = vmatpush1.msra.mxu0 0.0
    %709 = vmatprep.subr.mxu0 0.0
    %710 = vmatpush1.msra.mxu0 0.0
    %711 = vmatprep.subr.mxu0 0.0
    %712 = vmatpush1.msra.mxu0 0.0
    %713 = vmatprep.subr.mxu0 0.0
    %714 = vmatpush1.msra.mxu0 0.0
    %715 = vmatprep.subr.mxu0 0.0
    %716 = vmatpush1.msra.mxu0 0.0
    %717 = vmatprep.subr.mxu0 0.0
    %718 = vmatpush1.msra.mxu0 0.0
    %719 = vmatprep.subr.mxu0 0.0
    %720 = vmatpush1.msra.mxu0 0.0
    %721 = vmatprep.subr.mxu0 0.0
    %722 = vmatpush1.msra.mxu0 0.0
    %723 = vmatprep.subr.mxu0 0.0
    %724 = vmatpush1.msra.mxu0 0.0
    %725 = vmatprep.subr.mxu0 0.0
    %726 = vmatpush1.msra.mxu0 0.0
    %727 = vmatprep.subr.mxu0 0.0
    %728 = vmatpush1.msra.mxu0 0.0
    %729 = vmatprep.subr.mxu0 0.0
    %730 = vmatpush1.msra.mxu0 0.0
    %731 = vmatprep.subr.mxu0 0.0
    %732 = vmatpush1.msra.mxu0 0.0
    %733 = vmatprep.subr.mxu0 0.0
    %734 = vmatpush1.msra.mxu0 0.0
    %735 = vmatprep.subr.mxu0 0.0
    %736 = vmatpush1.msra.mxu0 0.0
    %737 = vmatprep.subr.mxu0 0.0
    %738 = vmatpush1.msra.mxu0 0.0
    %739 = vmatprep.subr.mxu0 0.0
    %740 = vmatpush1.msra.mxu0 0.0
    %741 = vmatprep.subr.mxu0 0.0
    %742 = vmatpush1.msra.mxu0 0.0
    %743 = vmatprep.subr.mxu0 0.0
    %744 = vmatpush1.msra.mxu0 0.0
    %745 = vmatprep.subr.mxu0 0.0
    %746 = vmatpush1.msra.mxu0 0.0
    %747 = vmatprep.subr.mxu0 0.0
    %748 = vmatpush1.msra.mxu0 0.0
    %749 = vmatprep.mubr.f32.mxu0 0.0
    %v750 = vand.u32 %v80, 4294901760
    %751 = vmatmul.mubr.f32.gmra.mrb[0].mxu0 %v750
    %v752 = vpop.f32.mrb[0].mxu0
    %v753 = vadd.f32 %v652, %v752
    %v754 = vpop.f32.mrb[0].mxu0
    %v755 = vadd.f32 %v654, %v754
    %756 = vmatprep.mubr.f32.mxu0 0.0
    %v757 = vand.u32 %v82, 4294901760
    %758 = vmatmul.mubr.f32.gmra.mrb[0].mxu0 %v757
    %v759 = vpop.f32.mrb[0].mxu0
    %v760 = vadd.f32 %v659, %v759
    %v761 = vpop.f32.mrb[0].mxu0
    %v762 = vadd.f32 %v661, %v761
    %763 = vmatprep.mubr.f32.mxu0 0.0
    %v764 = vand.u32 %v84, 4294901760
    %765 = vmatmul.mubr.f32.gmra.mrb[0].mxu0 %v764
    %v766 = vpop.f32.mrb[0].mxu0
    %v767 = vadd.f32 %v666, %v766
    %v768 = vpop.f32.mrb[0].mxu0
    %v769 = vadd.f32 %v668, %v768
    %770 = vmatprep.mubr.f32.mxu0 0.0
    %v771 = vand.u32 %v86, 4294901760
    %772 = vmatmul.mubr.f32.gmra.mrb[0].mxu0 %v771
    %v773 = vpop.f32.mrb[0].mxu0
    %v774 = vadd.f32 %v673, %v773
    %v775 = vpop.f32.mrb[0].mxu0
    %v776 = vadd.f32 %v675, %v775
    %777 = vdwg.mxu0
    %s778 = scalar_lea.vmem %s1, 128
    %v779 = vld [vmem:[%s778] sm:$0xff]
    %v780 = vld [vmem:[%s778 + $0x8] sm:$0xff]
    %v781 = vld [vmem:[%s778 + $0x10] sm:$0xff]
    %v782 = vld [vmem:[%s778 + $0x18] sm:$0xff]
    %v783 = vld [vmem:[%s778 + $0x20] sm:$0xff]
    %v784 = vld [vmem:[%s778 + $0x28] sm:$0xff]
    %v785 = vld [vmem:[%s778 + $0x30] sm:$0xff]
    %v786 = vld [vmem:[%s778 + $0x38] sm:$0xff]
    %s787 = scalar_lea.vmem %s1, 192
    %v788 = vld [vmem:[%s787] sm:$0xff]
    %v789 = vld [vmem:[%s787 + $0x8] sm:$0xff]
    %v790 = vld [vmem:[%s787 + $0x10] sm:$0xff]
    %v791 = vld [vmem:[%s787 + $0x18] sm:$0xff]
    %v792 = vld [vmem:[%s787 + $0x20] sm:$0xff]
    %v793 = vld [vmem:[%s787 + $0x28] sm:$0xff]
    %v794 = vld [vmem:[%s787 + $0x30] sm:$0xff]
    %v795 = vld [vmem:[%s787 + $0x38] sm:$0xff]
    %vm796 = vcmask 1044480
    %v797 = vrot.slane %v46, 3
    %v798 = vrot.slane %v47, 3
    %v799 = vsel %vm796, %v797, %v798
    %v800 = vrot.slane %v48, 3
    %v801 = vsel %vm796, %v798, %v800
    %v802 = vrot.slane %v49, 3
    %v803 = vsel %vm796, %v800, %v802
    %v804 = vsel %vm79, %v799, 0
    %v806 = vsel %vm79, %v801, 0
    %v808 = vsel %vm79, %v803, 0
    %v810 = vsel %vm79, %v802, 0
    %v812 = vand.u32 %v789, 4294901760
    %813 = vmatprep.subr.mxu0 %v812
    %v814 = vand.u32 %v788, 4294901760
    %815 = vmatpush1.msra.mxu0 %v814
    %v816 = vand.u32 %v791, 4294901760
    %817 = vmatprep.subr.mxu0 %v816
    %v818 = vand.u32 %v790, 4294901760
    %819 = vmatpush1.msra.mxu0 %v818
    %v820 = vand.u32 %v793, 4294901760
    %821 = vmatprep.subr.mxu0 %v820
    %v822 = vand.u32 %v792, 4294901760
    %823 = vmatpush1.msra.mxu0 %v822
    %v824 = vand.u32 %v795, 4294901760
    %825 = vmatprep.subr.mxu0 %v824
    %v826 = vand.u32 %v794, 4294901760
    %827 = vmatpush1.msra.mxu0 %v826
    %828 = vmatprep.subr.mxu0 0.0
    %829 = vmatpush1.msra.mxu0 0.0
    %830 = vmatprep.subr.mxu0 0.0
    %831 = vmatpush1.msra.mxu0 0.0
    %832 = vmatprep.subr.mxu0 0.0
    %833 = vmatpush1.msra.mxu0 0.0
    %834 = vmatprep.subr.mxu0 0.0
    %835 = vmatpush1.msra.mxu0 0.0
    %836 = vmatprep.subr.mxu0 0.0
    %837 = vmatpush1.msra.mxu0 0.0
    %838 = vmatprep.subr.mxu0 0.0
    %839 = vmatpush1.msra.mxu0 0.0
    %840 = vmatprep.subr.mxu0 0.0
    %841 = vmatpush1.msra.mxu0 0.0
    %842 = vmatprep.subr.mxu0 0.0
    %843 = vmatpush1.msra.mxu0 0.0
    %844 = vmatprep.subr.mxu0 0.0
    %845 = vmatpush1.msra.mxu0 0.0
    %846 = vmatprep.subr.mxu0 0.0
    %847 = vmatpush1.msra.mxu0 0.0
    %848 = vmatprep.subr.mxu0 0.0
    %849 = vmatpush1.msra.mxu0 0.0
    %850 = vmatprep.subr.mxu0 0.0
    %851 = vmatpush1.msra.mxu0 0.0
    %852 = vmatprep.subr.mxu0 0.0
    %853 = vmatpush1.msra.mxu0 0.0
    %854 = vmatprep.subr.mxu0 0.0
    %855 = vmatpush1.msra.mxu0 0.0
    %856 = vmatprep.subr.mxu0 0.0
    %857 = vmatpush1.msra.mxu0 0.0
    %858 = vmatprep.subr.mxu0 0.0
    %859 = vmatpush1.msra.mxu0 0.0
    %860 = vmatprep.subr.mxu0 0.0
    %861 = vmatpush1.msra.mxu0 0.0
    %862 = vmatprep.subr.mxu0 0.0
    %863 = vmatpush1.msra.mxu0 0.0
    %864 = vmatprep.subr.mxu0 0.0
    %865 = vmatpush1.msra.mxu0 0.0
    %866 = vmatprep.subr.mxu0 0.0
    %867 = vmatpush1.msra.mxu0 0.0
    %868 = vmatprep.subr.mxu0 0.0
    %869 = vmatpush1.msra.mxu0 0.0
    %870 = vmatprep.subr.mxu0 0.0
    %871 = vmatpush1.msra.mxu0 0.0
    %872 = vmatprep.subr.mxu0 0.0
    %873 = vmatpush1.msra.mxu0 0.0
    %874 = vmatprep.subr.mxu0 0.0
    %875 = vmatpush1.msra.mxu0 0.0
    %876 = vmatprep.subr.mxu0 0.0
    %877 = vmatpush1.msra.mxu0 0.0
    %878 = vmatprep.subr.mxu0 0.0
    %879 = vmatpush1.msra.mxu0 0.0
    %880 = vmatprep.subr.mxu0 0.0
    %881 = vmatpush1.msra.mxu0 0.0
    %882 = vmatprep.subr.mxu0 0.0
    %883 = vmatpush1.msra.mxu0 0.0
    %884 = vmatprep.mubr.f32.mxu0 0.0
    %v885 = vand.u32 %v804, 4294901760
    %v886 = vsub.f32 %v804, %v885
    %v887 = vand.u32 %v886, 4294901760
    %v888 = vsub.f32 %v886, %v887
    %v889 = vand.u32 %v888, 4294901760
    %890 = vmatmul.mubr.f32.gmra.mrb[0].mxu0 %v889
    %v891 = vpop.f32.mrb[0].mxu0
    %v892 = vadd.f32 0.0, %v891
    %v893 = vpop.f32.mrb[0].mxu0
    %v894 = vadd.f32 0.0, %v893
    %895 = vmatprep.mubr.f32.mxu0 0.0
    %v896 = vand.u32 %v806, 4294901760
    %v897 = vsub.f32 %v806, %v896
    %v898 = vand.u32 %v897, 4294901760
    %v899 = vsub.f32 %v897, %v898
    %v900 = vand.u32 %v899, 4294901760
    %901 = vmatmul.mubr.f32.gmra.mrb[0].mxu0 %v900
    %v902 = vpop.f32.mrb[0].mxu0
    %v903 = vadd.f32 0.0, %v902
    %v904 = vpop.f32.mrb[0].mxu0
    %v905 = vadd.f32 0.0, %v904
    %906 = vmatprep.mubr.f32.mxu0 0.0
    %v907 = vand.u32 %v808, 4294901760
    %v908 = vsub.f32 %v808, %v907
    %v909 = vand.u32 %v908, 4294901760
    %v910 = vsub.f32 %v908, %v909
    %v911 = vand.u32 %v910, 4294901760
    %912 = vmatmul.mubr.f32.gmra.mrb[0].mxu0 %v911
    %v913 = vpop.f32.mrb[0].mxu0
    %v914 = vadd.f32 0.0, %v913
    %v915 = vpop.f32.mrb[0].mxu0
    %v916 = vadd.f32 0.0, %v915
    %917 = vmatprep.mubr.f32.mxu0 0.0
    %v918 = vand.u32 %v810, 4294901760
    %v919 = vsub.f32 %v810, %v918
    %v920 = vand.u32 %v919, 4294901760
    %v921 = vsub.f32 %v919, %v920
    %v922 = vand.u32 %v921, 4294901760
    %923 = vmatmul.mubr.f32.gmra.mrb[0].mxu0 %v922
    %v924 = vpop.f32.mrb[0].mxu0
    %v925 = vadd.f32 0.0, %v924
    %v926 = vpop.f32.mrb[0].mxu0
    %v927 = vadd.f32 0.0, %v926
    %928 = vdwg.mxu0
    %v929 = vand.u32 %v789, 4294901760
    %v930 = vsub.f32 %v789, %v929
    %v931 = vand.u32 %v930, 4294901760
    %v932 = vsub.f32 %v930, %v931
    %v933 = vand.u32 %v932, 4294901760
    %934 = vmatprep.subr.mxu0 %v933
    %v935 = vand.u32 %v788, 4294901760
    %v936 = vsub.f32 %v788, %v935
    %v937 = vand.u32 %v936, 4294901760
    %v938 = vsub.f32 %v936, %v937
    %v939 = vand.u32 %v938, 4294901760
    %940 = vmatpush1.msra.mxu0 %v939
    %v941 = vand.u32 %v791, 4294901760
    %v942 = vsub.f32 %v791, %v941
    %v943 = vand.u32 %v942, 4294901760
    %v944 = vsub.f32 %v942, %v943
    %v945 = vand.u32 %v944, 4294901760
    %946 = vmatprep.subr.mxu0 %v945
    %v947 = vand.u32 %v790, 4294901760
    %v948 = vsub.f32 %v790, %v947
    %v949 = vand.u32 %v948, 4294901760
    %v950 = vsub.f32 %v948, %v949
    %v951 = vand.u32 %v950, 4294901760
    %952 = vmatpush1.msra.mxu0 %v951
    %v953 = vand.u32 %v793, 4294901760
    %v954 = vsub.f32 %v793, %v953
    %v955 = vand.u32 %v954, 4294901760
    %v956 = vsub.f32 %v954, %v955
    %v957 = vand.u32 %v956, 4294901760
    %958 = vmatprep.subr.mxu0 %v957
    %v959 = vand.u32 %v792, 4294901760
    %v960 = vsub.f32 %v792, %v959
    %v961 = vand.u32 %v960, 4294901760
    %v962 = vsub.f32 %v960, %v961
    %v963 = vand.u32 %v962, 4294901760
    %964 = vmatpush1.msra.mxu0 %v963
    %v965 = vand.u32 %v795, 4294901760
    %v966 = vsub.f32 %v795, %v965
    %v967 = vand.u32 %v966, 4294901760
    %v968 = vsub.f32 %v966, %v967
    %v969 = vand.u32 %v968, 4294901760
    %970 = vmatprep.subr.mxu0 %v969
    %v971 = vand.u32 %v794, 4294901760
    %v972 = vsub.f32 %v794, %v971
    %v973 = vand.u32 %v972, 4294901760
    %v974 = vsub.f32 %v972, %v973
    %v975 = vand.u32 %v974, 4294901760
    %976 = vmatpush1.msra.mxu0 %v975
    %977 = vmatprep.subr.mxu0 0.0
    %978 = vmatpush1.msra.mxu0 0.0
    %979 = vmatprep.subr.mxu0 0.0
    %980 = vmatpush1.msra.mxu0 0.0
    %981 = vmatprep.subr.mxu0 0.0
    %982 = vmatpush1.msra.mxu0 0.0
    %983 = vmatprep.subr.mxu0 0.0
    %984 = vmatpush1.msra.mxu0 0.0
    %985 = vmatprep.subr.mxu0 0.0
    %986 = vmatpush1.msra.mxu0 0.0
    %987 = vmatprep.subr.mxu0 0.0
    %988 = vmatpush1.msra.mxu0 0.0
    %989 = vmatprep.subr.mxu0 0.0
    %990 = vmatpush1.msra.mxu0 0.0
    %991 = vmatprep.subr.mxu0 0.0
    %992 = vmatpush1.msra.mxu0 0.0
    %993 = vmatprep.subr.mxu0 0.0
    %994 = vmatpush1.msra.mxu0 0.0
    %995 = vmatprep.subr.mxu0 0.0
    %996 = vmatpush1.msra.mxu0 0.0
    %997 = vmatprep.subr.mxu0 0.0
    %998 = vmatpush1.msra.mxu0 0.0
    %999 = vmatprep.subr.mxu0 0.0
    %1000 = vmatpush1.msra.mxu0 0.0
    %1001 = vmatprep.subr.mxu0 0.0
    %1002 = vmatpush1.msra.mxu0 0.0
    %1003 = vmatprep.subr.mxu0 0.0
    %1004 = vmatpush1.msra.mxu0 0.0
    %1005 = vmatprep.subr.mxu0 0.0
    %1006 = vmatpush1.msra.mxu0 0.0
    %1007 = vmatprep.subr.mxu0 0.0
    %1008 = vmatpush1.msra.mxu0 0.0
    %1009 = vmatprep.subr.mxu0 0.0
    %1010 = vmatpush1.msra.mxu0 0.0
    %1011 = vmatprep.subr.mxu0 0.0
    %1012 = vmatpush1.msra.mxu0 0.0
    %1013 = vmatprep.subr.mxu0 0.0
    %1014 = vmatpush1.msra.mxu0 0.0
    %1015 = vmatprep.subr.mxu0 0.0
    %1016 = vmatpush1.msra.mxu0 0.0
    %1017 = vmatprep.subr.mxu0 0.0
    %1018 = vmatpush1.msra.mxu0 0.0
    %1019 = vmatprep.subr.mxu0 0.0
    %1020 = vmatpush1.msra.mxu0 0.0
    %1021 = vmatprep.subr.mxu0 0.0
    %1022 = vmatpush1.msra.mxu0 0.0
    %1023 = vmatprep.subr.mxu0 0.0
    %1024 = vmatpush1.msra.mxu0 0.0
    %1025 = vmatprep.subr.mxu0 0.0
    %1026 = vmatpush1.msra.mxu0 0.0
    %1027 = vmatprep.subr.mxu0 0.0
    %1028 = vmatpush1.msra.mxu0 0.0
    %1029 = vmatprep.subr.mxu0 0.0
    %1030 = vmatpush1.msra.mxu0 0.0
    %1031 = vmatprep.subr.mxu0 0.0
    %1032 = vmatpush1.msra.mxu0 0.0
    %1033 = vmatprep.mubr.f32.mxu0 0.0
    %v1034 = vand.u32 %v804, 4294901760
    %1035 = vmatmul.mubr.f32.gmra.mrb[0].mxu0 %v1034
    %v1036 = vpop.f32.mrb[0].mxu0
    %v1037 = vadd.f32 %v892, %v1036
    %v1038 = vpop.f32.mrb[0].mxu0
    %v1039 = vadd.f32 %v894, %v1038
    %1040 = vmatprep.mubr.f32.mxu0 0.0
    %v1041 = vand.u32 %v806, 4294901760
    %1042 = vmatmul.mubr.f32.gmra.mrb[0].mxu0 %v1041
    %v1043 = vpop.f32.mrb[0].mxu0
    %v1044 = vadd.f32 %v903, %v1043
    %v1045 = vpop.f32.mrb[0].mxu0
    %v1046 = vadd.f32 %v905, %v1045
    %1047 = vmatprep.mubr.f32.mxu0 0.0
    %v1048 = vand.u32 %v808, 4294901760
    %1049 = vmatmul.mubr.f32.gmra.mrb[0].mxu0 %v1048
    %v1050 = vpop.f32.mrb[0].mxu0
    %v1051 = vadd.f32 %v914, %v1050
    %v1052 = vpop.f32.mrb[0].mxu0
    %v1053 = vadd.f32 %v916, %v1052
    %1054 = vmatprep.mubr.f32.mxu0 0.0
    %v1055 = vand.u32 %v810, 4294901760
    %1056 = vmatmul.mubr.f32.gmra.mrb[0].mxu0 %v1055
    %v1057 = vpop.f32.mrb[0].mxu0
    %v1058 = vadd.f32 %v925, %v1057
    %v1059 = vpop.f32.mrb[0].mxu0
    %v1060 = vadd.f32 %v927, %v1059
    %1061 = vdwg.mxu0
    %v1062 = vand.u32 %v789, 4294901760
    %v1063 = vsub.f32 %v789, %v1062
    %1064 = vmatprep.subr.mxu0 %v1063
    %v1065 = vand.u32 %v788, 4294901760
    %v1066 = vsub.f32 %v788, %v1065
    %1067 = vmatpush1.msra.mxu0 %v1066
    %v1068 = vand.u32 %v791, 4294901760
    %v1069 = vsub.f32 %v791, %v1068
    %1070 = vmatprep.subr.mxu0 %v1069
    %v1071 = vand.u32 %v790, 4294901760
    %v1072 = vsub.f32 %v790, %v1071
    %1073 = vmatpush1.msra.mxu0 %v1072
    %v1074 = vand.u32 %v793, 4294901760
    %v1075 = vsub.f32 %v793, %v1074
    %1076 = vmatprep.subr.mxu0 %v1075
    %v1077 = vand.u32 %v792, 4294901760
    %v1078 = vsub.f32 %v792, %v1077
    %1079 = vmatpush1.msra.mxu0 %v1078
    %v1080 = vand.u32 %v795, 4294901760
    %v1081 = vsub.f32 %v795, %v1080
    %1082 = vmatprep.subr.mxu0 %v1081
    %v1083 = vand.u32 %v794, 4294901760
    %v1084 = vsub.f32 %v794, %v1083
    %1085 = vmatpush1.msra.mxu0 %v1084
    %1086 = vmatprep.subr.mxu0 0.0
    %1087 = vmatpush1.msra.mxu0 0.0
    %1088 = vmatprep.subr.mxu0 0.0
    %1089 = vmatpush1.msra.mxu0 0.0
    %1090 = vmatprep.subr.mxu0 0.0
    %1091 = vmatpush1.msra.mxu0 0.0
    %1092 = vmatprep.subr.mxu0 0.0
    %1093 = vmatpush1.msra.mxu0 0.0
    %1094 = vmatprep.subr.mxu0 0.0
    %1095 = vmatpush1.msra.mxu0 0.0
    %1096 = vmatprep.subr.mxu0 0.0
    %1097 = vmatpush1.msra.mxu0 0.0
    %1098 = vmatprep.subr.mxu0 0.0
    %1099 = vmatpush1.msra.mxu0 0.0
    %1100 = vmatprep.subr.mxu0 0.0
    %1101 = vmatpush1.msra.mxu0 0.0
    %1102 = vmatprep.subr.mxu0 0.0
    %1103 = vmatpush1.msra.mxu0 0.0
    %1104 = vmatprep.subr.mxu0 0.0
    %1105 = vmatpush1.msra.mxu0 0.0
    %1106 = vmatprep.subr.mxu0 0.0
    %1107 = vmatpush1.msra.mxu0 0.0
    %1108 = vmatprep.subr.mxu0 0.0
    %1109 = vmatpush1.msra.mxu0 0.0
    %1110 = vmatprep.subr.mxu0 0.0
    %1111 = vmatpush1.msra.mxu0 0.0
    %1112 = vmatprep.subr.mxu0 0.0
    %1113 = vmatpush1.msra.mxu0 0.0
    %1114 = vmatprep.subr.mxu0 0.0
    %1115 = vmatpush1.msra.mxu0 0.0
    %1116 = vmatprep.subr.mxu0 0.0
    %1117 = vmatpush1.msra.mxu0 0.0
    %1118 = vmatprep.subr.mxu0 0.0
    %1119 = vmatpush1.msra.mxu0 0.0
    %1120 = vmatprep.subr.mxu0 0.0
    %1121 = vmatpush1.msra.mxu0 0.0
    %1122 = vmatprep.subr.mxu0 0.0
    %1123 = vmatpush1.msra.mxu0 0.0
    %1124 = vmatprep.subr.mxu0 0.0
    %1125 = vmatpush1.msra.mxu0 0.0
    %1126 = vmatprep.subr.mxu0 0.0
    %1127 = vmatpush1.msra.mxu0 0.0
    %1128 = vmatprep.subr.mxu0 0.0
    %1129 = vmatpush1.msra.mxu0 0.0
    %1130 = vmatprep.subr.mxu0 0.0
    %1131 = vmatpush1.msra.mxu0 0.0
    %1132 = vmatprep.subr.mxu0 0.0
    %1133 = vmatpush1.msra.mxu0 0.0
    %1134 = vmatprep.subr.mxu0 0.0
    %1135 = vmatpush1.msra.mxu0 0.0
    %1136 = vmatprep.subr.mxu0 0.0
    %1137 = vmatpush1.msra.mxu0 0.0
    %1138 = vmatprep.subr.mxu0 0.0
    %1139 = vmatpush1.msra.mxu0 0.0
    %1140 = vmatprep.subr.mxu0 0.0
    %1141 = vmatpush1.msra.mxu0 0.0
    %1142 = vmatprep.mubr.f32.mxu0 0.0
    %v1143 = vand.u32 %v804, 4294901760
    %v1144 = vsub.f32 %v804, %v1143
    %1145 = vmatmul.mubr.f32.gmra.mrb[0].mxu0 %v1144
    %v1146 = vpop.f32.mrb[0].mxu0
    %v1147 = vadd.f32 %v1037, %v1146
    %v1148 = vpop.f32.mrb[0].mxu0
    %v1149 = vadd.f32 %v1039, %v1148
    %1150 = vmatprep.mubr.f32.mxu0 0.0
    %v1151 = vand.u32 %v806, 4294901760
    %v1152 = vsub.f32 %v806, %v1151
    %1153 = vmatmul.mubr.f32.gmra.mrb[0].mxu0 %v1152
    %v1154 = vpop.f32.mrb[0].mxu0
    %v1155 = vadd.f32 %v1044, %v1154
    %v1156 = vpop.f32.mrb[0].mxu0
    %v1157 = vadd.f32 %v1046, %v1156
    %1158 = vmatprep.mubr.f32.mxu0 0.0
    %v1159 = vand.u32 %v808, 4294901760
    %v1160 = vsub.f32 %v808, %v1159
    %1161 = vmatmul.mubr.f32.gmra.mrb[0].mxu0 %v1160
    %v1162 = vpop.f32.mrb[0].mxu0
    %v1163 = vadd.f32 %v1051, %v1162
    %v1164 = vpop.f32.mrb[0].mxu0
    %v1165 = vadd.f32 %v1053, %v1164
    %1166 = vmatprep.mubr.f32.mxu0 0.0
    %v1167 = vand.u32 %v810, 4294901760
    %v1168 = vsub.f32 %v810, %v1167
    %1169 = vmatmul.mubr.f32.gmra.mrb[0].mxu0 %v1168
    %v1170 = vpop.f32.mrb[0].mxu0
    %v1171 = vadd.f32 %v1058, %v1170
    %v1172 = vpop.f32.mrb[0].mxu0
    %v1173 = vadd.f32 %v1060, %v1172
    %1174 = vdwg.mxu0
    %v1175 = vand.u32 %v789, 4294901760
    %1176 = vmatprep.subr.mxu0 %v1175
    %v1177 = vand.u32 %v788, 4294901760
    %1178 = vmatpush1.msra.mxu0 %v1177
    %v1179 = vand.u32 %v791, 4294901760
    %1180 = vmatprep.subr.mxu0 %v1179
    %v1181 = vand.u32 %v790, 4294901760
    %1182 = vmatpush1.msra.mxu0 %v1181
    %v1183 = vand.u32 %v793, 4294901760
    %1184 = vmatprep.subr.mxu0 %v1183
    %v1185 = vand.u32 %v792, 4294901760
    %1186 = vmatpush1.msra.mxu0 %v1185
    %v1187 = vand.u32 %v795, 4294901760
    %1188 = vmatprep.subr.mxu0 %v1187
    %v1189 = vand.u32 %v794, 4294901760
    %1190 = vmatpush1.msra.mxu0 %v1189
    %1191 = vmatprep.subr.mxu0 0.0
    %1192 = vmatpush1.msra.mxu0 0.0
    %1193 = vmatprep.subr.mxu0 0.0
    %1194 = vmatpush1.msra.mxu0 0.0
    %1195 = vmatprep.subr.mxu0 0.0
    %1196 = vmatpush1.msra.mxu0 0.0
    %1197 = vmatprep.subr.mxu0 0.0
    %1198 = vmatpush1.msra.mxu0 0.0
    %1199 = vmatprep.subr.mxu0 0.0
    %1200 = vmatpush1.msra.mxu0 0.0
    %1201 = vmatprep.subr.mxu0 0.0
    %1202 = vmatpush1.msra.mxu0 0.0
    %1203 = vmatprep.subr.mxu0 0.0
    %1204 = vmatpush1.msra.mxu0 0.0
    %1205 = vmatprep.subr.mxu0 0.0
    %1206 = vmatpush1.msra.mxu0 0.0
    %1207 = vmatprep.subr.mxu0 0.0
    %1208 = vmatpush1.msra.mxu0 0.0
    %1209 = vmatprep.subr.mxu0 0.0
    %1210 = vmatpush1.msra.mxu0 0.0
    %1211 = vmatprep.subr.mxu0 0.0
    %1212 = vmatpush1.msra.mxu0 0.0
    %1213 = vmatprep.subr.mxu0 0.0
    %1214 = vmatpush1.msra.mxu0 0.0
    %1215 = vmatprep.subr.mxu0 0.0
    %1216 = vmatpush1.msra.mxu0 0.0
    %1217 = vmatprep.subr.mxu0 0.0
    %1218 = vmatpush1.msra.mxu0 0.0
    %1219 = vmatprep.subr.mxu0 0.0
    %1220 = vmatpush1.msra.mxu0 0.0
    %1221 = vmatprep.subr.mxu0 0.0
    %1222 = vmatpush1.msra.mxu0 0.0
    %1223 = vmatprep.subr.mxu0 0.0
    %1224 = vmatpush1.msra.mxu0 0.0
    %1225 = vmatprep.subr.mxu0 0.0
    %1226 = vmatpush1.msra.mxu0 0.0
    %1227 = vmatprep.subr.mxu0 0.0
    %1228 = vmatpush1.msra.mxu0 0.0
    %1229 = vmatprep.subr.mxu0 0.0
    %1230 = vmatpush1.msra.mxu0 0.0
    %1231 = vmatprep.subr.mxu0 0.0
    %1232 = vmatpush1.msra.mxu0 0.0
    %1233 = vmatprep.subr.mxu0 0.0
    %1234 = vmatpush1.msra.mxu0 0.0
    %1235 = vmatprep.subr.mxu0 0.0
    %1236 = vmatpush1.msra.mxu0 0.0
    %1237 = vmatprep.subr.mxu0 0.0
    %1238 = vmatpush1.msra.mxu0 0.0
    %1239 = vmatprep.subr.mxu0 0.0
    %1240 = vmatpush1.msra.mxu0 0.0
    %1241 = vmatprep.subr.mxu0 0.0
    %1242 = vmatpush1.msra.mxu0 0.0
    %1243 = vmatprep.subr.mxu0 0.0
    %1244 = vmatpush1.msra.mxu0 0.0
    %1245 = vmatprep.subr.mxu0 0.0
    %1246 = vmatpush1.msra.mxu0 0.0
    %1247 = vmatprep.mubr.f32.mxu0 0.0
    %v1248 = vand.u32 %v804, 4294901760
    %v1249 = vsub.f32 %v804, %v1248
    %v1250 = vand.u32 %v1249, 4294901760
    %1251 = vmatmul.mubr.f32.gmra.mrb[0].mxu0 %v1250
    %v1252 = vpop.f32.mrb[0].mxu0
    %v1253 = vadd.f32 %v1147, %v1252
    %v1254 = vpop.f32.mrb[0].mxu0
    %v1255 = vadd.f32 %v1149, %v1254
    %1256 = vmatprep.mubr.f32.mxu0 0.0
    %v1257 = vand.u32 %v806, 4294901760
    %v1258 = vsub.f32 %v806, %v1257
    %v1259 = vand.u32 %v1258, 4294901760
    %1260 = vmatmul.mubr.f32.gmra.mrb[0].mxu0 %v1259
    %v1261 = vpop.f32.mrb[0].mxu0
    %v1262 = vadd.f32 %v1155, %v1261
    %v1263 = vpop.f32.mrb[0].mxu0
    %v1264 = vadd.f32 %v1157, %v1263
    %1265 = vmatprep.mubr.f32.mxu0 0.0
    %v1266 = vand.u32 %v808, 4294901760
    %v1267 = vsub.f32 %v808, %v1266
    %v1268 = vand.u32 %v1267, 4294901760
    %1269 = vmatmul.mubr.f32.gmra.mrb[0].mxu0 %v1268
    %v1270 = vpop.f32.mrb[0].mxu0
    %v1271 = vadd.f32 %v1163, %v1270
    %v1272 = vpop.f32.mrb[0].mxu0
    %v1273 = vadd.f32 %v1165, %v1272
    %1274 = vmatprep.mubr.f32.mxu0 0.0
    %v1275 = vand.u32 %v810, 4294901760
    %v1276 = vsub.f32 %v810, %v1275
    %v1277 = vand.u32 %v1276, 4294901760
    %1278 = vmatmul.mubr.f32.gmra.mrb[0].mxu0 %v1277
    %v1279 = vpop.f32.mrb[0].mxu0
    %v1280 = vadd.f32 %v1171, %v1279
    %v1281 = vpop.f32.mrb[0].mxu0
    %v1282 = vadd.f32 %v1173, %v1281
    %1283 = vdwg.mxu0
    %v1284 = vand.u32 %v789, 4294901760
    %v1285 = vsub.f32 %v789, %v1284
    %v1286 = vand.u32 %v1285, 4294901760
    %1287 = vmatprep.subr.mxu0 %v1286
    %v1288 = vand.u32 %v788, 4294901760
    %v1289 = vsub.f32 %v788, %v1288
    %v1290 = vand.u32 %v1289, 4294901760
    %1291 = vmatpush1.msra.mxu0 %v1290
    %v1292 = vand.u32 %v791, 4294901760
    %v1293 = vsub.f32 %v791, %v1292
    %v1294 = vand.u32 %v1293, 4294901760
    %1295 = vmatprep.subr.mxu0 %v1294
    %v1296 = vand.u32 %v790, 4294901760
    %v1297 = vsub.f32 %v790, %v1296
    %v1298 = vand.u32 %v1297, 4294901760
    %1299 = vmatpush1.msra.mxu0 %v1298
    %v1300 = vand.u32 %v793, 4294901760
    %v1301 = vsub.f32 %v793, %v1300
    %v1302 = vand.u32 %v1301, 4294901760
    %1303 = vmatprep.subr.mxu0 %v1302
    %v1304 = vand.u32 %v792, 4294901760
    %v1305 = vsub.f32 %v792, %v1304
    %v1306 = vand.u32 %v1305, 4294901760
    %1307 = vmatpush1.msra.mxu0 %v1306
    %v1308 = vand.u32 %v795, 4294901760
    %v1309 = vsub.f32 %v795, %v1308
    %v1310 = vand.u32 %v1309, 4294901760
    %1311 = vmatprep.subr.mxu0 %v1310
    %v1312 = vand.u32 %v794, 4294901760
    %v1313 = vsub.f32 %v794, %v1312
    %v1314 = vand.u32 %v1313, 4294901760
    %1315 = vmatpush1.msra.mxu0 %v1314
    %1316 = vmatprep.subr.mxu0 0.0
    %1317 = vmatpush1.msra.mxu0 0.0
    %1318 = vmatprep.subr.mxu0 0.0
    %1319 = vmatpush1.msra.mxu0 0.0
    %1320 = vmatprep.subr.mxu0 0.0
    %1321 = vmatpush1.msra.mxu0 0.0
    %1322 = vmatprep.subr.mxu0 0.0
    %1323 = vmatpush1.msra.mxu0 0.0
    %1324 = vmatprep.subr.mxu0 0.0
    %1325 = vmatpush1.msra.mxu0 0.0
    %1326 = vmatprep.subr.mxu0 0.0
    %1327 = vmatpush1.msra.mxu0 0.0
    %1328 = vmatprep.subr.mxu0 0.0
    %1329 = vmatpush1.msra.mxu0 0.0
    %1330 = vmatprep.subr.mxu0 0.0
    %1331 = vmatpush1.msra.mxu0 0.0
    %1332 = vmatprep.subr.mxu0 0.0
    %1333 = vmatpush1.msra.mxu0 0.0
    %1334 = vmatprep.subr.mxu0 0.0
    %1335 = vmatpush1.msra.mxu0 0.0
    %1336 = vmatprep.subr.mxu0 0.0
    %1337 = vmatpush1.msra.mxu0 0.0
    %1338 = vmatprep.subr.mxu0 0.0
    %1339 = vmatpush1.msra.mxu0 0.0
    %1340 = vmatprep.subr.mxu0 0.0
    %1341 = vmatpush1.msra.mxu0 0.0
    %1342 = vmatprep.subr.mxu0 0.0
    %1343 = vmatpush1.msra.mxu0 0.0
    %1344 = vmatprep.subr.mxu0 0.0
    %1345 = vmatpush1.msra.mxu0 0.0
    %1346 = vmatprep.subr.mxu0 0.0
    %1347 = vmatpush1.msra.mxu0 0.0
    %1348 = vmatprep.subr.mxu0 0.0
    %1349 = vmatpush1.msra.mxu0 0.0
    %1350 = vmatprep.subr.mxu0 0.0
    %1351 = vmatpush1.msra.mxu0 0.0
    %1352 = vmatprep.subr.mxu0 0.0
    %1353 = vmatpush1.msra.mxu0 0.0
    %1354 = vmatprep.subr.mxu0 0.0
    %1355 = vmatpush1.msra.mxu0 0.0
    %1356 = vmatprep.subr.mxu0 0.0
    %1357 = vmatpush1.msra.mxu0 0.0
    %1358 = vmatprep.subr.mxu0 0.0
    %1359 = vmatpush1.msra.mxu0 0.0
    %1360 = vmatprep.subr.mxu0 0.0
    %1361 = vmatpush1.msra.mxu0 0.0
    %1362 = vmatprep.subr.mxu0 0.0
    %1363 = vmatpush1.msra.mxu0 0.0
    %1364 = vmatprep.subr.mxu0 0.0
    %1365 = vmatpush1.msra.mxu0 0.0
    %1366 = vmatprep.subr.mxu0 0.0
    %1367 = vmatpush1.msra.mxu0 0.0
    %1368 = vmatprep.subr.mxu0 0.0
    %1369 = vmatpush1.msra.mxu0 0.0
    %1370 = vmatprep.subr.mxu0 0.0
    %1371 = vmatpush1.msra.mxu0 0.0
    %1372 = vmatprep.mubr.f32.mxu0 0.0
    %v1373 = vand.u32 %v804, 4294901760
    %1374 = vmatmul.mubr.f32.gmra.mrb[0].mxu0 %v1373
    %v1375 = vpop.f32.mrb[0].mxu0
    %v1376 = vadd.f32 %v1253, %v1375
    %v1377 = vpop.f32.mrb[0].mxu0
    %v1378 = vadd.f32 %v1255, %v1377
    %1379 = vmatprep.mubr.f32.mxu0 0.0
    %v1380 = vand.u32 %v806, 4294901760
    %1381 = vmatmul.mubr.f32.gmra.mrb[0].mxu0 %v1380
    %v1382 = vpop.f32.mrb[0].mxu0
    %v1383 = vadd.f32 %v1262, %v1382
    %v1384 = vpop.f32.mrb[0].mxu0
    %v1385 = vadd.f32 %v1264, %v1384
    %1386 = vmatprep.mubr.f32.mxu0 0.0
    %v1387 = vand.u32 %v808, 4294901760
    %1388 = vmatmul.mubr.f32.gmra.mrb[0].mxu0 %v1387
    %v1389 = vpop.f32.mrb[0].mxu0
    %v1390 = vadd.f32 %v1271, %v1389
    %v1391 = vpop.f32.mrb[0].mxu0
    %v1392 = vadd.f32 %v1273, %v1391
    %1393 = vmatprep.mubr.f32.mxu0 0.0
    %v1394 = vand.u32 %v810, 4294901760
    %1395 = vmatmul.mubr.f32.gmra.mrb[0].mxu0 %v1394
    %v1396 = vpop.f32.mrb[0].mxu0
    %v1397 = vadd.f32 %v1280, %v1396
    %v1398 = vpop.f32.mrb[0].mxu0
    %v1399 = vadd.f32 %v1282, %v1398
    %1400 = vdwg.mxu0
    %v1401 = vand.u32 %v789, 4294901760
    %1402 = vmatprep.subr.mxu0 %v1401
    %v1403 = vand.u32 %v788, 4294901760
    %1404 = vmatpush1.msra.mxu0 %v1403
    %v1405 = vand.u32 %v791, 4294901760
    %1406 = vmatprep.subr.mxu0 %v1405
    %v1407 = vand.u32 %v790, 4294901760
    %1408 = vmatpush1.msra.mxu0 %v1407
    %v1409 = vand.u32 %v793, 4294901760
    %1410 = vmatprep.subr.mxu0 %v1409
    %v1411 = vand.u32 %v792, 4294901760
    %1412 = vmatpush1.msra.mxu0 %v1411
    %v1413 = vand.u32 %v795, 4294901760
    %1414 = vmatprep.subr.mxu0 %v1413
    %v1415 = vand.u32 %v794, 4294901760
    %1416 = vmatpush1.msra.mxu0 %v1415
    %1417 = vmatprep.subr.mxu0 0.0
    %1418 = vmatpush1.msra.mxu0 0.0
    %1419 = vmatprep.subr.mxu0 0.0
    %1420 = vmatpush1.msra.mxu0 0.0
    %1421 = vmatprep.subr.mxu0 0.0
    %1422 = vmatpush1.msra.mxu0 0.0
    %1423 = vmatprep.subr.mxu0 0.0
    %1424 = vmatpush1.msra.mxu0 0.0
    %1425 = vmatprep.subr.mxu0 0.0
    %1426 = vmatpush1.msra.mxu0 0.0
    %1427 = vmatprep.subr.mxu0 0.0
    %1428 = vmatpush1.msra.mxu0 0.0
    %1429 = vmatprep.subr.mxu0 0.0
    %1430 = vmatpush1.msra.mxu0 0.0
    %1431 = vmatprep.subr.mxu0 0.0
    %1432 = vmatpush1.msra.mxu0 0.0
    %1433 = vmatprep.subr.mxu0 0.0
    %1434 = vmatpush1.msra.mxu0 0.0
    %1435 = vmatprep.subr.mxu0 0.0
    %1436 = vmatpush1.msra.mxu0 0.0
    %1437 = vmatprep.subr.mxu0 0.0
    %1438 = vmatpush1.msra.mxu0 0.0
    %1439 = vmatprep.subr.mxu0 0.0
    %1440 = vmatpush1.msra.mxu0 0.0
    %1441 = vmatprep.subr.mxu0 0.0
    %1442 = vmatpush1.msra.mxu0 0.0
    %1443 = vmatprep.subr.mxu0 0.0
    %1444 = vmatpush1.msra.mxu0 0.0
    %1445 = vmatprep.subr.mxu0 0.0
    %1446 = vmatpush1.msra.mxu0 0.0
    %1447 = vmatprep.subr.mxu0 0.0
    %1448 = vmatpush1.msra.mxu0 0.0
    %1449 = vmatprep.subr.mxu0 0.0
    %1450 = vmatpush1.msra.mxu0 0.0
    %1451 = vmatprep.subr.mxu0 0.0
    %1452 = vmatpush1.msra.mxu0 0.0
    %1453 = vmatprep.subr.mxu0 0.0
    %1454 = vmatpush1.msra.mxu0 0.0
    %1455 = vmatprep.subr.mxu0 0.0
    %1456 = vmatpush1.msra.mxu0 0.0
    %1457 = vmatprep.subr.mxu0 0.0
    %1458 = vmatpush1.msra.mxu0 0.0
    %1459 = vmatprep.subr.mxu0 0.0
    %1460 = vmatpush1.msra.mxu0 0.0
    %1461 = vmatprep.subr.mxu0 0.0
    %1462 = vmatpush1.msra.mxu0 0.0
    %1463 = vmatprep.subr.mxu0 0.0
    %1464 = vmatpush1.msra.mxu0 0.0
    %1465 = vmatprep.subr.mxu0 0.0
    %1466 = vmatpush1.msra.mxu0 0.0
    %1467 = vmatprep.subr.mxu0 0.0
    %1468 = vmatpush1.msra.mxu0 0.0
    %1469 = vmatprep.subr.mxu0 0.0
    %1470 = vmatpush1.msra.mxu0 0.0
    %1471 = vmatprep.subr.mxu0 0.0
    %1472 = vmatpush1.msra.mxu0 0.0
    %1473 = vmatprep.mubr.f32.mxu0 0.0
    %v1474 = vand.u32 %v804, 4294901760
    %1475 = vmatmul.mubr.f32.gmra.mrb[0].mxu0 %v1474
    %v1476 = vpop.f32.mrb[0].mxu0
    %v1477 = vadd.f32 %v1376, %v1476
    %v1478 = vpop.f32.mrb[0].mxu0
    %v1479 = vadd.f32 %v1378, %v1478
    %1480 = vmatprep.mubr.f32.mxu0 0.0
    %v1481 = vand.u32 %v806, 4294901760
    %1482 = vmatmul.mubr.f32.gmra.mrb[0].mxu0 %v1481
    %v1483 = vpop.f32.mrb[0].mxu0
    %v1484 = vadd.f32 %v1383, %v1483
    %v1485 = vpop.f32.mrb[0].mxu0
    %v1486 = vadd.f32 %v1385, %v1485
    %1487 = vmatprep.mubr.f32.mxu0 0.0
    %v1488 = vand.u32 %v808, 4294901760
    %1489 = vmatmul.mubr.f32.gmra.mrb[0].mxu0 %v1488
    %v1490 = vpop.f32.mrb[0].mxu0
    %v1491 = vadd.f32 %v1390, %v1490
    %v1492 = vpop.f32.mrb[0].mxu0
    %v1493 = vadd.f32 %v1392, %v1492
    %1494 = vmatprep.mubr.f32.mxu0 0.0
    %v1495 = vand.u32 %v810, 4294901760
    %1496 = vmatmul.mubr.f32.gmra.mrb[0].mxu0 %v1495
    %v1497 = vpop.f32.mrb[0].mxu0
    %v1498 = vadd.f32 %v1397, %v1497
    %v1499 = vpop.f32.mrb[0].mxu0
    %v1500 = vadd.f32 %v1399, %v1499
    %1501 = vdwg.mxu0
    %s1502 = scalar_lea.vmem %s1, 256
    %v1503 = vld [vmem:[%s1502] sm:$0xff]
    %v1504 = vld [vmem:[%s1502 + $0x8] sm:$0xff]
    %v1505 = vld [vmem:[%s1502 + $0x10] sm:$0xff]
    %v1506 = vld [vmem:[%s1502 + $0x18] sm:$0xff]
    %v1507 = vld [vmem:[%s1502 + $0x20] sm:$0xff]
    %v1508 = vld [vmem:[%s1502 + $0x28] sm:$0xff]
    %v1509 = vld [vmem:[%s1502 + $0x30] sm:$0xff]
    %v1510 = vld [vmem:[%s1502 + $0x38] sm:$0xff]
    %vm1511 = vcmask 1043456
    %v1512 = vrot.slane %v46, 4
    %v1513 = vrot.slane %v47, 4
    %v1514 = vsel %vm1511, %v1512, %v1513
    %v1515 = vrot.slane %v48, 4
    %v1516 = vsel %vm1511, %v1513, %v1515
    %v1517 = vrot.slane %v49, 4
    %v1518 = vsel %vm1511, %v1515, %v1517
    %v1519 = vsel %vm79, %v1514, 0
    %v1521 = vsel %vm79, %v1516, 0
    %v1523 = vsel %vm79, %v1518, 0
    %v1525 = vsel %vm79, %v1517, 0
    %v1527 = vand.u32 %v1504, 4294901760
    %1528 = vmatprep.subr.mxu0 %v1527
    %v1529 = vand.u32 %v1503, 4294901760
    %1530 = vmatpush1.msra.mxu0 %v1529
    %v1531 = vand.u32 %v1506, 4294901760
    %1532 = vmatprep.subr.mxu0 %v1531
    %v1533 = vand.u32 %v1505, 4294901760
    %1534 = vmatpush1.msra.mxu0 %v1533
    %v1535 = vand.u32 %v1508, 4294901760
    %1536 = vmatprep.subr.mxu0 %v1535
    %v1537 = vand.u32 %v1507, 4294901760
    %1538 = vmatpush1.msra.mxu0 %v1537
    %v1539 = vand.u32 %v1510, 4294901760
    %1540 = vmatprep.subr.mxu0 %v1539
    %v1541 = vand.u32 %v1509, 4294901760
    %1542 = vmatpush1.msra.mxu0 %v1541
    %1543 = vmatprep.subr.mxu0 0.0
    %1544 = vmatpush1.msra.mxu0 0.0
    %1545 = vmatprep.subr.mxu0 0.0
    %1546 = vmatpush1.msra.mxu0 0.0
    %1547 = vmatprep.subr.mxu0 0.0
    %1548 = vmatpush1.msra.mxu0 0.0
    %1549 = vmatprep.subr.mxu0 0.0
    %1550 = vmatpush1.msra.mxu0 0.0
    %1551 = vmatprep.subr.mxu0 0.0
    %1552 = vmatpush1.msra.mxu0 0.0
    %1553 = vmatprep.subr.mxu0 0.0
    %1554 = vmatpush1.msra.mxu0 0.0
    %1555 = vmatprep.subr.mxu0 0.0
    %1556 = vmatpush1.msra.mxu0 0.0
    %1557 = vmatprep.subr.mxu0 0.0
    %1558 = vmatpush1.msra.mxu0 0.0
    %1559 = vmatprep.subr.mxu0 0.0
    %1560 = vmatpush1.msra.mxu0 0.0
    %1561 = vmatprep.subr.mxu0 0.0
    %1562 = vmatpush1.msra.mxu0 0.0
    %1563 = vmatprep.subr.mxu0 0.0
    %1564 = vmatpush1.msra.mxu0 0.0
    %1565 = vmatprep.subr.mxu0 0.0
    %1566 = vmatpush1.msra.mxu0 0.0
    %1567 = vmatprep.subr.mxu0 0.0
    %1568 = vmatpush1.msra.mxu0 0.0
    %1569 = vmatprep.subr.mxu0 0.0
    %1570 = vmatpush1.msra.mxu0 0.0
    %1571 = vmatprep.subr.mxu0 0.0
    %1572 = vmatpush1.msra.mxu0 0.0
    %1573 = vmatprep.subr.mxu0 0.0
    %1574 = vmatpush1.msra.mxu0 0.0
    %1575 = vmatprep.subr.mxu0 0.0
    %1576 = vmatpush1.msra.mxu0 0.0
    %1577 = vmatprep.subr.mxu0 0.0
    %1578 = vmatpush1.msra.mxu0 0.0
    %1579 = vmatprep.subr.mxu0 0.0
    %1580 = vmatpush1.msra.mxu0 0.0
    %1581 = vmatprep.subr.mxu0 0.0
    %1582 = vmatpush1.msra.mxu0 0.0
    %1583 = vmatprep.subr.mxu0 0.0
    %1584 = vmatpush1.msra.mxu0 0.0
    %1585 = vmatprep.subr.mxu0 0.0
    %1586 = vmatpush1.msra.mxu0 0.0
    %1587 = vmatprep.subr.mxu0 0.0
    %1588 = vmatpush1.msra.mxu0 0.0
    %1589 = vmatprep.subr.mxu0 0.0
    %1590 = vmatpush1.msra.mxu0 0.0
    %1591 = vmatprep.subr.mxu0 0.0
    %1592 = vmatpush1.msra.mxu0 0.0
    %1593 = vmatprep.subr.mxu0 0.0
    %1594 = vmatpush1.msra.mxu0 0.0
    %1595 = vmatprep.subr.mxu0 0.0
    %1596 = vmatpush1.msra.mxu0 0.0
    %1597 = vmatprep.subr.mxu0 0.0
    %1598 = vmatpush1.msra.mxu0 0.0
    %1599 = vmatprep.mubr.f32.mxu0 0.0
    %v1600 = vand.u32 %v1519, 4294901760
    %v1601 = vsub.f32 %v1519, %v1600
    %v1602 = vand.u32 %v1601, 4294901760
    %v1603 = vsub.f32 %v1601, %v1602
    %v1604 = vand.u32 %v1603, 4294901760
    %1605 = vmatmul.mubr.f32.gmra.mrb[0].mxu0 %v1604
    %v1606 = vpop.f32.mrb[0].mxu0
    %v1607 = vadd.f32 0.0, %v1606
    %v1608 = vpop.f32.mrb[0].mxu0
    %v1609 = vadd.f32 0.0, %v1608
    %1610 = vmatprep.mubr.f32.mxu0 0.0
    %v1611 = vand.u32 %v1521, 4294901760
    %v1612 = vsub.f32 %v1521, %v1611
    %v1613 = vand.u32 %v1612, 4294901760
    %v1614 = vsub.f32 %v1612, %v1613
    %v1615 = vand.u32 %v1614, 4294901760
    %1616 = vmatmul.mubr.f32.gmra.mrb[0].mxu0 %v1615
    %v1617 = vpop.f32.mrb[0].mxu0
    %v1618 = vadd.f32 0.0, %v1617
    %v1619 = vpop.f32.mrb[0].mxu0
    %v1620 = vadd.f32 0.0, %v1619
    %1621 = vmatprep.mubr.f32.mxu0 0.0
    %v1622 = vand.u32 %v1523, 4294901760
    %v1623 = vsub.f32 %v1523, %v1622
    %v1624 = vand.u32 %v1623, 4294901760
    %v1625 = vsub.f32 %v1623, %v1624
    %v1626 = vand.u32 %v1625, 4294901760
    %1627 = vmatmul.mubr.f32.gmra.mrb[0].mxu0 %v1626
    %v1628 = vpop.f32.mrb[0].mxu0
    %v1629 = vadd.f32 0.0, %v1628
    %v1630 = vpop.f32.mrb[0].mxu0
    %v1631 = vadd.f32 0.0, %v1630
    %1632 = vmatprep.mubr.f32.mxu0 0.0
    %v1633 = vand.u32 %v1525, 4294901760
    %v1634 = vsub.f32 %v1525, %v1633
    %v1635 = vand.u32 %v1634, 4294901760
    %v1636 = vsub.f32 %v1634, %v1635
    %v1637 = vand.u32 %v1636, 4294901760
    %1638 = vmatmul.mubr.f32.gmra.mrb[0].mxu0 %v1637
    %v1639 = vpop.f32.mrb[0].mxu0
    %v1640 = vadd.f32 0.0, %v1639
    %v1641 = vpop.f32.mrb[0].mxu0
    %v1642 = vadd.f32 0.0, %v1641
    %1643 = vdwg.mxu0
    %v1644 = vand.u32 %v1504, 4294901760
    %v1645 = vsub.f32 %v1504, %v1644
    %v1646 = vand.u32 %v1645, 4294901760
    %v1647 = vsub.f32 %v1645, %v1646
    %v1648 = vand.u32 %v1647, 4294901760
    %1649 = vmatprep.subr.mxu0 %v1648
    %v1650 = vand.u32 %v1503, 4294901760
    %v1651 = vsub.f32 %v1503, %v1650
    %v1652 = vand.u32 %v1651, 4294901760
    %v1653 = vsub.f32 %v1651, %v1652
    %v1654 = vand.u32 %v1653, 4294901760
    %1655 = vmatpush1.msra.mxu0 %v1654
    %v1656 = vand.u32 %v1506, 4294901760
    %v1657 = vsub.f32 %v1506, %v1656
    %v1658 = vand.u32 %v1657, 4294901760
    %v1659 = vsub.f32 %v1657, %v1658
    %v1660 = vand.u32 %v1659, 4294901760
    %1661 = vmatprep.subr.mxu0 %v1660
    %v1662 = vand.u32 %v1505, 4294901760
    %v1663 = vsub.f32 %v1505, %v1662
    %v1664 = vand.u32 %v1663, 4294901760
    %v1665 = vsub.f32 %v1663, %v1664
    %v1666 = vand.u32 %v1665, 4294901760
    %1667 = vmatpush1.msra.mxu0 %v1666
    %v1668 = vand.u32 %v1508, 4294901760
    %v1669 = vsub.f32 %v1508, %v1668
    %v1670 = vand.u32 %v1669, 4294901760
    %v1671 = vsub.f32 %v1669, %v1670
    %v1672 = vand.u32 %v1671, 4294901760
    %1673 = vmatprep.subr.mxu0 %v1672
    %v1674 = vand.u32 %v1507, 4294901760
    %v1675 = vsub.f32 %v1507, %v1674
    %v1676 = vand.u32 %v1675, 4294901760
    %v1677 = vsub.f32 %v1675, %v1676
    %v1678 = vand.u32 %v1677, 4294901760
    %1679 = vmatpush1.msra.mxu0 %v1678
    %v1680 = vand.u32 %v1510, 4294901760
    %v1681 = vsub.f32 %v1510, %v1680
    %v1682 = vand.u32 %v1681, 4294901760
    %v1683 = vsub.f32 %v1681, %v1682
    %v1684 = vand.u32 %v1683, 4294901760
    %1685 = vmatprep.subr.mxu0 %v1684
    %v1686 = vand.u32 %v1509, 4294901760
    %v1687 = vsub.f32 %v1509, %v1686
    %v1688 = vand.u32 %v1687, 4294901760
    %v1689 = vsub.f32 %v1687, %v1688
    %v1690 = vand.u32 %v1689, 4294901760
    %1691 = vmatpush1.msra.mxu0 %v1690
    %1692 = vmatprep.subr.mxu0 0.0
    %1693 = vmatpush1.msra.mxu0 0.0
    %1694 = vmatprep.subr.mxu0 0.0
    %1695 = vmatpush1.msra.mxu0 0.0
    %1696 = vmatprep.subr.mxu0 0.0
    %1697 = vmatpush1.msra.mxu0 0.0
    %1698 = vmatprep.subr.mxu0 0.0
    %1699 = vmatpush1.msra.mxu0 0.0
    %1700 = vmatprep.subr.mxu0 0.0
    %1701 = vmatpush1.msra.mxu0 0.0
    %1702 = vmatprep.subr.mxu0 0.0
    %1703 = vmatpush1.msra.mxu0 0.0
    %1704 = vmatprep.subr.mxu0 0.0
    %1705 = vmatpush1.msra.mxu0 0.0
    %1706 = vmatprep.subr.mxu0 0.0
    %1707 = vmatpush1.msra.mxu0 0.0
    %1708 = vmatprep.subr.mxu0 0.0
    %1709 = vmatpush1.msra.mxu0 0.0
    %1710 = vmatprep.subr.mxu0 0.0
    %1711 = vmatpush1.msra.mxu0 0.0
    %1712 = vmatprep.subr.mxu0 0.0
    %1713 = vmatpush1.msra.mxu0 0.0
    %1714 = vmatprep.subr.mxu0 0.0
    %1715 = vmatpush1.msra.mxu0 0.0
    %1716 = vmatprep.subr.mxu0 0.0
    %1717 = vmatpush1.msra.mxu0 0.0
    %1718 = vmatprep.subr.mxu0 0.0
    %1719 = vmatpush1.msra.mxu0 0.0
    %1720 = vmatprep.subr.mxu0 0.0
    %1721 = vmatpush1.msra.mxu0 0.0
    %1722 = vmatprep.subr.mxu0 0.0
    %1723 = vmatpush1.msra.mxu0 0.0
    %1724 = vmatprep.subr.mxu0 0.0
    %1725 = vmatpush1.msra.mxu0 0.0
    %1726 = vmatprep.subr.mxu0 0.0
    %1727 = vmatpush1.msra.mxu0 0.0
    %1728 = vmatprep.subr.mxu0 0.0
    %1729 = vmatpush1.msra.mxu0 0.0
    %1730 = vmatprep.subr.mxu0 0.0
    %1731 = vmatpush1.msra.mxu0 0.0
    %1732 = vmatprep.subr.mxu0 0.0
    %1733 = vmatpush1.msra.mxu0 0.0
    %1734 = vmatprep.subr.mxu0 0.0
    %1735 = vmatpush1.msra.mxu0 0.0
    %1736 = vmatprep.subr.mxu0 0.0
    %1737 = vmatpush1.msra.mxu0 0.0
    %1738 = vmatprep.subr.mxu0 0.0
    %1739 = vmatpush1.msra.mxu0 0.0
    %1740 = vmatprep.subr.mxu0 0.0
    %1741 = vmatpush1.msra.mxu0 0.0
    %1742 = vmatprep.subr.mxu0 0.0
    %1743 = vmatpush1.msra.mxu0 0.0
    %1744 = vmatprep.subr.mxu0 0.0
    %1745 = vmatpush1.msra.mxu0 0.0
    %1746 = vmatprep.subr.mxu0 0.0
    %1747 = vmatpush1.msra.mxu0 0.0
    %1748 = vmatprep.mubr.f32.mxu0 0.0
    %v1749 = vand.u32 %v1519, 4294901760
    %1750 = vmatmul.mubr.f32.gmra.mrb[0].mxu0 %v1749
    %v1751 = vpop.f32.mrb[0].mxu0
    %v1752 = vadd.f32 %v1607, %v1751
    %v1753 = vpop.f32.mrb[0].mxu0
    %v1754 = vadd.f32 %v1609, %v1753
    %1755 = vmatprep.mubr.f32.mxu0 0.0
    %v1756 = vand.u32 %v1521, 4294901760
    %1757 = vmatmul.mubr.f32.gmra.mrb[0].mxu0 %v1756
    %v1758 = vpop.f32.mrb[0].mxu0
    %v1759 = vadd.f32 %v1618, %v1758
    %v1760 = vpop.f32.mrb[0].mxu0
    %v1761 = vadd.f32 %v1620, %v1760
    %1762 = vmatprep.mubr.f32.mxu0 0.0
    %v1763 = vand.u32 %v1523, 4294901760
    %1764 = vmatmul.mubr.f32.gmra.mrb[0].mxu0 %v1763
    %v1765 = vpop.f32.mrb[0].mxu0
    %v1766 = vadd.f32 %v1629, %v1765
    %v1767 = vpop.f32.mrb[0].mxu0
    %v1768 = vadd.f32 %v1631, %v1767
    %1769 = vmatprep.mubr.f32.mxu0 0.0
    %v1770 = vand.u32 %v1525, 4294901760
    %1771 = vmatmul.mubr.f32.gmra.mrb[0].mxu0 %v1770
    %v1772 = vpop.f32.mrb[0].mxu0
    %v1773 = vadd.f32 %v1640, %v1772
    %v1774 = vpop.f32.mrb[0].mxu0
    %v1775 = vadd.f32 %v1642, %v1774
    %1776 = vdwg.mxu0
    %v1777 = vand.u32 %v1504, 4294901760
    %v1778 = vsub.f32 %v1504, %v1777
    %1779 = vmatprep.subr.mxu0 %v1778
    %v1780 = vand.u32 %v1503, 4294901760
    %v1781 = vsub.f32 %v1503, %v1780
    %1782 = vmatpush1.msra.mxu0 %v1781
    %v1783 = vand.u32 %v1506, 4294901760
    %v1784 = vsub.f32 %v1506, %v1783
    %1785 = vmatprep.subr.mxu0 %v1784
    %v1786 = vand.u32 %v1505, 4294901760
    %v1787 = vsub.f32 %v1505, %v1786
    %1788 = vmatpush1.msra.mxu0 %v1787
    %v1789 = vand.u32 %v1508, 4294901760
    %v1790 = vsub.f32 %v1508, %v1789
    %1791 = vmatprep.subr.mxu0 %v1790
    %v1792 = vand.u32 %v1507, 4294901760
    %v1793 = vsub.f32 %v1507, %v1792
    %1794 = vmatpush1.msra.mxu0 %v1793
    %v1795 = vand.u32 %v1510, 4294901760
    %v1796 = vsub.f32 %v1510, %v1795
    %1797 = vmatprep.subr.mxu0 %v1796
    %v1798 = vand.u32 %v1509, 4294901760
    %v1799 = vsub.f32 %v1509, %v1798
    %1800 = vmatpush1.msra.mxu0 %v1799
    %1801 = vmatprep.subr.mxu0 0.0
    %1802 = vmatpush1.msra.mxu0 0.0
    %1803 = vmatprep.subr.mxu0 0.0
    %1804 = vmatpush1.msra.mxu0 0.0
    %1805 = vmatprep.subr.mxu0 0.0
    %1806 = vmatpush1.msra.mxu0 0.0
    %1807 = vmatprep.subr.mxu0 0.0
    %1808 = vmatpush1.msra.mxu0 0.0
    %1809 = vmatprep.subr.mxu0 0.0
    %1810 = vmatpush1.msra.mxu0 0.0
    %1811 = vmatprep.subr.mxu0 0.0
    %1812 = vmatpush1.msra.mxu0 0.0
    %1813 = vmatprep.subr.mxu0 0.0
    %1814 = vmatpush1.msra.mxu0 0.0
    %1815 = vmatprep.subr.mxu0 0.0
    %1816 = vmatpush1.msra.mxu0 0.0
    %1817 = vmatprep.subr.mxu0 0.0
    %1818 = vmatpush1.msra.mxu0 0.0
    %1819 = vmatprep.subr.mxu0 0.0
    %1820 = vmatpush1.msra.mxu0 0.0
    %1821 = vmatprep.subr.mxu0 0.0
    %1822 = vmatpush1.msra.mxu0 0.0
    %1823 = vmatprep.subr.mxu0 0.0
    %1824 = vmatpush1.msra.mxu0 0.0
    %1825 = vmatprep.subr.mxu0 0.0
    %1826 = vmatpush1.msra.mxu0 0.0
    %1827 = vmatprep.subr.mxu0 0.0
    %1828 = vmatpush1.msra.mxu0 0.0
    %1829 = vmatprep.subr.mxu0 0.0
    %1830 = vmatpush1.msra.mxu0 0.0
    %1831 = vmatprep.subr.mxu0 0.0
    %1832 = vmatpush1.msra.mxu0 0.0
    %1833 = vmatprep.subr.mxu0 0.0
    %1834 = vmatpush1.msra.mxu0 0.0
    %1835 = vmatprep.subr.mxu0 0.0
    %1836 = vmatpush1.msra.mxu0 0.0
    %1837 = vmatprep.subr.mxu0 0.0
    %1838 = vmatpush1.msra.mxu0 0.0
    %1839 = vmatprep.subr.mxu0 0.0
    %1840 = vmatpush1.msra.mxu0 0.0
    %1841 = vmatprep.subr.mxu0 0.0
    %1842 = vmatpush1.msra.mxu0 0.0
    %1843 = vmatprep.subr.mxu0 0.0
    %1844 = vmatpush1.msra.mxu0 0.0
    %1845 = vmatprep.subr.mxu0 0.0
    %1846 = vmatpush1.msra.mxu0 0.0
    %1847 = vmatprep.subr.mxu0 0.0
    %1848 = vmatpush1.msra.mxu0 0.0
    %1849 = vmatprep.subr.mxu0 0.0
    %1850 = vmatpush1.msra.mxu0 0.0
    %1851 = vmatprep.subr.mxu0 0.0
    %1852 = vmatpush1.msra.mxu0 0.0
    %1853 = vmatprep.subr.mxu0 0.0
    %1854 = vmatpush1.msra.mxu0 0.0
    %1855 = vmatprep.subr.mxu0 0.0
    %1856 = vmatpush1.msra.mxu0 0.0
    %1857 = vmatprep.mubr.f32.mxu0 0.0
    %v1858 = vand.u32 %v1519, 4294901760
    %v1859 = vsub.f32 %v1519, %v1858
    %1860 = vmatmul.mubr.f32.gmra.mrb[0].mxu0 %v1859
    %v1861 = vpop.f32.mrb[0].mxu0
    %v1862 = vadd.f32 %v1752, %v1861
    %v1863 = vpop.f32.mrb[0].mxu0
    %v1864 = vadd.f32 %v1754, %v1863
    %1865 = vmatprep.mubr.f32.mxu0 0.0
    %v1866 = vand.u32 %v1521, 4294901760
    %v1867 = vsub.f32 %v1521, %v1866
    %1868 = vmatmul.mubr.f32.gmra.mrb[0].mxu0 %v1867
    %v1869 = vpop.f32.mrb[0].mxu0
    %v1870 = vadd.f32 %v1759, %v1869
    %v1871 = vpop.f32.mrb[0].mxu0
    %v1872 = vadd.f32 %v1761, %v1871
    %1873 = vmatprep.mubr.f32.mxu0 0.0
    %v1874 = vand.u32 %v1523, 4294901760
    %v1875 = vsub.f32 %v1523, %v1874
    %1876 = vmatmul.mubr.f32.gmra.mrb[0].mxu0 %v1875
    %v1877 = vpop.f32.mrb[0].mxu0
    %v1878 = vadd.f32 %v1766, %v1877
    %v1879 = vpop.f32.mrb[0].mxu0
    %v1880 = vadd.f32 %v1768, %v1879
    %1881 = vmatprep.mubr.f32.mxu0 0.0
    %v1882 = vand.u32 %v1525, 4294901760
    %v1883 = vsub.f32 %v1525, %v1882
    %1884 = vmatmul.mubr.f32.gmra.mrb[0].mxu0 %v1883
    %v1885 = vpop.f32.mrb[0].mxu0
    %v1886 = vadd.f32 %v1773, %v1885
    %v1887 = vpop.f32.mrb[0].mxu0
    %v1888 = vadd.f32 %v1775, %v1887
    %1889 = vdwg.mxu0
    %v1890 = vand.u32 %v1504, 4294901760
    %1891 = vmatprep.subr.mxu0 %v1890
    %v1892 = vand.u32 %v1503, 4294901760
    %1893 = vmatpush1.msra.mxu0 %v1892
    %v1894 = vand.u32 %v1506, 4294901760
    %1895 = vmatprep.subr.mxu0 %v1894
    %v1896 = vand.u32 %v1505, 4294901760
    %1897 = vmatpush1.msra.mxu0 %v1896
    %v1898 = vand.u32 %v1508, 4294901760
    %1899 = vmatprep.subr.mxu0 %v1898
    %v1900 = vand.u32 %v1507, 4294901760
    %1901 = vmatpush1.msra.mxu0 %v1900
    %v1902 = vand.u32 %v1510, 4294901760
    %1903 = vmatprep.subr.mxu0 %v1902
    %v1904 = vand.u32 %v1509, 4294901760
    %1905 = vmatpush1.msra.mxu0 %v1904
    %1906 = vmatprep.subr.mxu0 0.0
    %1907 = vmatpush1.msra.mxu0 0.0
    %1908 = vmatprep.subr.mxu0 0.0
    %1909 = vmatpush1.msra.mxu0 0.0
    %1910 = vmatprep.subr.mxu0 0.0
    %1911 = vmatpush1.msra.mxu0 0.0
    %1912 = vmatprep.subr.mxu0 0.0
    %1913 = vmatpush1.msra.mxu0 0.0
    %1914 = vmatprep.subr.mxu0 0.0
    %1915 = vmatpush1.msra.mxu0 0.0
    %1916 = vmatprep.subr.mxu0 0.0
    %1917 = vmatpush1.msra.mxu0 0.0
    %1918 = vmatprep.subr.mxu0 0.0
    %1919 = vmatpush1.msra.mxu0 0.0
    %1920 = vmatprep.subr.mxu0 0.0
    %1921 = vmatpush1.msra.mxu0 0.0
    %1922 = vmatprep.subr.mxu0 0.0
    %1923 = vmatpush1.msra.mxu0 0.0
    %1924 = vmatprep.subr.mxu0 0.0
    %1925 = vmatpush1.msra.mxu0 0.0
    %1926 = vmatprep.subr.mxu0 0.0
    %1927 = vmatpush1.msra.mxu0 0.0
    %1928 = vmatprep.subr.mxu0 0.0
    %1929 = vmatpush1.msra.mxu0 0.0
    %1930 = vmatprep.subr.mxu0 0.0
    %1931 = vmatpush1.msra.mxu0 0.0
    %1932 = vmatprep.subr.mxu0 0.0
    %1933 = vmatpush1.msra.mxu0 0.0
    %1934 = vmatprep.subr.mxu0 0.0
    %1935 = vmatpush1.msra.mxu0 0.0
    %1936 = vmatprep.subr.mxu0 0.0
    %1937 = vmatpush1.msra.mxu0 0.0
    %1938 = vmatprep.subr.mxu0 0.0
    %1939 = vmatpush1.msra.mxu0 0.0
    %1940 = vmatprep.subr.mxu0 0.0
    %1941 = vmatpush1.msra.mxu0 0.0
    %1942 = vmatprep.subr.mxu0 0.0
    %1943 = vmatpush1.msra.mxu0 0.0
    %1944 = vmatprep.subr.mxu0 0.0
    %1945 = vmatpush1.msra.mxu0 0.0
    %1946 = vmatprep.subr.mxu0 0.0
    %1947 = vmatpush1.msra.mxu0 0.0
    %1948 = vmatprep.subr.mxu0 0.0
    %1949 = vmatpush1.msra.mxu0 0.0
    %1950 = vmatprep.subr.mxu0 0.0
    %1951 = vmatpush1.msra.mxu0 0.0
    %1952 = vmatprep.subr.mxu0 0.0
    %1953 = vmatpush1.msra.mxu0 0.0
    %1954 = vmatprep.subr.mxu0 0.0
    %1955 = vmatpush1.msra.mxu0 0.0
    %1956 = vmatprep.subr.mxu0 0.0
    %1957 = vmatpush1.msra.mxu0 0.0
    %1958 = vmatprep.subr.mxu0 0.0
    %1959 = vmatpush1.msra.mxu0 0.0
    %1960 = vmatprep.subr.mxu0 0.0
    %1961 = vmatpush1.msra.mxu0 0.0
    %1962 = vmatprep.mubr.f32.mxu0 0.0
    %v1963 = vand.u32 %v1519, 4294901760
    %v1964 = vsub.f32 %v1519, %v1963
    %v1965 = vand.u32 %v1964, 4294901760
    %1966 = vmatmul.mubr.f32.gmra.mrb[0].mxu0 %v1965
    %v1967 = vpop.f32.mrb[0].mxu0
    %v1968 = vadd.f32 %v1862, %v1967
    %v1969 = vpop.f32.mrb[0].mxu0
    %v1970 = vadd.f32 %v1864, %v1969
    %1971 = vmatprep.mubr.f32.mxu0 0.0
    %v1972 = vand.u32 %v1521, 4294901760
    %v1973 = vsub.f32 %v1521, %v1972
    %v1974 = vand.u32 %v1973, 4294901760
    %1975 = vmatmul.mubr.f32.gmra.mrb[0].mxu0 %v1974
    %v1976 = vpop.f32.mrb[0].mxu0
    %v1977 = vadd.f32 %v1870, %v1976
    %v1978 = vpop.f32.mrb[0].mxu0
    %v1979 = vadd.f32 %v1872, %v1978
    %1980 = vmatprep.mubr.f32.mxu0 0.0
    %v1981 = vand.u32 %v1523, 4294901760
    %v1982 = vsub.f32 %v1523, %v1981
    %v1983 = vand.u32 %v1982, 4294901760
    %1984 = vmatmul.mubr.f32.gmra.mrb[0].mxu0 %v1983
    %v1985 = vpop.f32.mrb[0].mxu0
    %v1986 = vadd.f32 %v1878, %v1985
    %v1987 = vpop.f32.mrb[0].mxu0
    %v1988 = vadd.f32 %v1880, %v1987
    %1989 = vmatprep.mubr.f32.mxu0 0.0
    %v1990 = vand.u32 %v1525, 4294901760
    %v1991 = vsub.f32 %v1525, %v1990
    %v1992 = vand.u32 %v1991, 4294901760
    %1993 = vmatmul.mubr.f32.gmra.mrb[0].mxu0 %v1992
    %v1994 = vpop.f32.mrb[0].mxu0
    %v1995 = vadd.f32 %v1886, %v1994
    %v1996 = vpop.f32.mrb[0].mxu0
    %v1997 = vadd.f32 %v1888, %v1996
    %1998 = vdwg.mxu0
    %v1999 = vand.u32 %v1504, 4294901760
    %v2000 = vsub.f32 %v1504, %v1999
    %v2001 = vand.u32 %v2000, 4294901760
    %2002 = vmatprep.subr.mxu0 %v2001
    %v2003 = vand.u32 %v1503, 4294901760
    %v2004 = vsub.f32 %v1503, %v2003
    %v2005 = vand.u32 %v2004, 4294901760
    %2006 = vmatpush1.msra.mxu0 %v2005
    %v2007 = vand.u32 %v1506, 4294901760
    %v2008 = vsub.f32 %v1506, %v2007
    %v2009 = vand.u32 %v2008, 4294901760
    %2010 = vmatprep.subr.mxu0 %v2009
    %v2011 = vand.u32 %v1505, 4294901760
    %v2012 = vsub.f32 %v1505, %v2011
    %v2013 = vand.u32 %v2012, 4294901760
    %2014 = vmatpush1.msra.mxu0 %v2013
    %v2015 = vand.u32 %v1508, 4294901760
    %v2016 = vsub.f32 %v1508, %v2015
    %v2017 = vand.u32 %v2016, 4294901760
    %2018 = vmatprep.subr.mxu0 %v2017
    %v2019 = vand.u32 %v1507, 4294901760
    %v2020 = vsub.f32 %v1507, %v2019
    %v2021 = vand.u32 %v2020, 4294901760
    %2022 = vmatpush1.msra.mxu0 %v2021
    %v2023 = vand.u32 %v1510, 4294901760
    %v2024 = vsub.f32 %v1510, %v2023
    %v2025 = vand.u32 %v2024, 4294901760
    %2026 = vmatprep.subr.mxu0 %v2025
    %v2027 = vand.u32 %v1509, 4294901760
    %v2028 = vsub.f32 %v1509, %v2027
    %v2029 = vand.u32 %v2028, 4294901760
    %2030 = vmatpush1.msra.mxu0 %v2029
    %2031 = vmatprep.subr.mxu0 0.0
    %2032 = vmatpush1.msra.mxu0 0.0
    %2033 = vmatprep.subr.mxu0 0.0
    %2034 = vmatpush1.msra.mxu0 0.0
    %2035 = vmatprep.subr.mxu0 0.0
    %2036 = vmatpush1.msra.mxu0 0.0
    %2037 = vmatprep.subr.mxu0 0.0
    %2038 = vmatpush1.msra.mxu0 0.0
    %2039 = vmatprep.subr.mxu0 0.0
    %2040 = vmatpush1.msra.mxu0 0.0
    %2041 = vmatprep.subr.mxu0 0.0
    %2042 = vmatpush1.msra.mxu0 0.0
    %2043 = vmatprep.subr.mxu0 0.0
    %2044 = vmatpush1.msra.mxu0 0.0
    %2045 = vmatprep.subr.mxu0 0.0
    %2046 = vmatpush1.msra.mxu0 0.0
    %2047 = vmatprep.subr.mxu0 0.0
    %2048 = vmatpush1.msra.mxu0 0.0
    %2049 = vmatprep.subr.mxu0 0.0
    %2050 = vmatpush1.msra.mxu0 0.0
    %2051 = vmatprep.subr.mxu0 0.0
    %2052 = vmatpush1.msra.mxu0 0.0
    %2053 = vmatprep.subr.mxu0 0.0
    %2054 = vmatpush1.msra.mxu0 0.0
    %2055 = vmatprep.subr.mxu0 0.0
    %2056 = vmatpush1.msra.mxu0 0.0
    %2057 = vmatprep.subr.mxu0 0.0
    %2058 = vmatpush1.msra.mxu0 0.0
    %2059 = vmatprep.subr.mxu0 0.0
    %2060 = vmatpush1.msra.mxu0 0.0
    %2061 = vmatprep.subr.mxu0 0.0
    %2062 = vmatpush1.msra.mxu0 0.0
    %2063 = vmatprep.subr.mxu0 0.0
    %2064 = vmatpush1.msra.mxu0 0.0
    %2065 = vmatprep.subr.mxu0 0.0
    %2066 = vmatpush1.msra.mxu0 0.0
    %2067 = vmatprep.subr.mxu0 0.0
    %2068 = vmatpush1.msra.mxu0 0.0
    %2069 = vmatprep.subr.mxu0 0.0
    %2070 = vmatpush1.msra.mxu0 0.0
    %2071 = vmatprep.subr.mxu0 0.0
    %2072 = vmatpush1.msra.mxu0 0.0
    %2073 = vmatprep.subr.mxu0 0.0
    %2074 = vmatpush1.msra.mxu0 0.0
    %2075 = vmatprep.subr.mxu0 0.0
    %2076 = vmatpush1.msra.mxu0 0.0
    %2077 = vmatprep.subr.mxu0 0.0
    %2078 = vmatpush1.msra.mxu0 0.0
    %2079 = vmatprep.subr.mxu0 0.0
    %2080 = vmatpush1.msra.mxu0 0.0
    %2081 = vmatprep.subr.mxu0 0.0
    %2082 = vmatpush1.msra.mxu0 0.0
    %2083 = vmatprep.subr.mxu0 0.0
    %2084 = vmatpush1.msra.mxu0 0.0
    %2085 = vmatprep.subr.mxu0 0.0
    %2086 = vmatpush1.msra.mxu0 0.0
    %2087 = vmatprep.mubr.f32.mxu0 0.0
    %v2088 = vand.u32 %v1519, 4294901760
    %2089 = vmatmul.mubr.f32.gmra.mrb[0].mxu0 %v2088
    %v2090 = vpop.f32.mrb[0].mxu0
    %v2091 = vadd.f32 %v1968, %v2090
    %v2092 = vpop.f32.mrb[0].mxu0
    %v2093 = vadd.f32 %v1970, %v2092
    %2094 = vmatprep.mubr.f32.mxu0 0.0
    %v2095 = vand.u32 %v1521, 4294901760
    %2096 = vmatmul.mubr.f32.gmra.mrb[0].mxu0 %v2095
    %v2097 = vpop.f32.mrb[0].mxu0
    %v2098 = vadd.f32 %v1977, %v2097
    %v2099 = vpop.f32.mrb[0].mxu0
    %v2100 = vadd.f32 %v1979, %v2099
    %2101 = vmatprep.mubr.f32.mxu0 0.0
    %v2102 = vand.u32 %v1523, 4294901760
    %2103 = vmatmul.mubr.f32.gmra.mrb[0].mxu0 %v2102
    %v2104 = vpop.f32.mrb[0].mxu0
    %v2105 = vadd.f32 %v1986, %v2104
    %v2106 = vpop.f32.mrb[0].mxu0
    %v2107 = vadd.f32 %v1988, %v2106
    %2108 = vmatprep.mubr.f32.mxu0 0.0
    %v2109 = vand.u32 %v1525, 4294901760
    %2110 = vmatmul.mubr.f32.gmra.mrb[0].mxu0 %v2109
    %v2111 = vpop.f32.mrb[0].mxu0
    %v2112 = vadd.f32 %v1995, %v2111
    %v2113 = vpop.f32.mrb[0].mxu0
    %v2114 = vadd.f32 %v1997, %v2113
    %2115 = vdwg.mxu0
    %v2116 = vand.u32 %v1504, 4294901760
    %2117 = vmatprep.subr.mxu0 %v2116
    %v2118 = vand.u32 %v1503, 4294901760
    %2119 = vmatpush1.msra.mxu0 %v2118
    %v2120 = vand.u32 %v1506, 4294901760
    %2121 = vmatprep.subr.mxu0 %v2120
    %v2122 = vand.u32 %v1505, 4294901760
    %2123 = vmatpush1.msra.mxu0 %v2122
    %v2124 = vand.u32 %v1508, 4294901760
    %2125 = vmatprep.subr.mxu0 %v2124
    %v2126 = vand.u32 %v1507, 4294901760
    %2127 = vmatpush1.msra.mxu0 %v2126
    %v2128 = vand.u32 %v1510, 4294901760
    %2129 = vmatprep.subr.mxu0 %v2128
    %v2130 = vand.u32 %v1509, 4294901760
    %2131 = vmatpush1.msra.mxu0 %v2130
    %2132 = vmatprep.subr.mxu0 0.0
    %2133 = vmatpush1.msra.mxu0 0.0
    %2134 = vmatprep.subr.mxu0 0.0
    %2135 = vmatpush1.msra.mxu0 0.0
    %2136 = vmatprep.subr.mxu0 0.0
    %2137 = vmatpush1.msra.mxu0 0.0
    %2138 = vmatprep.subr.mxu0 0.0
    %2139 = vmatpush1.msra.mxu0 0.0
    %2140 = vmatprep.subr.mxu0 0.0
    %2141 = vmatpush1.msra.mxu0 0.0
    %2142 = vmatprep.subr.mxu0 0.0
    %2143 = vmatpush1.msra.mxu0 0.0
    %2144 = vmatprep.subr.mxu0 0.0
    %2145 = vmatpush1.msra.mxu0 0.0
    %2146 = vmatprep.subr.mxu0 0.0
    %2147 = vmatpush1.msra.mxu0 0.0
    %2148 = vmatprep.subr.mxu0 0.0
    %2149 = vmatpush1.msra.mxu0 0.0
    %2150 = vmatprep.subr.mxu0 0.0
    %2151 = vmatpush1.msra.mxu0 0.0
    %2152 = vmatprep.subr.mxu0 0.0
    %2153 = vmatpush1.msra.mxu0 0.0
    %2154 = vmatprep.subr.mxu0 0.0
    %2155 = vmatpush1.msra.mxu0 0.0
    %2156 = vmatprep.subr.mxu0 0.0
    %2157 = vmatpush1.msra.mxu0 0.0
    %2158 = vmatprep.subr.mxu0 0.0
    %2159 = vmatpush1.msra.mxu0 0.0
    %2160 = vmatprep.subr.mxu0 0.0
    %2161 = vmatpush1.msra.mxu0 0.0
    %2162 = vmatprep.subr.mxu0 0.0
    %2163 = vmatpush1.msra.mxu0 0.0
    %2164 = vmatprep.subr.mxu0 0.0
    %2165 = vmatpush1.msra.mxu0 0.0
    %2166 = vmatprep.subr.mxu0 0.0
    %2167 = vmatpush1.msra.mxu0 0.0
    %2168 = vmatprep.subr.mxu0 0.0
    %2169 = vmatpush1.msra.mxu0 0.0
    %2170 = vmatprep.subr.mxu0 0.0
    %2171 = vmatpush1.msra.mxu0 0.0
    %2172 = vmatprep.subr.mxu0 0.0
    %2173 = vmatpush1.msra.mxu0 0.0
    %2174 = vmatprep.subr.mxu0 0.0
    %2175 = vmatpush1.msra.mxu0 0.0
    %2176 = vmatprep.subr.mxu0 0.0
    %2177 = vmatpush1.msra.mxu0 0.0
    %2178 = vmatprep.subr.mxu0 0.0
    %2179 = vmatpush1.msra.mxu0 0.0
    %2180 = vmatprep.subr.mxu0 0.0
    %2181 = vmatpush1.msra.mxu0 0.0
    %2182 = vmatprep.subr.mxu0 0.0
    %2183 = vmatpush1.msra.mxu0 0.0
    %2184 = vmatprep.subr.mxu0 0.0
    %2185 = vmatpush1.msra.mxu0 0.0
    %2186 = vmatprep.subr.mxu0 0.0
    %2187 = vmatpush1.msra.mxu0 0.0
    %2188 = vmatprep.mubr.f32.mxu0 0.0
    %v2189 = vand.u32 %v1519, 4294901760
    %2190 = vmatmul.mubr.f32.gmra.mrb[0].mxu0 %v2189
    %v2191 = vpop.f32.mrb[0].mxu0
    %v2192 = vadd.f32 %v2091, %v2191
    %v2193 = vpop.f32.mrb[0].mxu0
    %v2194 = vadd.f32 %v2093, %v2193
    %2195 = vmatprep.mubr.f32.mxu0 0.0
    %v2196 = vand.u32 %v1521, 4294901760
    %2197 = vmatmul.mubr.f32.gmra.mrb[0].mxu0 %v2196
    %v2198 = vpop.f32.mrb[0].mxu0
    %v2199 = vadd.f32 %v2098, %v2198
    %v2200 = vpop.f32.mrb[0].mxu0
    %v2201 = vadd.f32 %v2100, %v2200
    %2202 = vmatprep.mubr.f32.mxu0 0.0
    %v2203 = vand.u32 %v1523, 4294901760
    %2204 = vmatmul.mubr.f32.gmra.mrb[0].mxu0 %v2203
    %v2205 = vpop.f32.mrb[0].mxu0
    %v2206 = vadd.f32 %v2105, %v2205
    %v2207 = vpop.f32.mrb[0].mxu0
    %v2208 = vadd.f32 %v2107, %v2207
    %2209 = vmatprep.mubr.f32.mxu0 0.0
    %v2210 = vand.u32 %v1525, 4294901760
    %2211 = vmatmul.mubr.f32.gmra.mrb[0].mxu0 %v2210
    %v2212 = vpop.f32.mrb[0].mxu0
    %v2213 = vadd.f32 %v2112, %v2212
    %v2214 = vpop.f32.mrb[0].mxu0
    %v2215 = vadd.f32 %v2114, %v2214
    %2216 = vdwg.mxu0
    %v2217 = vsel %vm79, %v46, 0
    %v2219 = vsel %vm79, %v47, 0
    %v2221 = vsel %vm79, %v48, 0
    %v2223 = vsel %vm79, %v49, 0
    %v2225 = vand.u32 %v51, 4294901760
    %2226 = vmatprep.subr.mxu0 %v2225
    %v2227 = vand.u32 %v50, 4294901760
    %2228 = vmatpush1.msra.mxu0 %v2227
    %v2229 = vand.u32 %v53, 4294901760
    %2230 = vmatprep.subr.mxu0 %v2229
    %v2231 = vand.u32 %v52, 4294901760
    %2232 = vmatpush1.msra.mxu0 %v2231
    %v2233 = vand.u32 %v55, 4294901760
    %2234 = vmatprep.subr.mxu0 %v2233
    %v2235 = vand.u32 %v54, 4294901760
    %2236 = vmatpush1.msra.mxu0 %v2235
    %v2237 = vand.u32 %v57, 4294901760
    %2238 = vmatprep.subr.mxu0 %v2237
    %v2239 = vand.u32 %v56, 4294901760
    %2240 = vmatpush1.msra.mxu0 %v2239
    %2241 = vmatprep.subr.mxu0 0.0
    %2242 = vmatpush1.msra.mxu0 0.0
    %2243 = vmatprep.subr.mxu0 0.0
    %2244 = vmatpush1.msra.mxu0 0.0
    %2245 = vmatprep.subr.mxu0 0.0
    %2246 = vmatpush1.msra.mxu0 0.0
    %2247 = vmatprep.subr.mxu0 0.0
    %2248 = vmatpush1.msra.mxu0 0.0
    %2249 = vmatprep.subr.mxu0 0.0
    %2250 = vmatpush1.msra.mxu0 0.0
    %2251 = vmatprep.subr.mxu0 0.0
    %2252 = vmatpush1.msra.mxu0 0.0
    %2253 = vmatprep.subr.mxu0 0.0
    %2254 = vmatpush1.msra.mxu0 0.0
    %2255 = vmatprep.subr.mxu0 0.0
    %2256 = vmatpush1.msra.mxu0 0.0
    %2257 = vmatprep.subr.mxu0 0.0
    %2258 = vmatpush1.msra.mxu0 0.0
    %2259 = vmatprep.subr.mxu0 0.0
    %2260 = vmatpush1.msra.mxu0 0.0
    %2261 = vmatprep.subr.mxu0 0.0
    %2262 = vmatpush1.msra.mxu0 0.0
    %2263 = vmatprep.subr.mxu0 0.0
    %2264 = vmatpush1.msra.mxu0 0.0
    %2265 = vmatprep.subr.mxu0 0.0
    %2266 = vmatpush1.msra.mxu0 0.0
    %2267 = vmatprep.subr.mxu0 0.0
    %2268 = vmatpush1.msra.mxu0 0.0
    %2269 = vmatprep.subr.mxu0 0.0
    %2270 = vmatpush1.msra.mxu0 0.0
    %2271 = vmatprep.subr.mxu0 0.0
    %2272 = vmatpush1.msra.mxu0 0.0
    %2273 = vmatprep.subr.mxu0 0.0
    %2274 = vmatpush1.msra.mxu0 0.0
    %2275 = vmatprep.subr.mxu0 0.0
    %2276 = vmatpush1.msra.mxu0 0.0
    %2277 = vmatprep.subr.mxu0 0.0
    %2278 = vmatpush1.msra.mxu0 0.0
    %2279 = vmatprep.subr.mxu0 0.0
    %2280 = vmatpush1.msra.mxu0 0.0
    %2281 = vmatprep.subr.mxu0 0.0
    %2282 = vmatpush1.msra.mxu0 0.0
    %2283 = vmatprep.subr.mxu0 0.0
    %2284 = vmatpush1.msra.mxu0 0.0
    %2285 = vmatprep.subr.mxu0 0.0
    %2286 = vmatpush1.msra.mxu0 0.0
    %2287 = vmatprep.subr.mxu0 0.0
    %2288 = vmatpush1.msra.mxu0 0.0
    %2289 = vmatprep.subr.mxu0 0.0
    %2290 = vmatpush1.msra.mxu0 0.0
    %2291 = vmatprep.subr.mxu0 0.0
    %2292 = vmatpush1.msra.mxu0 0.0
    %2293 = vmatprep.subr.mxu0 0.0
    %2294 = vmatpush1.msra.mxu0 0.0
    %2295 = vmatprep.subr.mxu0 0.0
    %2296 = vmatpush1.msra.mxu0 0.0
    %2297 = vmatprep.mubr.f32.mxu0 0.0
    %v2298 = vand.u32 %v2217, 4294901760
    %v2299 = vsub.f32 %v2217, %v2298
    %v2300 = vand.u32 %v2299, 4294901760
    %v2301 = vsub.f32 %v2299, %v2300
    %v2302 = vand.u32 %v2301, 4294901760
    %2303 = vmatmul.mubr.f32.gmra.mrb[0].mxu0 %v2302
    %v2304 = vpop.f32.mrb[0].mxu0
    %v2305 = vadd.f32 %v753, %v2304
    %v2306 = vpop.f32.mrb[0].mxu0
    %v2307 = vadd.f32 %v755, %v2306
    %2308 = vmatprep.mubr.f32.mxu0 0.0
    %v2309 = vand.u32 %v2219, 4294901760
    %v2310 = vsub.f32 %v2219, %v2309
    %v2311 = vand.u32 %v2310, 4294901760
    %v2312 = vsub.f32 %v2310, %v2311
    %v2313 = vand.u32 %v2312, 4294901760
    %2314 = vmatmul.mubr.f32.gmra.mrb[0].mxu0 %v2313
    %v2315 = vpop.f32.mrb[0].mxu0
    %v2316 = vadd.f32 %v760, %v2315
    %v2317 = vpop.f32.mrb[0].mxu0
    %v2318 = vadd.f32 %v762, %v2317
    %2319 = vmatprep.mubr.f32.mxu0 0.0
    %v2320 = vand.u32 %v2221, 4294901760
    %v2321 = vsub.f32 %v2221, %v2320
    %v2322 = vand.u32 %v2321, 4294901760
    %v2323 = vsub.f32 %v2321, %v2322
    %v2324 = vand.u32 %v2323, 4294901760
    %2325 = vmatmul.mubr.f32.gmra.mrb[0].mxu0 %v2324
    %v2326 = vpop.f32.mrb[0].mxu0
    %v2327 = vadd.f32 %v767, %v2326
    %v2328 = vpop.f32.mrb[0].mxu0
    %v2329 = vadd.f32 %v769, %v2328
    %2330 = vmatprep.mubr.f32.mxu0 0.0
    %v2331 = vand.u32 %v2223, 4294901760
    %v2332 = vsub.f32 %v2223, %v2331
    %v2333 = vand.u32 %v2332, 4294901760
    %v2334 = vsub.f32 %v2332, %v2333
    %v2335 = vand.u32 %v2334, 4294901760
    %2336 = vmatmul.mubr.f32.gmra.mrb[0].mxu0 %v2335
    %v2337 = vpop.f32.mrb[0].mxu0
    %v2338 = vadd.f32 %v774, %v2337
    %v2339 = vpop.f32.mrb[0].mxu0
    %v2340 = vadd.f32 %v776, %v2339
    %2341 = vdwg.mxu0
    %v2342 = vand.u32 %v51, 4294901760
    %v2343 = vsub.f32 %v51, %v2342
    %v2344 = vand.u32 %v2343, 4294901760
    %v2345 = vsub.f32 %v2343, %v2344
    %v2346 = vand.u32 %v2345, 4294901760
    %2347 = vmatprep.subr.mxu0 %v2346
    %v2348 = vand.u32 %v50, 4294901760
    %v2349 = vsub.f32 %v50, %v2348
    %v2350 = vand.u32 %v2349, 4294901760
    %v2351 = vsub.f32 %v2349, %v2350
    %v2352 = vand.u32 %v2351, 4294901760
    %2353 = vmatpush1.msra.mxu0 %v2352
    %v2354 = vand.u32 %v53, 4294901760
    %v2355 = vsub.f32 %v53, %v2354
    %v2356 = vand.u32 %v2355, 4294901760
    %v2357 = vsub.f32 %v2355, %v2356
    %v2358 = vand.u32 %v2357, 4294901760
    %2359 = vmatprep.subr.mxu0 %v2358
    %v2360 = vand.u32 %v52, 4294901760
    %v2361 = vsub.f32 %v52, %v2360
    %v2362 = vand.u32 %v2361, 4294901760
    %v2363 = vsub.f32 %v2361, %v2362
    %v2364 = vand.u32 %v2363, 4294901760
    %2365 = vmatpush1.msra.mxu0 %v2364
    %v2366 = vand.u32 %v55, 4294901760
    %v2367 = vsub.f32 %v55, %v2366
    %v2368 = vand.u32 %v2367, 4294901760
    %v2369 = vsub.f32 %v2367, %v2368
    %v2370 = vand.u32 %v2369, 4294901760
    %2371 = vmatprep.subr.mxu0 %v2370
    %v2372 = vand.u32 %v54, 4294901760
    %v2373 = vsub.f32 %v54, %v2372
    %v2374 = vand.u32 %v2373, 4294901760
    %v2375 = vsub.f32 %v2373, %v2374
    %v2376 = vand.u32 %v2375, 4294901760
    %2377 = vmatpush1.msra.mxu0 %v2376
    %v2378 = vand.u32 %v57, 4294901760
    %v2379 = vsub.f32 %v57, %v2378
    %v2380 = vand.u32 %v2379, 4294901760
    %v2381 = vsub.f32 %v2379, %v2380
    %v2382 = vand.u32 %v2381, 4294901760
    %2383 = vmatprep.subr.mxu0 %v2382
    %v2384 = vand.u32 %v56, 4294901760
    %v2385 = vsub.f32 %v56, %v2384
    %v2386 = vand.u32 %v2385, 4294901760
    %v2387 = vsub.f32 %v2385, %v2386
    %v2388 = vand.u32 %v2387, 4294901760
    %2389 = vmatpush1.msra.mxu0 %v2388
    %2390 = vmatprep.subr.mxu0 0.0
    %2391 = vmatpush1.msra.mxu0 0.0
    %2392 = vmatprep.subr.mxu0 0.0
    %2393 = vmatpush1.msra.mxu0 0.0
    %2394 = vmatprep.subr.mxu0 0.0
    %2395 = vmatpush1.msra.mxu0 0.0
    %2396 = vmatprep.subr.mxu0 0.0
    %2397 = vmatpush1.msra.mxu0 0.0
    %2398 = vmatprep.subr.mxu0 0.0
    %2399 = vmatpush1.msra.mxu0 0.0
    %2400 = vmatprep.subr.mxu0 0.0
    %2401 = vmatpush1.msra.mxu0 0.0
    %2402 = vmatprep.subr.mxu0 0.0
    %2403 = vmatpush1.msra.mxu0 0.0
    %2404 = vmatprep.subr.mxu0 0.0
    %2405 = vmatpush1.msra.mxu0 0.0
    %2406 = vmatprep.subr.mxu0 0.0
    %2407 = vmatpush1.msra.mxu0 0.0
    %2408 = vmatprep.subr.mxu0 0.0
    %2409 = vmatpush1.msra.mxu0 0.0
    %2410 = vmatprep.subr.mxu0 0.0
    %2411 = vmatpush1.msra.mxu0 0.0
    %2412 = vmatprep.subr.mxu0 0.0
    %2413 = vmatpush1.msra.mxu0 0.0
    %2414 = vmatprep.subr.mxu0 0.0
    %2415 = vmatpush1.msra.mxu0 0.0
    %2416 = vmatprep.subr.mxu0 0.0
    %2417 = vmatpush1.msra.mxu0 0.0
    %2418 = vmatprep.subr.mxu0 0.0
    %2419 = vmatpush1.msra.mxu0 0.0
    %2420 = vmatprep.subr.mxu0 0.0
    %2421 = vmatpush1.msra.mxu0 0.0
    %2422 = vmatprep.subr.mxu0 0.0
    %2423 = vmatpush1.msra.mxu0 0.0
    %2424 = vmatprep.subr.mxu0 0.0
    %2425 = vmatpush1.msra.mxu0 0.0
    %2426 = vmatprep.subr.mxu0 0.0
    %2427 = vmatpush1.msra.mxu0 0.0
    %2428 = vmatprep.subr.mxu0 0.0
    %2429 = vmatpush1.msra.mxu0 0.0
    %2430 = vmatprep.subr.mxu0 0.0
    %2431 = vmatpush1.msra.mxu0 0.0
    %2432 = vmatprep.subr.mxu0 0.0
    %2433 = vmatpush1.msra.mxu0 0.0
    %2434 = vmatprep.subr.mxu0 0.0
    %2435 = vmatpush1.msra.mxu0 0.0
    %2436 = vmatprep.subr.mxu0 0.0
    %2437 = vmatpush1.msra.mxu0 0.0
    %2438 = vmatprep.subr.mxu0 0.0
    %2439 = vmatpush1.msra.mxu0 0.0
    %2440 = vmatprep.subr.mxu0 0.0
    %2441 = vmatpush1.msra.mxu0 0.0
    %2442 = vmatprep.subr.mxu0 0.0
    %2443 = vmatpush1.msra.mxu0 0.0
    %2444 = vmatprep.subr.mxu0 0.0
    %2445 = vmatpush1.msra.mxu0 0.0
    %2446 = vmatprep.mubr.f32.mxu0 0.0
    %v2447 = vand.u32 %v2217, 4294901760
    %2448 = vmatmul.mubr.f32.gmra.mrb[0].mxu0 %v2447
    %v2449 = vpop.f32.mrb[0].mxu0
    %v2450 = vadd.f32 %v2305, %v2449
    %v2451 = vpop.f32.mrb[0].mxu0
    %v2452 = vadd.f32 %v2307, %v2451
    %2453 = vmatprep.mubr.f32.mxu0 0.0
    %v2454 = vand.u32 %v2219, 4294901760
    %2455 = vmatmul.mubr.f32.gmra.mrb[0].mxu0 %v2454
    %v2456 = vpop.f32.mrb[0].mxu0
    %v2457 = vadd.f32 %v2316, %v2456
    %v2458 = vpop.f32.mrb[0].mxu0
    %v2459 = vadd.f32 %v2318, %v2458
    %2460 = vmatprep.mubr.f32.mxu0 0.0
    %v2461 = vand.u32 %v2221, 4294901760
    %2462 = vmatmul.mubr.f32.gmra.mrb[0].mxu0 %v2461
    %v2463 = vpop.f32.mrb[0].mxu0
    %v2464 = vadd.f32 %v2327, %v2463
    %v2465 = vpop.f32.mrb[0].mxu0
    %v2466 = vadd.f32 %v2329, %v2465
    %2467 = vmatprep.mubr.f32.mxu0 0.0
    %v2468 = vand.u32 %v2223, 4294901760
    %2469 = vmatmul.mubr.f32.gmra.mrb[0].mxu0 %v2468
    %v2470 = vpop.f32.mrb[0].mxu0
    %v2471 = vadd.f32 %v2338, %v2470
    %v2472 = vpop.f32.mrb[0].mxu0
    %v2473 = vadd.f32 %v2340, %v2472
    %2474 = vdwg.mxu0
    %v2475 = vand.u32 %v51, 4294901760
    %v2476 = vsub.f32 %v51, %v2475
    %2477 = vmatprep.subr.mxu0 %v2476
    %v2478 = vand.u32 %v50, 4294901760
    %v2479 = vsub.f32 %v50, %v2478
    %2480 = vmatpush1.msra.mxu0 %v2479
    %v2481 = vand.u32 %v53, 4294901760
    %v2482 = vsub.f32 %v53, %v2481
    %2483 = vmatprep.subr.mxu0 %v2482
    %v2484 = vand.u32 %v52, 4294901760
    %v2485 = vsub.f32 %v52, %v2484
    %2486 = vmatpush1.msra.mxu0 %v2485
    %v2487 = vand.u32 %v55, 4294901760
    %v2488 = vsub.f32 %v55, %v2487
    %2489 = vmatprep.subr.mxu0 %v2488
    %v2490 = vand.u32 %v54, 4294901760
    %v2491 = vsub.f32 %v54, %v2490
    %2492 = vmatpush1.msra.mxu0 %v2491
    %v2493 = vand.u32 %v57, 4294901760
    %v2494 = vsub.f32 %v57, %v2493
    %2495 = vmatprep.subr.mxu0 %v2494
    %v2496 = vand.u32 %v56, 4294901760
    %v2497 = vsub.f32 %v56, %v2496
    %2498 = vmatpush1.msra.mxu0 %v2497
    %2499 = vmatprep.subr.mxu0 0.0
    %2500 = vmatpush1.msra.mxu0 0.0
    %2501 = vmatprep.subr.mxu0 0.0
    %2502 = vmatpush1.msra.mxu0 0.0
    %2503 = vmatprep.subr.mxu0 0.0
    %2504 = vmatpush1.msra.mxu0 0.0
    %2505 = vmatprep.subr.mxu0 0.0
    %2506 = vmatpush1.msra.mxu0 0.0
    %2507 = vmatprep.subr.mxu0 0.0
    %2508 = vmatpush1.msra.mxu0 0.0
    %2509 = vmatprep.subr.mxu0 0.0
    %2510 = vmatpush1.msra.mxu0 0.0
    %2511 = vmatprep.subr.mxu0 0.0
    %2512 = vmatpush1.msra.mxu0 0.0
    %2513 = vmatprep.subr.mxu0 0.0
    %2514 = vmatpush1.msra.mxu0 0.0
    %2515 = vmatprep.subr.mxu0 0.0
    %2516 = vmatpush1.msra.mxu0 0.0
    %2517 = vmatprep.subr.mxu0 0.0
    %2518 = vmatpush1.msra.mxu0 0.0
    %2519 = vmatprep.subr.mxu0 0.0
    %2520 = vmatpush1.msra.mxu0 0.0
    %2521 = vmatprep.subr.mxu0 0.0
    %2522 = vmatpush1.msra.mxu0 0.0
    %2523 = vmatprep.subr.mxu0 0.0
    %2524 = vmatpush1.msra.mxu0 0.0
    %2525 = vmatprep.subr.mxu0 0.0
    %2526 = vmatpush1.msra.mxu0 0.0
    %2527 = vmatprep.subr.mxu0 0.0
    %2528 = vmatpush1.msra.mxu0 0.0
    %2529 = vmatprep.subr.mxu0 0.0
    %2530 = vmatpush1.msra.mxu0 0.0
    %2531 = vmatprep.subr.mxu0 0.0
    %2532 = vmatpush1.msra.mxu0 0.0
    %2533 = vmatprep.subr.mxu0 0.0
    %2534 = vmatpush1.msra.mxu0 0.0
    %2535 = vmatprep.subr.mxu0 0.0
    %2536 = vmatpush1.msra.mxu0 0.0
    %2537 = vmatprep.subr.mxu0 0.0
    %2538 = vmatpush1.msra.mxu0 0.0
    %2539 = vmatprep.subr.mxu0 0.0
    %2540 = vmatpush1.msra.mxu0 0.0
    %2541 = vmatprep.subr.mxu0 0.0
    %2542 = vmatpush1.msra.mxu0 0.0
    %2543 = vmatprep.subr.mxu0 0.0
    %2544 = vmatpush1.msra.mxu0 0.0
    %2545 = vmatprep.subr.mxu0 0.0
    %2546 = vmatpush1.msra.mxu0 0.0
    %2547 = vmatprep.subr.mxu0 0.0
    %2548 = vmatpush1.msra.mxu0 0.0
    %2549 = vmatprep.subr.mxu0 0.0
    %2550 = vmatpush1.msra.mxu0 0.0
    %2551 = vmatprep.subr.mxu0 0.0
    %2552 = vmatpush1.msra.mxu0 0.0
    %2553 = vmatprep.subr.mxu0 0.0
    %2554 = vmatpush1.msra.mxu0 0.0
    %2555 = vmatprep.mubr.f32.mxu0 0.0
    %v2556 = vand.u32 %v2217, 4294901760
    %v2557 = vsub.f32 %v2217, %v2556
    %2558 = vmatmul.mubr.f32.gmra.mrb[0].mxu0 %v2557
    %v2559 = vpop.f32.mrb[0].mxu0
    %v2560 = vadd.f32 %v2450, %v2559
    %v2561 = vpop.f32.mrb[0].mxu0
    %v2562 = vadd.f32 %v2452, %v2561
    %2563 = vmatprep.mubr.f32.mxu0 0.0
    %v2564 = vand.u32 %v2219, 4294901760
    %v2565 = vsub.f32 %v2219, %v2564
    %2566 = vmatmul.mubr.f32.gmra.mrb[0].mxu0 %v2565
    %v2567 = vpop.f32.mrb[0].mxu0
    %v2568 = vadd.f32 %v2457, %v2567
    %v2569 = vpop.f32.mrb[0].mxu0
    %v2570 = vadd.f32 %v2459, %v2569
    %2571 = vmatprep.mubr.f32.mxu0 0.0
    %v2572 = vand.u32 %v2221, 4294901760
    %v2573 = vsub.f32 %v2221, %v2572
    %2574 = vmatmul.mubr.f32.gmra.mrb[0].mxu0 %v2573
    %v2575 = vpop.f32.mrb[0].mxu0
    %v2576 = vadd.f32 %v2464, %v2575
    %v2577 = vpop.f32.mrb[0].mxu0
    %v2578 = vadd.f32 %v2466, %v2577
    %2579 = vmatprep.mubr.f32.mxu0 0.0
    %v2580 = vand.u32 %v2223, 4294901760
    %v2581 = vsub.f32 %v2223, %v2580
    %2582 = vmatmul.mubr.f32.gmra.mrb[0].mxu0 %v2581
    %v2583 = vpop.f32.mrb[0].mxu0
    %v2584 = vadd.f32 %v2471, %v2583
    %v2585 = vpop.f32.mrb[0].mxu0
    %v2586 = vadd.f32 %v2473, %v2585
    %2587 = vdwg.mxu0
    %v2588 = vand.u32 %v51, 4294901760
    %2589 = vmatprep.subr.mxu0 %v2588
    %v2590 = vand.u32 %v50, 4294901760
    %2591 = vmatpush1.msra.mxu0 %v2590
    %v2592 = vand.u32 %v53, 4294901760
    %2593 = vmatprep.subr.mxu0 %v2592
    %v2594 = vand.u32 %v52, 4294901760
    %2595 = vmatpush1.msra.mxu0 %v2594
    %v2596 = vand.u32 %v55, 4294901760
    %2597 = vmatprep.subr.mxu0 %v2596
    %v2598 = vand.u32 %v54, 4294901760
    %2599 = vmatpush1.msra.mxu0 %v2598
    %v2600 = vand.u32 %v57, 4294901760
    %2601 = vmatprep.subr.mxu0 %v2600
    %v2602 = vand.u32 %v56, 4294901760
    %2603 = vmatpush1.msra.mxu0 %v2602
    %2604 = vmatprep.subr.mxu0 0.0
    %2605 = vmatpush1.msra.mxu0 0.0
    %2606 = vmatprep.subr.mxu0 0.0
    %2607 = vmatpush1.msra.mxu0 0.0
    %2608 = vmatprep.subr.mxu0 0.0
    %2609 = vmatpush1.msra.mxu0 0.0
    %2610 = vmatprep.subr.mxu0 0.0
    %2611 = vmatpush1.msra.mxu0 0.0
    %2612 = vmatprep.subr.mxu0 0.0
    %2613 = vmatpush1.msra.mxu0 0.0
    %2614 = vmatprep.subr.mxu0 0.0
    %2615 = vmatpush1.msra.mxu0 0.0
    %2616 = vmatprep.subr.mxu0 0.0
    %2617 = vmatpush1.msra.mxu0 0.0
    %2618 = vmatprep.subr.mxu0 0.0
    %2619 = vmatpush1.msra.mxu0 0.0
    %2620 = vmatprep.subr.mxu0 0.0
    %2621 = vmatpush1.msra.mxu0 0.0
    %2622 = vmatprep.subr.mxu0 0.0
    %2623 = vmatpush1.msra.mxu0 0.0
    %2624 = vmatprep.subr.mxu0 0.0
    %2625 = vmatpush1.msra.mxu0 0.0
    %2626 = vmatprep.subr.mxu0 0.0
    %2627 = vmatpush1.msra.mxu0 0.0
    %2628 = vmatprep.subr.mxu0 0.0
    %2629 = vmatpush1.msra.mxu0 0.0
    %2630 = vmatprep.subr.mxu0 0.0
    %2631 = vmatpush1.msra.mxu0 0.0
    %2632 = vmatprep.subr.mxu0 0.0
    %2633 = vmatpush1.msra.mxu0 0.0
    %2634 = vmatprep.subr.mxu0 0.0
    %2635 = vmatpush1.msra.mxu0 0.0
    %2636 = vmatprep.subr.mxu0 0.0
    %2637 = vmatpush1.msra.mxu0 0.0
    %2638 = vmatprep.subr.mxu0 0.0
    %2639 = vmatpush1.msra.mxu0 0.0
    %2640 = vmatprep.subr.mxu0 0.0
    %2641 = vmatpush1.msra.mxu0 0.0
    %2642 = vmatprep.subr.mxu0 0.0
    %2643 = vmatpush1.msra.mxu0 0.0
    %2644 = vmatprep.subr.mxu0 0.0
    %2645 = vmatpush1.msra.mxu0 0.0
    %2646 = vmatprep.subr.mxu0 0.0
    %2647 = vmatpush1.msra.mxu0 0.0
    %2648 = vmatprep.subr.mxu0 0.0
    %2649 = vmatpush1.msra.mxu0 0.0
    %2650 = vmatprep.subr.mxu0 0.0
    %2651 = vmatpush1.msra.mxu0 0.0
    %2652 = vmatprep.subr.mxu0 0.0
    %2653 = vmatpush1.msra.mxu0 0.0
    %2654 = vmatprep.subr.mxu0 0.0
    %2655 = vmatpush1.msra.mxu0 0.0
    %2656 = vmatprep.subr.mxu0 0.0
    %2657 = vmatpush1.msra.mxu0 0.0
    %2658 = vmatprep.subr.mxu0 0.0
    %2659 = vmatpush1.msra.mxu0 0.0
    %2660 = vmatprep.mubr.f32.mxu0 0.0
    %v2661 = vand.u32 %v2217, 4294901760
    %v2662 = vsub.f32 %v2217, %v2661
    %v2663 = vand.u32 %v2662, 4294901760
    %2664 = vmatmul.mubr.f32.gmra.mrb[0].mxu0 %v2663
    %v2665 = vpop.f32.mrb[0].mxu0
    %v2666 = vadd.f32 %v2560, %v2665
    %v2667 = vpop.f32.mrb[0].mxu0
    %v2668 = vadd.f32 %v2562, %v2667
    %2669 = vmatprep.mubr.f32.mxu0 0.0
    %v2670 = vand.u32 %v2219, 4294901760
    %v2671 = vsub.f32 %v2219, %v2670
    %v2672 = vand.u32 %v2671, 4294901760
    %2673 = vmatmul.mubr.f32.gmra.mrb[0].mxu0 %v2672
    %v2674 = vpop.f32.mrb[0].mxu0
    %v2675 = vadd.f32 %v2568, %v2674
    %v2676 = vpop.f32.mrb[0].mxu0
    %v2677 = vadd.f32 %v2570, %v2676
    %2678 = vmatprep.mubr.f32.mxu0 0.0
    %v2679 = vand.u32 %v2221, 4294901760
    %v2680 = vsub.f32 %v2221, %v2679
    %v2681 = vand.u32 %v2680, 4294901760
    %2682 = vmatmul.mubr.f32.gmra.mrb[0].mxu0 %v2681
    %v2683 = vpop.f32.mrb[0].mxu0
    %v2684 = vadd.f32 %v2576, %v2683
    %v2685 = vpop.f32.mrb[0].mxu0
    %v2686 = vadd.f32 %v2578, %v2685
    %2687 = vmatprep.mubr.f32.mxu0 0.0
    %v2688 = vand.u32 %v2223, 4294901760
    %v2689 = vsub.f32 %v2223, %v2688
    %v2690 = vand.u32 %v2689, 4294901760
    %2691 = vmatmul.mubr.f32.gmra.mrb[0].mxu0 %v2690
    %v2692 = vpop.f32.mrb[0].mxu0
    %v2693 = vadd.f32 %v2584, %v2692
    %v2694 = vpop.f32.mrb[0].mxu0
    %v2695 = vadd.f32 %v2586, %v2694
    %2696 = vdwg.mxu0
    %v2697 = vand.u32 %v51, 4294901760
    %v2698 = vsub.f32 %v51, %v2697
    %v2699 = vand.u32 %v2698, 4294901760
    %2700 = vmatprep.subr.mxu0 %v2699
    %v2701 = vand.u32 %v50, 4294901760
    %v2702 = vsub.f32 %v50, %v2701
    %v2703 = vand.u32 %v2702, 4294901760
    %2704 = vmatpush1.msra.mxu0 %v2703
    %v2705 = vand.u32 %v53, 4294901760
    %v2706 = vsub.f32 %v53, %v2705
    %v2707 = vand.u32 %v2706, 4294901760
    %2708 = vmatprep.subr.mxu0 %v2707
    %v2709 = vand.u32 %v52, 4294901760
    %v2710 = vsub.f32 %v52, %v2709
    %v2711 = vand.u32 %v2710, 4294901760
    %2712 = vmatpush1.msra.mxu0 %v2711
    %v2713 = vand.u32 %v55, 4294901760
    %v2714 = vsub.f32 %v55, %v2713
    %v2715 = vand.u32 %v2714, 4294901760
    %2716 = vmatprep.subr.mxu0 %v2715
    %v2717 = vand.u32 %v54, 4294901760
    %v2718 = vsub.f32 %v54, %v2717
    %v2719 = vand.u32 %v2718, 4294901760
    %2720 = vmatpush1.msra.mxu0 %v2719
    %v2721 = vand.u32 %v57, 4294901760
    %v2722 = vsub.f32 %v57, %v2721
    %v2723 = vand.u32 %v2722, 4294901760
    %2724 = vmatprep.subr.mxu0 %v2723
    %v2725 = vand.u32 %v56, 4294901760
    %v2726 = vsub.f32 %v56, %v2725
    %v2727 = vand.u32 %v2726, 4294901760
    %2728 = vmatpush1.msra.mxu0 %v2727
    %2729 = vmatprep.subr.mxu0 0.0
    %2730 = vmatpush1.msra.mxu0 0.0
    %2731 = vmatprep.subr.mxu0 0.0
    %2732 = vmatpush1.msra.mxu0 0.0
    %2733 = vmatprep.subr.mxu0 0.0
    %2734 = vmatpush1.msra.mxu0 0.0
    %2735 = vmatprep.subr.mxu0 0.0
    %2736 = vmatpush1.msra.mxu0 0.0
    %2737 = vmatprep.subr.mxu0 0.0
    %2738 = vmatpush1.msra.mxu0 0.0
    %2739 = vmatprep.subr.mxu0 0.0
    %2740 = vmatpush1.msra.mxu0 0.0
    %2741 = vmatprep.subr.mxu0 0.0
    %2742 = vmatpush1.msra.mxu0 0.0
    %2743 = vmatprep.subr.mxu0 0.0
    %2744 = vmatpush1.msra.mxu0 0.0
    %2745 = vmatprep.subr.mxu0 0.0
    %2746 = vmatpush1.msra.mxu0 0.0
    %2747 = vmatprep.subr.mxu0 0.0
    %2748 = vmatpush1.msra.mxu0 0.0
    %2749 = vmatprep.subr.mxu0 0.0
    %2750 = vmatpush1.msra.mxu0 0.0
    %2751 = vmatprep.subr.mxu0 0.0
    %2752 = vmatpush1.msra.mxu0 0.0
    %2753 = vmatprep.subr.mxu0 0.0
    %2754 = vmatpush1.msra.mxu0 0.0
    %2755 = vmatprep.subr.mxu0 0.0
    %2756 = vmatpush1.msra.mxu0 0.0
    %2757 = vmatprep.subr.mxu0 0.0
    %2758 = vmatpush1.msra.mxu0 0.0
    %2759 = vmatprep.subr.mxu0 0.0
    %2760 = vmatpush1.msra.mxu0 0.0
    %2761 = vmatprep.subr.mxu0 0.0
    %2762 = vmatpush1.msra.mxu0 0.0
    %2763 = vmatprep.subr.mxu0 0.0
    %2764 = vmatpush1.msra.mxu0 0.0
    %2765 = vmatprep.subr.mxu0 0.0
    %2766 = vmatpush1.msra.mxu0 0.0
    %2767 = vmatprep.subr.mxu0 0.0
    %2768 = vmatpush1.msra.mxu0 0.0
    %2769 = vmatprep.subr.mxu0 0.0
    %2770 = vmatpush1.msra.mxu0 0.0
    %2771 = vmatprep.subr.mxu0 0.0
    %2772 = vmatpush1.msra.mxu0 0.0
    %2773 = vmatprep.subr.mxu0 0.0
    %2774 = vmatpush1.msra.mxu0 0.0
    %2775 = vmatprep.subr.mxu0 0.0
    %2776 = vmatpush1.msra.mxu0 0.0
    %2777 = vmatprep.subr.mxu0 0.0
    %2778 = vmatpush1.msra.mxu0 0.0
    %2779 = vmatprep.subr.mxu0 0.0
    %2780 = vmatpush1.msra.mxu0 0.0
    %2781 = vmatprep.subr.mxu0 0.0
    %2782 = vmatpush1.msra.mxu0 0.0
    %2783 = vmatprep.subr.mxu0 0.0
    %2784 = vmatpush1.msra.mxu0 0.0
    %2785 = vmatprep.mubr.f32.mxu0 0.0
    %v2786 = vand.u32 %v2217, 4294901760
    %2787 = vmatmul.mubr.f32.gmra.mrb[0].mxu0 %v2786
    %v2788 = vpop.f32.mrb[0].mxu0
    %v2789 = vadd.f32 %v2666, %v2788
    %v2790 = vpop.f32.mrb[0].mxu0
    %v2791 = vadd.f32 %v2668, %v2790
    %2792 = vmatprep.mubr.f32.mxu0 0.0
    %v2793 = vand.u32 %v2219, 4294901760
    %2794 = vmatmul.mubr.f32.gmra.mrb[0].mxu0 %v2793
    %v2795 = vpop.f32.mrb[0].mxu0
    %v2796 = vadd.f32 %v2675, %v2795
    %v2797 = vpop.f32.mrb[0].mxu0
    %v2798 = vadd.f32 %v2677, %v2797
    %2799 = vmatprep.mubr.f32.mxu0 0.0
    %v2800 = vand.u32 %v2221, 4294901760
    %2801 = vmatmul.mubr.f32.gmra.mrb[0].mxu0 %v2800
    %v2802 = vpop.f32.mrb[0].mxu0
    %v2803 = vadd.f32 %v2684, %v2802
    %v2804 = vpop.f32.mrb[0].mxu0
    %v2805 = vadd.f32 %v2686, %v2804
    %2806 = vmatprep.mubr.f32.mxu0 0.0
    %v2807 = vand.u32 %v2223, 4294901760
    %2808 = vmatmul.mubr.f32.gmra.mrb[0].mxu0 %v2807
    %v2809 = vpop.f32.mrb[0].mxu0
    %v2810 = vadd.f32 %v2693, %v2809
    %v2811 = vpop.f32.mrb[0].mxu0
    %v2812 = vadd.f32 %v2695, %v2811
    %2813 = vdwg.mxu0
    %v2814 = vand.u32 %v51, 4294901760
    %2815 = vmatprep.subr.mxu0 %v2814
    %v2816 = vand.u32 %v50, 4294901760
    %2817 = vmatpush1.msra.mxu0 %v2816
    %v2818 = vand.u32 %v53, 4294901760
    %2819 = vmatprep.subr.mxu0 %v2818
    %v2820 = vand.u32 %v52, 4294901760
    %2821 = vmatpush1.msra.mxu0 %v2820
    %v2822 = vand.u32 %v55, 4294901760
    %2823 = vmatprep.subr.mxu0 %v2822
    %v2824 = vand.u32 %v54, 4294901760
    %2825 = vmatpush1.msra.mxu0 %v2824
    %v2826 = vand.u32 %v57, 4294901760
    %2827 = vmatprep.subr.mxu0 %v2826
    %v2828 = vand.u32 %v56, 4294901760
    %2829 = vmatpush1.msra.mxu0 %v2828
    %2830 = vmatprep.subr.mxu0 0.0
    %2831 = vmatpush1.msra.mxu0 0.0
    %2832 = vmatprep.subr.mxu0 0.0
    %2833 = vmatpush1.msra.mxu0 0.0
    %2834 = vmatprep.subr.mxu0 0.0
    %2835 = vmatpush1.msra.mxu0 0.0
    %2836 = vmatprep.subr.mxu0 0.0
    %2837 = vmatpush1.msra.mxu0 0.0
    %2838 = vmatprep.subr.mxu0 0.0
    %2839 = vmatpush1.msra.mxu0 0.0
    %2840 = vmatprep.subr.mxu0 0.0
    %2841 = vmatpush1.msra.mxu0 0.0
    %2842 = vmatprep.subr.mxu0 0.0
    %2843 = vmatpush1.msra.mxu0 0.0
    %2844 = vmatprep.subr.mxu0 0.0
    %2845 = vmatpush1.msra.mxu0 0.0
    %2846 = vmatprep.subr.mxu0 0.0
    %2847 = vmatpush1.msra.mxu0 0.0
    %2848 = vmatprep.subr.mxu0 0.0
    %2849 = vmatpush1.msra.mxu0 0.0
    %2850 = vmatprep.subr.mxu0 0.0
    %2851 = vmatpush1.msra.mxu0 0.0
    %2852 = vmatprep.subr.mxu0 0.0
    %2853 = vmatpush1.msra.mxu0 0.0
    %2854 = vmatprep.subr.mxu0 0.0
    %2855 = vmatpush1.msra.mxu0 0.0
    %2856 = vmatprep.subr.mxu0 0.0
    %2857 = vmatpush1.msra.mxu0 0.0
    %2858 = vmatprep.subr.mxu0 0.0
    %2859 = vmatpush1.msra.mxu0 0.0
    %2860 = vmatprep.subr.mxu0 0.0
    %2861 = vmatpush1.msra.mxu0 0.0
    %2862 = vmatprep.subr.mxu0 0.0
    %2863 = vmatpush1.msra.mxu0 0.0
    %2864 = vmatprep.subr.mxu0 0.0
    %2865 = vmatpush1.msra.mxu0 0.0
    %2866 = vmatprep.subr.mxu0 0.0
    %2867 = vmatpush1.msra.mxu0 0.0
    %2868 = vmatprep.subr.mxu0 0.0
    %2869 = vmatpush1.msra.mxu0 0.0
    %2870 = vmatprep.subr.mxu0 0.0
    %2871 = vmatpush1.msra.mxu0 0.0
    %2872 = vmatprep.subr.mxu0 0.0
    %2873 = vmatpush1.msra.mxu0 0.0
    %2874 = vmatprep.subr.mxu0 0.0
    %2875 = vmatpush1.msra.mxu0 0.0
    %2876 = vmatprep.subr.mxu0 0.0
    %2877 = vmatpush1.msra.mxu0 0.0
    %2878 = vmatprep.subr.mxu0 0.0
    %2879 = vmatpush1.msra.mxu0 0.0
    %2880 = vmatprep.subr.mxu0 0.0
    %2881 = vmatpush1.msra.mxu0 0.0
    %2882 = vmatprep.subr.mxu0 0.0
    %2883 = vmatpush1.msra.mxu0 0.0
    %2884 = vmatprep.subr.mxu0 0.0
    %2885 = vmatpush1.msra.mxu0 0.0
    %2886 = vmatprep.mubr.f32.mxu0 0.0
    %v2887 = vand.u32 %v2217, 4294901760
    %2888 = vmatmul.mubr.f32.gmra.mrb[0].mxu0 %v2887
    %v2889 = vpop.f32.mrb[0].mxu0
    %v2890 = vadd.f32 %v2789, %v2889
    %v2891 = vpop.f32.mrb[0].mxu0
    %v2892 = vadd.f32 %v2791, %v2891
    %2893 = vmatprep.mubr.f32.mxu0 0.0
    %v2894 = vand.u32 %v2219, 4294901760
    %2895 = vmatmul.mubr.f32.gmra.mrb[0].mxu0 %v2894
    %v2896 = vpop.f32.mrb[0].mxu0
    %v2897 = vadd.f32 %v2796, %v2896
    %v2898 = vpop.f32.mrb[0].mxu0
    %v2899 = vadd.f32 %v2798, %v2898
    %2900 = vmatprep.mubr.f32.mxu0 0.0
    %v2901 = vand.u32 %v2221, 4294901760
    %2902 = vmatmul.mubr.f32.gmra.mrb[0].mxu0 %v2901
    %v2903 = vpop.f32.mrb[0].mxu0
    %v2904 = vadd.f32 %v2803, %v2903
    %v2905 = vpop.f32.mrb[0].mxu0
    %v2906 = vadd.f32 %v2805, %v2905
    %2907 = vmatprep.mubr.f32.mxu0 0.0
    %v2908 = vand.u32 %v2223, 4294901760
    %2909 = vmatmul.mubr.f32.gmra.mrb[0].mxu0 %v2908
    %v2910 = vpop.f32.mrb[0].mxu0
    %v2911 = vadd.f32 %v2810, %v2910
    %v2912 = vpop.f32.mrb[0].mxu0
    %v2913 = vadd.f32 %v2812, %v2912
    %2914 = vdwg.mxu0
    %vm2915 = vcmask 1045504
    %v2916 = vrot.slane %v46, 2
    %v2917 = vrot.slane %v47, 2
    %v2918 = vsel %vm2915, %v2916, %v2917
    %v2919 = vrot.slane %v48, 2
    %v2920 = vsel %vm2915, %v2917, %v2919
    %v2921 = vrot.slane %v49, 2
    %v2922 = vsel %vm2915, %v2919, %v2921
    %v2923 = vsel %vm79, %v2918, 0
    %v2925 = vsel %vm79, %v2920, 0
    %v2927 = vsel %vm79, %v2922, 0
    %v2929 = vsel %vm79, %v2921, 0
    %v2931 = vand.u32 %v780, 4294901760
    %2932 = vmatprep.subr.mxu0 %v2931
    %v2933 = vand.u32 %v779, 4294901760
    %2934 = vmatpush1.msra.mxu0 %v2933
    %v2935 = vand.u32 %v782, 4294901760
    %2936 = vmatprep.subr.mxu0 %v2935
    %v2937 = vand.u32 %v781, 4294901760
    %2938 = vmatpush1.msra.mxu0 %v2937
    %v2939 = vand.u32 %v784, 4294901760
    %2940 = vmatprep.subr.mxu0 %v2939
    %v2941 = vand.u32 %v783, 4294901760
    %2942 = vmatpush1.msra.mxu0 %v2941
    %v2943 = vand.u32 %v786, 4294901760
    %2944 = vmatprep.subr.mxu0 %v2943
    %v2945 = vand.u32 %v785, 4294901760
    %2946 = vmatpush1.msra.mxu0 %v2945
    %2947 = vmatprep.subr.mxu0 0.0
    %2948 = vmatpush1.msra.mxu0 0.0
    %2949 = vmatprep.subr.mxu0 0.0
    %2950 = vmatpush1.msra.mxu0 0.0
    %2951 = vmatprep.subr.mxu0 0.0
    %2952 = vmatpush1.msra.mxu0 0.0
    %2953 = vmatprep.subr.mxu0 0.0
    %2954 = vmatpush1.msra.mxu0 0.0
    %2955 = vmatprep.subr.mxu0 0.0
    %2956 = vmatpush1.msra.mxu0 0.0
    %2957 = vmatprep.subr.mxu0 0.0
    %2958 = vmatpush1.msra.mxu0 0.0
    %2959 = vmatprep.subr.mxu0 0.0
    %2960 = vmatpush1.msra.mxu0 0.0
    %2961 = vmatprep.subr.mxu0 0.0
    %2962 = vmatpush1.msra.mxu0 0.0
    %2963 = vmatprep.subr.mxu0 0.0
    %2964 = vmatpush1.msra.mxu0 0.0
    %2965 = vmatprep.subr.mxu0 0.0
    %2966 = vmatpush1.msra.mxu0 0.0
    %2967 = vmatprep.subr.mxu0 0.0
    %2968 = vmatpush1.msra.mxu0 0.0
    %2969 = vmatprep.subr.mxu0 0.0
    %2970 = vmatpush1.msra.mxu0 0.0
    %2971 = vmatprep.subr.mxu0 0.0
    %2972 = vmatpush1.msra.mxu0 0.0
    %2973 = vmatprep.subr.mxu0 0.0
    %2974 = vmatpush1.msra.mxu0 0.0
    %2975 = vmatprep.subr.mxu0 0.0
    %2976 = vmatpush1.msra.mxu0 0.0
    %2977 = vmatprep.subr.mxu0 0.0
    %2978 = vmatpush1.msra.mxu0 0.0
    %2979 = vmatprep.subr.mxu0 0.0
    %2980 = vmatpush1.msra.mxu0 0.0
    %2981 = vmatprep.subr.mxu0 0.0
    %2982 = vmatpush1.msra.mxu0 0.0
    %2983 = vmatprep.subr.mxu0 0.0
    %2984 = vmatpush1.msra.mxu0 0.0
    %2985 = vmatprep.subr.mxu0 0.0
    %2986 = vmatpush1.msra.mxu0 0.0
    %2987 = vmatprep.subr.mxu0 0.0
    %2988 = vmatpush1.msra.mxu0 0.0
    %2989 = vmatprep.subr.mxu0 0.0
    %2990 = vmatpush1.msra.mxu0 0.0
    %2991 = vmatprep.subr.mxu0 0.0
    %2992 = vmatpush1.msra.mxu0 0.0
    %2993 = vmatprep.subr.mxu0 0.0
    %2994 = vmatpush1.msra.mxu0 0.0
    %2995 = vmatprep.subr.mxu0 0.0
    %2996 = vmatpush1.msra.mxu0 0.0
    %2997 = vmatprep.subr.mxu0 0.0
    %2998 = vmatpush1.msra.mxu0 0.0
    %2999 = vmatprep.subr.mxu0 0.0
    %3000 = vmatpush1.msra.mxu0 0.0
    %3001 = vmatprep.subr.mxu0 0.0
    %3002 = vmatpush1.msra.mxu0 0.0
    %3003 = vmatprep.mubr.f32.mxu0 0.0
    %v3004 = vand.u32 %v2923, 4294901760
    %v3005 = vsub.f32 %v2923, %v3004
    %v3006 = vand.u32 %v3005, 4294901760
    %v3007 = vsub.f32 %v3005, %v3006
    %v3008 = vand.u32 %v3007, 4294901760
    %3009 = vmatmul.mubr.f32.gmra.mrb[0].mxu0 %v3008
    %v3010 = vpop.f32.mrb[0].mxu0
    %v3011 = vadd.f32 %v1477, %v3010
    %v3012 = vpop.f32.mrb[0].mxu0
    %v3013 = vadd.f32 %v1479, %v3012
    %3014 = vmatprep.mubr.f32.mxu0 0.0
    %v3015 = vand.u32 %v2925, 4294901760
    %v3016 = vsub.f32 %v2925, %v3015
    %v3017 = vand.u32 %v3016, 4294901760
    %v3018 = vsub.f32 %v3016, %v3017
    %v3019 = vand.u32 %v3018, 4294901760
    %3020 = vmatmul.mubr.f32.gmra.mrb[0].mxu0 %v3019
    %v3021 = vpop.f32.mrb[0].mxu0
    %v3022 = vadd.f32 %v1484, %v3021
    %v3023 = vpop.f32.mrb[0].mxu0
    %v3024 = vadd.f32 %v1486, %v3023
    %3025 = vmatprep.mubr.f32.mxu0 0.0
    %v3026 = vand.u32 %v2927, 4294901760
    %v3027 = vsub.f32 %v2927, %v3026
    %v3028 = vand.u32 %v3027, 4294901760
    %v3029 = vsub.f32 %v3027, %v3028
    %v3030 = vand.u32 %v3029, 4294901760
    %3031 = vmatmul.mubr.f32.gmra.mrb[0].mxu0 %v3030
    %v3032 = vpop.f32.mrb[0].mxu0
    %v3033 = vadd.f32 %v1491, %v3032
    %v3034 = vpop.f32.mrb[0].mxu0
    %v3035 = vadd.f32 %v1493, %v3034
    %3036 = vmatprep.mubr.f32.mxu0 0.0
    %v3037 = vand.u32 %v2929, 4294901760
    %v3038 = vsub.f32 %v2929, %v3037
    %v3039 = vand.u32 %v3038, 4294901760
    %v3040 = vsub.f32 %v3038, %v3039
    %v3041 = vand.u32 %v3040, 4294901760
    %3042 = vmatmul.mubr.f32.gmra.mrb[0].mxu0 %v3041
    %v3043 = vpop.f32.mrb[0].mxu0
    %v3044 = vadd.f32 %v1498, %v3043
    %v3045 = vpop.f32.mrb[0].mxu0
    %v3046 = vadd.f32 %v1500, %v3045
    %3047 = vdwg.mxu0
    %v3048 = vand.u32 %v780, 4294901760
    %v3049 = vsub.f32 %v780, %v3048
    %v3050 = vand.u32 %v3049, 4294901760
    %v3051 = vsub.f32 %v3049, %v3050
    %v3052 = vand.u32 %v3051, 4294901760
    %3053 = vmatprep.subr.mxu0 %v3052
    %v3054 = vand.u32 %v779, 4294901760
    %v3055 = vsub.f32 %v779, %v3054
    %v3056 = vand.u32 %v3055, 4294901760
    %v3057 = vsub.f32 %v3055, %v3056
    %v3058 = vand.u32 %v3057, 4294901760
    %3059 = vmatpush1.msra.mxu0 %v3058
    %v3060 = vand.u32 %v782, 4294901760
    %v3061 = vsub.f32 %v782, %v3060
    %v3062 = vand.u32 %v3061, 4294901760
    %v3063 = vsub.f32 %v3061, %v3062
    %v3064 = vand.u32 %v3063, 4294901760
    %3065 = vmatprep.subr.mxu0 %v3064
    %v3066 = vand.u32 %v781, 4294901760
    %v3067 = vsub.f32 %v781, %v3066
    %v3068 = vand.u32 %v3067, 4294901760
    %v3069 = vsub.f32 %v3067, %v3068
    %v3070 = vand.u32 %v3069, 4294901760
    %3071 = vmatpush1.msra.mxu0 %v3070
    %v3072 = vand.u32 %v784, 4294901760
    %v3073 = vsub.f32 %v784, %v3072
    %v3074 = vand.u32 %v3073, 4294901760
    %v3075 = vsub.f32 %v3073, %v3074
    %v3076 = vand.u32 %v3075, 4294901760
    %3077 = vmatprep.subr.mxu0 %v3076
    %v3078 = vand.u32 %v783, 4294901760
    %v3079 = vsub.f32 %v783, %v3078
    %v3080 = vand.u32 %v3079, 4294901760
    %v3081 = vsub.f32 %v3079, %v3080
    %v3082 = vand.u32 %v3081, 4294901760
    %3083 = vmatpush1.msra.mxu0 %v3082
    %v3084 = vand.u32 %v786, 4294901760
    %v3085 = vsub.f32 %v786, %v3084
    %v3086 = vand.u32 %v3085, 4294901760
    %v3087 = vsub.f32 %v3085, %v3086
    %v3088 = vand.u32 %v3087, 4294901760
    %3089 = vmatprep.subr.mxu0 %v3088
    %v3090 = vand.u32 %v785, 4294901760
    %v3091 = vsub.f32 %v785, %v3090
    %v3092 = vand.u32 %v3091, 4294901760
    %v3093 = vsub.f32 %v3091, %v3092
    %v3094 = vand.u32 %v3093, 4294901760
    %3095 = vmatpush1.msra.mxu0 %v3094
    %3096 = vmatprep.subr.mxu0 0.0
    %3097 = vmatpush1.msra.mxu0 0.0
    %3098 = vmatprep.subr.mxu0 0.0
    %3099 = vmatpush1.msra.mxu0 0.0
    %3100 = vmatprep.subr.mxu0 0.0
    %3101 = vmatpush1.msra.mxu0 0.0
    %3102 = vmatprep.subr.mxu0 0.0
    %3103 = vmatpush1.msra.mxu0 0.0
    %3104 = vmatprep.subr.mxu0 0.0
    %3105 = vmatpush1.msra.mxu0 0.0
    %3106 = vmatprep.subr.mxu0 0.0
    %3107 = vmatpush1.msra.mxu0 0.0
    %3108 = vmatprep.subr.mxu0 0.0
    %3109 = vmatpush1.msra.mxu0 0.0
    %3110 = vmatprep.subr.mxu0 0.0
    %3111 = vmatpush1.msra.mxu0 0.0
    %3112 = vmatprep.subr.mxu0 0.0
    %3113 = vmatpush1.msra.mxu0 0.0
    %3114 = vmatprep.subr.mxu0 0.0
    %3115 = vmatpush1.msra.mxu0 0.0
    %3116 = vmatprep.subr.mxu0 0.0
    %3117 = vmatpush1.msra.mxu0 0.0
    %3118 = vmatprep.subr.mxu0 0.0
    %3119 = vmatpush1.msra.mxu0 0.0
    %3120 = vmatprep.subr.mxu0 0.0
    %3121 = vmatpush1.msra.mxu0 0.0
    %3122 = vmatprep.subr.mxu0 0.0
    %3123 = vmatpush1.msra.mxu0 0.0
    %3124 = vmatprep.subr.mxu0 0.0
    %3125 = vmatpush1.msra.mxu0 0.0
    %3126 = vmatprep.subr.mxu0 0.0
    %3127 = vmatpush1.msra.mxu0 0.0
    %3128 = vmatprep.subr.mxu0 0.0
    %3129 = vmatpush1.msra.mxu0 0.0
    %3130 = vmatprep.subr.mxu0 0.0
    %3131 = vmatpush1.msra.mxu0 0.0
    %3132 = vmatprep.subr.mxu0 0.0
    %3133 = vmatpush1.msra.mxu0 0.0
    %3134 = vmatprep.subr.mxu0 0.0
    %3135 = vmatpush1.msra.mxu0 0.0
    %3136 = vmatprep.subr.mxu0 0.0
    %3137 = vmatpush1.msra.mxu0 0.0
    %3138 = vmatprep.subr.mxu0 0.0
    %3139 = vmatpush1.msra.mxu0 0.0
    %3140 = vmatprep.subr.mxu0 0.0
    %3141 = vmatpush1.msra.mxu0 0.0
    %3142 = vmatprep.subr.mxu0 0.0
    %3143 = vmatpush1.msra.mxu0 0.0
    %3144 = vmatprep.subr.mxu0 0.0
    %3145 = vmatpush1.msra.mxu0 0.0
    %3146 = vmatprep.subr.mxu0 0.0
    %3147 = vmatpush1.msra.mxu0 0.0
    %3148 = vmatprep.subr.mxu0 0.0
    %3149 = vmatpush1.msra.mxu0 0.0
    %3150 = vmatprep.subr.mxu0 0.0
    %3151 = vmatpush1.msra.mxu0 0.0
    %3152 = vmatprep.mubr.f32.mxu0 0.0
    %v3153 = vand.u32 %v2923, 4294901760
    %3154 = vmatmul.mubr.f32.gmra.mrb[0].mxu0 %v3153
    %v3155 = vpop.f32.mrb[0].mxu0
    %v3156 = vadd.f32 %v3011, %v3155
    %v3157 = vpop.f32.mrb[0].mxu0
    %v3158 = vadd.f32 %v3013, %v3157
    %3159 = vmatprep.mubr.f32.mxu0 0.0
    %v3160 = vand.u32 %v2925, 4294901760
    %3161 = vmatmul.mubr.f32.gmra.mrb[0].mxu0 %v3160
    %v3162 = vpop.f32.mrb[0].mxu0
    %v3163 = vadd.f32 %v3022, %v3162
    %v3164 = vpop.f32.mrb[0].mxu0
    %v3165 = vadd.f32 %v3024, %v3164
    %3166 = vmatprep.mubr.f32.mxu0 0.0
    %v3167 = vand.u32 %v2927, 4294901760
    %3168 = vmatmul.mubr.f32.gmra.mrb[0].mxu0 %v3167
    %v3169 = vpop.f32.mrb[0].mxu0
    %v3170 = vadd.f32 %v3033, %v3169
    %v3171 = vpop.f32.mrb[0].mxu0
    %v3172 = vadd.f32 %v3035, %v3171
    %3173 = vmatprep.mubr.f32.mxu0 0.0
    %v3174 = vand.u32 %v2929, 4294901760
    %3175 = vmatmul.mubr.f32.gmra.mrb[0].mxu0 %v3174
    %v3176 = vpop.f32.mrb[0].mxu0
    %v3177 = vadd.f32 %v3044, %v3176
    %v3178 = vpop.f32.mrb[0].mxu0
    %v3179 = vadd.f32 %v3046, %v3178
    %3180 = vdwg.mxu0
    %v3181 = vand.u32 %v780, 4294901760
    %v3182 = vsub.f32 %v780, %v3181
    %3183 = vmatprep.subr.mxu0 %v3182
    %v3184 = vand.u32 %v779, 4294901760
    %v3185 = vsub.f32 %v779, %v3184
    %3186 = vmatpush1.msra.mxu0 %v3185
    %v3187 = vand.u32 %v782, 4294901760
    %v3188 = vsub.f32 %v782, %v3187
    %3189 = vmatprep.subr.mxu0 %v3188
    %v3190 = vand.u32 %v781, 4294901760
    %v3191 = vsub.f32 %v781, %v3190
    %3192 = vmatpush1.msra.mxu0 %v3191
    %v3193 = vand.u32 %v784, 4294901760
    %v3194 = vsub.f32 %v784, %v3193
    %3195 = vmatprep.subr.mxu0 %v3194
    %v3196 = vand.u32 %v783, 4294901760
    %v3197 = vsub.f32 %v783, %v3196
    %3198 = vmatpush1.msra.mxu0 %v3197
    %v3199 = vand.u32 %v786, 4294901760
    %v3200 = vsub.f32 %v786, %v3199
    %3201 = vmatprep.subr.mxu0 %v3200
    %v3202 = vand.u32 %v785, 4294901760
    %v3203 = vsub.f32 %v785, %v3202
    %3204 = vmatpush1.msra.mxu0 %v3203
    %3205 = vmatprep.subr.mxu0 0.0
    %3206 = vmatpush1.msra.mxu0 0.0
    %3207 = vmatprep.subr.mxu0 0.0
    %3208 = vmatpush1.msra.mxu0 0.0
    %3209 = vmatprep.subr.mxu0 0.0
    %3210 = vmatpush1.msra.mxu0 0.0
    %3211 = vmatprep.subr.mxu0 0.0
    %3212 = vmatpush1.msra.mxu0 0.0
    %3213 = vmatprep.subr.mxu0 0.0
    %3214 = vmatpush1.msra.mxu0 0.0
    %3215 = vmatprep.subr.mxu0 0.0
    %3216 = vmatpush1.msra.mxu0 0.0
    %3217 = vmatprep.subr.mxu0 0.0
    %3218 = vmatpush1.msra.mxu0 0.0
    %3219 = vmatprep.subr.mxu0 0.0
    %3220 = vmatpush1.msra.mxu0 0.0
    %3221 = vmatprep.subr.mxu0 0.0
    %3222 = vmatpush1.msra.mxu0 0.0
    %3223 = vmatprep.subr.mxu0 0.0
    %3224 = vmatpush1.msra.mxu0 0.0
    %3225 = vmatprep.subr.mxu0 0.0
    %3226 = vmatpush1.msra.mxu0 0.0
    %3227 = vmatprep.subr.mxu0 0.0
    %3228 = vmatpush1.msra.mxu0 0.0
    %3229 = vmatprep.subr.mxu0 0.0
    %3230 = vmatpush1.msra.mxu0 0.0
    %3231 = vmatprep.subr.mxu0 0.0
    %3232 = vmatpush1.msra.mxu0 0.0
    %3233 = vmatprep.subr.mxu0 0.0
    %3234 = vmatpush1.msra.mxu0 0.0
    %3235 = vmatprep.subr.mxu0 0.0
    %3236 = vmatpush1.msra.mxu0 0.0
    %3237 = vmatprep.subr.mxu0 0.0
    %3238 = vmatpush1.msra.mxu0 0.0
    %3239 = vmatprep.subr.mxu0 0.0
    %3240 = vmatpush1.msra.mxu0 0.0
    %3241 = vmatprep.subr.mxu0 0.0
    %3242 = vmatpush1.msra.mxu0 0.0
    %3243 = vmatprep.subr.mxu0 0.0
    %3244 = vmatpush1.msra.mxu0 0.0
    %3245 = vmatprep.subr.mxu0 0.0
    %3246 = vmatpush1.msra.mxu0 0.0
    %3247 = vmatprep.subr.mxu0 0.0
    %3248 = vmatpush1.msra.mxu0 0.0
    %3249 = vmatprep.subr.mxu0 0.0
    %3250 = vmatpush1.msra.mxu0 0.0
    %3251 = vmatprep.subr.mxu0 0.0
    %3252 = vmatpush1.msra.mxu0 0.0
    %3253 = vmatprep.subr.mxu0 0.0
    %3254 = vmatpush1.msra.mxu0 0.0
    %3255 = vmatprep.subr.mxu0 0.0
    %3256 = vmatpush1.msra.mxu0 0.0
    %3257 = vmatprep.subr.mxu0 0.0
    %3258 = vmatpush1.msra.mxu0 0.0
    %3259 = vmatprep.subr.mxu0 0.0
    %3260 = vmatpush1.msra.mxu0 0.0
    %3261 = vmatprep.mubr.f32.mxu0 0.0
    %v3262 = vand.u32 %v2923, 4294901760
    %v3263 = vsub.f32 %v2923, %v3262
    %3264 = vmatmul.mubr.f32.gmra.mrb[0].mxu0 %v3263
    %v3265 = vpop.f32.mrb[0].mxu0
    %v3266 = vadd.f32 %v3156, %v3265
    %v3267 = vpop.f32.mrb[0].mxu0
    %v3268 = vadd.f32 %v3158, %v3267
    %3269 = vmatprep.mubr.f32.mxu0 0.0
    %v3270 = vand.u32 %v2925, 4294901760
    %v3271 = vsub.f32 %v2925, %v3270
    %3272 = vmatmul.mubr.f32.gmra.mrb[0].mxu0 %v3271
    %v3273 = vpop.f32.mrb[0].mxu0
    %v3274 = vadd.f32 %v3163, %v3273
    %v3275 = vpop.f32.mrb[0].mxu0
    %v3276 = vadd.f32 %v3165, %v3275
    %3277 = vmatprep.mubr.f32.mxu0 0.0
    %v3278 = vand.u32 %v2927, 4294901760
    %v3279 = vsub.f32 %v2927, %v3278
    %3280 = vmatmul.mubr.f32.gmra.mrb[0].mxu0 %v3279
    %v3281 = vpop.f32.mrb[0].mxu0
    %v3282 = vadd.f32 %v3170, %v3281
    %v3283 = vpop.f32.mrb[0].mxu0
    %v3284 = vadd.f32 %v3172, %v3283
    %3285 = vmatprep.mubr.f32.mxu0 0.0
    %v3286 = vand.u32 %v2929, 4294901760
    %v3287 = vsub.f32 %v2929, %v3286
    %3288 = vmatmul.mubr.f32.gmra.mrb[0].mxu0 %v3287
    %v3289 = vpop.f32.mrb[0].mxu0
    %v3290 = vadd.f32 %v3177, %v3289
    %v3291 = vpop.f32.mrb[0].mxu0
    %v3292 = vadd.f32 %v3179, %v3291
    %3293 = vdwg.mxu0
    %v3294 = vand.u32 %v780, 4294901760
    %3295 = vmatprep.subr.mxu0 %v3294
    %v3296 = vand.u32 %v779, 4294901760
    %3297 = vmatpush1.msra.mxu0 %v3296
    %v3298 = vand.u32 %v782, 4294901760
    %3299 = vmatprep.subr.mxu0 %v3298
    %v3300 = vand.u32 %v781, 4294901760
    %3301 = vmatpush1.msra.mxu0 %v3300
    %v3302 = vand.u32 %v784, 4294901760
    %3303 = vmatprep.subr.mxu0 %v3302
    %v3304 = vand.u32 %v783, 4294901760
    %3305 = vmatpush1.msra.mxu0 %v3304
    %v3306 = vand.u32 %v786, 4294901760
    %3307 = vmatprep.subr.mxu0 %v3306
    %v3308 = vand.u32 %v785, 4294901760
    %3309 = vmatpush1.msra.mxu0 %v3308
    %3310 = vmatprep.subr.mxu0 0.0
    %3311 = vmatpush1.msra.mxu0 0.0
    %3312 = vmatprep.subr.mxu0 0.0
    %3313 = vmatpush1.msra.mxu0 0.0
    %3314 = vmatprep.subr.mxu0 0.0
    %3315 = vmatpush1.msra.mxu0 0.0
    %3316 = vmatprep.subr.mxu0 0.0
    %3317 = vmatpush1.msra.mxu0 0.0
    %3318 = vmatprep.subr.mxu0 0.0
    %3319 = vmatpush1.msra.mxu0 0.0
    %3320 = vmatprep.subr.mxu0 0.0
    %3321 = vmatpush1.msra.mxu0 0.0
    %3322 = vmatprep.subr.mxu0 0.0
    %3323 = vmatpush1.msra.mxu0 0.0
    %3324 = vmatprep.subr.mxu0 0.0
    %3325 = vmatpush1.msra.mxu0 0.0
    %3326 = vmatprep.subr.mxu0 0.0
    %3327 = vmatpush1.msra.mxu0 0.0
    %3328 = vmatprep.subr.mxu0 0.0
    %3329 = vmatpush1.msra.mxu0 0.0
    %3330 = vmatprep.subr.mxu0 0.0
    %3331 = vmatpush1.msra.mxu0 0.0
    %3332 = vmatprep.subr.mxu0 0.0
    %3333 = vmatpush1.msra.mxu0 0.0
    %3334 = vmatprep.subr.mxu0 0.0
    %3335 = vmatpush1.msra.mxu0 0.0
    %3336 = vmatprep.subr.mxu0 0.0
    %3337 = vmatpush1.msra.mxu0 0.0
    %3338 = vmatprep.subr.mxu0 0.0
    %3339 = vmatpush1.msra.mxu0 0.0
    %3340 = vmatprep.subr.mxu0 0.0
    %3341 = vmatpush1.msra.mxu0 0.0
    %3342 = vmatprep.subr.mxu0 0.0
    %3343 = vmatpush1.msra.mxu0 0.0
    %3344 = vmatprep.subr.mxu0 0.0
    %3345 = vmatpush1.msra.mxu0 0.0
    %3346 = vmatprep.subr.mxu0 0.0
    %3347 = vmatpush1.msra.mxu0 0.0
    %3348 = vmatprep.subr.mxu0 0.0
    %3349 = vmatpush1.msra.mxu0 0.0
    %3350 = vmatprep.subr.mxu0 0.0
    %3351 = vmatpush1.msra.mxu0 0.0
    %3352 = vmatprep.subr.mxu0 0.0
    %3353 = vmatpush1.msra.mxu0 0.0
    %3354 = vmatprep.subr.mxu0 0.0
    %3355 = vmatpush1.msra.mxu0 0.0
    %3356 = vmatprep.subr.mxu0 0.0
    %3357 = vmatpush1.msra.mxu0 0.0
    %3358 = vmatprep.subr.mxu0 0.0
    %3359 = vmatpush1.msra.mxu0 0.0
    %3360 = vmatprep.subr.mxu0 0.0
    %3361 = vmatpush1.msra.mxu0 0.0
    %3362 = vmatprep.subr.mxu0 0.0
    %3363 = vmatpush1.msra.mxu0 0.0
    %3364 = vmatprep.subr.mxu0 0.0
    %3365 = vmatpush1.msra.mxu0 0.0
    %3366 = vmatprep.mubr.f32.mxu0 0.0
    %v3367 = vand.u32 %v2923, 4294901760
    %v3368 = vsub.f32 %v2923, %v3367
    %v3369 = vand.u32 %v3368, 4294901760
    %3370 = vmatmul.mubr.f32.gmra.mrb[0].mxu0 %v3369
    %v3371 = vpop.f32.mrb[0].mxu0
    %v3372 = vadd.f32 %v3266, %v3371
    %v3373 = vpop.f32.mrb[0].mxu0
    %v3374 = vadd.f32 %v3268, %v3373
    %3375 = vmatprep.mubr.f32.mxu0 0.0
    %v3376 = vand.u32 %v2925, 4294901760
    %v3377 = vsub.f32 %v2925, %v3376
    %v3378 = vand.u32 %v3377, 4294901760
    %3379 = vmatmul.mubr.f32.gmra.mrb[0].mxu0 %v3378
    %v3380 = vpop.f32.mrb[0].mxu0
    %v3381 = vadd.f32 %v3274, %v3380
    %v3382 = vpop.f32.mrb[0].mxu0
    %v3383 = vadd.f32 %v3276, %v3382
    %3384 = vmatprep.mubr.f32.mxu0 0.0
    %v3385 = vand.u32 %v2927, 4294901760
    %v3386 = vsub.f32 %v2927, %v3385
    %v3387 = vand.u32 %v3386, 4294901760
    %3388 = vmatmul.mubr.f32.gmra.mrb[0].mxu0 %v3387
    %v3389 = vpop.f32.mrb[0].mxu0
    %v3390 = vadd.f32 %v3282, %v3389
    %v3391 = vpop.f32.mrb[0].mxu0
    %v3392 = vadd.f32 %v3284, %v3391
    %3393 = vmatprep.mubr.f32.mxu0 0.0
    %v3394 = vand.u32 %v2929, 4294901760
    %v3395 = vsub.f32 %v2929, %v3394
    %v3396 = vand.u32 %v3395, 4294901760
    %3397 = vmatmul.mubr.f32.gmra.mrb[0].mxu0 %v3396
    %v3398 = vpop.f32.mrb[0].mxu0
    %v3399 = vadd.f32 %v3290, %v3398
    %v3400 = vpop.f32.mrb[0].mxu0
    %v3401 = vadd.f32 %v3292, %v3400
    %3402 = vdwg.mxu0
    %v3403 = vand.u32 %v780, 4294901760
    %v3404 = vsub.f32 %v780, %v3403
    %v3405 = vand.u32 %v3404, 4294901760
    %3406 = vmatprep.subr.mxu0 %v3405
    %v3407 = vand.u32 %v779, 4294901760
    %v3408 = vsub.f32 %v779, %v3407
    %v3409 = vand.u32 %v3408, 4294901760
    %3410 = vmatpush1.msra.mxu0 %v3409
    %v3411 = vand.u32 %v782, 4294901760
    %v3412 = vsub.f32 %v782, %v3411
    %v3413 = vand.u32 %v3412, 4294901760
    %3414 = vmatprep.subr.mxu0 %v3413
    %v3415 = vand.u32 %v781, 4294901760
    %v3416 = vsub.f32 %v781, %v3415
    %v3417 = vand.u32 %v3416, 4294901760
    %3418 = vmatpush1.msra.mxu0 %v3417
    %v3419 = vand.u32 %v784, 4294901760
    %v3420 = vsub.f32 %v784, %v3419
    %v3421 = vand.u32 %v3420, 4294901760
    %3422 = vmatprep.subr.mxu0 %v3421
    %v3423 = vand.u32 %v783, 4294901760
    %v3424 = vsub.f32 %v783, %v3423
    %v3425 = vand.u32 %v3424, 4294901760
    %3426 = vmatpush1.msra.mxu0 %v3425
    %v3427 = vand.u32 %v786, 4294901760
    %v3428 = vsub.f32 %v786, %v3427
    %v3429 = vand.u32 %v3428, 4294901760
    %3430 = vmatprep.subr.mxu0 %v3429
    %v3431 = vand.u32 %v785, 4294901760
    %v3432 = vsub.f32 %v785, %v3431
    %v3433 = vand.u32 %v3432, 4294901760
    %3434 = vmatpush1.msra.mxu0 %v3433
    %3435 = vmatprep.subr.mxu0 0.0
    %3436 = vmatpush1.msra.mxu0 0.0
    %3437 = vmatprep.subr.mxu0 0.0
    %3438 = vmatpush1.msra.mxu0 0.0
    %3439 = vmatprep.subr.mxu0 0.0
    %3440 = vmatpush1.msra.mxu0 0.0
    %3441 = vmatprep.subr.mxu0 0.0
    %3442 = vmatpush1.msra.mxu0 0.0
    %3443 = vmatprep.subr.mxu0 0.0
    %3444 = vmatpush1.msra.mxu0 0.0
    %3445 = vmatprep.subr.mxu0 0.0
    %3446 = vmatpush1.msra.mxu0 0.0
    %3447 = vmatprep.subr.mxu0 0.0
    %3448 = vmatpush1.msra.mxu0 0.0
    %3449 = vmatprep.subr.mxu0 0.0
    %3450 = vmatpush1.msra.mxu0 0.0
    %3451 = vmatprep.subr.mxu0 0.0
    %3452 = vmatpush1.msra.mxu0 0.0
    %3453 = vmatprep.subr.mxu0 0.0
    %3454 = vmatpush1.msra.mxu0 0.0
    %3455 = vmatprep.subr.mxu0 0.0
    %3456 = vmatpush1.msra.mxu0 0.0
    %3457 = vmatprep.subr.mxu0 0.0
    %3458 = vmatpush1.msra.mxu0 0.0
    %3459 = vmatprep.subr.mxu0 0.0
    %3460 = vmatpush1.msra.mxu0 0.0
    %3461 = vmatprep.subr.mxu0 0.0
    %3462 = vmatpush1.msra.mxu0 0.0
    %3463 = vmatprep.subr.mxu0 0.0
    %3464 = vmatpush1.msra.mxu0 0.0
    %3465 = vmatprep.subr.mxu0 0.0
    %3466 = vmatpush1.msra.mxu0 0.0
    %3467 = vmatprep.subr.mxu0 0.0
    %3468 = vmatpush1.msra.mxu0 0.0
    %3469 = vmatprep.subr.mxu0 0.0
    %3470 = vmatpush1.msra.mxu0 0.0
    %3471 = vmatprep.subr.mxu0 0.0
    %3472 = vmatpush1.msra.mxu0 0.0
    %3473 = vmatprep.subr.mxu0 0.0
    %3474 = vmatpush1.msra.mxu0 0.0
    %3475 = vmatprep.subr.mxu0 0.0
    %3476 = vmatpush1.msra.mxu0 0.0
    %3477 = vmatprep.subr.mxu0 0.0
    %3478 = vmatpush1.msra.mxu0 0.0
    %3479 = vmatprep.subr.mxu0 0.0
    %3480 = vmatpush1.msra.mxu0 0.0
    %3481 = vmatprep.subr.mxu0 0.0
    %3482 = vmatpush1.msra.mxu0 0.0
    %3483 = vmatprep.subr.mxu0 0.0
    %3484 = vmatpush1.msra.mxu0 0.0
    %3485 = vmatprep.subr.mxu0 0.0
    %3486 = vmatpush1.msra.mxu0 0.0
    %3487 = vmatprep.subr.mxu0 0.0
    %3488 = vmatpush1.msra.mxu0 0.0
    %3489 = vmatprep.subr.mxu0 0.0
    %3490 = vmatpush1.msra.mxu0 0.0
    %3491 = vmatprep.mubr.f32.mxu0 0.0
    %v3492 = vand.u32 %v2923, 4294901760
    %3493 = vmatmul.mubr.f32.gmra.mrb[0].mxu0 %v3492
    %v3494 = vpop.f32.mrb[0].mxu0
    %v3495 = vadd.f32 %v3372, %v3494
    %v3496 = vpop.f32.mrb[0].mxu0
    %v3497 = vadd.f32 %v3374, %v3496
    %3498 = vmatprep.mubr.f32.mxu0 0.0
    %v3499 = vand.u32 %v2925, 4294901760
    %3500 = vmatmul.mubr.f32.gmra.mrb[0].mxu0 %v3499
    %v3501 = vpop.f32.mrb[0].mxu0
    %v3502 = vadd.f32 %v3381, %v3501
    %v3503 = vpop.f32.mrb[0].mxu0
    %v3504 = vadd.f32 %v3383, %v3503
    %3505 = vmatprep.mubr.f32.mxu0 0.0
    %v3506 = vand.u32 %v2927, 4294901760
    %3507 = vmatmul.mubr.f32.gmra.mrb[0].mxu0 %v3506
    %v3508 = vpop.f32.mrb[0].mxu0
    %v3509 = vadd.f32 %v3390, %v3508
    %v3510 = vpop.f32.mrb[0].mxu0
    %v3511 = vadd.f32 %v3392, %v3510
    %3512 = vmatprep.mubr.f32.mxu0 0.0
    %v3513 = vand.u32 %v2929, 4294901760
    %3514 = vmatmul.mubr.f32.gmra.mrb[0].mxu0 %v3513
    %v3515 = vpop.f32.mrb[0].mxu0
    %v3516 = vadd.f32 %v3399, %v3515
    %v3517 = vpop.f32.mrb[0].mxu0
    %v3518 = vadd.f32 %v3401, %v3517
    %3519 = vdwg.mxu0
    %v3520 = vand.u32 %v780, 4294901760
    %3521 = vmatprep.subr.mxu0 %v3520
    %v3522 = vand.u32 %v779, 4294901760
    %3523 = vmatpush1.msra.mxu0 %v3522
    %v3524 = vand.u32 %v782, 4294901760
    %3525 = vmatprep.subr.mxu0 %v3524
    %v3526 = vand.u32 %v781, 4294901760
    %3527 = vmatpush1.msra.mxu0 %v3526
    %v3528 = vand.u32 %v784, 4294901760
    %3529 = vmatprep.subr.mxu0 %v3528
    %v3530 = vand.u32 %v783, 4294901760
    %3531 = vmatpush1.msra.mxu0 %v3530
    %v3532 = vand.u32 %v786, 4294901760
    %3533 = vmatprep.subr.mxu0 %v3532
    %v3534 = vand.u32 %v785, 4294901760
    %3535 = vmatpush1.msra.mxu0 %v3534
    %3536 = vmatprep.subr.mxu0 0.0
    %3537 = vmatpush1.msra.mxu0 0.0
    %3538 = vmatprep.subr.mxu0 0.0
    %3539 = vmatpush1.msra.mxu0 0.0
    %3540 = vmatprep.subr.mxu0 0.0
    %3541 = vmatpush1.msra.mxu0 0.0
    %3542 = vmatprep.subr.mxu0 0.0
    %3543 = vmatpush1.msra.mxu0 0.0
    %3544 = vmatprep.subr.mxu0 0.0
    %3545 = vmatpush1.msra.mxu0 0.0
    %3546 = vmatprep.subr.mxu0 0.0
    %3547 = vmatpush1.msra.mxu0 0.0
    %3548 = vmatprep.subr.mxu0 0.0
    %3549 = vmatpush1.msra.mxu0 0.0
    %3550 = vmatprep.subr.mxu0 0.0
    %3551 = vmatpush1.msra.mxu0 0.0
    %3552 = vmatprep.subr.mxu0 0.0
    %3553 = vmatpush1.msra.mxu0 0.0
    %3554 = vmatprep.subr.mxu0 0.0
    %3555 = vmatpush1.msra.mxu0 0.0
    %3556 = vmatprep.subr.mxu0 0.0
    %3557 = vmatpush1.msra.mxu0 0.0
    %3558 = vmatprep.subr.mxu0 0.0
    %3559 = vmatpush1.msra.mxu0 0.0
    %3560 = vmatprep.subr.mxu0 0.0
    %3561 = vmatpush1.msra.mxu0 0.0
    %3562 = vmatprep.subr.mxu0 0.0
    %3563 = vmatpush1.msra.mxu0 0.0
    %3564 = vmatprep.subr.mxu0 0.0
    %3565 = vmatpush1.msra.mxu0 0.0
    %3566 = vmatprep.subr.mxu0 0.0
    %3567 = vmatpush1.msra.mxu0 0.0
    %3568 = vmatprep.subr.mxu0 0.0
    %3569 = vmatpush1.msra.mxu0 0.0
    %3570 = vmatprep.subr.mxu0 0.0
    %3571 = vmatpush1.msra.mxu0 0.0
    %3572 = vmatprep.subr.mxu0 0.0
    %3573 = vmatpush1.msra.mxu0 0.0
    %3574 = vmatprep.subr.mxu0 0.0
    %3575 = vmatpush1.msra.mxu0 0.0
    %3576 = vmatprep.subr.mxu0 0.0
    %3577 = vmatpush1.msra.mxu0 0.0
    %3578 = vmatprep.subr.mxu0 0.0
    %3579 = vmatpush1.msra.mxu0 0.0
    %3580 = vmatprep.subr.mxu0 0.0
    %3581 = vmatpush1.msra.mxu0 0.0
    %3582 = vmatprep.subr.mxu0 0.0
    %3583 = vmatpush1.msra.mxu0 0.0
    %3584 = vmatprep.subr.mxu0 0.0
    %3585 = vmatpush1.msra.mxu0 0.0
    %3586 = vmatprep.subr.mxu0 0.0
    %3587 = vmatpush1.msra.mxu0 0.0
    %3588 = vmatprep.subr.mxu0 0.0
    %3589 = vmatpush1.msra.mxu0 0.0
    %3590 = vmatprep.subr.mxu0 0.0
    %3591 = vmatpush1.msra.mxu0 0.0
    %3592 = vmatprep.mubr.f32.mxu0 0.0
    %v3593 = vand.u32 %v2923, 4294901760
    %3594 = vmatmul.mubr.f32.gmra.mrb[0].mxu0 %v3593
    %v3595 = vpop.f32.mrb[0].mxu0
    %v3596 = vadd.f32 %v3495, %v3595
    %v3597 = vpop.f32.mrb[0].mxu0
    %v3598 = vadd.f32 %v3497, %v3597
    %3599 = vmatprep.mubr.f32.mxu0 0.0
    %v3600 = vand.u32 %v2925, 4294901760
    %3601 = vmatmul.mubr.f32.gmra.mrb[0].mxu0 %v3600
    %v3602 = vpop.f32.mrb[0].mxu0
    %v3603 = vadd.f32 %v3502, %v3602
    %v3604 = vpop.f32.mrb[0].mxu0
    %v3605 = vadd.f32 %v3504, %v3604
    %3606 = vmatprep.mubr.f32.mxu0 0.0
    %v3607 = vand.u32 %v2927, 4294901760
    %3608 = vmatmul.mubr.f32.gmra.mrb[0].mxu0 %v3607
    %v3609 = vpop.f32.mrb[0].mxu0
    %v3610 = vadd.f32 %v3509, %v3609
    %v3611 = vpop.f32.mrb[0].mxu0
    %v3612 = vadd.f32 %v3511, %v3611
    %3613 = vmatprep.mubr.f32.mxu0 0.0
    %v3614 = vand.u32 %v2929, 4294901760
    %3615 = vmatmul.mubr.f32.gmra.mrb[0].mxu0 %v3614
    %v3616 = vpop.f32.mrb[0].mxu0
    %v3617 = vadd.f32 %v3516, %v3616
    %v3618 = vpop.f32.mrb[0].mxu0
    %v3619 = vadd.f32 %v3518, %v3618
    %3620 = vdwg.mxu0
    %v3621 = vadd.f32 %v2890, %v3596
    %v3622 = vadd.f32 %v2892, %v3598
    %v3623 = vadd.f32 %v2897, %v3603
    %v3624 = vadd.f32 %v2899, %v3605
    %v3625 = vadd.f32 %v2904, %v3610
    %v3626 = vadd.f32 %v2906, %v3612
    %v3627 = vadd.f32 %v2911, %v3617
    %v3628 = vadd.f32 %v2913, %v3619
    %v3629 = vadd.f32 %v3621, %v2192
    %v3630 = vadd.f32 %v3622, %v2194
    %v3631 = vadd.f32 %v3623, %v2199
    %v3632 = vadd.f32 %v3624, %v2201
    %v3633 = vadd.f32 %v3625, %v2206
    %v3634 = vadd.f32 %v3626, %v2208
    %v3635 = vadd.f32 %v3627, %v2213
    %v3636 = vadd.f32 %v3628, %v2215
    %v3637 = vld [vmem:[%s2] sm:$0x3]
    %v3639 = vlaneseq
    %v3640 = vshrl.u32 %v3639, 7
    %v3641 = vsub.s32 0, %v3640
    %v3642 = vrot.slane %v3637, %v3641
    %v3643 = vlaneseq
    %v3644 = vshrl.u32 %v3643, 7
    %v3645 = vsub.s32 1, %v3644
    %v3646 = vrot.slane %v3637, %v3645
    %v3649 = vadd.f32 %v3629, %v3642
    %v3650 = vadd.f32 %v3630, %v3646
    %v3651 = vadd.f32 %v3631, %v3642
    %v3652 = vadd.f32 %v3632, %v3646
    %v3653 = vadd.f32 %v3633, %v3642
    %v3654 = vadd.f32 %v3634, %v3646
    %v3655 = vadd.f32 %v3635, %v3642
    %v3656 = vadd.f32 %v3636, %v3646
    %v3657 = vmax.f32 %v3649, 0.0
    %v3658 = vmax.f32 %v3650, 0.0
    %v3659 = vmax.f32 %v3651, 0.0
    %v3660 = vmax.f32 %v3652, 0.0
    %v3661 = vmax.f32 %v3653, 0.0
    %v3662 = vmax.f32 %v3654, 0.0
    %v3663 = vmax.f32 %v3655, 0.0
    %v3664 = vmax.f32 %v3656, 0.0
    %v3665 = vld [vmem:[%s3] sm:$0xff]
    %v3666 = vld [vmem:[%s3 + $0x8] sm:$0xff]
    %v3667 = vld [vmem:[%s3 + $0x10] sm:$0xff]
    %v3668 = vld [vmem:[%s3 + $0x18] sm:$0xff]
    %v3669 = vld [vmem:[%s3 + $0x20] sm:$0xff]
    %v3670 = vld [vmem:[%s3 + $0x28] sm:$0xff]
    %v3671 = vld [vmem:[%s3 + $0x30] sm:$0xff]
    %v3672 = vld [vmem:[%s3 + $0x38] sm:$0xff]
    %v3673 = vld [vmem:[%s3 + $0x40] sm:$0xff]
    %v3674 = vld [vmem:[%s3 + $0x48] sm:$0xff]
    %v3675 = vld [vmem:[%s3 + $0x50] sm:$0xff]
    %v3676 = vld [vmem:[%s3 + $0x58] sm:$0xff]
    %v3677 = vld [vmem:[%s3 + $0x60] sm:$0xff]
    %v3678 = vld [vmem:[%s3 + $0x68] sm:$0xff]
    %v3679 = vld [vmem:[%s3 + $0x70] sm:$0xff]
    %v3680 = vld [vmem:[%s3 + $0x78] sm:$0xff]
    %v3681 = vld [vmem:[%s3 + $0x80] sm:$0xff]
    %v3682 = vld [vmem:[%s3 + $0x88] sm:$0xff]
    %v3683 = vld [vmem:[%s3 + $0x90] sm:$0xff]
    %v3684 = vld [vmem:[%s3 + $0x98] sm:$0xff]
    %v3685 = vld [vmem:[%s3 + $0xa0] sm:$0xff]
    %v3686 = vld [vmem:[%s3 + $0xa8] sm:$0xff]
    %v3687 = vld [vmem:[%s3 + $0xb0] sm:$0xff]
    %v3688 = vld [vmem:[%s3 + $0xb8] sm:$0xff]
    %v3689 = vld [vmem:[%s3 + $0xc0] sm:$0xff]
    %v3690 = vld [vmem:[%s3 + $0xc8] sm:$0xff]
    %v3691 = vld [vmem:[%s3 + $0xd0] sm:$0xff]
    %v3692 = vld [vmem:[%s3 + $0xd8] sm:$0xff]
    %v3693 = vld [vmem:[%s3 + $0xe0] sm:$0xff]
    %v3694 = vld [vmem:[%s3 + $0xe8] sm:$0xff]
    %v3695 = vld [vmem:[%s3 + $0xf0] sm:$0xff]
    %v3696 = vld [vmem:[%s3 + $0xf8] sm:$0xff]
    %v3697 = vld [vmem:[%s3 + $0x100] sm:$0xff]
    %v3698 = vld [vmem:[%s3 + $0x108] sm:$0xff]
    %v3699 = vld [vmem:[%s3 + $0x110] sm:$0xff]
    %v3700 = vld [vmem:[%s3 + $0x118] sm:$0xff]
    %v3701 = vld [vmem:[%s3 + $0x120] sm:$0xff]
    %v3702 = vld [vmem:[%s3 + $0x128] sm:$0xff]
    %v3703 = vld [vmem:[%s3 + $0x130] sm:$0xff]
    %v3704 = vld [vmem:[%s3 + $0x138] sm:$0xff]
    %v3705 = vld [vmem:[%s3 + $0x140] sm:$0xff]
    %v3706 = vld [vmem:[%s3 + $0x148] sm:$0xff]
    %vm3707 = vcmask 326656
    %v3709 = vsel %vm3707, %v3658, 0
    %v3712 = vsel %vm3707, %v3660, 0
    %v3715 = vsel %vm3707, %v3662, 0
    %v3718 = vsel %vm3707, %v3664, 0
    %v3720 = vand.u32 %v3666, 4294901760
    %3721 = vmatprep.subr.mxu0 %v3720
    %v3722 = vand.u32 %v3665, 4294901760
    %3723 = vmatpush1.msra.mxu0 %v3722
    %v3724 = vand.u32 %v3668, 4294901760
    %3725 = vmatprep.subr.mxu0 %v3724
    %v3726 = vand.u32 %v3667, 4294901760
    %3727 = vmatpush1.msra.mxu0 %v3726
    %v3728 = vand.u32 %v3670, 4294901760
    %3729 = vmatprep.subr.mxu0 %v3728
    %v3730 = vand.u32 %v3669, 4294901760
    %3731 = vmatpush1.msra.mxu0 %v3730
    %v3732 = vand.u32 %v3672, 4294901760
    %3733 = vmatprep.subr.mxu0 %v3732
    %v3734 = vand.u32 %v3671, 4294901760
    %3735 = vmatpush1.msra.mxu0 %v3734
    %v3736 = vand.u32 %v3674, 4294901760
    %3737 = vmatprep.subr.mxu0 %v3736
    %v3738 = vand.u32 %v3673, 4294901760
    %3739 = vmatpush1.msra.mxu0 %v3738
    %v3740 = vand.u32 %v3676, 4294901760
    %3741 = vmatprep.subr.mxu0 %v3740
    %v3742 = vand.u32 %v3675, 4294901760
    %3743 = vmatpush1.msra.mxu0 %v3742
    %v3744 = vand.u32 %v3678, 4294901760
    %3745 = vmatprep.subr.mxu0 %v3744
    %v3746 = vand.u32 %v3677, 4294901760
    %3747 = vmatpush1.msra.mxu0 %v3746
    %v3748 = vand.u32 %v3680, 4294901760
    %3749 = vmatprep.subr.mxu0 %v3748
    %v3750 = vand.u32 %v3679, 4294901760
    %3751 = vmatpush1.msra.mxu0 %v3750
    %v3752 = vand.u32 %v3682, 4294901760
    %3753 = vmatprep.subr.mxu0 %v3752
    %v3754 = vand.u32 %v3681, 4294901760
    %3755 = vmatpush1.msra.mxu0 %v3754
    %v3756 = vand.u32 %v3684, 4294901760
    %3757 = vmatprep.subr.mxu0 %v3756
    %v3758 = vand.u32 %v3683, 4294901760
    %3759 = vmatpush1.msra.mxu0 %v3758
    %v3760 = vand.u32 %v3686, 4294901760
    %3761 = vmatprep.subr.mxu0 %v3760
    %v3762 = vand.u32 %v3685, 4294901760
    %3763 = vmatpush1.msra.mxu0 %v3762
    %v3764 = vand.u32 %v3688, 4294901760
    %3765 = vmatprep.subr.mxu0 %v3764
    %v3766 = vand.u32 %v3687, 4294901760
    %3767 = vmatpush1.msra.mxu0 %v3766
    %v3768 = vand.u32 %v3690, 4294901760
    %3769 = vmatprep.subr.mxu0 %v3768
    %v3770 = vand.u32 %v3689, 4294901760
    %3771 = vmatpush1.msra.mxu0 %v3770
    %v3772 = vand.u32 %v3692, 4294901760
    %3773 = vmatprep.subr.mxu0 %v3772
    %v3774 = vand.u32 %v3691, 4294901760
    %3775 = vmatpush1.msra.mxu0 %v3774
    %v3776 = vand.u32 %v3694, 4294901760
    %3777 = vmatprep.subr.mxu0 %v3776
    %v3778 = vand.u32 %v3693, 4294901760
    %3779 = vmatpush1.msra.mxu0 %v3778
    %v3780 = vand.u32 %v3696, 4294901760
    %3781 = vmatprep.subr.mxu0 %v3780
    %v3782 = vand.u32 %v3695, 4294901760
    %3783 = vmatpush1.msra.mxu0 %v3782
    %v3784 = vand.u32 %v3698, 4294901760
    %3785 = vmatprep.subr.mxu0 %v3784
    %v3786 = vand.u32 %v3697, 4294901760
    %3787 = vmatpush1.msra.mxu0 %v3786
    %v3788 = vand.u32 %v3700, 4294901760
    %3789 = vmatprep.subr.mxu0 %v3788
    %v3790 = vand.u32 %v3699, 4294901760
    %3791 = vmatpush1.msra.mxu0 %v3790
    %v3792 = vand.u32 %v3702, 4294901760
    %3793 = vmatprep.subr.mxu0 %v3792
    %v3794 = vand.u32 %v3701, 4294901760
    %3795 = vmatpush1.msra.mxu0 %v3794
    %v3796 = vand.u32 %v3704, 4294901760
    %3797 = vmatprep.subr.mxu0 %v3796
    %v3798 = vand.u32 %v3703, 4294901760
    %3799 = vmatpush1.msra.mxu0 %v3798
    %v3800 = vand.u32 %v3706, 4294901760
    %3801 = vmatprep.subr.mxu0 %v3800
    %v3802 = vand.u32 %v3705, 4294901760
    %3803 = vmatpush1.msra.mxu0 %v3802
    %3804 = vmatprep.subr.mxu0 0.0
    %3805 = vmatpush1.msra.mxu0 0.0
    %3806 = vmatprep.subr.mxu0 0.0
    %3807 = vmatpush1.msra.mxu0 0.0
    %3808 = vmatprep.subr.mxu0 0.0
    %3809 = vmatpush1.msra.mxu0 0.0
    %3810 = vmatprep.subr.mxu0 0.0
    %3811 = vmatpush1.msra.mxu0 0.0
    %3812 = vmatprep.subr.mxu0 0.0
    %3813 = vmatpush1.msra.mxu0 0.0
    %3814 = vmatprep.subr.mxu0 0.0
    %3815 = vmatpush1.msra.mxu0 0.0
    %3816 = vmatprep.subr.mxu0 0.0
    %3817 = vmatpush1.msra.mxu0 0.0
    %3818 = vmatprep.subr.mxu0 0.0
    %3819 = vmatpush1.msra.mxu0 0.0
    %3820 = vmatprep.subr.mxu0 0.0
    %3821 = vmatpush1.msra.mxu0 0.0
    %3822 = vmatprep.subr.mxu0 0.0
    %3823 = vmatpush1.msra.mxu0 0.0
    %3824 = vmatprep.subr.mxu0 0.0
    %3825 = vmatpush1.msra.mxu0 0.0
    %v3826 = vand.u32 %v3709, 4294901760
    %v3827 = vsub.f32 %v3709, %v3826
    %v3828 = vand.u32 %v3827, 4294901760
    %v3829 = vsub.f32 %v3827, %v3828
    %v3830 = vand.u32 %v3829, 4294901760
    %3831 = vmatprep.mubr.f32.mxu0 %v3830
    %v3832 = vand.u32 %v3657, 4294901760
    %v3833 = vsub.f32 %v3657, %v3832
    %v3834 = vand.u32 %v3833, 4294901760
    %v3835 = vsub.f32 %v3833, %v3834
    %v3836 = vand.u32 %v3835, 4294901760
    %3837 = vmatmul.mubr.f32.gmra.mrb[0].mxu0 %v3836
    %v3838 = vpop.f32.mrb[0].mxu0
    %v3839 = vadd.f32 0.0, %v3838
    %v3840 = vpop.f32.mrb[0].mxu0
    %v3841 = vadd.f32 0.0, %v3840
    %v3842 = vand.u32 %v3712, 4294901760
    %v3843 = vsub.f32 %v3712, %v3842
    %v3844 = vand.u32 %v3843, 4294901760
    %v3845 = vsub.f32 %v3843, %v3844
    %v3846 = vand.u32 %v3845, 4294901760
    %3847 = vmatprep.mubr.f32.mxu0 %v3846
    %v3848 = vand.u32 %v3659, 4294901760
    %v3849 = vsub.f32 %v3659, %v3848
    %v3850 = vand.u32 %v3849, 4294901760
    %v3851 = vsub.f32 %v3849, %v3850
    %v3852 = vand.u32 %v3851, 4294901760
    %3853 = vmatmul.mubr.f32.gmra.mrb[0].mxu0 %v3852
    %v3854 = vpop.f32.mrb[0].mxu0
    %v3855 = vadd.f32 0.0, %v3854
    %v3856 = vpop.f32.mrb[0].mxu0
    %v3857 = vadd.f32 0.0, %v3856
    %v3858 = vand.u32 %v3715, 4294901760
    %v3859 = vsub.f32 %v3715, %v3858
    %v3860 = vand.u32 %v3859, 4294901760
    %v3861 = vsub.f32 %v3859, %v3860
    %v3862 = vand.u32 %v3861, 4294901760
    %3863 = vmatprep.mubr.f32.mxu0 %v3862
    %v3864 = vand.u32 %v3661, 4294901760
    %v3865 = vsub.f32 %v3661, %v3864
    %v3866 = vand.u32 %v3865, 4294901760
    %v3867 = vsub.f32 %v3865, %v3866
    %v3868 = vand.u32 %v3867, 4294901760
    %3869 = vmatmul.mubr.f32.gmra.mrb[0].mxu0 %v3868
    %v3870 = vpop.f32.mrb[0].mxu0
    %v3871 = vadd.f32 0.0, %v3870
    %v3872 = vpop.f32.mrb[0].mxu0
    %v3873 = vadd.f32 0.0, %v3872
    %v3874 = vand.u32 %v3718, 4294901760
    %v3875 = vsub.f32 %v3718, %v3874
    %v3876 = vand.u32 %v3875, 4294901760
    %v3877 = vsub.f32 %v3875, %v3876
    %v3878 = vand.u32 %v3877, 4294901760
    %3879 = vmatprep.mubr.f32.mxu0 %v3878
    %v3880 = vand.u32 %v3663, 4294901760
    %v3881 = vsub.f32 %v3663, %v3880
    %v3882 = vand.u32 %v3881, 4294901760
    %v3883 = vsub.f32 %v3881, %v3882
    %v3884 = vand.u32 %v3883, 4294901760
    %3885 = vmatmul.mubr.f32.gmra.mrb[0].mxu0 %v3884
    %v3886 = vpop.f32.mrb[0].mxu0
    %v3887 = vadd.f32 0.0, %v3886
    %v3888 = vpop.f32.mrb[0].mxu0
    %v3889 = vadd.f32 0.0, %v3888
    %3890 = vdwg.mxu0
    %v3891 = vand.u32 %v3666, 4294901760
    %v3892 = vsub.f32 %v3666, %v3891
    %v3893 = vand.u32 %v3892, 4294901760
    %v3894 = vsub.f32 %v3892, %v3893
    %v3895 = vand.u32 %v3894, 4294901760
    %3896 = vmatprep.subr.mxu0 %v3895
    %v3897 = vand.u32 %v3665, 4294901760
    %v3898 = vsub.f32 %v3665, %v3897
    %v3899 = vand.u32 %v3898, 4294901760
    %v3900 = vsub.f32 %v3898, %v3899
    %v3901 = vand.u32 %v3900, 4294901760
    %3902 = vmatpush1.msra.mxu0 %v3901
    %v3903 = vand.u32 %v3668, 4294901760
    %v3904 = vsub.f32 %v3668, %v3903
    %v3905 = vand.u32 %v3904, 4294901760
    %v3906 = vsub.f32 %v3904, %v3905
    %v3907 = vand.u32 %v3906, 4294901760
    %3908 = vmatprep.subr.mxu0 %v3907
    %v3909 = vand.u32 %v3667, 4294901760
    %v3910 = vsub.f32 %v3667, %v3909
    %v3911 = vand.u32 %v3910, 4294901760
    %v3912 = vsub.f32 %v3910, %v3911
    %v3913 = vand.u32 %v3912, 4294901760
    %3914 = vmatpush1.msra.mxu0 %v3913
    %v3915 = vand.u32 %v3670, 4294901760
    %v3916 = vsub.f32 %v3670, %v3915
    %v3917 = vand.u32 %v3916, 4294901760
    %v3918 = vsub.f32 %v3916, %v3917
    %v3919 = vand.u32 %v3918, 4294901760
    %3920 = vmatprep.subr.mxu0 %v3919
    %v3921 = vand.u32 %v3669, 4294901760
    %v3922 = vsub.f32 %v3669, %v3921
    %v3923 = vand.u32 %v3922, 4294901760
    %v3924 = vsub.f32 %v3922, %v3923
    %v3925 = vand.u32 %v3924, 4294901760
    %3926 = vmatpush1.msra.mxu0 %v3925
    %v3927 = vand.u32 %v3672, 4294901760
    %v3928 = vsub.f32 %v3672, %v3927
    %v3929 = vand.u32 %v3928, 4294901760
    %v3930 = vsub.f32 %v3928, %v3929
    %v3931 = vand.u32 %v3930, 4294901760
    %3932 = vmatprep.subr.mxu0 %v3931
    %v3933 = vand.u32 %v3671, 4294901760
    %v3934 = vsub.f32 %v3671, %v3933
    %v3935 = vand.u32 %v3934, 4294901760
    %v3936 = vsub.f32 %v3934, %v3935
    %v3937 = vand.u32 %v3936, 4294901760
    %3938 = vmatpush1.msra.mxu0 %v3937
    %v3939 = vand.u32 %v3674, 4294901760
    %v3940 = vsub.f32 %v3674, %v3939
    %v3941 = vand.u32 %v3940, 4294901760
    %v3942 = vsub.f32 %v3940, %v3941
    %v3943 = vand.u32 %v3942, 4294901760
    %3944 = vmatprep.subr.mxu0 %v3943
    %v3945 = vand.u32 %v3673, 4294901760
    %v3946 = vsub.f32 %v3673, %v3945
    %v3947 = vand.u32 %v3946, 4294901760
    %v3948 = vsub.f32 %v3946, %v3947
    %v3949 = vand.u32 %v3948, 4294901760
    %3950 = vmatpush1.msra.mxu0 %v3949
    %v3951 = vand.u32 %v3676, 4294901760
    %v3952 = vsub.f32 %v3676, %v3951
    %v3953 = vand.u32 %v3952, 4294901760
    %v3954 = vsub.f32 %v3952, %v3953
    %v3955 = vand.u32 %v3954, 4294901760
    %3956 = vmatprep.subr.mxu0 %v3955
    %v3957 = vand.u32 %v3675, 4294901760
    %v3958 = vsub.f32 %v3675, %v3957
    %v3959 = vand.u32 %v3958, 4294901760
    %v3960 = vsub.f32 %v3958, %v3959
    %v3961 = vand.u32 %v3960, 4294901760
    %3962 = vmatpush1.msra.mxu0 %v3961
    %v3963 = vand.u32 %v3678, 4294901760
    %v3964 = vsub.f32 %v3678, %v3963
    %v3965 = vand.u32 %v3964, 4294901760
    %v3966 = vsub.f32 %v3964, %v3965
    %v3967 = vand.u32 %v3966, 4294901760
    %3968 = vmatprep.subr.mxu0 %v3967
    %v3969 = vand.u32 %v3677, 4294901760
    %v3970 = vsub.f32 %v3677, %v3969
    %v3971 = vand.u32 %v3970, 4294901760
    %v3972 = vsub.f32 %v3970, %v3971
    %v3973 = vand.u32 %v3972, 4294901760
    %3974 = vmatpush1.msra.mxu0 %v3973
    %v3975 = vand.u32 %v3680, 4294901760
    %v3976 = vsub.f32 %v3680, %v3975
    %v3977 = vand.u32 %v3976, 4294901760
    %v3978 = vsub.f32 %v3976, %v3977
    %v3979 = vand.u32 %v3978, 4294901760
    %3980 = vmatprep.subr.mxu0 %v3979
    %v3981 = vand.u32 %v3679, 4294901760
    %v3982 = vsub.f32 %v3679, %v3981
    %v3983 = vand.u32 %v3982, 4294901760
    %v3984 = vsub.f32 %v3982, %v3983
    %v3985 = vand.u32 %v3984, 4294901760
    %3986 = vmatpush1.msra.mxu0 %v3985
    %v3987 = vand.u32 %v3682, 4294901760
    %v3988 = vsub.f32 %v3682, %v3987
    %v3989 = vand.u32 %v3988, 4294901760
    %v3990 = vsub.f32 %v3988, %v3989
    %v3991 = vand.u32 %v3990, 4294901760
    %3992 = vmatprep.subr.mxu0 %v3991
    %v3993 = vand.u32 %v3681, 4294901760
    %v3994 = vsub.f32 %v3681, %v3993
    %v3995 = vand.u32 %v3994, 4294901760
    %v3996 = vsub.f32 %v3994, %v3995
    %v3997 = vand.u32 %v3996, 4294901760
    %3998 = vmatpush1.msra.mxu0 %v3997
    %v3999 = vand.u32 %v3684, 4294901760
    %v4000 = vsub.f32 %v3684, %v3999
    %v4001 = vand.u32 %v4000, 4294901760
    %v4002 = vsub.f32 %v4000, %v4001
    %v4003 = vand.u32 %v4002, 4294901760
    %4004 = vmatprep.subr.mxu0 %v4003
    %v4005 = vand.u32 %v3683, 4294901760
    %v4006 = vsub.f32 %v3683, %v4005
    %v4007 = vand.u32 %v4006, 4294901760
    %v4008 = vsub.f32 %v4006, %v4007
    %v4009 = vand.u32 %v4008, 4294901760
    %4010 = vmatpush1.msra.mxu0 %v4009
    %v4011 = vand.u32 %v3686, 4294901760
    %v4012 = vsub.f32 %v3686, %v4011
    %v4013 = vand.u32 %v4012, 4294901760
    %v4014 = vsub.f32 %v4012, %v4013
    %v4015 = vand.u32 %v4014, 4294901760
    %4016 = vmatprep.subr.mxu0 %v4015
    %v4017 = vand.u32 %v3685, 4294901760
    %v4018 = vsub.f32 %v3685, %v4017
    %v4019 = vand.u32 %v4018, 4294901760
    %v4020 = vsub.f32 %v4018, %v4019
    %v4021 = vand.u32 %v4020, 4294901760
    %4022 = vmatpush1.msra.mxu0 %v4021
    %v4023 = vand.u32 %v3688, 4294901760
    %v4024 = vsub.f32 %v3688, %v4023
    %v4025 = vand.u32 %v4024, 4294901760
    %v4026 = vsub.f32 %v4024, %v4025
    %v4027 = vand.u32 %v4026, 4294901760
    %4028 = vmatprep.subr.mxu0 %v4027
    %v4029 = vand.u32 %v3687, 4294901760
    %v4030 = vsub.f32 %v3687, %v4029
    %v4031 = vand.u32 %v4030, 4294901760
    %v4032 = vsub.f32 %v4030, %v4031
    %v4033 = vand.u32 %v4032, 4294901760
    %4034 = vmatpush1.msra.mxu0 %v4033
    %v4035 = vand.u32 %v3690, 4294901760
    %v4036 = vsub.f32 %v3690, %v4035
    %v4037 = vand.u32 %v4036, 4294901760
    %v4038 = vsub.f32 %v4036, %v4037
    %v4039 = vand.u32 %v4038, 4294901760
    %4040 = vmatprep.subr.mxu0 %v4039
    %v4041 = vand.u32 %v3689, 4294901760
    %v4042 = vsub.f32 %v3689, %v4041
    %v4043 = vand.u32 %v4042, 4294901760
    %v4044 = vsub.f32 %v4042, %v4043
    %v4045 = vand.u32 %v4044, 4294901760
    %4046 = vmatpush1.msra.mxu0 %v4045
    %v4047 = vand.u32 %v3692, 4294901760
    %v4048 = vsub.f32 %v3692, %v4047
    %v4049 = vand.u32 %v4048, 4294901760
    %v4050 = vsub.f32 %v4048, %v4049
    %v4051 = vand.u32 %v4050, 4294901760
    %4052 = vmatprep.subr.mxu0 %v4051
    %v4053 = vand.u32 %v3691, 4294901760
    %v4054 = vsub.f32 %v3691, %v4053
    %v4055 = vand.u32 %v4054, 4294901760
    %v4056 = vsub.f32 %v4054, %v4055
    %v4057 = vand.u32 %v4056, 4294901760
    %4058 = vmatpush1.msra.mxu0 %v4057
    %v4059 = vand.u32 %v3694, 4294901760
    %v4060 = vsub.f32 %v3694, %v4059
    %v4061 = vand.u32 %v4060, 4294901760
    %v4062 = vsub.f32 %v4060, %v4061
    %v4063 = vand.u32 %v4062, 4294901760
    %4064 = vmatprep.subr.mxu0 %v4063
    %v4065 = vand.u32 %v3693, 4294901760
    %v4066 = vsub.f32 %v3693, %v4065
    %v4067 = vand.u32 %v4066, 4294901760
    %v4068 = vsub.f32 %v4066, %v4067
    %v4069 = vand.u32 %v4068, 4294901760
    %4070 = vmatpush1.msra.mxu0 %v4069
    %v4071 = vand.u32 %v3696, 4294901760
    %v4072 = vsub.f32 %v3696, %v4071
    %v4073 = vand.u32 %v4072, 4294901760
    %v4074 = vsub.f32 %v4072, %v4073
    %v4075 = vand.u32 %v4074, 4294901760
    %4076 = vmatprep.subr.mxu0 %v4075
    %v4077 = vand.u32 %v3695, 4294901760
    %v4078 = vsub.f32 %v3695, %v4077
    %v4079 = vand.u32 %v4078, 4294901760
    %v4080 = vsub.f32 %v4078, %v4079
    %v4081 = vand.u32 %v4080, 4294901760
    %4082 = vmatpush1.msra.mxu0 %v4081
    %v4083 = vand.u32 %v3698, 4294901760
    %v4084 = vsub.f32 %v3698, %v4083
    %v4085 = vand.u32 %v4084, 4294901760
    %v4086 = vsub.f32 %v4084, %v4085
    %v4087 = vand.u32 %v4086, 4294901760
    %4088 = vmatprep.subr.mxu0 %v4087
    %v4089 = vand.u32 %v3697, 4294901760
    %v4090 = vsub.f32 %v3697, %v4089
    %v4091 = vand.u32 %v4090, 4294901760
    %v4092 = vsub.f32 %v4090, %v4091
    %v4093 = vand.u32 %v4092, 4294901760
    %4094 = vmatpush1.msra.mxu0 %v4093
    %v4095 = vand.u32 %v3700, 4294901760
    %v4096 = vsub.f32 %v3700, %v4095
    %v4097 = vand.u32 %v4096, 4294901760
    %v4098 = vsub.f32 %v4096, %v4097
    %v4099 = vand.u32 %v4098, 4294901760
    %4100 = vmatprep.subr.mxu0 %v4099
    %v4101 = vand.u32 %v3699, 4294901760
    %v4102 = vsub.f32 %v3699, %v4101
    %v4103 = vand.u32 %v4102, 4294901760
    %v4104 = vsub.f32 %v4102, %v4103
    %v4105 = vand.u32 %v4104, 4294901760
    %4106 = vmatpush1.msra.mxu0 %v4105
    %v4107 = vand.u32 %v3702, 4294901760
    %v4108 = vsub.f32 %v3702, %v4107
    %v4109 = vand.u32 %v4108, 4294901760
    %v4110 = vsub.f32 %v4108, %v4109
    %v4111 = vand.u32 %v4110, 4294901760
    %4112 = vmatprep.subr.mxu0 %v4111
    %v4113 = vand.u32 %v3701, 4294901760
    %v4114 = vsub.f32 %v3701, %v4113
    %v4115 = vand.u32 %v4114, 4294901760
    %v4116 = vsub.f32 %v4114, %v4115
    %v4117 = vand.u32 %v4116, 4294901760
    %4118 = vmatpush1.msra.mxu0 %v4117
    %v4119 = vand.u32 %v3704, 4294901760
    %v4120 = vsub.f32 %v3704, %v4119
    %v4121 = vand.u32 %v4120, 4294901760
    %v4122 = vsub.f32 %v4120, %v4121
    %v4123 = vand.u32 %v4122, 4294901760
    %4124 = vmatprep.subr.mxu0 %v4123
    %v4125 = vand.u32 %v3703, 4294901760
    %v4126 = vsub.f32 %v3703, %v4125
    %v4127 = vand.u32 %v4126, 4294901760
    %v4128 = vsub.f32 %v4126, %v4127
    %v4129 = vand.u32 %v4128, 4294901760
    %4130 = vmatpush1.msra.mxu0 %v4129
    %v4131 = vand.u32 %v3706, 4294901760
    %v4132 = vsub.f32 %v3706, %v4131
    %v4133 = vand.u32 %v4132, 4294901760
    %v4134 = vsub.f32 %v4132, %v4133
    %v4135 = vand.u32 %v4134, 4294901760
    %4136 = vmatprep.subr.mxu0 %v4135
    %v4137 = vand.u32 %v3705, 4294901760
    %v4138 = vsub.f32 %v3705, %v4137
    %v4139 = vand.u32 %v4138, 4294901760
    %v4140 = vsub.f32 %v4138, %v4139
    %v4141 = vand.u32 %v4140, 4294901760
    %4142 = vmatpush1.msra.mxu0 %v4141
    %4143 = vmatprep.subr.mxu0 0.0
    %4144 = vmatpush1.msra.mxu0 0.0
    %4145 = vmatprep.subr.mxu0 0.0
    %4146 = vmatpush1.msra.mxu0 0.0
    %4147 = vmatprep.subr.mxu0 0.0
    %4148 = vmatpush1.msra.mxu0 0.0
    %4149 = vmatprep.subr.mxu0 0.0
    %4150 = vmatpush1.msra.mxu0 0.0
    %4151 = vmatprep.subr.mxu0 0.0
    %4152 = vmatpush1.msra.mxu0 0.0
    %4153 = vmatprep.subr.mxu0 0.0
    %4154 = vmatpush1.msra.mxu0 0.0
    %4155 = vmatprep.subr.mxu0 0.0
    %4156 = vmatpush1.msra.mxu0 0.0
    %4157 = vmatprep.subr.mxu0 0.0
    %4158 = vmatpush1.msra.mxu0 0.0
    %4159 = vmatprep.subr.mxu0 0.0
    %4160 = vmatpush1.msra.mxu0 0.0
    %4161 = vmatprep.subr.mxu0 0.0
    %4162 = vmatpush1.msra.mxu0 0.0
    %4163 = vmatprep.subr.mxu0 0.0
    %4164 = vmatpush1.msra.mxu0 0.0
    %v4165 = vand.u32 %v3709, 4294901760
    %4166 = vmatprep.mubr.f32.mxu0 %v4165
    %v4167 = vand.u32 %v3657, 4294901760
    %4168 = vmatmul.mubr.f32.gmra.mrb[0].mxu0 %v4167
    %v4169 = vpop.f32.mrb[0].mxu0
    %v4170 = vadd.f32 %v3839, %v4169
    %v4171 = vpop.f32.mrb[0].mxu0
    %v4172 = vadd.f32 %v3841, %v4171
    %v4173 = vand.u32 %v3712, 4294901760
    %4174 = vmatprep.mubr.f32.mxu0 %v4173
    %v4175 = vand.u32 %v3659, 4294901760
    %4176 = vmatmul.mubr.f32.gmra.mrb[0].mxu0 %v4175
    %v4177 = vpop.f32.mrb[0].mxu0
    %v4178 = vadd.f32 %v3855, %v4177
    %v4179 = vpop.f32.mrb[0].mxu0
    %v4180 = vadd.f32 %v3857, %v4179
    %v4181 = vand.u32 %v3715, 4294901760
    %4182 = vmatprep.mubr.f32.mxu0 %v4181
    %v4183 = vand.u32 %v3661, 4294901760
    %4184 = vmatmul.mubr.f32.gmra.mrb[0].mxu0 %v4183
    %v4185 = vpop.f32.mrb[0].mxu0
    %v4186 = vadd.f32 %v3871, %v4185
    %v4187 = vpop.f32.mrb[0].mxu0
    %v4188 = vadd.f32 %v3873, %v4187
    %v4189 = vand.u32 %v3718, 4294901760
    %4190 = vmatprep.mubr.f32.mxu0 %v4189
    %v4191 = vand.u32 %v3663, 4294901760
    %4192 = vmatmul.mubr.f32.gmra.mrb[0].mxu0 %v4191
    %v4193 = vpop.f32.mrb[0].mxu0
    %v4194 = vadd.f32 %v3887, %v4193
    %v4195 = vpop.f32.mrb[0].mxu0
    %v4196 = vadd.f32 %v3889, %v4195
    %4197 = vdwg.mxu0
    %v4198 = vand.u32 %v3666, 4294901760
    %v4199 = vsub.f32 %v3666, %v4198
    %4200 = vmatprep.subr.mxu0 %v4199
    %v4201 = vand.u32 %v3665, 4294901760
    %v4202 = vsub.f32 %v3665, %v4201
    %4203 = vmatpush1.msra.mxu0 %v4202
    %v4204 = vand.u32 %v3668, 4294901760
    %v4205 = vsub.f32 %v3668, %v4204
    %4206 = vmatprep.subr.mxu0 %v4205
    %v4207 = vand.u32 %v3667, 4294901760
    %v4208 = vsub.f32 %v3667, %v4207
    %4209 = vmatpush1.msra.mxu0 %v4208
    %v4210 = vand.u32 %v3670, 4294901760
    %v4211 = vsub.f32 %v3670, %v4210
    %4212 = vmatprep.subr.mxu0 %v4211
    %v4213 = vand.u32 %v3669, 4294901760
    %v4214 = vsub.f32 %v3669, %v4213
    %4215 = vmatpush1.msra.mxu0 %v4214
    %v4216 = vand.u32 %v3672, 4294901760
    %v4217 = vsub.f32 %v3672, %v4216
    %4218 = vmatprep.subr.mxu0 %v4217
    %v4219 = vand.u32 %v3671, 4294901760
    %v4220 = vsub.f32 %v3671, %v4219
    %4221 = vmatpush1.msra.mxu0 %v4220
    %v4222 = vand.u32 %v3674, 4294901760
    %v4223 = vsub.f32 %v3674, %v4222
    %4224 = vmatprep.subr.mxu0 %v4223
    %v4225 = vand.u32 %v3673, 4294901760
    %v4226 = vsub.f32 %v3673, %v4225
    %4227 = vmatpush1.msra.mxu0 %v4226
    %v4228 = vand.u32 %v3676, 4294901760
    %v4229 = vsub.f32 %v3676, %v4228
    %4230 = vmatprep.subr.mxu0 %v4229
    %v4231 = vand.u32 %v3675, 4294901760
    %v4232 = vsub.f32 %v3675, %v4231
    %4233 = vmatpush1.msra.mxu0 %v4232
    %v4234 = vand.u32 %v3678, 4294901760
    %v4235 = vsub.f32 %v3678, %v4234
    %4236 = vmatprep.subr.mxu0 %v4235
    %v4237 = vand.u32 %v3677, 4294901760
    %v4238 = vsub.f32 %v3677, %v4237
    %4239 = vmatpush1.msra.mxu0 %v4238
    %v4240 = vand.u32 %v3680, 4294901760
    %v4241 = vsub.f32 %v3680, %v4240
    %4242 = vmatprep.subr.mxu0 %v4241
    %v4243 = vand.u32 %v3679, 4294901760
    %v4244 = vsub.f32 %v3679, %v4243
    %4245 = vmatpush1.msra.mxu0 %v4244
    %v4246 = vand.u32 %v3682, 4294901760
    %v4247 = vsub.f32 %v3682, %v4246
    %4248 = vmatprep.subr.mxu0 %v4247
    %v4249 = vand.u32 %v3681, 4294901760
    %v4250 = vsub.f32 %v3681, %v4249
    %4251 = vmatpush1.msra.mxu0 %v4250
    %v4252 = vand.u32 %v3684, 4294901760
    %v4253 = vsub.f32 %v3684, %v4252
    %4254 = vmatprep.subr.mxu0 %v4253
    %v4255 = vand.u32 %v3683, 4294901760
    %v4256 = vsub.f32 %v3683, %v4255
    %4257 = vmatpush1.msra.mxu0 %v4256
    %v4258 = vand.u32 %v3686, 4294901760
    %v4259 = vsub.f32 %v3686, %v4258
    %4260 = vmatprep.subr.mxu0 %v4259
    %v4261 = vand.u32 %v3685, 4294901760
    %v4262 = vsub.f32 %v3685, %v4261
    %4263 = vmatpush1.msra.mxu0 %v4262
    %v4264 = vand.u32 %v3688, 4294901760
    %v4265 = vsub.f32 %v3688, %v4264
    %4266 = vmatprep.subr.mxu0 %v4265
    %v4267 = vand.u32 %v3687, 4294901760
    %v4268 = vsub.f32 %v3687, %v4267
    %4269 = vmatpush1.msra.mxu0 %v4268
    %v4270 = vand.u32 %v3690, 4294901760
    %v4271 = vsub.f32 %v3690, %v4270
    %4272 = vmatprep.subr.mxu0 %v4271
    %v4273 = vand.u32 %v3689, 4294901760
    %v4274 = vsub.f32 %v3689, %v4273
    %4275 = vmatpush1.msra.mxu0 %v4274
    %v4276 = vand.u32 %v3692, 4294901760
    %v4277 = vsub.f32 %v3692, %v4276
    %4278 = vmatprep.subr.mxu0 %v4277
    %v4279 = vand.u32 %v3691, 4294901760
    %v4280 = vsub.f32 %v3691, %v4279
    %4281 = vmatpush1.msra.mxu0 %v4280
    %v4282 = vand.u32 %v3694, 4294901760
    %v4283 = vsub.f32 %v3694, %v4282
    %4284 = vmatprep.subr.mxu0 %v4283
    %v4285 = vand.u32 %v3693, 4294901760
    %v4286 = vsub.f32 %v3693, %v4285
    %4287 = vmatpush1.msra.mxu0 %v4286
    %v4288 = vand.u32 %v3696, 4294901760
    %v4289 = vsub.f32 %v3696, %v4288
    %4290 = vmatprep.subr.mxu0 %v4289
    %v4291 = vand.u32 %v3695, 4294901760
    %v4292 = vsub.f32 %v3695, %v4291
    %4293 = vmatpush1.msra.mxu0 %v4292
    %v4294 = vand.u32 %v3698, 4294901760
    %v4295 = vsub.f32 %v3698, %v4294
    %4296 = vmatprep.subr.mxu0 %v4295
    %v4297 = vand.u32 %v3697, 4294901760
    %v4298 = vsub.f32 %v3697, %v4297
    %4299 = vmatpush1.msra.mxu0 %v4298
    %v4300 = vand.u32 %v3700, 4294901760
    %v4301 = vsub.f32 %v3700, %v4300
    %4302 = vmatprep.subr.mxu0 %v4301
    %v4303 = vand.u32 %v3699, 4294901760
    %v4304 = vsub.f32 %v3699, %v4303
    %4305 = vmatpush1.msra.mxu0 %v4304
    %v4306 = vand.u32 %v3702, 4294901760
    %v4307 = vsub.f32 %v3702, %v4306
    %4308 = vmatprep.subr.mxu0 %v4307
    %v4309 = vand.u32 %v3701, 4294901760
    %v4310 = vsub.f32 %v3701, %v4309
    %4311 = vmatpush1.msra.mxu0 %v4310
    %v4312 = vand.u32 %v3704, 4294901760
    %v4313 = vsub.f32 %v3704, %v4312
    %4314 = vmatprep.subr.mxu0 %v4313
    %v4315 = vand.u32 %v3703, 4294901760
    %v4316 = vsub.f32 %v3703, %v4315
    %4317 = vmatpush1.msra.mxu0 %v4316
    %v4318 = vand.u32 %v3706, 4294901760
    %v4319 = vsub.f32 %v3706, %v4318
    %4320 = vmatprep.subr.mxu0 %v4319
    %v4321 = vand.u32 %v3705, 4294901760
    %v4322 = vsub.f32 %v3705, %v4321
    %4323 = vmatpush1.msra.mxu0 %v4322
    %4324 = vmatprep.subr.mxu0 0.0
    %4325 = vmatpush1.msra.mxu0 0.0
    %4326 = vmatprep.subr.mxu0 0.0
    %4327 = vmatpush1.msra.mxu0 0.0
    %4328 = vmatprep.subr.mxu0 0.0
    %4329 = vmatpush1.msra.mxu0 0.0
    %4330 = vmatprep.subr.mxu0 0.0
    %4331 = vmatpush1.msra.mxu0 0.0
    %4332 = vmatprep.subr.mxu0 0.0
    %4333 = vmatpush1.msra.mxu0 0.0
    %4334 = vmatprep.subr.mxu0 0.0
    %4335 = vmatpush1.msra.mxu0 0.0
    %4336 = vmatprep.subr.mxu0 0.0
    %4337 = vmatpush1.msra.mxu0 0.0
    %4338 = vmatprep.subr.mxu0 0.0
    %4339 = vmatpush1.msra.mxu0 0.0
    %4340 = vmatprep.subr.mxu0 0.0
    %4341 = vmatpush1.msra.mxu0 0.0
    %4342 = vmatprep.subr.mxu0 0.0
    %4343 = vmatpush1.msra.mxu0 0.0
    %4344 = vmatprep.subr.mxu0 0.0
    %4345 = vmatpush1.msra.mxu0 0.0
    %v4346 = vand.u32 %v3709, 4294901760
    %v4347 = vsub.f32 %v3709, %v4346
    %4348 = vmatprep.mubr.f32.mxu0 %v4347
    %v4349 = vand.u32 %v3657, 4294901760
    %v4350 = vsub.f32 %v3657, %v4349
    %4351 = vmatmul.mubr.f32.gmra.mrb[0].mxu0 %v4350
    %v4352 = vpop.f32.mrb[0].mxu0
    %v4353 = vadd.f32 %v4170, %v4352
    %v4354 = vpop.f32.mrb[0].mxu0
    %v4355 = vadd.f32 %v4172, %v4354
    %v4356 = vand.u32 %v3712, 4294901760
    %v4357 = vsub.f32 %v3712, %v4356
    %4358 = vmatprep.mubr.f32.mxu0 %v4357
    %v4359 = vand.u32 %v3659, 4294901760
    %v4360 = vsub.f32 %v3659, %v4359
    %4361 = vmatmul.mubr.f32.gmra.mrb[0].mxu0 %v4360
    %v4362 = vpop.f32.mrb[0].mxu0
    %v4363 = vadd.f32 %v4178, %v4362
    %v4364 = vpop.f32.mrb[0].mxu0
    %v4365 = vadd.f32 %v4180, %v4364
    %v4366 = vand.u32 %v3715, 4294901760
    %v4367 = vsub.f32 %v3715, %v4366
    %4368 = vmatprep.mubr.f32.mxu0 %v4367
    %v4369 = vand.u32 %v3661, 4294901760
    %v4370 = vsub.f32 %v3661, %v4369
    %4371 = vmatmul.mubr.f32.gmra.mrb[0].mxu0 %v4370
    %v4372 = vpop.f32.mrb[0].mxu0
    %v4373 = vadd.f32 %v4186, %v4372
    %v4374 = vpop.f32.mrb[0].mxu0
    %v4375 = vadd.f32 %v4188, %v4374
    %v4376 = vand.u32 %v3718, 4294901760
    %v4377 = vsub.f32 %v3718, %v4376
    %4378 = vmatprep.mubr.f32.mxu0 %v4377
    %v4379 = vand.u32 %v3663, 4294901760
    %v4380 = vsub.f32 %v3663, %v4379
    %4381 = vmatmul.mubr.f32.gmra.mrb[0].mxu0 %v4380
    %v4382 = vpop.f32.mrb[0].mxu0
    %v4383 = vadd.f32 %v4194, %v4382
    %v4384 = vpop.f32.mrb[0].mxu0
    %v4385 = vadd.f32 %v4196, %v4384
    %4386 = vdwg.mxu0
    %v4387 = vand.u32 %v3666, 4294901760
    %4388 = vmatprep.subr.mxu0 %v4387
    %v4389 = vand.u32 %v3665, 4294901760
    %4390 = vmatpush1.msra.mxu0 %v4389
    %v4391 = vand.u32 %v3668, 4294901760
    %4392 = vmatprep.subr.mxu0 %v4391
    %v4393 = vand.u32 %v3667, 4294901760
    %4394 = vmatpush1.msra.mxu0 %v4393
    %v4395 = vand.u32 %v3670, 4294901760
    %4396 = vmatprep.subr.mxu0 %v4395
    %v4397 = vand.u32 %v3669, 4294901760
    %4398 = vmatpush1.msra.mxu0 %v4397
    %v4399 = vand.u32 %v3672, 4294901760
    %4400 = vmatprep.subr.mxu0 %v4399
    %v4401 = vand.u32 %v3671, 4294901760
    %4402 = vmatpush1.msra.mxu0 %v4401
    %v4403 = vand.u32 %v3674, 4294901760
    %4404 = vmatprep.subr.mxu0 %v4403
    %v4405 = vand.u32 %v3673, 4294901760
    %4406 = vmatpush1.msra.mxu0 %v4405
    %v4407 = vand.u32 %v3676, 4294901760
    %4408 = vmatprep.subr.mxu0 %v4407
    %v4409 = vand.u32 %v3675, 4294901760
    %4410 = vmatpush1.msra.mxu0 %v4409
    %v4411 = vand.u32 %v3678, 4294901760
    %4412 = vmatprep.subr.mxu0 %v4411
    %v4413 = vand.u32 %v3677, 4294901760
    %4414 = vmatpush1.msra.mxu0 %v4413
    %v4415 = vand.u32 %v3680, 4294901760
    %4416 = vmatprep.subr.mxu0 %v4415
    %v4417 = vand.u32 %v3679, 4294901760
    %4418 = vmatpush1.msra.mxu0 %v4417
    %v4419 = vand.u32 %v3682, 4294901760
    %4420 = vmatprep.subr.mxu0 %v4419
    %v4421 = vand.u32 %v3681, 4294901760
    %4422 = vmatpush1.msra.mxu0 %v4421
    %v4423 = vand.u32 %v3684, 4294901760
    %4424 = vmatprep.subr.mxu0 %v4423
    %v4425 = vand.u32 %v3683, 4294901760
    %4426 = vmatpush1.msra.mxu0 %v4425
    %v4427 = vand.u32 %v3686, 4294901760
    %4428 = vmatprep.subr.mxu0 %v4427
    %v4429 = vand.u32 %v3685, 4294901760
    %4430 = vmatpush1.msra.mxu0 %v4429
    %v4431 = vand.u32 %v3688, 4294901760
    %4432 = vmatprep.subr.mxu0 %v4431
    %v4433 = vand.u32 %v3687, 4294901760
    %4434 = vmatpush1.msra.mxu0 %v4433
    %v4435 = vand.u32 %v3690, 4294901760
    %4436 = vmatprep.subr.mxu0 %v4435
    %v4437 = vand.u32 %v3689, 4294901760
    %4438 = vmatpush1.msra.mxu0 %v4437
    %v4439 = vand.u32 %v3692, 4294901760
    %4440 = vmatprep.subr.mxu0 %v4439
    %v4441 = vand.u32 %v3691, 4294901760
    %4442 = vmatpush1.msra.mxu0 %v4441
    %v4443 = vand.u32 %v3694, 4294901760
    %4444 = vmatprep.subr.mxu0 %v4443
    %v4445 = vand.u32 %v3693, 4294901760
    %4446 = vmatpush1.msra.mxu0 %v4445
    %v4447 = vand.u32 %v3696, 4294901760
    %4448 = vmatprep.subr.mxu0 %v4447
    %v4449 = vand.u32 %v3695, 4294901760
    %4450 = vmatpush1.msra.mxu0 %v4449
    %v4451 = vand.u32 %v3698, 4294901760
    %4452 = vmatprep.subr.mxu0 %v4451
    %v4453 = vand.u32 %v3697, 4294901760
    %4454 = vmatpush1.msra.mxu0 %v4453
    %v4455 = vand.u32 %v3700, 4294901760
    %4456 = vmatprep.subr.mxu0 %v4455
    %v4457 = vand.u32 %v3699, 4294901760
    %4458 = vmatpush1.msra.mxu0 %v4457
    %v4459 = vand.u32 %v3702, 4294901760
    %4460 = vmatprep.subr.mxu0 %v4459
    %v4461 = vand.u32 %v3701, 4294901760
    %4462 = vmatpush1.msra.mxu0 %v4461
    %v4463 = vand.u32 %v3704, 4294901760
    %4464 = vmatprep.subr.mxu0 %v4463
    %v4465 = vand.u32 %v3703, 4294901760
    %4466 = vmatpush1.msra.mxu0 %v4465
    %v4467 = vand.u32 %v3706, 4294901760
    %4468 = vmatprep.subr.mxu0 %v4467
    %v4469 = vand.u32 %v3705, 4294901760
    %4470 = vmatpush1.msra.mxu0 %v4469
    %4471 = vmatprep.subr.mxu0 0.0
    %4472 = vmatpush1.msra.mxu0 0.0
    %4473 = vmatprep.subr.mxu0 0.0
    %4474 = vmatpush1.msra.mxu0 0.0
    %4475 = vmatprep.subr.mxu0 0.0
    %4476 = vmatpush1.msra.mxu0 0.0
    %4477 = vmatprep.subr.mxu0 0.0
    %4478 = vmatpush1.msra.mxu0 0.0
    %4479 = vmatprep.subr.mxu0 0.0
    %4480 = vmatpush1.msra.mxu0 0.0
    %4481 = vmatprep.subr.mxu0 0.0
    %4482 = vmatpush1.msra.mxu0 0.0
    %4483 = vmatprep.subr.mxu0 0.0
    %4484 = vmatpush1.msra.mxu0 0.0
    %4485 = vmatprep.subr.mxu0 0.0
    %4486 = vmatpush1.msra.mxu0 0.0
    %4487 = vmatprep.subr.mxu0 0.0
    %4488 = vmatpush1.msra.mxu0 0.0
    %4489 = vmatprep.subr.mxu0 0.0
    %4490 = vmatpush1.msra.mxu0 0.0
    %4491 = vmatprep.subr.mxu0 0.0
    %4492 = vmatpush1.msra.mxu0 0.0
    %v4493 = vand.u32 %v3709, 4294901760
    %v4494 = vsub.f32 %v3709, %v4493
    %v4495 = vand.u32 %v4494, 4294901760
    %4496 = vmatprep.mubr.f32.mxu0 %v4495
    %v4497 = vand.u32 %v3657, 4294901760
    %v4498 = vsub.f32 %v3657, %v4497
    %v4499 = vand.u32 %v4498, 4294901760
    %4500 = vmatmul.mubr.f32.gmra.mrb[0].mxu0 %v4499
    %v4501 = vpop.f32.mrb[0].mxu0
    %v4502 = vadd.f32 %v4353, %v4501
    %v4503 = vpop.f32.mrb[0].mxu0
    %v4504 = vadd.f32 %v4355, %v4503
    %v4505 = vand.u32 %v3712, 4294901760
    %v4506 = vsub.f32 %v3712, %v4505
    %v4507 = vand.u32 %v4506, 4294901760
    %4508 = vmatprep.mubr.f32.mxu0 %v4507
    %v4509 = vand.u32 %v3659, 4294901760
    %v4510 = vsub.f32 %v3659, %v4509
    %v4511 = vand.u32 %v4510, 4294901760
    %4512 = vmatmul.mubr.f32.gmra.mrb[0].mxu0 %v4511
    %v4513 = vpop.f32.mrb[0].mxu0
    %v4514 = vadd.f32 %v4363, %v4513
    %v4515 = vpop.f32.mrb[0].mxu0
    %v4516 = vadd.f32 %v4365, %v4515
    %v4517 = vand.u32 %v3715, 4294901760
    %v4518 = vsub.f32 %v3715, %v4517
    %v4519 = vand.u32 %v4518, 4294901760
    %4520 = vmatprep.mubr.f32.mxu0 %v4519
    %v4521 = vand.u32 %v3661, 4294901760
    %v4522 = vsub.f32 %v3661, %v4521
    %v4523 = vand.u32 %v4522, 4294901760
    %4524 = vmatmul.mubr.f32.gmra.mrb[0].mxu0 %v4523
    %v4525 = vpop.f32.mrb[0].mxu0
    %v4526 = vadd.f32 %v4373, %v4525
    %v4527 = vpop.f32.mrb[0].mxu0
    %v4528 = vadd.f32 %v4375, %v4527
    %v4529 = vand.u32 %v3718, 4294901760
    %v4530 = vsub.f32 %v3718, %v4529
    %v4531 = vand.u32 %v4530, 4294901760
    %4532 = vmatprep.mubr.f32.mxu0 %v4531
    %v4533 = vand.u32 %v3663, 4294901760
    %v4534 = vsub.f32 %v3663, %v4533
    %v4535 = vand.u32 %v4534, 4294901760
    %4536 = vmatmul.mubr.f32.gmra.mrb[0].mxu0 %v4535
    %v4537 = vpop.f32.mrb[0].mxu0
    %v4538 = vadd.f32 %v4383, %v4537
    %v4539 = vpop.f32.mrb[0].mxu0
    %v4540 = vadd.f32 %v4385, %v4539
    %4541 = vdwg.mxu0
    %v4542 = vand.u32 %v3666, 4294901760
    %v4543 = vsub.f32 %v3666, %v4542
    %v4544 = vand.u32 %v4543, 4294901760
    %4545 = vmatprep.subr.mxu0 %v4544
    %v4546 = vand.u32 %v3665, 4294901760
    %v4547 = vsub.f32 %v3665, %v4546
    %v4548 = vand.u32 %v4547, 4294901760
    %4549 = vmatpush1.msra.mxu0 %v4548
    %v4550 = vand.u32 %v3668, 4294901760
    %v4551 = vsub.f32 %v3668, %v4550
    %v4552 = vand.u32 %v4551, 4294901760
    %4553 = vmatprep.subr.mxu0 %v4552
    %v4554 = vand.u32 %v3667, 4294901760
    %v4555 = vsub.f32 %v3667, %v4554
    %v4556 = vand.u32 %v4555, 4294901760
    %4557 = vmatpush1.msra.mxu0 %v4556
    %v4558 = vand.u32 %v3670, 4294901760
    %v4559 = vsub.f32 %v3670, %v4558
    %v4560 = vand.u32 %v4559, 4294901760
    %4561 = vmatprep.subr.mxu0 %v4560
    %v4562 = vand.u32 %v3669, 4294901760
    %v4563 = vsub.f32 %v3669, %v4562
    %v4564 = vand.u32 %v4563, 4294901760
    %4565 = vmatpush1.msra.mxu0 %v4564
    %v4566 = vand.u32 %v3672, 4294901760
    %v4567 = vsub.f32 %v3672, %v4566
    %v4568 = vand.u32 %v4567, 4294901760
    %4569 = vmatprep.subr.mxu0 %v4568
    %v4570 = vand.u32 %v3671, 4294901760
    %v4571 = vsub.f32 %v3671, %v4570
    %v4572 = vand.u32 %v4571, 4294901760
    %4573 = vmatpush1.msra.mxu0 %v4572
    %v4574 = vand.u32 %v3674, 4294901760
    %v4575 = vsub.f32 %v3674, %v4574
    %v4576 = vand.u32 %v4575, 4294901760
    %4577 = vmatprep.subr.mxu0 %v4576
    %v4578 = vand.u32 %v3673, 4294901760
    %v4579 = vsub.f32 %v3673, %v4578
    %v4580 = vand.u32 %v4579, 4294901760
    %4581 = vmatpush1.msra.mxu0 %v4580
    %v4582 = vand.u32 %v3676, 4294901760
    %v4583 = vsub.f32 %v3676, %v4582
    %v4584 = vand.u32 %v4583, 4294901760
    %4585 = vmatprep.subr.mxu0 %v4584
    %v4586 = vand.u32 %v3675, 4294901760
    %v4587 = vsub.f32 %v3675, %v4586
    %v4588 = vand.u32 %v4587, 4294901760
    %4589 = vmatpush1.msra.mxu0 %v4588
    %v4590 = vand.u32 %v3678, 4294901760
    %v4591 = vsub.f32 %v3678, %v4590
    %v4592 = vand.u32 %v4591, 4294901760
    %4593 = vmatprep.subr.mxu0 %v4592
    %v4594 = vand.u32 %v3677, 4294901760
    %v4595 = vsub.f32 %v3677, %v4594
    %v4596 = vand.u32 %v4595, 4294901760
    %4597 = vmatpush1.msra.mxu0 %v4596
    %v4598 = vand.u32 %v3680, 4294901760
    %v4599 = vsub.f32 %v3680, %v4598
    %v4600 = vand.u32 %v4599, 4294901760
    %4601 = vmatprep.subr.mxu0 %v4600
    %v4602 = vand.u32 %v3679, 4294901760
    %v4603 = vsub.f32 %v3679, %v4602
    %v4604 = vand.u32 %v4603, 4294901760
    %4605 = vmatpush1.msra.mxu0 %v4604
    %v4606 = vand.u32 %v3682, 4294901760
    %v4607 = vsub.f32 %v3682, %v4606
    %v4608 = vand.u32 %v4607, 4294901760
    %4609 = vmatprep.subr.mxu0 %v4608
    %v4610 = vand.u32 %v3681, 4294901760
    %v4611 = vsub.f32 %v3681, %v4610
    %v4612 = vand.u32 %v4611, 4294901760
    %4613 = vmatpush1.msra.mxu0 %v4612
    %v4614 = vand.u32 %v3684, 4294901760
    %v4615 = vsub.f32 %v3684, %v4614
    %v4616 = vand.u32 %v4615, 4294901760
    %4617 = vmatprep.subr.mxu0 %v4616
    %v4618 = vand.u32 %v3683, 4294901760
    %v4619 = vsub.f32 %v3683, %v4618
    %v4620 = vand.u32 %v4619, 4294901760
    %4621 = vmatpush1.msra.mxu0 %v4620
    %v4622 = vand.u32 %v3686, 4294901760
    %v4623 = vsub.f32 %v3686, %v4622
    %v4624 = vand.u32 %v4623, 4294901760
    %4625 = vmatprep.subr.mxu0 %v4624
    %v4626 = vand.u32 %v3685, 4294901760
    %v4627 = vsub.f32 %v3685, %v4626
    %v4628 = vand.u32 %v4627, 4294901760
    %4629 = vmatpush1.msra.mxu0 %v4628
    %v4630 = vand.u32 %v3688, 4294901760
    %v4631 = vsub.f32 %v3688, %v4630
    %v4632 = vand.u32 %v4631, 4294901760
    %4633 = vmatprep.subr.mxu0 %v4632
    %v4634 = vand.u32 %v3687, 4294901760
    %v4635 = vsub.f32 %v3687, %v4634
    %v4636 = vand.u32 %v4635, 4294901760
    %4637 = vmatpush1.msra.mxu0 %v4636
    %v4638 = vand.u32 %v3690, 4294901760
    %v4639 = vsub.f32 %v3690, %v4638
    %v4640 = vand.u32 %v4639, 4294901760
    %4641 = vmatprep.subr.mxu0 %v4640
    %v4642 = vand.u32 %v3689, 4294901760
    %v4643 = vsub.f32 %v3689, %v4642
    %v4644 = vand.u32 %v4643, 4294901760
    %4645 = vmatpush1.msra.mxu0 %v4644
    %v4646 = vand.u32 %v3692, 4294901760
    %v4647 = vsub.f32 %v3692, %v4646
    %v4648 = vand.u32 %v4647, 4294901760
    %4649 = vmatprep.subr.mxu0 %v4648
    %v4650 = vand.u32 %v3691, 4294901760
    %v4651 = vsub.f32 %v3691, %v4650
    %v4652 = vand.u32 %v4651, 4294901760
    %4653 = vmatpush1.msra.mxu0 %v4652
    %v4654 = vand.u32 %v3694, 4294901760
    %v4655 = vsub.f32 %v3694, %v4654
    %v4656 = vand.u32 %v4655, 4294901760
    %4657 = vmatprep.subr.mxu0 %v4656
    %v4658 = vand.u32 %v3693, 4294901760
    %v4659 = vsub.f32 %v3693, %v4658
    %v4660 = vand.u32 %v4659, 4294901760
    %4661 = vmatpush1.msra.mxu0 %v4660
    %v4662 = vand.u32 %v3696, 4294901760
    %v4663 = vsub.f32 %v3696, %v4662
    %v4664 = vand.u32 %v4663, 4294901760
    %4665 = vmatprep.subr.mxu0 %v4664
    %v4666 = vand.u32 %v3695, 4294901760
    %v4667 = vsub.f32 %v3695, %v4666
    %v4668 = vand.u32 %v4667, 4294901760
    %4669 = vmatpush1.msra.mxu0 %v4668
    %v4670 = vand.u32 %v3698, 4294901760
    %v4671 = vsub.f32 %v3698, %v4670
    %v4672 = vand.u32 %v4671, 4294901760
    %4673 = vmatprep.subr.mxu0 %v4672
    %v4674 = vand.u32 %v3697, 4294901760
    %v4675 = vsub.f32 %v3697, %v4674
    %v4676 = vand.u32 %v4675, 4294901760
    %4677 = vmatpush1.msra.mxu0 %v4676
    %v4678 = vand.u32 %v3700, 4294901760
    %v4679 = vsub.f32 %v3700, %v4678
    %v4680 = vand.u32 %v4679, 4294901760
    %4681 = vmatprep.subr.mxu0 %v4680
    %v4682 = vand.u32 %v3699, 4294901760
    %v4683 = vsub.f32 %v3699, %v4682
    %v4684 = vand.u32 %v4683, 4294901760
    %4685 = vmatpush1.msra.mxu0 %v4684
    %v4686 = vand.u32 %v3702, 4294901760
    %v4687 = vsub.f32 %v3702, %v4686
    %v4688 = vand.u32 %v4687, 4294901760
    %4689 = vmatprep.subr.mxu0 %v4688
    %v4690 = vand.u32 %v3701, 4294901760
    %v4691 = vsub.f32 %v3701, %v4690
    %v4692 = vand.u32 %v4691, 4294901760
    %4693 = vmatpush1.msra.mxu0 %v4692
    %v4694 = vand.u32 %v3704, 4294901760
    %v4695 = vsub.f32 %v3704, %v4694
    %v4696 = vand.u32 %v4695, 4294901760
    %4697 = vmatprep.subr.mxu0 %v4696
    %v4698 = vand.u32 %v3703, 4294901760
    %v4699 = vsub.f32 %v3703, %v4698
    %v4700 = vand.u32 %v4699, 4294901760
    %4701 = vmatpush1.msra.mxu0 %v4700
    %v4702 = vand.u32 %v3706, 4294901760
    %v4703 = vsub.f32 %v3706, %v4702
    %v4704 = vand.u32 %v4703, 4294901760
    %4705 = vmatprep.subr.mxu0 %v4704
    %v4706 = vand.u32 %v3705, 4294901760
    %v4707 = vsub.f32 %v3705, %v4706
    %v4708 = vand.u32 %v4707, 4294901760
    %4709 = vmatpush1.msra.mxu0 %v4708
    %4710 = vmatprep.subr.mxu0 0.0
    %4711 = vmatpush1.msra.mxu0 0.0
    %4712 = vmatprep.subr.mxu0 0.0
    %4713 = vmatpush1.msra.mxu0 0.0
    %4714 = vmatprep.subr.mxu0 0.0
    %4715 = vmatpush1.msra.mxu0 0.0
    %4716 = vmatprep.subr.mxu0 0.0
    %4717 = vmatpush1.msra.mxu0 0.0
    %4718 = vmatprep.subr.mxu0 0.0
    %4719 = vmatpush1.msra.mxu0 0.0
    %4720 = vmatprep.subr.mxu0 0.0
    %4721 = vmatpush1.msra.mxu0 0.0
    %4722 = vmatprep.subr.mxu0 0.0
    %4723 = vmatpush1.msra.mxu0 0.0
    %4724 = vmatprep.subr.mxu0 0.0
    %4725 = vmatpush1.msra.mxu0 0.0
    %4726 = vmatprep.subr.mxu0 0.0
    %4727 = vmatpush1.msra.mxu0 0.0
    %4728 = vmatprep.subr.mxu0 0.0
    %4729 = vmatpush1.msra.mxu0 0.0
    %4730 = vmatprep.subr.mxu0 0.0
    %4731 = vmatpush1.msra.mxu0 0.0
    %v4732 = vand.u32 %v3709, 4294901760
    %4733 = vmatprep.mubr.f32.mxu0 %v4732
    %v4734 = vand.u32 %v3657, 4294901760
    %4735 = vmatmul.mubr.f32.gmra.mrb[0].mxu0 %v4734
    %v4736 = vpop.f32.mrb[0].mxu0
    %v4737 = vadd.f32 %v4502, %v4736
    %v4738 = vpop.f32.mrb[0].mxu0
    %v4739 = vadd.f32 %v4504, %v4738
    %v4740 = vand.u32 %v3712, 4294901760
    %4741 = vmatprep.mubr.f32.mxu0 %v4740
    %v4742 = vand.u32 %v3659, 4294901760
    %4743 = vmatmul.mubr.f32.gmra.mrb[0].mxu0 %v4742
    %v4744 = vpop.f32.mrb[0].mxu0
    %v4745 = vadd.f32 %v4514, %v4744
    %v4746 = vpop.f32.mrb[0].mxu0
    %v4747 = vadd.f32 %v4516, %v4746
    %v4748 = vand.u32 %v3715, 4294901760
    %4749 = vmatprep.mubr.f32.mxu0 %v4748
    %v4750 = vand.u32 %v3661, 4294901760
    %4751 = vmatmul.mubr.f32.gmra.mrb[0].mxu0 %v4750
    %v4752 = vpop.f32.mrb[0].mxu0
    %v4753 = vadd.f32 %v4526, %v4752
    %v4754 = vpop.f32.mrb[0].mxu0
    %v4755 = vadd.f32 %v4528, %v4754
    %v4756 = vand.u32 %v3718, 4294901760
    %4757 = vmatprep.mubr.f32.mxu0 %v4756
    %v4758 = vand.u32 %v3663, 4294901760
    %4759 = vmatmul.mubr.f32.gmra.mrb[0].mxu0 %v4758
    %v4760 = vpop.f32.mrb[0].mxu0
    %v4761 = vadd.f32 %v4538, %v4760
    %v4762 = vpop.f32.mrb[0].mxu0
    %v4763 = vadd.f32 %v4540, %v4762
    %4764 = vdwg.mxu0
    %v4765 = vand.u32 %v3666, 4294901760
    %4766 = vmatprep.subr.mxu0 %v4765
    %v4767 = vand.u32 %v3665, 4294901760
    %4768 = vmatpush1.msra.mxu0 %v4767
    %v4769 = vand.u32 %v3668, 4294901760
    %4770 = vmatprep.subr.mxu0 %v4769
    %v4771 = vand.u32 %v3667, 4294901760
    %4772 = vmatpush1.msra.mxu0 %v4771
    %v4773 = vand.u32 %v3670, 4294901760
    %4774 = vmatprep.subr.mxu0 %v4773
    %v4775 = vand.u32 %v3669, 4294901760
    %4776 = vmatpush1.msra.mxu0 %v4775
    %v4777 = vand.u32 %v3672, 4294901760
    %4778 = vmatprep.subr.mxu0 %v4777
    %v4779 = vand.u32 %v3671, 4294901760
    %4780 = vmatpush1.msra.mxu0 %v4779
    %v4781 = vand.u32 %v3674, 4294901760
    %4782 = vmatprep.subr.mxu0 %v4781
    %v4783 = vand.u32 %v3673, 4294901760
    %4784 = vmatpush1.msra.mxu0 %v4783
    %v4785 = vand.u32 %v3676, 4294901760
    %4786 = vmatprep.subr.mxu0 %v4785
    %v4787 = vand.u32 %v3675, 4294901760
    %4788 = vmatpush1.msra.mxu0 %v4787
    %v4789 = vand.u32 %v3678, 4294901760
    %4790 = vmatprep.subr.mxu0 %v4789
    %v4791 = vand.u32 %v3677, 4294901760
    %4792 = vmatpush1.msra.mxu0 %v4791
    %v4793 = vand.u32 %v3680, 4294901760
    %4794 = vmatprep.subr.mxu0 %v4793
    %v4795 = vand.u32 %v3679, 4294901760
    %4796 = vmatpush1.msra.mxu0 %v4795
    %v4797 = vand.u32 %v3682, 4294901760
    %4798 = vmatprep.subr.mxu0 %v4797
    %v4799 = vand.u32 %v3681, 4294901760
    %4800 = vmatpush1.msra.mxu0 %v4799
    %v4801 = vand.u32 %v3684, 4294901760
    %4802 = vmatprep.subr.mxu0 %v4801
    %v4803 = vand.u32 %v3683, 4294901760
    %4804 = vmatpush1.msra.mxu0 %v4803
    %v4805 = vand.u32 %v3686, 4294901760
    %4806 = vmatprep.subr.mxu0 %v4805
    %v4807 = vand.u32 %v3685, 4294901760
    %4808 = vmatpush1.msra.mxu0 %v4807
    %v4809 = vand.u32 %v3688, 4294901760
    %4810 = vmatprep.subr.mxu0 %v4809
    %v4811 = vand.u32 %v3687, 4294901760
    %4812 = vmatpush1.msra.mxu0 %v4811
    %v4813 = vand.u32 %v3690, 4294901760
    %4814 = vmatprep.subr.mxu0 %v4813
    %v4815 = vand.u32 %v3689, 4294901760
    %4816 = vmatpush1.msra.mxu0 %v4815
    %v4817 = vand.u32 %v3692, 4294901760
    %4818 = vmatprep.subr.mxu0 %v4817
    %v4819 = vand.u32 %v3691, 4294901760
    %4820 = vmatpush1.msra.mxu0 %v4819
    %v4821 = vand.u32 %v3694, 4294901760
    %4822 = vmatprep.subr.mxu0 %v4821
    %v4823 = vand.u32 %v3693, 4294901760
    %4824 = vmatpush1.msra.mxu0 %v4823
    %v4825 = vand.u32 %v3696, 4294901760
    %4826 = vmatprep.subr.mxu0 %v4825
    %v4827 = vand.u32 %v3695, 4294901760
    %4828 = vmatpush1.msra.mxu0 %v4827
    %v4829 = vand.u32 %v3698, 4294901760
    %4830 = vmatprep.subr.mxu0 %v4829
    %v4831 = vand.u32 %v3697, 4294901760
    %4832 = vmatpush1.msra.mxu0 %v4831
    %v4833 = vand.u32 %v3700, 4294901760
    %4834 = vmatprep.subr.mxu0 %v4833
    %v4835 = vand.u32 %v3699, 4294901760
    %4836 = vmatpush1.msra.mxu0 %v4835
    %v4837 = vand.u32 %v3702, 4294901760
    %4838 = vmatprep.subr.mxu0 %v4837
    %v4839 = vand.u32 %v3701, 4294901760
    %4840 = vmatpush1.msra.mxu0 %v4839
    %v4841 = vand.u32 %v3704, 4294901760
    %4842 = vmatprep.subr.mxu0 %v4841
    %v4843 = vand.u32 %v3703, 4294901760
    %4844 = vmatpush1.msra.mxu0 %v4843
    %v4845 = vand.u32 %v3706, 4294901760
    %4846 = vmatprep.subr.mxu0 %v4845
    %v4847 = vand.u32 %v3705, 4294901760
    %4848 = vmatpush1.msra.mxu0 %v4847
    %4849 = vmatprep.subr.mxu0 0.0
    %4850 = vmatpush1.msra.mxu0 0.0
    %4851 = vmatprep.subr.mxu0 0.0
    %4852 = vmatpush1.msra.mxu0 0.0
    %4853 = vmatprep.subr.mxu0 0.0
    %4854 = vmatpush1.msra.mxu0 0.0
    %4855 = vmatprep.subr.mxu0 0.0
    %4856 = vmatpush1.msra.mxu0 0.0
    %4857 = vmatprep.subr.mxu0 0.0
    %4858 = vmatpush1.msra.mxu0 0.0
    %4859 = vmatprep.subr.mxu0 0.0
    %4860 = vmatpush1.msra.mxu0 0.0
    %4861 = vmatprep.subr.mxu0 0.0
    %4862 = vmatpush1.msra.mxu0 0.0
    %4863 = vmatprep.subr.mxu0 0.0
    %4864 = vmatpush1.msra.mxu0 0.0
    %4865 = vmatprep.subr.mxu0 0.0
    %4866 = vmatpush1.msra.mxu0 0.0
    %4867 = vmatprep.subr.mxu0 0.0
    %4868 = vmatpush1.msra.mxu0 0.0
    %4869 = vmatprep.subr.mxu0 0.0
    %4870 = vmatpush1.msra.mxu0 0.0
    %v4871 = vand.u32 %v3709, 4294901760
    %4872 = vmatprep.mubr.f32.mxu0 %v4871
    %v4873 = vand.u32 %v3657, 4294901760
    %4874 = vmatmul.mubr.f32.gmra.mrb[0].mxu0 %v4873
    %v4875 = vpop.f32.mrb[0].mxu0
    %v4876 = vadd.f32 %v4737, %v4875
    %v4877 = vpop.f32.mrb[0].mxu0
    %v4878 = vadd.f32 %v4739, %v4877
    %v4879 = vand.u32 %v3712, 4294901760
    %4880 = vmatprep.mubr.f32.mxu0 %v4879
    %v4881 = vand.u32 %v3659, 4294901760
    %4882 = vmatmul.mubr.f32.gmra.mrb[0].mxu0 %v4881
    %v4883 = vpop.f32.mrb[0].mxu0
    %v4884 = vadd.f32 %v4745, %v4883
    %v4885 = vpop.f32.mrb[0].mxu0
    %v4886 = vadd.f32 %v4747, %v4885
    %v4887 = vand.u32 %v3715, 4294901760
    %4888 = vmatprep.mubr.f32.mxu0 %v4887
    %v4889 = vand.u32 %v3661, 4294901760
    %4890 = vmatmul.mubr.f32.gmra.mrb[0].mxu0 %v4889
    %v4891 = vpop.f32.mrb[0].mxu0
    %v4892 = vadd.f32 %v4753, %v4891
    %v4893 = vpop.f32.mrb[0].mxu0
    %v4894 = vadd.f32 %v4755, %v4893
    %v4895 = vand.u32 %v3718, 4294901760
    %4896 = vmatprep.mubr.f32.mxu0 %v4895
    %v4897 = vand.u32 %v3663, 4294901760
    %4898 = vmatmul.mubr.f32.gmra.mrb[0].mxu0 %v4897
    %v4899 = vpop.f32.mrb[0].mxu0
    %v4900 = vadd.f32 %v4761, %v4899
    %v4901 = vpop.f32.mrb[0].mxu0
    %v4902 = vadd.f32 %v4763, %v4901
    %4903 = vdwg.mxu0
    %v4904 = vmax.f32 %v4876, %v4878
    %v4905 = vmax.f32 %v4884, %v4886
    %v4906 = vmax.f32 %v4892, %v4894
    %v4907 = vmax.f32 %v4900, %v4902
    %vm4908 = vcmask 687104
    %4909 = vst.msk [vmem:[#allocation2] sm:$0xff] %vm4908, %v4904
    %4910 = vst.msk [vmem:[#allocation2 + $0x8] sm:$0xff] %vm4908, %v4905
    %4911 = vst.msk [vmem:[#allocation2 + $0x10] sm:$0xff] %vm4908, %v4906
    %vm4912 = vcmask 683008
    %4913 = vst.msk [vmem:[#allocation2 + $0x18] sm:$0xf] %vm4912, %v4907
    %v4914 = vld [vmem:[#allocation2] ss:$2 sm:$0xff]
    %s4915 = scalar_lea.vmem [#allocation2], 16
    %v4916 = vld [vmem:[%s4915] ss:$2 sm:$0x3f]
    %s4917 = scalar_lea.vmem [#allocation2], 1
    %v4918 = vld [vmem:[%s4917] ss:$2 sm:$0xff]
    %s4919 = scalar_lea.vmem [#allocation2], 17
    %v4920 = vld [vmem:[%s4919] ss:$2 sm:$0x3f]
    %v4921 = vmax.f32 %v4914, %v4918
    %v4922 = vmax.f32 %v4916, %v4920
    %v4923 = vld [vmem:[%s4] sm:$0xff]
    %v4924 = vld [vmem:[%s4 + $0x8] sm:$0xff]
    %v4925 = vld [vmem:[%s4 + $0x10] sm:$0xff]
    %v4926 = vld [vmem:[%s4 + $0x18] sm:$0xff]
    %v4927 = vld [vmem:[%s4 + $0x20] sm:$0xff]
    %v4928 = vld [vmem:[%s4 + $0x28] sm:$0xff]
    %v4929 = vld [vmem:[%s4 + $0x30] sm:$0xff]
    %v4930 = vld [vmem:[%s4 + $0x38] sm:$0xff]
    %v4931 = vld [vmem:[%s4 + $0x40] sm:$0xff]
    %v4932 = vld [vmem:[%s4 + $0x48] sm:$0xff]
    %v4933 = vld [vmem:[%s4 + $0x50] sm:$0xf]
    %s4934 = scalar_lea.vmem %s4, 88
    %v4935 = vld [vmem:[%s4934] sm:$0xff]
    %v4936 = vld [vmem:[%s4934 + $0x8] sm:$0xff]
    %v4937 = vld [vmem:[%s4934 + $0x10] sm:$0xff]
    %v4938 = vld [vmem:[%s4934 + $0x18] sm:$0xff]
    %v4939 = vld [vmem:[%s4934 + $0x20] sm:$0xff]
    %v4940 = vld [vmem:[%s4934 + $0x28] sm:$0xff]
    %v4941 = vld [vmem:[%s4934 + $0x30] sm:$0xff]
    %v4942 = vld [vmem:[%s4934 + $0x38] sm:$0xff]
    %v4943 = vld [vmem:[%s4934 + $0x40] sm:$0xff]
    %v4944 = vld [vmem:[%s4934 + $0x48] sm:$0xff]
    %v4945 = vld [vmem:[%s4934 + $0x50] sm:$0xf]
    %v4948 = vrot.slane %v4921, 1
    %v4949 = vrot.slane %v4922, 1
    %v4950 = vsel %vm71, %v4948, %v4949
    %v4951 = vsel %vm4908, %v4950, 0
    %v4953 = vsel %vm4908, %v4949, 0
    %v4956 = vsel %vm1511, %v4945, 0
    %4958 = vmatprep.subr.mxu0 0.0
    %v4959 = vand.u32 %v4935, 4294901760
    %4960 = vmatpush1.msra.mxu0 %v4959
    %4961 = vmatprep.subr.mxu0 0.0
    %v4962 = vand.u32 %v4936, 4294901760
    %4963 = vmatpush1.msra.mxu0 %v4962
    %4964 = vmatprep.subr.mxu0 0.0
    %v4965 = vand.u32 %v4937, 4294901760
    %4966 = vmatpush1.msra.mxu0 %v4965
    %4967 = vmatprep.subr.mxu0 0.0
    %v4968 = vand.u32 %v4938, 4294901760
    %4969 = vmatpush1.msra.mxu0 %v4968
    %4970 = vmatprep.subr.mxu0 0.0
    %v4971 = vand.u32 %v4939, 4294901760
    %4972 = vmatpush1.msra.mxu0 %v4971
    %4973 = vmatprep.subr.mxu0 0.0
    %v4974 = vand.u32 %v4940, 4294901760
    %4975 = vmatpush1.msra.mxu0 %v4974
    %4976 = vmatprep.subr.mxu0 0.0
    %v4977 = vand.u32 %v4941, 4294901760
    %4978 = vmatpush1.msra.mxu0 %v4977
    %4979 = vmatprep.subr.mxu0 0.0
    %v4980 = vand.u32 %v4942, 4294901760
    %4981 = vmatpush1.msra.mxu0 %v4980
    %4982 = vmatprep.subr.mxu0 0.0
    %v4983 = vand.u32 %v4943, 4294901760
    %4984 = vmatpush1.msra.mxu0 %v4983
    %4985 = vmatprep.subr.mxu0 0.0
    %v4986 = vand.u32 %v4944, 4294901760
    %4987 = vmatpush1.msra.mxu0 %v4986
    %4988 = vmatprep.subr.mxu0 0.0
    %v4989 = vand.u32 %v4956, 4294901760
    %4990 = vmatpush1.msra.mxu0 %v4989
    %4991 = vmatprep.subr.mxu0 0.0
    %4992 = vmatpush1.msra.mxu0 0.0
    %4993 = vmatprep.subr.mxu0 0.0
    %4994 = vmatpush1.msra.mxu0 0.0
    %4995 = vmatprep.subr.mxu0 0.0
    %4996 = vmatpush1.msra.mxu0 0.0
    %4997 = vmatprep.subr.mxu0 0.0
    %4998 = vmatpush1.msra.mxu0 0.0
    %4999 = vmatprep.subr.mxu0 0.0
    %5000 = vmatpush1.msra.mxu0 0.0
    %5001 = vmatprep.subr.mxu0 0.0
    %5002 = vmatpush1.msra.mxu0 0.0
    %5003 = vmatprep.subr.mxu0 0.0
    %5004 = vmatpush1.msra.mxu0 0.0
    %5005 = vmatprep.subr.mxu0 0.0
    %5006 = vmatpush1.msra.mxu0 0.0
    %5007 = vmatprep.subr.mxu0 0.0
    %5008 = vmatpush1.msra.mxu0 0.0
    %5009 = vmatprep.subr.mxu0 0.0
    %5010 = vmatpush1.msra.mxu0 0.0
    %5011 = vmatprep.subr.mxu0 0.0
    %5012 = vmatpush1.msra.mxu0 0.0
    %5013 = vmatprep.subr.mxu0 0.0
    %5014 = vmatpush1.msra.mxu0 0.0
    %5015 = vmatprep.subr.mxu0 0.0
    %5016 = vmatpush1.msra.mxu0 0.0
    %5017 = vmatprep.subr.mxu0 0.0
    %5018 = vmatpush1.msra.mxu0 0.0
    %5019 = vmatprep.subr.mxu0 0.0
    %5020 = vmatpush1.msra.mxu0 0.0
    %5021 = vmatprep.subr.mxu0 0.0
    %5022 = vmatpush1.msra.mxu0 0.0
    %5023 = vmatprep.subr.mxu0 0.0
    %5024 = vmatpush1.msra.mxu0 0.0
    %5025 = vmatprep.subr.mxu0 0.0
    %5026 = vmatpush1.msra.mxu0 0.0
    %5027 = vmatprep.subr.mxu0 0.0
    %5028 = vmatpush1.msra.mxu0 0.0
    %5029 = vmatprep.subr.mxu0 0.0
    %5030 = vmatpush1.msra.mxu0 0.0
    %5031 = vmatprep.subr.mxu0 0.0
    %5032 = vmatpush1.msra.mxu0 0.0
    %5033 = vmatprep.mubr.f32.mxu0 0.0
    %v5034 = vand.u32 %v4951, 4294901760
    %v5035 = vsub.f32 %v4951, %v5034
    %v5036 = vand.u32 %v5035, 4294901760
    %v5037 = vsub.f32 %v5035, %v5036
    %v5038 = vand.u32 %v5037, 4294901760
    %5039 = vmatmul.mubr.f32.gmra.mrb[0].mxu0 %v5038
    %v5040 = vpop.f32.mrb[0].mxu0
    %v5041 = vadd.f32 0.0, %v5040
    %v5042 = vpop.f32.mrb[0].mxu0
    %5043 = vmatprep.mubr.f32.mxu0 0.0
    %v5044 = vand.u32 %v4953, 4294901760
    %v5045 = vsub.f32 %v4953, %v5044
    %v5046 = vand.u32 %v5045, 4294901760
    %v5047 = vsub.f32 %v5045, %v5046
    %v5048 = vand.u32 %v5047, 4294901760
    %5049 = vmatmul.mubr.f32.gmra.mrb[0].mxu0 %v5048
    %v5050 = vpop.f32.mrb[0].mxu0
    %v5051 = vadd.f32 0.0, %v5050
    %v5052 = vpop.f32.mrb[0].mxu0
    %5053 = vdwg.mxu0
    %5054 = vmatprep.subr.mxu0 0.0
    %v5055 = vand.u32 %v4935, 4294901760
    %v5056 = vsub.f32 %v4935, %v5055
    %v5057 = vand.u32 %v5056, 4294901760
    %v5058 = vsub.f32 %v5056, %v5057
    %v5059 = vand.u32 %v5058, 4294901760
    %5060 = vmatpush1.msra.mxu0 %v5059
    %5061 = vmatprep.subr.mxu0 0.0
    %v5062 = vand.u32 %v4936, 4294901760
    %v5063 = vsub.f32 %v4936, %v5062
    %v5064 = vand.u32 %v5063, 4294901760
    %v5065 = vsub.f32 %v5063, %v5064
    %v5066 = vand.u32 %v5065, 4294901760
    %5067 = vmatpush1.msra.mxu0 %v5066
    %5068 = vmatprep.subr.mxu0 0.0
    %v5069 = vand.u32 %v4937, 4294901760
    %v5070 = vsub.f32 %v4937, %v5069
    %v5071 = vand.u32 %v5070, 4294901760
    %v5072 = vsub.f32 %v5070, %v5071
    %v5073 = vand.u32 %v5072, 4294901760
    %5074 = vmatpush1.msra.mxu0 %v5073
    %5075 = vmatprep.subr.mxu0 0.0
    %v5076 = vand.u32 %v4938, 4294901760
    %v5077 = vsub.f32 %v4938, %v5076
    %v5078 = vand.u32 %v5077, 4294901760
    %v5079 = vsub.f32 %v5077, %v5078
    %v5080 = vand.u32 %v5079, 4294901760
    %5081 = vmatpush1.msra.mxu0 %v5080
    %5082 = vmatprep.subr.mxu0 0.0
    %v5083 = vand.u32 %v4939, 4294901760
    %v5084 = vsub.f32 %v4939, %v5083
    %v5085 = vand.u32 %v5084, 4294901760
    %v5086 = vsub.f32 %v5084, %v5085
    %v5087 = vand.u32 %v5086, 4294901760
    %5088 = vmatpush1.msra.mxu0 %v5087
    %5089 = vmatprep.subr.mxu0 0.0
    %v5090 = vand.u32 %v4940, 4294901760
    %v5091 = vsub.f32 %v4940, %v5090
    %v5092 = vand.u32 %v5091, 4294901760
    %v5093 = vsub.f32 %v5091, %v5092
    %v5094 = vand.u32 %v5093, 4294901760
    %5095 = vmatpush1.msra.mxu0 %v5094
    %5096 = vmatprep.subr.mxu0 0.0
    %v5097 = vand.u32 %v4941, 4294901760
    %v5098 = vsub.f32 %v4941, %v5097
    %v5099 = vand.u32 %v5098, 4294901760
    %v5100 = vsub.f32 %v5098, %v5099
    %v5101 = vand.u32 %v5100, 4294901760
    %5102 = vmatpush1.msra.mxu0 %v5101
    %5103 = vmatprep.subr.mxu0 0.0
    %v5104 = vand.u32 %v4942, 4294901760
    %v5105 = vsub.f32 %v4942, %v5104
    %v5106 = vand.u32 %v5105, 4294901760
    %v5107 = vsub.f32 %v5105, %v5106
    %v5108 = vand.u32 %v5107, 4294901760
    %5109 = vmatpush1.msra.mxu0 %v5108
    %5110 = vmatprep.subr.mxu0 0.0
    %v5111 = vand.u32 %v4943, 4294901760
    %v5112 = vsub.f32 %v4943, %v5111
    %v5113 = vand.u32 %v5112, 4294901760
    %v5114 = vsub.f32 %v5112, %v5113
    %v5115 = vand.u32 %v5114, 4294901760
    %5116 = vmatpush1.msra.mxu0 %v5115
    %5117 = vmatprep.subr.mxu0 0.0
    %v5118 = vand.u32 %v4944, 4294901760
    %v5119 = vsub.f32 %v4944, %v5118
    %v5120 = vand.u32 %v5119, 4294901760
    %v5121 = vsub.f32 %v5119, %v5120
    %v5122 = vand.u32 %v5121, 4294901760
    %5123 = vmatpush1.msra.mxu0 %v5122
    %5124 = vmatprep.subr.mxu0 0.0
    %v5125 = vand.u32 %v4956, 4294901760
    %v5126 = vsub.f32 %v4956, %v5125
    %v5127 = vand.u32 %v5126, 4294901760
    %v5128 = vsub.f32 %v5126, %v5127
    %v5129 = vand.u32 %v5128, 4294901760
    %5130 = vmatpush1.msra.mxu0 %v5129
    %5131 = vmatprep.subr.mxu0 0.0
    %5132 = vmatpush1.msra.mxu0 0.0
    %5133 = vmatprep.subr.mxu0 0.0
    %5134 = vmatpush1.msra.mxu0 0.0
    %5135 = vmatprep.subr.mxu0 0.0
    %5136 = vmatpush1.msra.mxu0 0.0
    %5137 = vmatprep.subr.mxu0 0.0
    %5138 = vmatpush1.msra.mxu0 0.0
    %5139 = vmatprep.subr.mxu0 0.0
    %5140 = vmatpush1.msra.mxu0 0.0
    %5141 = vmatprep.subr.mxu0 0.0
    %5142 = vmatpush1.msra.mxu0 0.0
    %5143 = vmatprep.subr.mxu0 0.0
    %5144 = vmatpush1.msra.mxu0 0.0
    %5145 = vmatprep.subr.mxu0 0.0
    %5146 = vmatpush1.msra.mxu0 0.0
    %5147 = vmatprep.subr.mxu0 0.0
    %5148 = vmatpush1.msra.mxu0 0.0
    %5149 = vmatprep.subr.mxu0 0.0
    %5150 = vmatpush1.msra.mxu0 0.0
    %5151 = vmatprep.subr.mxu0 0.0
    %5152 = vmatpush1.msra.mxu0 0.0
    %5153 = vmatprep.subr.mxu0 0.0
    %5154 = vmatpush1.msra.mxu0 0.0
    %5155 = vmatprep.subr.mxu0 0.0
    %5156 = vmatpush1.msra.mxu0 0.0
    %5157 = vmatprep.subr.mxu0 0.0
    %5158 = vmatpush1.msra.mxu0 0.0
    %5159 = vmatprep.subr.mxu0 0.0
    %5160 = vmatpush1.msra.mxu0 0.0
    %5161 = vmatprep.subr.mxu0 0.0
    %5162 = vmatpush1.msra.mxu0 0.0
    %5163 = vmatprep.subr.mxu0 0.0
    %5164 = vmatpush1.msra.mxu0 0.0
    %5165 = vmatprep.subr.mxu0 0.0
    %5166 = vmatpush1.msra.mxu0 0.0
    %5167 = vmatprep.subr.mxu0 0.0
    %5168 = vmatpush1.msra.mxu0 0.0
    %5169 = vmatprep.subr.mxu0 0.0
    %5170 = vmatpush1.msra.mxu0 0.0
    %5171 = vmatprep.subr.mxu0 0.0
    %5172 = vmatpush1.msra.mxu0 0.0
    %5173 = vmatprep.mubr.f32.mxu0 0.0
    %v5174 = vand.u32 %v4951, 4294901760
    %5175 = vmatmul.mubr.f32.gmra.mrb[0].mxu0 %v5174
    %v5176 = vpop.f32.mrb[0].mxu0
    %v5177 = vadd.f32 %v5041, %v5176
    %v5178 = vpop.f32.mrb[0].mxu0
    %5179 = vmatprep.mubr.f32.mxu0 0.0
    %v5180 = vand.u32 %v4953, 4294901760
    %5181 = vmatmul.mubr.f32.gmra.mrb[0].mxu0 %v5180
    %v5182 = vpop.f32.mrb[0].mxu0
    %v5183 = vadd.f32 %v5051, %v5182
    %v5184 = vpop.f32.mrb[0].mxu0
    %5185 = vdwg.mxu0
    %5186 = vmatprep.subr.mxu0 0.0
    %v5187 = vand.u32 %v4935, 4294901760
    %v5188 = vsub.f32 %v4935, %v5187
    %5189 = vmatpush1.msra.mxu0 %v5188
    %5190 = vmatprep.subr.mxu0 0.0
    %v5191 = vand.u32 %v4936, 4294901760
    %v5192 = vsub.f32 %v4936, %v5191
    %5193 = vmatpush1.msra.mxu0 %v5192
    %5194 = vmatprep.subr.mxu0 0.0
    %v5195 = vand.u32 %v4937, 4294901760
    %v5196 = vsub.f32 %v4937, %v5195
    %5197 = vmatpush1.msra.mxu0 %v5196
    %5198 = vmatprep.subr.mxu0 0.0
    %v5199 = vand.u32 %v4938, 4294901760
    %v5200 = vsub.f32 %v4938, %v5199
    %5201 = vmatpush1.msra.mxu0 %v5200
    %5202 = vmatprep.subr.mxu0 0.0
    %v5203 = vand.u32 %v4939, 4294901760
    %v5204 = vsub.f32 %v4939, %v5203
    %5205 = vmatpush1.msra.mxu0 %v5204
    %5206 = vmatprep.subr.mxu0 0.0
    %v5207 = vand.u32 %v4940, 4294901760
    %v5208 = vsub.f32 %v4940, %v5207
    %5209 = vmatpush1.msra.mxu0 %v5208
    %5210 = vmatprep.subr.mxu0 0.0
    %v5211 = vand.u32 %v4941, 4294901760
    %v5212 = vsub.f32 %v4941, %v5211
    %5213 = vmatpush1.msra.mxu0 %v5212
    %5214 = vmatprep.subr.mxu0 0.0
    %v5215 = vand.u32 %v4942, 4294901760
    %v5216 = vsub.f32 %v4942, %v5215
    %5217 = vmatpush1.msra.mxu0 %v5216
    %5218 = vmatprep.subr.mxu0 0.0
    %v5219 = vand.u32 %v4943, 4294901760
    %v5220 = vsub.f32 %v4943, %v5219
    %5221 = vmatpush1.msra.mxu0 %v5220
    %5222 = vmatprep.subr.mxu0 0.0
    %v5223 = vand.u32 %v4944, 4294901760
    %v5224 = vsub.f32 %v4944, %v5223
    %5225 = vmatpush1.msra.mxu0 %v5224
    %5226 = vmatprep.subr.mxu0 0.0
    %v5227 = vand.u32 %v4956, 4294901760
    %v5228 = vsub.f32 %v4956, %v5227
    %5229 = vmatpush1.msra.mxu0 %v5228
    %5230 = vmatprep.subr.mxu0 0.0
    %5231 = vmatpush1.msra.mxu0 0.0
    %5232 = vmatprep.subr.mxu0 0.0
    %5233 = vmatpush1.msra.mxu0 0.0
    %5234 = vmatprep.subr.mxu0 0.0
    %5235 = vmatpush1.msra.mxu0 0.0
    %5236 = vmatprep.subr.mxu0 0.0
    %5237 = vmatpush1.msra.mxu0 0.0
    %5238 = vmatprep.subr.mxu0 0.0
    %5239 = vmatpush1.msra.mxu0 0.0
    %5240 = vmatprep.subr.mxu0 0.0
    %5241 = vmatpush1.msra.mxu0 0.0
    %5242 = vmatprep.subr.mxu0 0.0
    %5243 = vmatpush1.msra.mxu0 0.0
    %5244 = vmatprep.subr.mxu0 0.0
    %5245 = vmatpush1.msra.mxu0 0.0
    %5246 = vmatprep.subr.mxu0 0.0
    %5247 = vmatpush1.msra.mxu0 0.0
    %5248 = vmatprep.subr.mxu0 0.0
    %5249 = vmatpush1.msra.mxu0 0.0
    %5250 = vmatprep.subr.mxu0 0.0
    %5251 = vmatpush1.msra.mxu0 0.0
    %5252 = vmatprep.subr.mxu0 0.0
    %5253 = vmatpush1.msra.mxu0 0.0
    %5254 = vmatprep.subr.mxu0 0.0
    %5255 = vmatpush1.msra.mxu0 0.0
    %5256 = vmatprep.subr.mxu0 0.0
    %5257 = vmatpush1.msra.mxu0 0.0
    %5258 = vmatprep.subr.mxu0 0.0
    %5259 = vmatpush1.msra.mxu0 0.0
    %5260 = vmatprep.subr.mxu0 0.0
    %5261 = vmatpush1.msra.mxu0 0.0
    %5262 = vmatprep.subr.mxu0 0.0
    %5263 = vmatpush1.msra.mxu0 0.0
    %5264 = vmatprep.subr.mxu0 0.0
    %5265 = vmatpush1.msra.mxu0 0.0
    %5266 = vmatprep.subr.mxu0 0.0
    %5267 = vmatpush1.msra.mxu0 0.0
    %5268 = vmatprep.subr.mxu0 0.0
    %5269 = vmatpush1.msra.mxu0 0.0
    %5270 = vmatprep.subr.mxu0 0.0
    %5271 = vmatpush1.msra.mxu0 0.0
    %5272 = vmatprep.mubr.f32.mxu0 0.0
    %v5273 = vand.u32 %v4951, 4294901760
    %v5274 = vsub.f32 %v4951, %v5273
    %5275 = vmatmul.mubr.f32.gmra.mrb[0].mxu0 %v5274
    %v5276 = vpop.f32.mrb[0].mxu0
    %v5277 = vadd.f32 %v5177, %v5276
    %v5278 = vpop.f32.mrb[0].mxu0
    %5279 = vmatprep.mubr.f32.mxu0 0.0
    %v5280 = vand.u32 %v4953, 4294901760
    %v5281 = vsub.f32 %v4953, %v5280
    %5282 = vmatmul.mubr.f32.gmra.mrb[0].mxu0 %v5281
    %v5283 = vpop.f32.mrb[0].mxu0
    %v5284 = vadd.f32 %v5183, %v5283
    %v5285 = vpop.f32.mrb[0].mxu0
    %5286 = vdwg.mxu0
    %5287 = vmatprep.subr.mxu0 0.0
    %v5288 = vand.u32 %v4935, 4294901760
    %5289 = vmatpush1.msra.mxu0 %v5288
    %5290 = vmatprep.subr.mxu0 0.0
    %v5291 = vand.u32 %v4936, 4294901760
    %5292 = vmatpush1.msra.mxu0 %v5291
    %5293 = vmatprep.subr.mxu0 0.0
    %v5294 = vand.u32 %v4937, 4294901760
    %5295 = vmatpush1.msra.mxu0 %v5294
    %5296 = vmatprep.subr.mxu0 0.0
    %v5297 = vand.u32 %v4938, 4294901760
    %5298 = vmatpush1.msra.mxu0 %v5297
    %5299 = vmatprep.subr.mxu0 0.0
    %v5300 = vand.u32 %v4939, 4294901760
    %5301 = vmatpush1.msra.mxu0 %v5300
    %5302 = vmatprep.subr.mxu0 0.0
    %v5303 = vand.u32 %v4940, 4294901760
    %5304 = vmatpush1.msra.mxu0 %v5303
    %5305 = vmatprep.subr.mxu0 0.0
    %v5306 = vand.u32 %v4941, 4294901760
    %5307 = vmatpush1.msra.mxu0 %v5306
    %5308 = vmatprep.subr.mxu0 0.0
    %v5309 = vand.u32 %v4942, 4294901760
    %5310 = vmatpush1.msra.mxu0 %v5309
    %5311 = vmatprep.subr.mxu0 0.0
    %v5312 = vand.u32 %v4943, 4294901760
    %5313 = vmatpush1.msra.mxu0 %v5312
    %5314 = vmatprep.subr.mxu0 0.0
    %v5315 = vand.u32 %v4944, 4294901760
    %5316 = vmatpush1.msra.mxu0 %v5315
    %5317 = vmatprep.subr.mxu0 0.0
    %v5318 = vand.u32 %v4956, 4294901760
    %5319 = vmatpush1.msra.mxu0 %v5318
    %5320 = vmatprep.subr.mxu0 0.0
    %5321 = vmatpush1.msra.mxu0 0.0
    %5322 = vmatprep.subr.mxu0 0.0
    %5323 = vmatpush1.msra.mxu0 0.0
    %5324 = vmatprep.subr.mxu0 0.0
    %5325 = vmatpush1.msra.mxu0 0.0
    %5326 = vmatprep.subr.mxu0 0.0
    %5327 = vmatpush1.msra.mxu0 0.0
    %5328 = vmatprep.subr.mxu0 0.0
    %5329 = vmatpush1.msra.mxu0 0.0
    %5330 = vmatprep.subr.mxu0 0.0
    %5331 = vmatpush1.msra.mxu0 0.0
    %5332 = vmatprep.subr.mxu0 0.0
    %5333 = vmatpush1.msra.mxu0 0.0
    %5334 = vmatprep.subr.mxu0 0.0
    %5335 = vmatpush1.msra.mxu0 0.0
    %5336 = vmatprep.subr.mxu0 0.0
    %5337 = vmatpush1.msra.mxu0 0.0
    %5338 = vmatprep.subr.mxu0 0.0
    %5339 = vmatpush1.msra.mxu0 0.0
    %5340 = vmatprep.subr.mxu0 0.0
    %5341 = vmatpush1.msra.mxu0 0.0
    %5342 = vmatprep.subr.mxu0 0.0
    %5343 = vmatpush1.msra.mxu0 0.0
    %5344 = vmatprep.subr.mxu0 0.0
    %5345 = vmatpush1.msra.mxu0 0.0
    %5346 = vmatprep.subr.mxu0 0.0
    %5347 = vmatpush1.msra.mxu0 0.0
    %5348 = vmatprep.subr.mxu0 0.0
    %5349 = vmatpush1.msra.mxu0 0.0
    %5350 = vmatprep.subr.mxu0 0.0
    %5351 = vmatpush1.msra.mxu0 0.0
    %5352 = vmatprep.subr.mxu0 0.0
    %5353 = vmatpush1.msra.mxu0 0.0
    %5354 = vmatprep.subr.mxu0 0.0
    %5355 = vmatpush1.msra.mxu0 0.0
    %5356 = vmatprep.subr.mxu0 0.0
    %5357 = vmatpush1.msra.mxu0 0.0
    %5358 = vmatprep.subr.mxu0 0.0
    %5359 = vmatpush1.msra.mxu0 0.0
    %5360 = vmatprep.subr.mxu0 0.0
    %5361 = vmatpush1.msra.mxu0 0.0
    %5362 = vmatprep.mubr.f32.mxu0 0.0
    %v5363 = vand.u32 %v4951, 4294901760
    %v5364 = vsub.f32 %v4951, %v5363
    %v5365 = vand.u32 %v5364, 4294901760
    %5366 = vmatmul.mubr.f32.gmra.mrb[0].mxu0 %v5365
    %v5367 = vpop.f32.mrb[0].mxu0
    %v5368 = vadd.f32 %v5277, %v5367
    %v5369 = vpop.f32.mrb[0].mxu0
    %5370 = vmatprep.mubr.f32.mxu0 0.0
    %v5371 = vand.u32 %v4953, 4294901760
    %v5372 = vsub.f32 %v4953, %v5371
    %v5373 = vand.u32 %v5372, 4294901760
    %5374 = vmatmul.mubr.f32.gmra.mrb[0].mxu0 %v5373
    %v5375 = vpop.f32.mrb[0].mxu0
    %v5376 = vadd.f32 %v5284, %v5375
    %v5377 = vpop.f32.mrb[0].mxu0
    %5378 = vdwg.mxu0
    %5379 = vmatprep.subr.mxu0 0.0
    %v5380 = vand.u32 %v4935, 4294901760
    %v5381 = vsub.f32 %v4935, %v5380
    %v5382 = vand.u32 %v5381, 4294901760
    %5383 = vmatpush1.msra.mxu0 %v5382
    %5384 = vmatprep.subr.mxu0 0.0
    %v5385 = vand.u32 %v4936, 4294901760
    %v5386 = vsub.f32 %v4936, %v5385
    %v5387 = vand.u32 %v5386, 4294901760
    %5388 = vmatpush1.msra.mxu0 %v5387
    %5389 = vmatprep.subr.mxu0 0.0
    %v5390 = vand.u32 %v4937, 4294901760
    %v5391 = vsub.f32 %v4937, %v5390
    %v5392 = vand.u32 %v5391, 4294901760
    %5393 = vmatpush1.msra.mxu0 %v5392
    %5394 = vmatprep.subr.mxu0 0.0
    %v5395 = vand.u32 %v4938, 4294901760
    %v5396 = vsub.f32 %v4938, %v5395
    %v5397 = vand.u32 %v5396, 4294901760
    %5398 = vmatpush1.msra.mxu0 %v5397
    %5399 = vmatprep.subr.mxu0 0.0
    %v5400 = vand.u32 %v4939, 4294901760
    %v5401 = vsub.f32 %v4939, %v5400
    %v5402 = vand.u32 %v5401, 4294901760
    %5403 = vmatpush1.msra.mxu0 %v5402
    %5404 = vmatprep.subr.mxu0 0.0
    %v5405 = vand.u32 %v4940, 4294901760
    %v5406 = vsub.f32 %v4940, %v5405
    %v5407 = vand.u32 %v5406, 4294901760
    %5408 = vmatpush1.msra.mxu0 %v5407
    %5409 = vmatprep.subr.mxu0 0.0
    %v5410 = vand.u32 %v4941, 4294901760
    %v5411 = vsub.f32 %v4941, %v5410
    %v5412 = vand.u32 %v5411, 4294901760
    %5413 = vmatpush1.msra.mxu0 %v5412
    %5414 = vmatprep.subr.mxu0 0.0
    %v5415 = vand.u32 %v4942, 4294901760
    %v5416 = vsub.f32 %v4942, %v5415
    %v5417 = vand.u32 %v5416, 4294901760
    %5418 = vmatpush1.msra.mxu0 %v5417
    %5419 = vmatprep.subr.mxu0 0.0
    %v5420 = vand.u32 %v4943, 4294901760
    %v5421 = vsub.f32 %v4943, %v5420
    %v5422 = vand.u32 %v5421, 4294901760
    %5423 = vmatpush1.msra.mxu0 %v5422
    %5424 = vmatprep.subr.mxu0 0.0
    %v5425 = vand.u32 %v4944, 4294901760
    %v5426 = vsub.f32 %v4944, %v5425
    %v5427 = vand.u32 %v5426, 4294901760
    %5428 = vmatpush1.msra.mxu0 %v5427
    %5429 = vmatprep.subr.mxu0 0.0
    %v5430 = vand.u32 %v4956, 4294901760
    %v5431 = vsub.f32 %v4956, %v5430
    %v5432 = vand.u32 %v5431, 4294901760
    %5433 = vmatpush1.msra.mxu0 %v5432
    %5434 = vmatprep.subr.mxu0 0.0
    %5435 = vmatpush1.msra.mxu0 0.0
    %5436 = vmatprep.subr.mxu0 0.0
    %5437 = vmatpush1.msra.mxu0 0.0
    %5438 = vmatprep.subr.mxu0 0.0
    %5439 = vmatpush1.msra.mxu0 0.0
    %5440 = vmatprep.subr.mxu0 0.0
    %5441 = vmatpush1.msra.mxu0 0.0
    %5442 = vmatprep.subr.mxu0 0.0
    %5443 = vmatpush1.msra.mxu0 0.0
    %5444 = vmatprep.subr.mxu0 0.0
    %5445 = vmatpush1.msra.mxu0 0.0
    %5446 = vmatprep.subr.mxu0 0.0
    %5447 = vmatpush1.msra.mxu0 0.0
    %5448 = vmatprep.subr.mxu0 0.0
    %5449 = vmatpush1.msra.mxu0 0.0
    %5450 = vmatprep.subr.mxu0 0.0
    %5451 = vmatpush1.msra.mxu0 0.0
    %5452 = vmatprep.subr.mxu0 0.0
    %5453 = vmatpush1.msra.mxu0 0.0
    %5454 = vmatprep.subr.mxu0 0.0
    %5455 = vmatpush1.msra.mxu0 0.0
    %5456 = vmatprep.subr.mxu0 0.0
    %5457 = vmatpush1.msra.mxu0 0.0
    %5458 = vmatprep.subr.mxu0 0.0
    %5459 = vmatpush1.msra.mxu0 0.0
    %5460 = vmatprep.subr.mxu0 0.0
    %5461 = vmatpush1.msra.mxu0 0.0
    %5462 = vmatprep.subr.mxu0 0.0
    %5463 = vmatpush1.msra.mxu0 0.0
    %5464 = vmatprep.subr.mxu0 0.0
    %5465 = vmatpush1.msra.mxu0 0.0
    %5466 = vmatprep.subr.mxu0 0.0
    %5467 = vmatpush1.msra.mxu0 0.0
    %5468 = vmatprep.subr.mxu0 0.0
    %5469 = vmatpush1.msra.mxu0 0.0
    %5470 = vmatprep.subr.mxu0 0.0
    %5471 = vmatpush1.msra.mxu0 0.0
    %5472 = vmatprep.subr.mxu0 0.0
    %5473 = vmatpush1.msra.mxu0 0.0
    %5474 = vmatprep.subr.mxu0 0.0
    %5475 = vmatpush1.msra.mxu0 0.0
    %5476 = vmatprep.mubr.f32.mxu0 0.0
    %v5477 = vand.u32 %v4951, 4294901760
    %5478 = vmatmul.mubr.f32.gmra.mrb[0].mxu0 %v5477
    %v5479 = vpop.f32.mrb[0].mxu0
    %v5480 = vadd.f32 %v5368, %v5479
    %v5481 = vpop.f32.mrb[0].mxu0
    %5482 = vmatprep.mubr.f32.mxu0 0.0
    %v5483 = vand.u32 %v4953, 4294901760
    %5484 = vmatmul.mubr.f32.gmra.mrb[0].mxu0 %v5483
    %v5485 = vpop.f32.mrb[0].mxu0
    %v5486 = vadd.f32 %v5376, %v5485
    %v5487 = vpop.f32.mrb[0].mxu0
    %5488 = vdwg.mxu0
    %5489 = vmatprep.subr.mxu0 0.0
    %v5490 = vand.u32 %v4935, 4294901760
    %5491 = vmatpush1.msra.mxu0 %v5490
    %5492 = vmatprep.subr.mxu0 0.0
    %v5493 = vand.u32 %v4936, 4294901760
    %5494 = vmatpush1.msra.mxu0 %v5493
    %5495 = vmatprep.subr.mxu0 0.0
    %v5496 = vand.u32 %v4937, 4294901760
    %5497 = vmatpush1.msra.mxu0 %v5496
    %5498 = vmatprep.subr.mxu0 0.0
    %v5499 = vand.u32 %v4938, 4294901760
    %5500 = vmatpush1.msra.mxu0 %v5499
    %5501 = vmatprep.subr.mxu0 0.0
    %v5502 = vand.u32 %v4939, 4294901760
    %5503 = vmatpush1.msra.mxu0 %v5502
    %5504 = vmatprep.subr.mxu0 0.0
    %v5505 = vand.u32 %v4940, 4294901760
    %5506 = vmatpush1.msra.mxu0 %v5505
    %5507 = vmatprep.subr.mxu0 0.0
    %v5508 = vand.u32 %v4941, 4294901760
    %5509 = vmatpush1.msra.mxu0 %v5508
    %5510 = vmatprep.subr.mxu0 0.0
    %v5511 = vand.u32 %v4942, 4294901760
    %5512 = vmatpush1.msra.mxu0 %v5511
    %5513 = vmatprep.subr.mxu0 0.0
    %v5514 = vand.u32 %v4943, 4294901760
    %5515 = vmatpush1.msra.mxu0 %v5514
    %5516 = vmatprep.subr.mxu0 0.0
    %v5517 = vand.u32 %v4944, 4294901760
    %5518 = vmatpush1.msra.mxu0 %v5517
    %5519 = vmatprep.subr.mxu0 0.0
    %v5520 = vand.u32 %v4956, 4294901760
    %5521 = vmatpush1.msra.mxu0 %v5520
    %5522 = vmatprep.subr.mxu0 0.0
    %5523 = vmatpush1.msra.mxu0 0.0
    %5524 = vmatprep.subr.mxu0 0.0
    %5525 = vmatpush1.msra.mxu0 0.0
    %5526 = vmatprep.subr.mxu0 0.0
    %5527 = vmatpush1.msra.mxu0 0.0
    %5528 = vmatprep.subr.mxu0 0.0
    %5529 = vmatpush1.msra.mxu0 0.0
    %5530 = vmatprep.subr.mxu0 0.0
    %5531 = vmatpush1.msra.mxu0 0.0
    %5532 = vmatprep.subr.mxu0 0.0
    %5533 = vmatpush1.msra.mxu0 0.0
    %5534 = vmatprep.subr.mxu0 0.0
    %5535 = vmatpush1.msra.mxu0 0.0
    %5536 = vmatprep.subr.mxu0 0.0
    %5537 = vmatpush1.msra.mxu0 0.0
    %5538 = vmatprep.subr.mxu0 0.0
    %5539 = vmatpush1.msra.mxu0 0.0
    %5540 = vmatprep.subr.mxu0 0.0
    %5541 = vmatpush1.msra.mxu0 0.0
    %5542 = vmatprep.subr.mxu0 0.0
    %5543 = vmatpush1.msra.mxu0 0.0
    %5544 = vmatprep.subr.mxu0 0.0
    %5545 = vmatpush1.msra.mxu0 0.0
    %5546 = vmatprep.subr.mxu0 0.0
    %5547 = vmatpush1.msra.mxu0 0.0
    %5548 = vmatprep.subr.mxu0 0.0
    %5549 = vmatpush1.msra.mxu0 0.0
    %5550 = vmatprep.subr.mxu0 0.0
    %5551 = vmatpush1.msra.mxu0 0.0
    %5552 = vmatprep.subr.mxu0 0.0
    %5553 = vmatpush1.msra.mxu0 0.0
    %5554 = vmatprep.subr.mxu0 0.0
    %5555 = vmatpush1.msra.mxu0 0.0
    %5556 = vmatprep.subr.mxu0 0.0
    %5557 = vmatpush1.msra.mxu0 0.0
    %5558 = vmatprep.subr.mxu0 0.0
    %5559 = vmatpush1.msra.mxu0 0.0
    %5560 = vmatprep.subr.mxu0 0.0
    %5561 = vmatpush1.msra.mxu0 0.0
    %5562 = vmatprep.subr.mxu0 0.0
    %5563 = vmatpush1.msra.mxu0 0.0
    %5564 = vmatprep.mubr.f32.mxu0 0.0
    %v5565 = vand.u32 %v4951, 4294901760
    %5566 = vmatmul.mubr.f32.gmra.mrb[0].mxu0 %v5565
    %v5567 = vpop.f32.mrb[0].mxu0
    %v5568 = vadd.f32 %v5480, %v5567
    %v5569 = vpop.f32.mrb[0].mxu0
    %5570 = vmatprep.mubr.f32.mxu0 0.0
    %v5571 = vand.u32 %v4953, 4294901760
    %5572 = vmatmul.mubr.f32.gmra.mrb[0].mxu0 %v5571
    %v5573 = vpop.f32.mrb[0].mxu0
    %v5574 = vadd.f32 %v5486, %v5573
    %v5575 = vpop.f32.mrb[0].mxu0
    %5576 = vdwg.mxu0
    %s5577 = scalar_lea.vmem %s4, 176
    %v5578 = vld [vmem:[%s5577] sm:$0xff]
    %v5579 = vld [vmem:[%s5577 + $0x8] sm:$0xff]
    %v5580 = vld [vmem:[%s5577 + $0x10] sm:$0xff]
    %v5581 = vld [vmem:[%s5577 + $0x18] sm:$0xff]
    %v5582 = vld [vmem:[%s5577 + $0x20] sm:$0xff]
    %v5583 = vld [vmem:[%s5577 + $0x28] sm:$0xff]
    %v5584 = vld [vmem:[%s5577 + $0x30] sm:$0xff]
    %v5585 = vld [vmem:[%s5577 + $0x38] sm:$0xff]
    %v5586 = vld [vmem:[%s5577 + $0x40] sm:$0xff]
    %v5587 = vld [vmem:[%s5577 + $0x48] sm:$0xff]
    %v5588 = vld [vmem:[%s5577 + $0x50] sm:$0xf]
    %s5589 = scalar_lea.vmem %s4, 264
    %v5590 = vld [vmem:[%s5589] sm:$0xff]
    %v5591 = vld [vmem:[%s5589 + $0x8] sm:$0xff]
    %v5592 = vld [vmem:[%s5589 + $0x10] sm:$0xff]
    %v5593 = vld [vmem:[%s5589 + $0x18] sm:$0xff]
    %v5594 = vld [vmem:[%s5589 + $0x20] sm:$0xff]
    %v5595 = vld [vmem:[%s5589 + $0x28] sm:$0xff]
    %v5596 = vld [vmem:[%s5589 + $0x30] sm:$0xff]
    %v5597 = vld [vmem:[%s5589 + $0x38] sm:$0xff]
    %v5598 = vld [vmem:[%s5589 + $0x40] sm:$0xff]
    %v5599 = vld [vmem:[%s5589 + $0x48] sm:$0xff]
    %v5600 = vld [vmem:[%s5589 + $0x50] sm:$0xf]
    %v5601 = vrot.slane %v4921, 3
    %v5602 = vrot.slane %v4922, 3
    %v5603 = vsel %vm796, %v5601, %v5602
    %v5604 = vsel %vm4908, %v5603, 0
    %v5606 = vsel %vm4908, %v5602, 0
    %v5609 = vsel %vm1511, %v5600, 0
    %5611 = vmatprep.subr.mxu0 0.0
    %v5612 = vand.u32 %v5590, 4294901760
    %5613 = vmatpush1.msra.mxu0 %v5612
    %5614 = vmatprep.subr.mxu0 0.0
    %v5615 = vand.u32 %v5591, 4294901760
    %5616 = vmatpush1.msra.mxu0 %v5615
    %5617 = vmatprep.subr.mxu0 0.0
    %v5618 = vand.u32 %v5592, 4294901760
    %5619 = vmatpush1.msra.mxu0 %v5618
    %5620 = vmatprep.subr.mxu0 0.0
    %v5621 = vand.u32 %v5593, 4294901760
    %5622 = vmatpush1.msra.mxu0 %v5621
    %5623 = vmatprep.subr.mxu0 0.0
    %v5624 = vand.u32 %v5594, 4294901760
    %5625 = vmatpush1.msra.mxu0 %v5624
    %5626 = vmatprep.subr.mxu0 0.0
    %v5627 = vand.u32 %v5595, 4294901760
    %5628 = vmatpush1.msra.mxu0 %v5627
    %5629 = vmatprep.subr.mxu0 0.0
    %v5630 = vand.u32 %v5596, 4294901760
    %5631 = vmatpush1.msra.mxu0 %v5630
    %5632 = vmatprep.subr.mxu0 0.0
    %v5633 = vand.u32 %v5597, 4294901760
    %5634 = vmatpush1.msra.mxu0 %v5633
    %5635 = vmatprep.subr.mxu0 0.0
    %v5636 = vand.u32 %v5598, 4294901760
    %5637 = vmatpush1.msra.mxu0 %v5636
    %5638 = vmatprep.subr.mxu0 0.0
    %v5639 = vand.u32 %v5599, 4294901760
    %5640 = vmatpush1.msra.mxu0 %v5639
    %5641 = vmatprep.subr.mxu0 0.0
    %v5642 = vand.u32 %v5609, 4294901760
    %5643 = vmatpush1.msra.mxu0 %v5642
    %5644 = vmatprep.subr.mxu0 0.0
    %5645 = vmatpush1.msra.mxu0 0.0
    %5646 = vmatprep.subr.mxu0 0.0
    %5647 = vmatpush1.msra.mxu0 0.0
    %5648 = vmatprep.subr.mxu0 0.0
    %5649 = vmatpush1.msra.mxu0 0.0
    %5650 = vmatprep.subr.mxu0 0.0
    %5651 = vmatpush1.msra.mxu0 0.0
    %5652 = vmatprep.subr.mxu0 0.0
    %5653 = vmatpush1.msra.mxu0 0.0
    %5654 = vmatprep.subr.mxu0 0.0
    %5655 = vmatpush1.msra.mxu0 0.0
    %5656 = vmatprep.subr.mxu0 0.0
    %5657 = vmatpush1.msra.mxu0 0.0
    %5658 = vmatprep.subr.mxu0 0.0
    %5659 = vmatpush1.msra.mxu0 0.0
    %5660 = vmatprep.subr.mxu0 0.0
    %5661 = vmatpush1.msra.mxu0 0.0
    %5662 = vmatprep.subr.mxu0 0.0
    %5663 = vmatpush1.msra.mxu0 0.0
    %5664 = vmatprep.subr.mxu0 0.0
    %5665 = vmatpush1.msra.mxu0 0.0
    %5666 = vmatprep.subr.mxu0 0.0
    %5667 = vmatpush1.msra.mxu0 0.0
    %5668 = vmatprep.subr.mxu0 0.0
    %5669 = vmatpush1.msra.mxu0 0.0
    %5670 = vmatprep.subr.mxu0 0.0
    %5671 = vmatpush1.msra.mxu0 0.0
    %5672 = vmatprep.subr.mxu0 0.0
    %5673 = vmatpush1.msra.mxu0 0.0
    %5674 = vmatprep.subr.mxu0 0.0
    %5675 = vmatpush1.msra.mxu0 0.0
    %5676 = vmatprep.subr.mxu0 0.0
    %5677 = vmatpush1.msra.mxu0 0.0
    %5678 = vmatprep.subr.mxu0 0.0
    %5679 = vmatpush1.msra.mxu0 0.0
    %5680 = vmatprep.subr.mxu0 0.0
    %5681 = vmatpush1.msra.mxu0 0.0
    %5682 = vmatprep.subr.mxu0 0.0
    %5683 = vmatpush1.msra.mxu0 0.0
    %5684 = vmatprep.subr.mxu0 0.0
    %5685 = vmatpush1.msra.mxu0 0.0
    %5686 = vmatprep.mubr.f32.mxu0 0.0
    %v5687 = vand.u32 %v5604, 4294901760
    %v5688 = vsub.f32 %v5604, %v5687
    %v5689 = vand.u32 %v5688, 4294901760
    %v5690 = vsub.f32 %v5688, %v5689
    %v5691 = vand.u32 %v5690, 4294901760
    %5692 = vmatmul.mubr.f32.gmra.mrb[0].mxu0 %v5691
    %v5693 = vpop.f32.mrb[0].mxu0
    %v5694 = vadd.f32 0.0, %v5693
    %v5695 = vpop.f32.mrb[0].mxu0
    %5696 = vmatprep.mubr.f32.mxu0 0.0
    %v5697 = vand.u32 %v5606, 4294901760
    %v5698 = vsub.f32 %v5606, %v5697
    %v5699 = vand.u32 %v5698, 4294901760
    %v5700 = vsub.f32 %v5698, %v5699
    %v5701 = vand.u32 %v5700, 4294901760
    %5702 = vmatmul.mubr.f32.gmra.mrb[0].mxu0 %v5701
    %v5703 = vpop.f32.mrb[0].mxu0
    %v5704 = vadd.f32 0.0, %v5703
    %v5705 = vpop.f32.mrb[0].mxu0
    %5706 = vdwg.mxu0
    %5707 = vmatprep.subr.mxu0 0.0
    %v5708 = vand.u32 %v5590, 4294901760
    %v5709 = vsub.f32 %v5590, %v5708
    %v5710 = vand.u32 %v5709, 4294901760
    %v5711 = vsub.f32 %v5709, %v5710
    %v5712 = vand.u32 %v5711, 4294901760
    %5713 = vmatpush1.msra.mxu0 %v5712
    %5714 = vmatprep.subr.mxu0 0.0
    %v5715 = vand.u32 %v5591, 4294901760
    %v5716 = vsub.f32 %v5591, %v5715
    %v5717 = vand.u32 %v5716, 4294901760
    %v5718 = vsub.f32 %v5716, %v5717
    %v5719 = vand.u32 %v5718, 4294901760
    %5720 = vmatpush1.msra.mxu0 %v5719
    %5721 = vmatprep.subr.mxu0 0.0
    %v5722 = vand.u32 %v5592, 4294901760
    %v5723 = vsub.f32 %v5592, %v5722
    %v5724 = vand.u32 %v5723, 4294901760
    %v5725 = vsub.f32 %v5723, %v5724
    %v5726 = vand.u32 %v5725, 4294901760
    %5727 = vmatpush1.msra.mxu0 %v5726
    %5728 = vmatprep.subr.mxu0 0.0
    %v5729 = vand.u32 %v5593, 4294901760
    %v5730 = vsub.f32 %v5593, %v5729
    %v5731 = vand.u32 %v5730, 4294901760
    %v5732 = vsub.f32 %v5730, %v5731
    %v5733 = vand.u32 %v5732, 4294901760
    %5734 = vmatpush1.msra.mxu0 %v5733
    %5735 = vmatprep.subr.mxu0 0.0
    %v5736 = vand.u32 %v5594, 4294901760
    %v5737 = vsub.f32 %v5594, %v5736
    %v5738 = vand.u32 %v5737, 4294901760
    %v5739 = vsub.f32 %v5737, %v5738
    %v5740 = vand.u32 %v5739, 4294901760
    %5741 = vmatpush1.msra.mxu0 %v5740
    %5742 = vmatprep.subr.mxu0 0.0
    %v5743 = vand.u32 %v5595, 4294901760
    %v5744 = vsub.f32 %v5595, %v5743
    %v5745 = vand.u32 %v5744, 4294901760
    %v5746 = vsub.f32 %v5744, %v5745
    %v5747 = vand.u32 %v5746, 4294901760
    %5748 = vmatpush1.msra.mxu0 %v5747
    %5749 = vmatprep.subr.mxu0 0.0
    %v5750 = vand.u32 %v5596, 4294901760
    %v5751 = vsub.f32 %v5596, %v5750
    %v5752 = vand.u32 %v5751, 4294901760
    %v5753 = vsub.f32 %v5751, %v5752
    %v5754 = vand.u32 %v5753, 4294901760
    %5755 = vmatpush1.msra.mxu0 %v5754
    %5756 = vmatprep.subr.mxu0 0.0
    %v5757 = vand.u32 %v5597, 4294901760
    %v5758 = vsub.f32 %v5597, %v5757
    %v5759 = vand.u32 %v5758, 4294901760
    %v5760 = vsub.f32 %v5758, %v5759
    %v5761 = vand.u32 %v5760, 4294901760
    %5762 = vmatpush1.msra.mxu0 %v5761
    %5763 = vmatprep.subr.mxu0 0.0
    %v5764 = vand.u32 %v5598, 4294901760
    %v5765 = vsub.f32 %v5598, %v5764
    %v5766 = vand.u32 %v5765, 4294901760
    %v5767 = vsub.f32 %v5765, %v5766
    %v5768 = vand.u32 %v5767, 4294901760
    %5769 = vmatpush1.msra.mxu0 %v5768
    %5770 = vmatprep.subr.mxu0 0.0
    %v5771 = vand.u32 %v5599, 4294901760
    %v5772 = vsub.f32 %v5599, %v5771
    %v5773 = vand.u32 %v5772, 4294901760
    %v5774 = vsub.f32 %v5772, %v5773
    %v5775 = vand.u32 %v5774, 4294901760
    %5776 = vmatpush1.msra.mxu0 %v5775
    %5777 = vmatprep.subr.mxu0 0.0
    %v5778 = vand.u32 %v5609, 4294901760
    %v5779 = vsub.f32 %v5609, %v5778
    %v5780 = vand.u32 %v5779, 4294901760
    %v5781 = vsub.f32 %v5779, %v5780
    %v5782 = vand.u32 %v5781, 4294901760
    %5783 = vmatpush1.msra.mxu0 %v5782
    %5784 = vmatprep.subr.mxu0 0.0
    %5785 = vmatpush1.msra.mxu0 0.0
    %5786 = vmatprep.subr.mxu0 0.0
    %5787 = vmatpush1.msra.mxu0 0.0
    %5788 = vmatprep.subr.mxu0 0.0
    %5789 = vmatpush1.msra.mxu0 0.0
    %5790 = vmatprep.subr.mxu0 0.0
    %5791 = vmatpush1.msra.mxu0 0.0
    %5792 = vmatprep.subr.mxu0 0.0
    %5793 = vmatpush1.msra.mxu0 0.0
    %5794 = vmatprep.subr.mxu0 0.0
    %5795 = vmatpush1.msra.mxu0 0.0
    %5796 = vmatprep.subr.mxu0 0.0
    %5797 = vmatpush1.msra.mxu0 0.0
    %5798 = vmatprep.subr.mxu0 0.0
    %5799 = vmatpush1.msra.mxu0 0.0
    %5800 = vmatprep.subr.mxu0 0.0
    %5801 = vmatpush1.msra.mxu0 0.0
    %5802 = vmatprep.subr.mxu0 0.0
    %5803 = vmatpush1.msra.mxu0 0.0
    %5804 = vmatprep.subr.mxu0 0.0
    %5805 = vmatpush1.msra.mxu0 0.0
    %5806 = vmatprep.subr.mxu0 0.0
    %5807 = vmatpush1.msra.mxu0 0.0
    %5808 = vmatprep.subr.mxu0 0.0
    %5809 = vmatpush1.msra.mxu0 0.0
    %5810 = vmatprep.subr.mxu0 0.0
    %5811 = vmatpush1.msra.mxu0 0.0
    %5812 = vmatprep.subr.mxu0 0.0
    %5813 = vmatpush1.msra.mxu0 0.0
    %5814 = vmatprep.subr.mxu0 0.0
    %5815 = vmatpush1.msra.mxu0 0.0
    %5816 = vmatprep.subr.mxu0 0.0
    %5817 = vmatpush1.msra.mxu0 0.0
    %5818 = vmatprep.subr.mxu0 0.0
    %5819 = vmatpush1.msra.mxu0 0.0
    %5820 = vmatprep.subr.mxu0 0.0
    %5821 = vmatpush1.msra.mxu0 0.0
    %5822 = vmatprep.subr.mxu0 0.0
    %5823 = vmatpush1.msra.mxu0 0.0
    %5824 = vmatprep.subr.mxu0 0.0
    %5825 = vmatpush1.msra.mxu0 0.0
    %5826 = vmatprep.mubr.f32.mxu0 0.0
    %v5827 = vand.u32 %v5604, 4294901760
    %5828 = vmatmul.mubr.f32.gmra.mrb[0].mxu0 %v5827
    %v5829 = vpop.f32.mrb[0].mxu0
    %v5830 = vadd.f32 %v5694, %v5829
    %v5831 = vpop.f32.mrb[0].mxu0
    %5832 = vmatprep.mubr.f32.mxu0 0.0
    %v5833 = vand.u32 %v5606, 4294901760
    %5834 = vmatmul.mubr.f32.gmra.mrb[0].mxu0 %v5833
    %v5835 = vpop.f32.mrb[0].mxu0
    %v5836 = vadd.f32 %v5704, %v5835
    %v5837 = vpop.f32.mrb[0].mxu0
    %5838 = vdwg.mxu0
    %5839 = vmatprep.subr.mxu0 0.0
    %v5840 = vand.u32 %v5590, 4294901760
    %v5841 = vsub.f32 %v5590, %v5840
    %5842 = vmatpush1.msra.mxu0 %v5841
    %5843 = vmatprep.subr.mxu0 0.0
    %v5844 = vand.u32 %v5591, 4294901760
    %v5845 = vsub.f32 %v5591, %v5844
    %5846 = vmatpush1.msra.mxu0 %v5845
    %5847 = vmatprep.subr.mxu0 0.0
    %v5848 = vand.u32 %v5592, 4294901760
    %v5849 = vsub.f32 %v5592, %v5848
    %5850 = vmatpush1.msra.mxu0 %v5849
    %5851 = vmatprep.subr.mxu0 0.0
    %v5852 = vand.u32 %v5593, 4294901760
    %v5853 = vsub.f32 %v5593, %v5852
    %5854 = vmatpush1.msra.mxu0 %v5853
    %5855 = vmatprep.subr.mxu0 0.0
    %v5856 = vand.u32 %v5594, 4294901760
    %v5857 = vsub.f32 %v5594, %v5856
    %5858 = vmatpush1.msra.mxu0 %v5857
    %5859 = vmatprep.subr.mxu0 0.0
    %v5860 = vand.u32 %v5595, 4294901760
    %v5861 = vsub.f32 %v5595, %v5860
    %5862 = vmatpush1.msra.mxu0 %v5861
    %5863 = vmatprep.subr.mxu0 0.0
    %v5864 = vand.u32 %v5596, 4294901760
    %v5865 = vsub.f32 %v5596, %v5864
    %5866 = vmatpush1.msra.mxu0 %v5865
    %5867 = vmatprep.subr.mxu0 0.0
    %v5868 = vand.u32 %v5597, 4294901760
    %v5869 = vsub.f32 %v5597, %v5868
    %5870 = vmatpush1.msra.mxu0 %v5869
    %5871 = vmatprep.subr.mxu0 0.0
    %v5872 = vand.u32 %v5598, 4294901760
    %v5873 = vsub.f32 %v5598, %v5872
    %5874 = vmatpush1.msra.mxu0 %v5873
    %5875 = vmatprep.subr.mxu0 0.0
    %v5876 = vand.u32 %v5599, 4294901760
    %v5877 = vsub.f32 %v5599, %v5876
    %5878 = vmatpush1.msra.mxu0 %v5877
    %5879 = vmatprep.subr.mxu0 0.0
    %v5880 = vand.u32 %v5609, 4294901760
    %v5881 = vsub.f32 %v5609, %v5880
    %5882 = vmatpush1.msra.mxu0 %v5881
    %5883 = vmatprep.subr.mxu0 0.0
    %5884 = vmatpush1.msra.mxu0 0.0
    %5885 = vmatprep.subr.mxu0 0.0
    %5886 = vmatpush1.msra.mxu0 0.0
    %5887 = vmatprep.subr.mxu0 0.0
    %5888 = vmatpush1.msra.mxu0 0.0
    %5889 = vmatprep.subr.mxu0 0.0
    %5890 = vmatpush1.msra.mxu0 0.0
    %5891 = vmatprep.subr.mxu0 0.0
    %5892 = vmatpush1.msra.mxu0 0.0
    %5893 = vmatprep.subr.mxu0 0.0
    %5894 = vmatpush1.msra.mxu0 0.0
    %5895 = vmatprep.subr.mxu0 0.0
    %5896 = vmatpush1.msra.mxu0 0.0
    %5897 = vmatprep.subr.mxu0 0.0
    %5898 = vmatpush1.msra.mxu0 0.0
    %5899 = vmatprep.subr.mxu0 0.0
    %5900 = vmatpush1.msra.mxu0 0.0
    %5901 = vmatprep.subr.mxu0 0.0
    %5902 = vmatpush1.msra.mxu0 0.0
    %5903 = vmatprep.subr.mxu0 0.0
    %5904 = vmatpush1.msra.mxu0 0.0
    %5905 = vmatprep.subr.mxu0 0.0
    %5906 = vmatpush1.msra.mxu0 0.0
    %5907 = vmatprep.subr.mxu0 0.0
    %5908 = vmatpush1.msra.mxu0 0.0
    %5909 = vmatprep.subr.mxu0 0.0
    %5910 = vmatpush1.msra.mxu0 0.0
    %5911 = vmatprep.subr.mxu0 0.0
    %5912 = vmatpush1.msra.mxu0 0.0
    %5913 = vmatprep.subr.mxu0 0.0
    %5914 = vmatpush1.msra.mxu0 0.0
    %5915 = vmatprep.subr.mxu0 0.0
    %5916 = vmatpush1.msra.mxu0 0.0
    %5917 = vmatprep.subr.mxu0 0.0
    %5918 = vmatpush1.msra.mxu0 0.0
    %5919 = vmatprep.subr.mxu0 0.0
    %5920 = vmatpush1.msra.mxu0 0.0
    %5921 = vmatprep.subr.mxu0 0.0
    %5922 = vmatpush1.msra.mxu0 0.0
    %5923 = vmatprep.subr.mxu0 0.0
    %5924 = vmatpush1.msra.mxu0 0.0
    %5925 = vmatprep.mubr.f32.mxu0 0.0
    %v5926 = vand.u32 %v5604, 4294901760
    %v5927 = vsub.f32 %v5604, %v5926
    %5928 = vmatmul.mubr.f32.gmra.mrb[0].mxu0 %v5927
    %v5929 = vpop.f32.mrb[0].mxu0
    %v5930 = vadd.f32 %v5830, %v5929
    %v5931 = vpop.f32.mrb[0].mxu0
    %5932 = vmatprep.mubr.f32.mxu0 0.0
    %v5933 = vand.u32 %v5606, 4294901760
    %v5934 = vsub.f32 %v5606, %v5933
    %5935 = vmatmul.mubr.f32.gmra.mrb[0].mxu0 %v5934
    %v5936 = vpop.f32.mrb[0].mxu0
    %v5937 = vadd.f32 %v5836, %v5936
    %v5938 = vpop.f32.mrb[0].mxu0
    %5939 = vdwg.mxu0
    %5940 = vmatprep.subr.mxu0 0.0
    %v5941 = vand.u32 %v5590, 4294901760
    %5942 = vmatpush1.msra.mxu0 %v5941
    %5943 = vmatprep.subr.mxu0 0.0
    %v5944 = vand.u32 %v5591, 4294901760
    %5945 = vmatpush1.msra.mxu0 %v5944
    %5946 = vmatprep.subr.mxu0 0.0
    %v5947 = vand.u32 %v5592, 4294901760
    %5948 = vmatpush1.msra.mxu0 %v5947
    %5949 = vmatprep.subr.mxu0 0.0
    %v5950 = vand.u32 %v5593, 4294901760
    %5951 = vmatpush1.msra.mxu0 %v5950
    %5952 = vmatprep.subr.mxu0 0.0
    %v5953 = vand.u32 %v5594, 4294901760
    %5954 = vmatpush1.msra.mxu0 %v5953
    %5955 = vmatprep.subr.mxu0 0.0
    %v5956 = vand.u32 %v5595, 4294901760
    %5957 = vmatpush1.msra.mxu0 %v5956
    %5958 = vmatprep.subr.mxu0 0.0
    %v5959 = vand.u32 %v5596, 4294901760
    %5960 = vmatpush1.msra.mxu0 %v5959
    %5961 = vmatprep.subr.mxu0 0.0
    %v5962 = vand.u32 %v5597, 4294901760
    %5963 = vmatpush1.msra.mxu0 %v5962
    %5964 = vmatprep.subr.mxu0 0.0
    %v5965 = vand.u32 %v5598, 4294901760
    %5966 = vmatpush1.msra.mxu0 %v5965
    %5967 = vmatprep.subr.mxu0 0.0
    %v5968 = vand.u32 %v5599, 4294901760
    %5969 = vmatpush1.msra.mxu0 %v5968
    %5970 = vmatprep.subr.mxu0 0.0
    %v5971 = vand.u32 %v5609, 4294901760
    %5972 = vmatpush1.msra.mxu0 %v5971
    %5973 = vmatprep.subr.mxu0 0.0
    %5974 = vmatpush1.msra.mxu0 0.0
    %5975 = vmatprep.subr.mxu0 0.0
    %5976 = vmatpush1.msra.mxu0 0.0
    %5977 = vmatprep.subr.mxu0 0.0
    %5978 = vmatpush1.msra.mxu0 0.0
    %5979 = vmatprep.subr.mxu0 0.0
    %5980 = vmatpush1.msra.mxu0 0.0
    %5981 = vmatprep.subr.mxu0 0.0
    %5982 = vmatpush1.msra.mxu0 0.0
    %5983 = vmatprep.subr.mxu0 0.0
    %5984 = vmatpush1.msra.mxu0 0.0
    %5985 = vmatprep.subr.mxu0 0.0
    %5986 = vmatpush1.msra.mxu0 0.0
    %5987 = vmatprep.subr.mxu0 0.0
    %5988 = vmatpush1.msra.mxu0 0.0
    %5989 = vmatprep.subr.mxu0 0.0
    %5990 = vmatpush1.msra.mxu0 0.0
    %5991 = vmatprep.subr.mxu0 0.0
    %5992 = vmatpush1.msra.mxu0 0.0
    %5993 = vmatprep.subr.mxu0 0.0
    %5994 = vmatpush1.msra.mxu0 0.0
    %5995 = vmatprep.subr.mxu0 0.0
    %5996 = vmatpush1.msra.mxu0 0.0
    %5997 = vmatprep.subr.mxu0 0.0
    %5998 = vmatpush1.msra.mxu0 0.0
    %5999 = vmatprep.subr.mxu0 0.0
    %6000 = vmatpush1.msra.mxu0 0.0
    %6001 = vmatprep.subr.mxu0 0.0
    %6002 = vmatpush1.msra.mxu0 0.0
    %6003 = vmatprep.subr.mxu0 0.0
    %6004 = vmatpush1.msra.mxu0 0.0
    %6005 = vmatprep.subr.mxu0 0.0
    %6006 = vmatpush1.msra.mxu0 0.0
    %6007 = vmatprep.subr.mxu0 0.0
    %6008 = vmatpush1.msra.mxu0 0.0
    %6009 = vmatprep.subr.mxu0 0.0
    %6010 = vmatpush1.msra.mxu0 0.0
    %6011 = vmatprep.subr.mxu0 0.0
    %6012 = vmatpush1.msra.mxu0 0.0
    %6013 = vmatprep.subr.mxu0 0.0
    %6014 = vmatpush1.msra.mxu0 0.0
    %6015 = vmatprep.mubr.f32.mxu0 0.0
    %v6016 = vand.u32 %v5604, 4294901760
    %v6017 = vsub.f32 %v5604, %v6016
    %v6018 = vand.u32 %v6017, 4294901760
    %6019 = vmatmul.mubr.f32.gmra.mrb[0].mxu0 %v6018
    %v6020 = vpop.f32.mrb[0].mxu0
    %v6021 = vadd.f32 %v5930, %v6020
    %v6022 = vpop.f32.mrb[0].mxu0
    %6023 = vmatprep.mubr.f32.mxu0 0.0
    %v6024 = vand.u32 %v5606, 4294901760
    %v6025 = vsub.f32 %v5606, %v6024
    %v6026 = vand.u32 %v6025, 4294901760
    %6027 = vmatmul.mubr.f32.gmra.mrb[0].mxu0 %v6026
    %v6028 = vpop.f32.mrb[0].mxu0
    %v6029 = vadd.f32 %v5937, %v6028
    %v6030 = vpop.f32.mrb[0].mxu0
    %6031 = vdwg.mxu0
    %6032 = vmatprep.subr.mxu0 0.0
    %v6033 = vand.u32 %v5590, 4294901760
    %v6034 = vsub.f32 %v5590, %v6033
    %v6035 = vand.u32 %v6034, 4294901760
    %6036 = vmatpush1.msra.mxu0 %v6035
    %6037 = vmatprep.subr.mxu0 0.0
    %v6038 = vand.u32 %v5591, 4294901760
    %v6039 = vsub.f32 %v5591, %v6038
    %v6040 = vand.u32 %v6039, 4294901760
    %6041 = vmatpush1.msra.mxu0 %v6040
    %6042 = vmatprep.subr.mxu0 0.0
    %v6043 = vand.u32 %v5592, 4294901760
    %v6044 = vsub.f32 %v5592, %v6043
    %v6045 = vand.u32 %v6044, 4294901760
    %6046 = vmatpush1.msra.mxu0 %v6045
    %6047 = vmatprep.subr.mxu0 0.0
    %v6048 = vand.u32 %v5593, 4294901760
    %v6049 = vsub.f32 %v5593, %v6048
    %v6050 = vand.u32 %v6049, 4294901760
    %6051 = vmatpush1.msra.mxu0 %v6050
    %6052 = vmatprep.subr.mxu0 0.0
    %v6053 = vand.u32 %v5594, 4294901760
    %v6054 = vsub.f32 %v5594, %v6053
    %v6055 = vand.u32 %v6054, 4294901760
    %6056 = vmatpush1.msra.mxu0 %v6055
    %6057 = vmatprep.subr.mxu0 0.0
    %v6058 = vand.u32 %v5595, 4294901760
    %v6059 = vsub.f32 %v5595, %v6058
    %v6060 = vand.u32 %v6059, 4294901760
    %6061 = vmatpush1.msra.mxu0 %v6060
    %6062 = vmatprep.subr.mxu0 0.0
    %v6063 = vand.u32 %v5596, 4294901760
    %v6064 = vsub.f32 %v5596, %v6063
    %v6065 = vand.u32 %v6064, 4294901760
    %6066 = vmatpush1.msra.mxu0 %v6065
    %6067 = vmatprep.subr.mxu0 0.0
    %v6068 = vand.u32 %v5597, 4294901760
    %v6069 = vsub.f32 %v5597, %v6068
    %v6070 = vand.u32 %v6069, 4294901760
    %6071 = vmatpush1.msra.mxu0 %v6070
    %6072 = vmatprep.subr.mxu0 0.0
    %v6073 = vand.u32 %v5598, 4294901760
    %v6074 = vsub.f32 %v5598, %v6073
    %v6075 = vand.u32 %v6074, 4294901760
    %6076 = vmatpush1.msra.mxu0 %v6075
    %6077 = vmatprep.subr.mxu0 0.0
    %v6078 = vand.u32 %v5599, 4294901760
    %v6079 = vsub.f32 %v5599, %v6078
    %v6080 = vand.u32 %v6079, 4294901760
    %6081 = vmatpush1.msra.mxu0 %v6080
    %6082 = vmatprep.subr.mxu0 0.0
    %v6083 = vand.u32 %v5609, 4294901760
    %v6084 = vsub.f32 %v5609, %v6083
    %v6085 = vand.u32 %v6084, 4294901760
    %6086 = vmatpush1.msra.mxu0 %v6085
    %6087 = vmatprep.subr.mxu0 0.0
    %6088 = vmatpush1.msra.mxu0 0.0
    %6089 = vmatprep.subr.mxu0 0.0
    %6090 = vmatpush1.msra.mxu0 0.0
    %6091 = vmatprep.subr.mxu0 0.0
    %6092 = vmatpush1.msra.mxu0 0.0
    %6093 = vmatprep.subr.mxu0 0.0
    %6094 = vmatpush1.msra.mxu0 0.0
    %6095 = vmatprep.subr.mxu0 0.0
    %6096 = vmatpush1.msra.mxu0 0.0
    %6097 = vmatprep.subr.mxu0 0.0
    %6098 = vmatpush1.msra.mxu0 0.0
    %6099 = vmatprep.subr.mxu0 0.0
    %6100 = vmatpush1.msra.mxu0 0.0
    %6101 = vmatprep.subr.mxu0 0.0
    %6102 = vmatpush1.msra.mxu0 0.0
    %6103 = vmatprep.subr.mxu0 0.0
    %6104 = vmatpush1.msra.mxu0 0.0
    %6105 = vmatprep.subr.mxu0 0.0
    %6106 = vmatpush1.msra.mxu0 0.0
    %6107 = vmatprep.subr.mxu0 0.0
    %6108 = vmatpush1.msra.mxu0 0.0
    %6109 = vmatprep.subr.mxu0 0.0
    %6110 = vmatpush1.msra.mxu0 0.0
    %6111 = vmatprep.subr.mxu0 0.0
    %6112 = vmatpush1.msra.mxu0 0.0
    %6113 = vmatprep.subr.mxu0 0.0
    %6114 = vmatpush1.msra.mxu0 0.0
    %6115 = vmatprep.subr.mxu0 0.0
    %6116 = vmatpush1.msra.mxu0 0.0
    %6117 = vmatprep.subr.mxu0 0.0
    %6118 = vmatpush1.msra.mxu0 0.0
    %6119 = vmatprep.subr.mxu0 0.0
    %6120 = vmatpush1.msra.mxu0 0.0
    %6121 = vmatprep.subr.mxu0 0.0
    %6122 = vmatpush1.msra.mxu0 0.0
    %6123 = vmatprep.subr.mxu0 0.0
    %6124 = vmatpush1.msra.mxu0 0.0
    %6125 = vmatprep.subr.mxu0 0.0
    %6126 = vmatpush1.msra.mxu0 0.0
    %6127 = vmatprep.subr.mxu0 0.0
    %6128 = vmatpush1.msra.mxu0 0.0
    %6129 = vmatprep.mubr.f32.mxu0 0.0
    %v6130 = vand.u32 %v5604, 4294901760
    %6131 = vmatmul.mubr.f32.gmra.mrb[0].mxu0 %v6130
    %v6132 = vpop.f32.mrb[0].mxu0
    %v6133 = vadd.f32 %v6021, %v6132
    %v6134 = vpop.f32.mrb[0].mxu0
    %6135 = vmatprep.mubr.f32.mxu0 0.0
    %v6136 = vand.u32 %v5606, 4294901760
    %6137 = vmatmul.mubr.f32.gmra.mrb[0].mxu0 %v6136
    %v6138 = vpop.f32.mrb[0].mxu0
    %v6139 = vadd.f32 %v6029, %v6138
    %v6140 = vpop.f32.mrb[0].mxu0
    %6141 = vdwg.mxu0
    %6142 = vmatprep.subr.mxu0 0.0
    %v6143 = vand.u32 %v5590, 4294901760
    %6144 = vmatpush1.msra.mxu0 %v6143
    %6145 = vmatprep.subr.mxu0 0.0
    %v6146 = vand.u32 %v5591, 4294901760
    %6147 = vmatpush1.msra.mxu0 %v6146
    %6148 = vmatprep.subr.mxu0 0.0
    %v6149 = vand.u32 %v5592, 4294901760
    %6150 = vmatpush1.msra.mxu0 %v6149
    %6151 = vmatprep.subr.mxu0 0.0
    %v6152 = vand.u32 %v5593, 4294901760
    %6153 = vmatpush1.msra.mxu0 %v6152
    %6154 = vmatprep.subr.mxu0 0.0
    %v6155 = vand.u32 %v5594, 4294901760
    %6156 = vmatpush1.msra.mxu0 %v6155
    %6157 = vmatprep.subr.mxu0 0.0
    %v6158 = vand.u32 %v5595, 4294901760
    %6159 = vmatpush1.msra.mxu0 %v6158
    %6160 = vmatprep.subr.mxu0 0.0
    %v6161 = vand.u32 %v5596, 4294901760
    %6162 = vmatpush1.msra.mxu0 %v6161
    %6163 = vmatprep.subr.mxu0 0.0
    %v6164 = vand.u32 %v5597, 4294901760
    %6165 = vmatpush1.msra.mxu0 %v6164
    %6166 = vmatprep.subr.mxu0 0.0
    %v6167 = vand.u32 %v5598, 4294901760
    %6168 = vmatpush1.msra.mxu0 %v6167
    %6169 = vmatprep.subr.mxu0 0.0
    %v6170 = vand.u32 %v5599, 4294901760
    %6171 = vmatpush1.msra.mxu0 %v6170
    %6172 = vmatprep.subr.mxu0 0.0
    %v6173 = vand.u32 %v5609, 4294901760
    %6174 = vmatpush1.msra.mxu0 %v6173
    %6175 = vmatprep.subr.mxu0 0.0
    %6176 = vmatpush1.msra.mxu0 0.0
    %6177 = vmatprep.subr.mxu0 0.0
    %6178 = vmatpush1.msra.mxu0 0.0
    %6179 = vmatprep.subr.mxu0 0.0
    %6180 = vmatpush1.msra.mxu0 0.0
    %6181 = vmatprep.subr.mxu0 0.0
    %6182 = vmatpush1.msra.mxu0 0.0
    %6183 = vmatprep.subr.mxu0 0.0
    %6184 = vmatpush1.msra.mxu0 0.0
    %6185 = vmatprep.subr.mxu0 0.0
    %6186 = vmatpush1.msra.mxu0 0.0
    %6187 = vmatprep.subr.mxu0 0.0
    %6188 = vmatpush1.msra.mxu0 0.0
    %6189 = vmatprep.subr.mxu0 0.0
    %6190 = vmatpush1.msra.mxu0 0.0
    %6191 = vmatprep.subr.mxu0 0.0
    %6192 = vmatpush1.msra.mxu0 0.0
    %6193 = vmatprep.subr.mxu0 0.0
    %6194 = vmatpush1.msra.mxu0 0.0
    %6195 = vmatprep.subr.mxu0 0.0
    %6196 = vmatpush1.msra.mxu0 0.0
    %6197 = vmatprep.subr.mxu0 0.0
    %6198 = vmatpush1.msra.mxu0 0.0
    %6199 = vmatprep.subr.mxu0 0.0
    %6200 = vmatpush1.msra.mxu0 0.0
    %6201 = vmatprep.subr.mxu0 0.0
    %6202 = vmatpush1.msra.mxu0 0.0
    %6203 = vmatprep.subr.mxu0 0.0
    %6204 = vmatpush1.msra.mxu0 0.0
    %6205 = vmatprep.subr.mxu0 0.0
    %6206 = vmatpush1.msra.mxu0 0.0
    %6207 = vmatprep.subr.mxu0 0.0
    %6208 = vmatpush1.msra.mxu0 0.0
    %6209 = vmatprep.subr.mxu0 0.0
    %6210 = vmatpush1.msra.mxu0 0.0
    %6211 = vmatprep.subr.mxu0 0.0
    %6212 = vmatpush1.msra.mxu0 0.0
    %6213 = vmatprep.subr.mxu0 0.0
    %6214 = vmatpush1.msra.mxu0 0.0
    %6215 = vmatprep.subr.mxu0 0.0
    %6216 = vmatpush1.msra.mxu0 0.0
    %6217 = vmatprep.mubr.f32.mxu0 0.0
    %v6218 = vand.u32 %v5604, 4294901760
    %6219 = vmatmul.mubr.f32.gmra.mrb[0].mxu0 %v6218
    %v6220 = vpop.f32.mrb[0].mxu0
    %v6221 = vadd.f32 %v6133, %v6220
    %v6222 = vpop.f32.mrb[0].mxu0
    %6223 = vmatprep.mubr.f32.mxu0 0.0
    %v6224 = vand.u32 %v5606, 4294901760
    %6225 = vmatmul.mubr.f32.gmra.mrb[0].mxu0 %v6224
    %v6226 = vpop.f32.mrb[0].mxu0
    %v6227 = vadd.f32 %v6139, %v6226
    %v6228 = vpop.f32.mrb[0].mxu0
    %6229 = vdwg.mxu0
    %s6230 = scalar_lea.vmem %s4, 352
    %v6231 = vld [vmem:[%s6230] sm:$0xff]
    %v6232 = vld [vmem:[%s6230 + $0x8] sm:$0xff]
    %v6233 = vld [vmem:[%s6230 + $0x10] sm:$0xff]
    %v6234 = vld [vmem:[%s6230 + $0x18] sm:$0xff]
    %v6235 = vld [vmem:[%s6230 + $0x20] sm:$0xff]
    %v6236 = vld [vmem:[%s6230 + $0x28] sm:$0xff]
    %v6237 = vld [vmem:[%s6230 + $0x30] sm:$0xff]
    %v6238 = vld [vmem:[%s6230 + $0x38] sm:$0xff]
    %v6239 = vld [vmem:[%s6230 + $0x40] sm:$0xff]
    %v6240 = vld [vmem:[%s6230 + $0x48] sm:$0xff]
    %v6241 = vld [vmem:[%s6230 + $0x50] sm:$0xf]
    %v6242 = vrot.slane %v4921, 4
    %v6243 = vrot.slane %v4922, 4
    %v6244 = vsel %vm1511, %v6242, %v6243
    %v6245 = vsel %vm4908, %v6244, 0
    %v6247 = vsel %vm4908, %v6243, 0
    %v6250 = vsel %vm1511, %v6241, 0
    %6252 = vmatprep.subr.mxu0 0.0
    %v6253 = vand.u32 %v6231, 4294901760
    %6254 = vmatpush1.msra.mxu0 %v6253
    %6255 = vmatprep.subr.mxu0 0.0
    %v6256 = vand.u32 %v6232, 4294901760
    %6257 = vmatpush1.msra.mxu0 %v6256
    %6258 = vmatprep.subr.mxu0 0.0
    %v6259 = vand.u32 %v6233, 4294901760
    %6260 = vmatpush1.msra.mxu0 %v6259
    %6261 = vmatprep.subr.mxu0 0.0
    %v6262 = vand.u32 %v6234, 4294901760
    %6263 = vmatpush1.msra.mxu0 %v6262
    %6264 = vmatprep.subr.mxu0 0.0
    %v6265 = vand.u32 %v6235, 4294901760
    %6266 = vmatpush1.msra.mxu0 %v6265
    %6267 = vmatprep.subr.mxu0 0.0
    %v6268 = vand.u32 %v6236, 4294901760
    %6269 = vmatpush1.msra.mxu0 %v6268
    %6270 = vmatprep.subr.mxu0 0.0
    %v6271 = vand.u32 %v6237, 4294901760
    %6272 = vmatpush1.msra.mxu0 %v6271
    %6273 = vmatprep.subr.mxu0 0.0
    %v6274 = vand.u32 %v6238, 4294901760
    %6275 = vmatpush1.msra.mxu0 %v6274
    %6276 = vmatprep.subr.mxu0 0.0
    %v6277 = vand.u32 %v6239, 4294901760
    %6278 = vmatpush1.msra.mxu0 %v6277
    %6279 = vmatprep.subr.mxu0 0.0
    %v6280 = vand.u32 %v6240, 4294901760
    %6281 = vmatpush1.msra.mxu0 %v6280
    %6282 = vmatprep.subr.mxu0 0.0
    %v6283 = vand.u32 %v6250, 4294901760
    %6284 = vmatpush1.msra.mxu0 %v6283
    %6285 = vmatprep.subr.mxu0 0.0
    %6286 = vmatpush1.msra.mxu0 0.0
    %6287 = vmatprep.subr.mxu0 0.0
    %6288 = vmatpush1.msra.mxu0 0.0
    %6289 = vmatprep.subr.mxu0 0.0
    %6290 = vmatpush1.msra.mxu0 0.0
    %6291 = vmatprep.subr.mxu0 0.0
    %6292 = vmatpush1.msra.mxu0 0.0
    %6293 = vmatprep.subr.mxu0 0.0
    %6294 = vmatpush1.msra.mxu0 0.0
    %6295 = vmatprep.subr.mxu0 0.0
    %6296 = vmatpush1.msra.mxu0 0.0
    %6297 = vmatprep.subr.mxu0 0.0
    %6298 = vmatpush1.msra.mxu0 0.0
    %6299 = vmatprep.subr.mxu0 0.0
    %6300 = vmatpush1.msra.mxu0 0.0
    %6301 = vmatprep.subr.mxu0 0.0
    %6302 = vmatpush1.msra.mxu0 0.0
    %6303 = vmatprep.subr.mxu0 0.0
    %6304 = vmatpush1.msra.mxu0 0.0
    %6305 = vmatprep.subr.mxu0 0.0
    %6306 = vmatpush1.msra.mxu0 0.0
    %6307 = vmatprep.subr.mxu0 0.0
    %6308 = vmatpush1.msra.mxu0 0.0
    %6309 = vmatprep.subr.mxu0 0.0
    %6310 = vmatpush1.msra.mxu0 0.0
    %6311 = vmatprep.subr.mxu0 0.0
    %6312 = vmatpush1.msra.mxu0 0.0
    %6313 = vmatprep.subr.mxu0 0.0
    %6314 = vmatpush1.msra.mxu0 0.0
    %6315 = vmatprep.subr.mxu0 0.0
    %6316 = vmatpush1.msra.mxu0 0.0
    %6317 = vmatprep.subr.mxu0 0.0
    %6318 = vmatpush1.msra.mxu0 0.0
    %6319 = vmatprep.subr.mxu0 0.0
    %6320 = vmatpush1.msra.mxu0 0.0
    %6321 = vmatprep.subr.mxu0 0.0
    %6322 = vmatpush1.msra.mxu0 0.0
    %6323 = vmatprep.subr.mxu0 0.0
    %6324 = vmatpush1.msra.mxu0 0.0
    %6325 = vmatprep.subr.mxu0 0.0
    %6326 = vmatpush1.msra.mxu0 0.0
    %6327 = vmatprep.mubr.f32.mxu0 0.0
    %v6328 = vand.u32 %v6245, 4294901760
    %v6329 = vsub.f32 %v6245, %v6328
    %v6330 = vand.u32 %v6329, 4294901760
    %v6331 = vsub.f32 %v6329, %v6330
    %v6332 = vand.u32 %v6331, 4294901760
    %6333 = vmatmul.mubr.f32.gmra.mrb[0].mxu0 %v6332
    %v6334 = vpop.f32.mrb[0].mxu0
    %v6335 = vadd.f32 0.0, %v6334
    %v6336 = vpop.f32.mrb[0].mxu0
    %6337 = vmatprep.mubr.f32.mxu0 0.0
    %v6338 = vand.u32 %v6247, 4294901760
    %v6339 = vsub.f32 %v6247, %v6338
    %v6340 = vand.u32 %v6339, 4294901760
    %v6341 = vsub.f32 %v6339, %v6340
    %v6342 = vand.u32 %v6341, 4294901760
    %6343 = vmatmul.mubr.f32.gmra.mrb[0].mxu0 %v6342
    %v6344 = vpop.f32.mrb[0].mxu0
    %v6345 = vadd.f32 0.0, %v6344
    %v6346 = vpop.f32.mrb[0].mxu0
    %6347 = vdwg.mxu0
    %6348 = vmatprep.subr.mxu0 0.0
    %v6349 = vand.u32 %v6231, 4294901760
    %v6350 = vsub.f32 %v6231, %v6349
    %v6351 = vand.u32 %v6350, 4294901760
    %v6352 = vsub.f32 %v6350, %v6351
    %v6353 = vand.u32 %v6352, 4294901760
    %6354 = vmatpush1.msra.mxu0 %v6353
    %6355 = vmatprep.subr.mxu0 0.0
    %v6356 = vand.u32 %v6232, 4294901760
    %v6357 = vsub.f32 %v6232, %v6356
    %v6358 = vand.u32 %v6357, 4294901760
    %v6359 = vsub.f32 %v6357, %v6358
    %v6360 = vand.u32 %v6359, 4294901760
    %6361 = vmatpush1.msra.mxu0 %v6360
    %6362 = vmatprep.subr.mxu0 0.0
    %v6363 = vand.u32 %v6233, 4294901760
    %v6364 = vsub.f32 %v6233, %v6363
    %v6365 = vand.u32 %v6364, 4294901760
    %v6366 = vsub.f32 %v6364, %v6365
    %v6367 = vand.u32 %v6366, 4294901760
    %6368 = vmatpush1.msra.mxu0 %v6367
    %6369 = vmatprep.subr.mxu0 0.0
    %v6370 = vand.u32 %v6234, 4294901760
    %v6371 = vsub.f32 %v6234, %v6370
    %v6372 = vand.u32 %v6371, 4294901760
    %v6373 = vsub.f32 %v6371, %v6372
    %v6374 = vand.u32 %v6373, 4294901760
    %6375 = vmatpush1.msra.mxu0 %v6374
    %6376 = vmatprep.subr.mxu0 0.0
    %v6377 = vand.u32 %v6235, 4294901760
    %v6378 = vsub.f32 %v6235, %v6377
    %v6379 = vand.u32 %v6378, 4294901760
    %v6380 = vsub.f32 %v6378, %v6379
    %v6381 = vand.u32 %v6380, 4294901760
    %6382 = vmatpush1.msra.mxu0 %v6381
    %6383 = vmatprep.subr.mxu0 0.0
    %v6384 = vand.u32 %v6236, 4294901760
    %v6385 = vsub.f32 %v6236, %v6384
    %v6386 = vand.u32 %v6385, 4294901760
    %v6387 = vsub.f32 %v6385, %v6386
    %v6388 = vand.u32 %v6387, 4294901760
    %6389 = vmatpush1.msra.mxu0 %v6388
    %6390 = vmatprep.subr.mxu0 0.0
    %v6391 = vand.u32 %v6237, 4294901760
    %v6392 = vsub.f32 %v6237, %v6391
    %v6393 = vand.u32 %v6392, 4294901760
    %v6394 = vsub.f32 %v6392, %v6393
    %v6395 = vand.u32 %v6394, 4294901760
    %6396 = vmatpush1.msra.mxu0 %v6395
    %6397 = vmatprep.subr.mxu0 0.0
    %v6398 = vand.u32 %v6238, 4294901760
    %v6399 = vsub.f32 %v6238, %v6398
    %v6400 = vand.u32 %v6399, 4294901760
    %v6401 = vsub.f32 %v6399, %v6400
    %v6402 = vand.u32 %v6401, 4294901760
    %6403 = vmatpush1.msra.mxu0 %v6402
    %6404 = vmatprep.subr.mxu0 0.0
    %v6405 = vand.u32 %v6239, 4294901760
    %v6406 = vsub.f32 %v6239, %v6405
    %v6407 = vand.u32 %v6406, 4294901760
    %v6408 = vsub.f32 %v6406, %v6407
    %v6409 = vand.u32 %v6408, 4294901760
    %6410 = vmatpush1.msra.mxu0 %v6409
    %6411 = vmatprep.subr.mxu0 0.0
    %v6412 = vand.u32 %v6240, 4294901760
    %v6413 = vsub.f32 %v6240, %v6412
    %v6414 = vand.u32 %v6413, 4294901760
    %v6415 = vsub.f32 %v6413, %v6414
    %v6416 = vand.u32 %v6415, 4294901760
    %6417 = vmatpush1.msra.mxu0 %v6416
    %6418 = vmatprep.subr.mxu0 0.0
    %v6419 = vand.u32 %v6250, 4294901760
    %v6420 = vsub.f32 %v6250, %v6419
    %v6421 = vand.u32 %v6420, 4294901760
    %v6422 = vsub.f32 %v6420, %v6421
    %v6423 = vand.u32 %v6422, 4294901760
    %6424 = vmatpush1.msra.mxu0 %v6423
    %6425 = vmatprep.subr.mxu0 0.0
    %6426 = vmatpush1.msra.mxu0 0.0
    %6427 = vmatprep.subr.mxu0 0.0
    %6428 = vmatpush1.msra.mxu0 0.0
    %6429 = vmatprep.subr.mxu0 0.0
    %6430 = vmatpush1.msra.mxu0 0.0
    %6431 = vmatprep.subr.mxu0 0.0
    %6432 = vmatpush1.msra.mxu0 0.0
    %6433 = vmatprep.subr.mxu0 0.0
    %6434 = vmatpush1.msra.mxu0 0.0
    %6435 = vmatprep.subr.mxu0 0.0
    %6436 = vmatpush1.msra.mxu0 0.0
    %6437 = vmatprep.subr.mxu0 0.0
    %6438 = vmatpush1.msra.mxu0 0.0
    %6439 = vmatprep.subr.mxu0 0.0
    %6440 = vmatpush1.msra.mxu0 0.0
    %6441 = vmatprep.subr.mxu0 0.0
    %6442 = vmatpush1.msra.mxu0 0.0
    %6443 = vmatprep.subr.mxu0 0.0
    %6444 = vmatpush1.msra.mxu0 0.0
    %6445 = vmatprep.subr.mxu0 0.0
    %6446 = vmatpush1.msra.mxu0 0.0
    %6447 = vmatprep.subr.mxu0 0.0
    %6448 = vmatpush1.msra.mxu0 0.0
    %6449 = vmatprep.subr.mxu0 0.0
    %6450 = vmatpush1.msra.mxu0 0.0
    %6451 = vmatprep.subr.mxu0 0.0
    %6452 = vmatpush1.msra.mxu0 0.0
    %6453 = vmatprep.subr.mxu0 0.0
    %6454 = vmatpush1.msra.mxu0 0.0
    %6455 = vmatprep.subr.mxu0 0.0
    %6456 = vmatpush1.msra.mxu0 0.0
    %6457 = vmatprep.subr.mxu0 0.0
    %6458 = vmatpush1.msra.mxu0 0.0
    %6459 = vmatprep.subr.mxu0 0.0
    %6460 = vmatpush1.msra.mxu0 0.0
    %6461 = vmatprep.subr.mxu0 0.0
    %6462 = vmatpush1.msra.mxu0 0.0
    %6463 = vmatprep.subr.mxu0 0.0
    %6464 = vmatpush1.msra.mxu0 0.0
    %6465 = vmatprep.subr.mxu0 0.0
    %6466 = vmatpush1.msra.mxu0 0.0
    %6467 = vmatprep.mubr.f32.mxu0 0.0
    %v6468 = vand.u32 %v6245, 4294901760
    %6469 = vmatmul.mubr.f32.gmra.mrb[0].mxu0 %v6468
    %v6470 = vpop.f32.mrb[0].mxu0
    %v6471 = vadd.f32 %v6335, %v6470
    %v6472 = vpop.f32.mrb[0].mxu0
    %6473 = vmatprep.mubr.f32.mxu0 0.0
    %v6474 = vand.u32 %v6247, 4294901760
    %6475 = vmatmul.mubr.f32.gmra.mrb[0].mxu0 %v6474
    %v6476 = vpop.f32.mrb[0].mxu0
    %v6477 = vadd.f32 %v6345, %v6476
    %v6478 = vpop.f32.mrb[0].mxu0
    %6479 = vdwg.mxu0
    %6480 = vmatprep.subr.mxu0 0.0
    %v6481 = vand.u32 %v6231, 4294901760
    %v6482 = vsub.f32 %v6231, %v6481
    %6483 = vmatpush1.msra.mxu0 %v6482
    %6484 = vmatprep.subr.mxu0 0.0
    %v6485 = vand.u32 %v6232, 4294901760
    %v6486 = vsub.f32 %v6232, %v6485
    %6487 = vmatpush1.msra.mxu0 %v6486
    %6488 = vmatprep.subr.mxu0 0.0
    %v6489 = vand.u32 %v6233, 4294901760
    %v6490 = vsub.f32 %v6233, %v6489
    %6491 = vmatpush1.msra.mxu0 %v6490
    %6492 = vmatprep.subr.mxu0 0.0
    %v6493 = vand.u32 %v6234, 4294901760
    %v6494 = vsub.f32 %v6234, %v6493
    %6495 = vmatpush1.msra.mxu0 %v6494
    %6496 = vmatprep.subr.mxu0 0.0
    %v6497 = vand.u32 %v6235, 4294901760
    %v6498 = vsub.f32 %v6235, %v6497
    %6499 = vmatpush1.msra.mxu0 %v6498
    %6500 = vmatprep.subr.mxu0 0.0
    %v6501 = vand.u32 %v6236, 4294901760
    %v6502 = vsub.f32 %v6236, %v6501
    %6503 = vmatpush1.msra.mxu0 %v6502
    %6504 = vmatprep.subr.mxu0 0.0
    %v6505 = vand.u32 %v6237, 4294901760
    %v6506 = vsub.f32 %v6237, %v6505
    %6507 = vmatpush1.msra.mxu0 %v6506
    %6508 = vmatprep.subr.mxu0 0.0
    %v6509 = vand.u32 %v6238, 4294901760
    %v6510 = vsub.f32 %v6238, %v6509
    %6511 = vmatpush1.msra.mxu0 %v6510
    %6512 = vmatprep.subr.mxu0 0.0
    %v6513 = vand.u32 %v6239, 4294901760
    %v6514 = vsub.f32 %v6239, %v6513
    %6515 = vmatpush1.msra.mxu0 %v6514
    %6516 = vmatprep.subr.mxu0 0.0
    %v6517 = vand.u32 %v6240, 4294901760
    %v6518 = vsub.f32 %v6240, %v6517
    %6519 = vmatpush1.msra.mxu0 %v6518
    %6520 = vmatprep.subr.mxu0 0.0
    %v6521 = vand.u32 %v6250, 4294901760
    %v6522 = vsub.f32 %v6250, %v6521
    %6523 = vmatpush1.msra.mxu0 %v6522
    %6524 = vmatprep.subr.mxu0 0.0
    %6525 = vmatpush1.msra.mxu0 0.0
    %6526 = vmatprep.subr.mxu0 0.0
    %6527 = vmatpush1.msra.mxu0 0.0
    %6528 = vmatprep.subr.mxu0 0.0
    %6529 = vmatpush1.msra.mxu0 0.0
    %6530 = vmatprep.subr.mxu0 0.0
    %6531 = vmatpush1.msra.mxu0 0.0
    %6532 = vmatprep.subr.mxu0 0.0
    %6533 = vmatpush1.msra.mxu0 0.0
    %6534 = vmatprep.subr.mxu0 0.0
    %6535 = vmatpush1.msra.mxu0 0.0
    %6536 = vmatprep.subr.mxu0 0.0
    %6537 = vmatpush1.msra.mxu0 0.0
    %6538 = vmatprep.subr.mxu0 0.0
    %6539 = vmatpush1.msra.mxu0 0.0
    %6540 = vmatprep.subr.mxu0 0.0
    %6541 = vmatpush1.msra.mxu0 0.0
    %6542 = vmatprep.subr.mxu0 0.0
    %6543 = vmatpush1.msra.mxu0 0.0
    %6544 = vmatprep.subr.mxu0 0.0
    %6545 = vmatpush1.msra.mxu0 0.0
    %6546 = vmatprep.subr.mxu0 0.0
    %6547 = vmatpush1.msra.mxu0 0.0
    %6548 = vmatprep.subr.mxu0 0.0
    %6549 = vmatpush1.msra.mxu0 0.0
    %6550 = vmatprep.subr.mxu0 0.0
    %6551 = vmatpush1.msra.mxu0 0.0
    %6552 = vmatprep.subr.mxu0 0.0
    %6553 = vmatpush1.msra.mxu0 0.0
    %6554 = vmatprep.subr.mxu0 0.0
    %6555 = vmatpush1.msra.mxu0 0.0
    %6556 = vmatprep.subr.mxu0 0.0
    %6557 = vmatpush1.msra.mxu0 0.0
    %6558 = vmatprep.subr.mxu0 0.0
    %6559 = vmatpush1.msra.mxu0 0.0
    %6560 = vmatprep.subr.mxu0 0.0
    %6561 = vmatpush1.msra.mxu0 0.0
    %6562 = vmatprep.subr.mxu0 0.0
    %6563 = vmatpush1.msra.mxu0 0.0
    %6564 = vmatprep.subr.mxu0 0.0
    %6565 = vmatpush1.msra.mxu0 0.0
    %6566 = vmatprep.mubr.f32.mxu0 0.0
    %v6567 = vand.u32 %v6245, 4294901760
    %v6568 = vsub.f32 %v6245, %v6567
    %6569 = vmatmul.mubr.f32.gmra.mrb[0].mxu0 %v6568
    %v6570 = vpop.f32.mrb[0].mxu0
    %v6571 = vadd.f32 %v6471, %v6570
    %v6572 = vpop.f32.mrb[0].mxu0
    %6573 = vmatprep.mubr.f32.mxu0 0.0
    %v6574 = vand.u32 %v6247, 4294901760
    %v6575 = vsub.f32 %v6247, %v6574
    %6576 = vmatmul.mubr.f32.gmra.mrb[0].mxu0 %v6575
    %v6577 = vpop.f32.mrb[0].mxu0
    %v6578 = vadd.f32 %v6477, %v6577
    %v6579 = vpop.f32.mrb[0].mxu0
    %6580 = vdwg.mxu0
    %6581 = vmatprep.subr.mxu0 0.0
    %v6582 = vand.u32 %v6231, 4294901760
    %6583 = vmatpush1.msra.mxu0 %v6582
    %6584 = vmatprep.subr.mxu0 0.0
    %v6585 = vand.u32 %v6232, 4294901760
    %6586 = vmatpush1.msra.mxu0 %v6585
    %6587 = vmatprep.subr.mxu0 0.0
    %v6588 = vand.u32 %v6233, 4294901760
    %6589 = vmatpush1.msra.mxu0 %v6588
    %6590 = vmatprep.subr.mxu0 0.0
    %v6591 = vand.u32 %v6234, 4294901760
    %6592 = vmatpush1.msra.mxu0 %v6591
    %6593 = vmatprep.subr.mxu0 0.0
    %v6594 = vand.u32 %v6235, 4294901760
    %6595 = vmatpush1.msra.mxu0 %v6594
    %6596 = vmatprep.subr.mxu0 0.0
    %v6597 = vand.u32 %v6236, 4294901760
    %6598 = vmatpush1.msra.mxu0 %v6597
    %6599 = vmatprep.subr.mxu0 0.0
    %v6600 = vand.u32 %v6237, 4294901760
    %6601 = vmatpush1.msra.mxu0 %v6600
    %6602 = vmatprep.subr.mxu0 0.0
    %v6603 = vand.u32 %v6238, 4294901760
    %6604 = vmatpush1.msra.mxu0 %v6603
    %6605 = vmatprep.subr.mxu0 0.0
    %v6606 = vand.u32 %v6239, 4294901760
    %6607 = vmatpush1.msra.mxu0 %v6606
    %6608 = vmatprep.subr.mxu0 0.0
    %v6609 = vand.u32 %v6240, 4294901760
    %6610 = vmatpush1.msra.mxu0 %v6609
    %6611 = vmatprep.subr.mxu0 0.0
    %v6612 = vand.u32 %v6250, 4294901760
    %6613 = vmatpush1.msra.mxu0 %v6612
    %6614 = vmatprep.subr.mxu0 0.0
    %6615 = vmatpush1.msra.mxu0 0.0
    %6616 = vmatprep.subr.mxu0 0.0
    %6617 = vmatpush1.msra.mxu0 0.0
    %6618 = vmatprep.subr.mxu0 0.0
    %6619 = vmatpush1.msra.mxu0 0.0
    %6620 = vmatprep.subr.mxu0 0.0
    %6621 = vmatpush1.msra.mxu0 0.0
    %6622 = vmatprep.subr.mxu0 0.0
    %6623 = vmatpush1.msra.mxu0 0.0
    %6624 = vmatprep.subr.mxu0 0.0
    %6625 = vmatpush1.msra.mxu0 0.0
    %6626 = vmatprep.subr.mxu0 0.0
    %6627 = vmatpush1.msra.mxu0 0.0
    %6628 = vmatprep.subr.mxu0 0.0
    %6629 = vmatpush1.msra.mxu0 0.0
    %6630 = vmatprep.subr.mxu0 0.0
    %6631 = vmatpush1.msra.mxu0 0.0
    %6632 = vmatprep.subr.mxu0 0.0
    %6633 = vmatpush1.msra.mxu0 0.0
    %6634 = vmatprep.subr.mxu0 0.0
    %6635 = vmatpush1.msra.mxu0 0.0
    %6636 = vmatprep.subr.mxu0 0.0
    %6637 = vmatpush1.msra.mxu0 0.0
    %6638 = vmatprep.subr.mxu0 0.0
    %6639 = vmatpush1.msra.mxu0 0.0
    %6640 = vmatprep.subr.mxu0 0.0
    %6641 = vmatpush1.msra.mxu0 0.0
    %6642 = vmatprep.subr.mxu0 0.0
    %6643 = vmatpush1.msra.mxu0 0.0
    %6644 = vmatprep.subr.mxu0 0.0
    %6645 = vmatpush1.msra.mxu0 0.0
    %6646 = vmatprep.subr.mxu0 0.0
    %6647 = vmatpush1.msra.mxu0 0.0
    %6648 = vmatprep.subr.mxu0 0.0
    %6649 = vmatpush1.msra.mxu0 0.0
    %6650 = vmatprep.subr.mxu0 0.0
    %6651 = vmatpush1.msra.mxu0 0.0
    %6652 = vmatprep.subr.mxu0 0.0
    %6653 = vmatpush1.msra.mxu0 0.0
    %6654 = vmatprep.subr.mxu0 0.0
    %6655 = vmatpush1.msra.mxu0 0.0
    %6656 = vmatprep.mubr.f32.mxu0 0.0
    %v6657 = vand.u32 %v6245, 4294901760
    %v6658 = vsub.f32 %v6245, %v6657
    %v6659 = vand.u32 %v6658, 4294901760
    %6660 = vmatmul.mubr.f32.gmra.mrb[0].mxu0 %v6659
    %v6661 = vpop.f32.mrb[0].mxu0
    %v6662 = vadd.f32 %v6571, %v6661
    %v6663 = vpop.f32.mrb[0].mxu0
    %6664 = vmatprep.mubr.f32.mxu0 0.0
    %v6665 = vand.u32 %v6247, 4294901760
    %v6666 = vsub.f32 %v6247, %v6665
    %v6667 = vand.u32 %v6666, 4294901760
    %6668 = vmatmul.mubr.f32.gmra.mrb[0].mxu0 %v6667
    %v6669 = vpop.f32.mrb[0].mxu0
    %v6670 = vadd.f32 %v6578, %v6669
    %v6671 = vpop.f32.mrb[0].mxu0
    %6672 = vdwg.mxu0
    %6673 = vmatprep.subr.mxu0 0.0
    %v6674 = vand.u32 %v6231, 4294901760
    %v6675 = vsub.f32 %v6231, %v6674
    %v6676 = vand.u32 %v6675, 4294901760
    %6677 = vmatpush1.msra.mxu0 %v6676
    %6678 = vmatprep.subr.mxu0 0.0
    %v6679 = vand.u32 %v6232, 4294901760
    %v6680 = vsub.f32 %v6232, %v6679
    %v6681 = vand.u32 %v6680, 4294901760
    %6682 = vmatpush1.msra.mxu0 %v6681
    %6683 = vmatprep.subr.mxu0 0.0
    %v6684 = vand.u32 %v6233, 4294901760
    %v6685 = vsub.f32 %v6233, %v6684
    %v6686 = vand.u32 %v6685, 4294901760
    %6687 = vmatpush1.msra.mxu0 %v6686
    %6688 = vmatprep.subr.mxu0 0.0
    %v6689 = vand.u32 %v6234, 4294901760
    %v6690 = vsub.f32 %v6234, %v6689
    %v6691 = vand.u32 %v6690, 4294901760
    %6692 = vmatpush1.msra.mxu0 %v6691
    %6693 = vmatprep.subr.mxu0 0.0
    %v6694 = vand.u32 %v6235, 4294901760
    %v6695 = vsub.f32 %v6235, %v6694
    %v6696 = vand.u32 %v6695, 4294901760
    %6697 = vmatpush1.msra.mxu0 %v6696
    %6698 = vmatprep.subr.mxu0 0.0
    %v6699 = vand.u32 %v6236, 4294901760
    %v6700 = vsub.f32 %v6236, %v6699
    %v6701 = vand.u32 %v6700, 4294901760
    %6702 = vmatpush1.msra.mxu0 %v6701
    %6703 = vmatprep.subr.mxu0 0.0
    %v6704 = vand.u32 %v6237, 4294901760
    %v6705 = vsub.f32 %v6237, %v6704
    %v6706 = vand.u32 %v6705, 4294901760
    %6707 = vmatpush1.msra.mxu0 %v6706
    %6708 = vmatprep.subr.mxu0 0.0
    %v6709 = vand.u32 %v6238, 4294901760
    %v6710 = vsub.f32 %v6238, %v6709
    %v6711 = vand.u32 %v6710, 4294901760
    %6712 = vmatpush1.msra.mxu0 %v6711
    %6713 = vmatprep.subr.mxu0 0.0
    %v6714 = vand.u32 %v6239, 4294901760
    %v6715 = vsub.f32 %v6239, %v6714
    %v6716 = vand.u32 %v6715, 4294901760
    %6717 = vmatpush1.msra.mxu0 %v6716
    %6718 = vmatprep.subr.mxu0 0.0
    %v6719 = vand.u32 %v6240, 4294901760
    %v6720 = vsub.f32 %v6240, %v6719
    %v6721 = vand.u32 %v6720, 4294901760
    %6722 = vmatpush1.msra.mxu0 %v6721
    %6723 = vmatprep.subr.mxu0 0.0
    %v6724 = vand.u32 %v6250, 4294901760
    %v6725 = vsub.f32 %v6250, %v6724
    %v6726 = vand.u32 %v6725, 4294901760
    %6727 = vmatpush1.msra.mxu0 %v6726
    %6728 = vmatprep.subr.mxu0 0.0
    %6729 = vmatpush1.msra.mxu0 0.0
    %6730 = vmatprep.subr.mxu0 0.0
    %6731 = vmatpush1.msra.mxu0 0.0
    %6732 = vmatprep.subr.mxu0 0.0
    %6733 = vmatpush1.msra.mxu0 0.0
    %6734 = vmatprep.subr.mxu0 0.0
    %6735 = vmatpush1.msra.mxu0 0.0
    %6736 = vmatprep.subr.mxu0 0.0
    %6737 = vmatpush1.msra.mxu0 0.0
    %6738 = vmatprep.subr.mxu0 0.0
    %6739 = vmatpush1.msra.mxu0 0.0
    %6740 = vmatprep.subr.mxu0 0.0
    %6741 = vmatpush1.msra.mxu0 0.0
    %6742 = vmatprep.subr.mxu0 0.0
    %6743 = vmatpush1.msra.mxu0 0.0
    %6744 = vmatprep.subr.mxu0 0.0
    %6745 = vmatpush1.msra.mxu0 0.0
    %6746 = vmatprep.subr.mxu0 0.0
    %6747 = vmatpush1.msra.mxu0 0.0
    %6748 = vmatprep.subr.mxu0 0.0
    %6749 = vmatpush1.msra.mxu0 0.0
    %6750 = vmatprep.subr.mxu0 0.0
    %6751 = vmatpush1.msra.mxu0 0.0
    %6752 = vmatprep.subr.mxu0 0.0
    %6753 = vmatpush1.msra.mxu0 0.0
    %6754 = vmatprep.subr.mxu0 0.0
    %6755 = vmatpush1.msra.mxu0 0.0
    %6756 = vmatprep.subr.mxu0 0.0
    %6757 = vmatpush1.msra.mxu0 0.0
    %6758 = vmatprep.subr.mxu0 0.0
    %6759 = vmatpush1.msra.mxu0 0.0
    %6760 = vmatprep.subr.mxu0 0.0
    %6761 = vmatpush1.msra.mxu0 0.0
    %6762 = vmatprep.subr.mxu0 0.0
    %6763 = vmatpush1.msra.mxu0 0.0
    %6764 = vmatprep.subr.mxu0 0.0
    %6765 = vmatpush1.msra.mxu0 0.0
    %6766 = vmatprep.subr.mxu0 0.0
    %6767 = vmatpush1.msra.mxu0 0.0
    %6768 = vmatprep.subr.mxu0 0.0
    %6769 = vmatpush1.msra.mxu0 0.0
    %6770 = vmatprep.mubr.f32.mxu0 0.0
    %v6771 = vand.u32 %v6245, 4294901760
    %6772 = vmatmul.mubr.f32.gmra.mrb[0].mxu0 %v6771
    %v6773 = vpop.f32.mrb[0].mxu0
    %v6774 = vadd.f32 %v6662, %v6773
    %v6775 = vpop.f32.mrb[0].mxu0
    %6776 = vmatprep.mubr.f32.mxu0 0.0
    %v6777 = vand.u32 %v6247, 4294901760
    %6778 = vmatmul.mubr.f32.gmra.mrb[0].mxu0 %v6777
    %v6779 = vpop.f32.mrb[0].mxu0
    %v6780 = vadd.f32 %v6670, %v6779
    %v6781 = vpop.f32.mrb[0].mxu0
    %6782 = vdwg.mxu0
    %6783 = vmatprep.subr.mxu0 0.0
    %v6784 = vand.u32 %v6231, 4294901760
    %6785 = vmatpush1.msra.mxu0 %v6784
    %6786 = vmatprep.subr.mxu0 0.0
    %v6787 = vand.u32 %v6232, 4294901760
    %6788 = vmatpush1.msra.mxu0 %v6787
    %6789 = vmatprep.subr.mxu0 0.0
    %v6790 = vand.u32 %v6233, 4294901760
    %6791 = vmatpush1.msra.mxu0 %v6790
    %6792 = vmatprep.subr.mxu0 0.0
    %v6793 = vand.u32 %v6234, 4294901760
    %6794 = vmatpush1.msra.mxu0 %v6793
    %6795 = vmatprep.subr.mxu0 0.0
    %v6796 = vand.u32 %v6235, 4294901760
    %6797 = vmatpush1.msra.mxu0 %v6796
    %6798 = vmatprep.subr.mxu0 0.0
    %v6799 = vand.u32 %v6236, 4294901760
    %6800 = vmatpush1.msra.mxu0 %v6799
    %6801 = vmatprep.subr.mxu0 0.0
    %v6802 = vand.u32 %v6237, 4294901760
    %6803 = vmatpush1.msra.mxu0 %v6802
    %6804 = vmatprep.subr.mxu0 0.0
    %v6805 = vand.u32 %v6238, 4294901760
    %6806 = vmatpush1.msra.mxu0 %v6805
    %6807 = vmatprep.subr.mxu0 0.0
    %v6808 = vand.u32 %v6239, 4294901760
    %6809 = vmatpush1.msra.mxu0 %v6808
    %6810 = vmatprep.subr.mxu0 0.0
    %v6811 = vand.u32 %v6240, 4294901760
    %6812 = vmatpush1.msra.mxu0 %v6811
    %6813 = vmatprep.subr.mxu0 0.0
    %v6814 = vand.u32 %v6250, 4294901760
    %6815 = vmatpush1.msra.mxu0 %v6814
    %6816 = vmatprep.subr.mxu0 0.0
    %6817 = vmatpush1.msra.mxu0 0.0
    %6818 = vmatprep.subr.mxu0 0.0
    %6819 = vmatpush1.msra.mxu0 0.0
    %6820 = vmatprep.subr.mxu0 0.0
    %6821 = vmatpush1.msra.mxu0 0.0
    %6822 = vmatprep.subr.mxu0 0.0
    %6823 = vmatpush1.msra.mxu0 0.0
    %6824 = vmatprep.subr.mxu0 0.0
    %6825 = vmatpush1.msra.mxu0 0.0
    %6826 = vmatprep.subr.mxu0 0.0
    %6827 = vmatpush1.msra.mxu0 0.0
    %6828 = vmatprep.subr.mxu0 0.0
    %6829 = vmatpush1.msra.mxu0 0.0
    %6830 = vmatprep.subr.mxu0 0.0
    %6831 = vmatpush1.msra.mxu0 0.0
    %6832 = vmatprep.subr.mxu0 0.0
    %6833 = vmatpush1.msra.mxu0 0.0
    %6834 = vmatprep.subr.mxu0 0.0
    %6835 = vmatpush1.msra.mxu0 0.0
    %6836 = vmatprep.subr.mxu0 0.0
    %6837 = vmatpush1.msra.mxu0 0.0
    %6838 = vmatprep.subr.mxu0 0.0
    %6839 = vmatpush1.msra.mxu0 0.0
    %6840 = vmatprep.subr.mxu0 0.0
    %6841 = vmatpush1.msra.mxu0 0.0
    %6842 = vmatprep.subr.mxu0 0.0
    %6843 = vmatpush1.msra.mxu0 0.0
    %6844 = vmatprep.subr.mxu0 0.0
    %6845 = vmatpush1.msra.mxu0 0.0
    %6846 = vmatprep.subr.mxu0 0.0
    %6847 = vmatpush1.msra.mxu0 0.0
    %6848 = vmatprep.subr.mxu0 0.0
    %6849 = vmatpush1.msra.mxu0 0.0
    %6850 = vmatprep.subr.mxu0 0.0
    %6851 = vmatpush1.msra.mxu0 0.0
    %6852 = vmatprep.subr.mxu0 0.0
    %6853 = vmatpush1.msra.mxu0 0.0
    %6854 = vmatprep.subr.mxu0 0.0
    %6855 = vmatpush1.msra.mxu0 0.0
    %6856 = vmatprep.subr.mxu0 0.0
    %6857 = vmatpush1.msra.mxu0 0.0
    %6858 = vmatprep.mubr.f32.mxu0 0.0
    %v6859 = vand.u32 %v6245, 4294901760
    %6860 = vmatmul.mubr.f32.gmra.mrb[0].mxu0 %v6859
    %v6861 = vpop.f32.mrb[0].mxu0
    %v6862 = vadd.f32 %v6774, %v6861
    %v6863 = vpop.f32.mrb[0].mxu0
    %6864 = vmatprep.mubr.f32.mxu0 0.0
    %v6865 = vand.u32 %v6247, 4294901760
    %6866 = vmatmul.mubr.f32.gmra.mrb[0].mxu0 %v6865
    %v6867 = vpop.f32.mrb[0].mxu0
    %v6868 = vadd.f32 %v6780, %v6867
    %v6869 = vpop.f32.mrb[0].mxu0
    %6870 = vdwg.mxu0
    %v6871 = vsel %vm4908, %v4921, 0
    %v6873 = vsel %vm4908, %v4922, 0
    %v6876 = vsel %vm1511, %v4933, 0
    %6878 = vmatprep.subr.mxu0 0.0
    %v6879 = vand.u32 %v4923, 4294901760
    %6880 = vmatpush1.msra.mxu0 %v6879
    %6881 = vmatprep.subr.mxu0 0.0
    %v6882 = vand.u32 %v4924, 4294901760
    %6883 = vmatpush1.msra.mxu0 %v6882
    %6884 = vmatprep.subr.mxu0 0.0
    %v6885 = vand.u32 %v4925, 4294901760
    %6886 = vmatpush1.msra.mxu0 %v6885
    %6887 = vmatprep.subr.mxu0 0.0
    %v6888 = vand.u32 %v4926, 4294901760
    %6889 = vmatpush1.msra.mxu0 %v6888
    %6890 = vmatprep.subr.mxu0 0.0
    %v6891 = vand.u32 %v4927, 4294901760
    %6892 = vmatpush1.msra.mxu0 %v6891
    %6893 = vmatprep.subr.mxu0 0.0
    %v6894 = vand.u32 %v4928, 4294901760
    %6895 = vmatpush1.msra.mxu0 %v6894
    %6896 = vmatprep.subr.mxu0 0.0
    %v6897 = vand.u32 %v4929, 4294901760
    %6898 = vmatpush1.msra.mxu0 %v6897
    %6899 = vmatprep.subr.mxu0 0.0
    %v6900 = vand.u32 %v4930, 4294901760
    %6901 = vmatpush1.msra.mxu0 %v6900
    %6902 = vmatprep.subr.mxu0 0.0
    %v6903 = vand.u32 %v4931, 4294901760
    %6904 = vmatpush1.msra.mxu0 %v6903
    %6905 = vmatprep.subr.mxu0 0.0
    %v6906 = vand.u32 %v4932, 4294901760
    %6907 = vmatpush1.msra.mxu0 %v6906
    %6908 = vmatprep.subr.mxu0 0.0
    %v6909 = vand.u32 %v6876, 4294901760
    %6910 = vmatpush1.msra.mxu0 %v6909
    %6911 = vmatprep.subr.mxu0 0.0
    %6912 = vmatpush1.msra.mxu0 0.0
    %6913 = vmatprep.subr.mxu0 0.0
    %6914 = vmatpush1.msra.mxu0 0.0
    %6915 = vmatprep.subr.mxu0 0.0
    %6916 = vmatpush1.msra.mxu0 0.0
    %6917 = vmatprep.subr.mxu0 0.0
    %6918 = vmatpush1.msra.mxu0 0.0
    %6919 = vmatprep.subr.mxu0 0.0
    %6920 = vmatpush1.msra.mxu0 0.0
    %6921 = vmatprep.subr.mxu0 0.0
    %6922 = vmatpush1.msra.mxu0 0.0
    %6923 = vmatprep.subr.mxu0 0.0
    %6924 = vmatpush1.msra.mxu0 0.0
    %6925 = vmatprep.subr.mxu0 0.0
    %6926 = vmatpush1.msra.mxu0 0.0
    %6927 = vmatprep.subr.mxu0 0.0
    %6928 = vmatpush1.msra.mxu0 0.0
    %6929 = vmatprep.subr.mxu0 0.0
    %6930 = vmatpush1.msra.mxu0 0.0
    %6931 = vmatprep.subr.mxu0 0.0
    %6932 = vmatpush1.msra.mxu0 0.0
    %6933 = vmatprep.subr.mxu0 0.0
    %6934 = vmatpush1.msra.mxu0 0.0
    %6935 = vmatprep.subr.mxu0 0.0
    %6936 = vmatpush1.msra.mxu0 0.0
    %6937 = vmatprep.subr.mxu0 0.0
    %6938 = vmatpush1.msra.mxu0 0.0
    %6939 = vmatprep.subr.mxu0 0.0
    %6940 = vmatpush1.msra.mxu0 0.0
    %6941 = vmatprep.subr.mxu0 0.0
    %6942 = vmatpush1.msra.mxu0 0.0
    %6943 = vmatprep.subr.mxu0 0.0
    %6944 = vmatpush1.msra.mxu0 0.0
    %6945 = vmatprep.subr.mxu0 0.0
    %6946 = vmatpush1.msra.mxu0 0.0
    %6947 = vmatprep.subr.mxu0 0.0
    %6948 = vmatpush1.msra.mxu0 0.0
    %6949 = vmatprep.subr.mxu0 0.0
    %6950 = vmatpush1.msra.mxu0 0.0
    %6951 = vmatprep.subr.mxu0 0.0
    %6952 = vmatpush1.msra.mxu0 0.0
    %6953 = vmatprep.mubr.f32.mxu0 0.0
    %v6954 = vand.u32 %v6871, 4294901760
    %v6955 = vsub.f32 %v6871, %v6954
    %v6956 = vand.u32 %v6955, 4294901760
    %v6957 = vsub.f32 %v6955, %v6956
    %v6958 = vand.u32 %v6957, 4294901760
    %6959 = vmatmul.mubr.f32.gmra.mrb[0].mxu0 %v6958
    %v6960 = vpop.f32.mrb[0].mxu0
    %v6961 = vadd.f32 %v5568, %v6960
    %v6962 = vpop.f32.mrb[0].mxu0
    %6963 = vmatprep.mubr.f32.mxu0 0.0
    %v6964 = vand.u32 %v6873, 4294901760
    %v6965 = vsub.f32 %v6873, %v6964
    %v6966 = vand.u32 %v6965, 4294901760
    %v6967 = vsub.f32 %v6965, %v6966
    %v6968 = vand.u32 %v6967, 4294901760
    %6969 = vmatmul.mubr.f32.gmra.mrb[0].mxu0 %v6968
    %v6970 = vpop.f32.mrb[0].mxu0
    %v6971 = vadd.f32 %v5574, %v6970
    %v6972 = vpop.f32.mrb[0].mxu0
    %6973 = vdwg.mxu0
    %6974 = vmatprep.subr.mxu0 0.0
    %v6975 = vand.u32 %v4923, 4294901760
    %v6976 = vsub.f32 %v4923, %v6975
    %v6977 = vand.u32 %v6976, 4294901760
    %v6978 = vsub.f32 %v6976, %v6977
    %v6979 = vand.u32 %v6978, 4294901760
    %6980 = vmatpush1.msra.mxu0 %v6979
    %6981 = vmatprep.subr.mxu0 0.0
    %v6982 = vand.u32 %v4924, 4294901760
    %v6983 = vsub.f32 %v4924, %v6982
    %v6984 = vand.u32 %v6983, 4294901760
    %v6985 = vsub.f32 %v6983, %v6984
    %v6986 = vand.u32 %v6985, 4294901760
    %6987 = vmatpush1.msra.mxu0 %v6986
    %6988 = vmatprep.subr.mxu0 0.0
    %v6989 = vand.u32 %v4925, 4294901760
    %v6990 = vsub.f32 %v4925, %v6989
    %v6991 = vand.u32 %v6990, 4294901760
    %v6992 = vsub.f32 %v6990, %v6991
    %v6993 = vand.u32 %v6992, 4294901760
    %6994 = vmatpush1.msra.mxu0 %v6993
    %6995 = vmatprep.subr.mxu0 0.0
    %v6996 = vand.u32 %v4926, 4294901760
    %v6997 = vsub.f32 %v4926, %v6996
    %v6998 = vand.u32 %v6997, 4294901760
    %v6999 = vsub.f32 %v6997, %v6998
    %v7000 = vand.u32 %v6999, 4294901760
    %7001 = vmatpush1.msra.mxu0 %v7000
    %7002 = vmatprep.subr.mxu0 0.0
    %v7003 = vand.u32 %v4927, 4294901760
    %v7004 = vsub.f32 %v4927, %v7003
    %v7005 = vand.u32 %v7004, 4294901760
    %v7006 = vsub.f32 %v7004, %v7005
    %v7007 = vand.u32 %v7006, 4294901760
    %7008 = vmatpush1.msra.mxu0 %v7007
    %7009 = vmatprep.subr.mxu0 0.0
    %v7010 = vand.u32 %v4928, 4294901760
    %v7011 = vsub.f32 %v4928, %v7010
    %v7012 = vand.u32 %v7011, 4294901760
    %v7013 = vsub.f32 %v7011, %v7012
    %v7014 = vand.u32 %v7013, 4294901760
    %7015 = vmatpush1.msra.mxu0 %v7014
    %7016 = vmatprep.subr.mxu0 0.0
    %v7017 = vand.u32 %v4929, 4294901760
    %v7018 = vsub.f32 %v4929, %v7017
    %v7019 = vand.u32 %v7018, 4294901760
    %v7020 = vsub.f32 %v7018, %v7019
    %v7021 = vand.u32 %v7020, 4294901760
    %7022 = vmatpush1.msra.mxu0 %v7021
    %7023 = vmatprep.subr.mxu0 0.0
    %v7024 = vand.u32 %v4930, 4294901760
    %v7025 = vsub.f32 %v4930, %v7024
    %v7026 = vand.u32 %v7025, 4294901760
    %v7027 = vsub.f32 %v7025, %v7026
    %v7028 = vand.u32 %v7027, 4294901760
    %7029 = vmatpush1.msra.mxu0 %v7028
    %7030 = vmatprep.subr.mxu0 0.0
    %v7031 = vand.u32 %v4931, 4294901760
    %v7032 = vsub.f32 %v4931, %v7031
    %v7033 = vand.u32 %v7032, 4294901760
    %v7034 = vsub.f32 %v7032, %v7033
    %v7035 = vand.u32 %v7034, 4294901760
    %7036 = vmatpush1.msra.mxu0 %v7035
    %7037 = vmatprep.subr.mxu0 0.0
    %v7038 = vand.u32 %v4932, 4294901760
    %v7039 = vsub.f32 %v4932, %v7038
    %v7040 = vand.u32 %v7039, 4294901760
    %v7041 = vsub.f32 %v7039, %v7040
    %v7042 = vand.u32 %v7041, 4294901760
    %7043 = vmatpush1.msra.mxu0 %v7042
    %7044 = vmatprep.subr.mxu0 0.0
    %v7045 = vand.u32 %v6876, 4294901760
    %v7046 = vsub.f32 %v6876, %v7045
    %v7047 = vand.u32 %v7046, 4294901760
    %v7048 = vsub.f32 %v7046, %v7047
    %v7049 = vand.u32 %v7048, 4294901760
    %7050 = vmatpush1.msra.mxu0 %v7049
    %7051 = vmatprep.subr.mxu0 0.0
    %7052 = vmatpush1.msra.mxu0 0.0
    %7053 = vmatprep.subr.mxu0 0.0
    %7054 = vmatpush1.msra.mxu0 0.0
    %7055 = vmatprep.subr.mxu0 0.0
    %7056 = vmatpush1.msra.mxu0 0.0
    %7057 = vmatprep.subr.mxu0 0.0
    %7058 = vmatpush1.msra.mxu0 0.0
    %7059 = vmatprep.subr.mxu0 0.0
    %7060 = vmatpush1.msra.mxu0 0.0
    %7061 = vmatprep.subr.mxu0 0.0
    %7062 = vmatpush1.msra.mxu0 0.0
    %7063 = vmatprep.subr.mxu0 0.0
    %7064 = vmatpush1.msra.mxu0 0.0
    %7065 = vmatprep.subr.mxu0 0.0
    %7066 = vmatpush1.msra.mxu0 0.0
    %7067 = vmatprep.subr.mxu0 0.0
    %7068 = vmatpush1.msra.mxu0 0.0
    %7069 = vmatprep.subr.mxu0 0.0
    %7070 = vmatpush1.msra.mxu0 0.0
    %7071 = vmatprep.subr.mxu0 0.0
    %7072 = vmatpush1.msra.mxu0 0.0
    %7073 = vmatprep.subr.mxu0 0.0
    %7074 = vmatpush1.msra.mxu0 0.0
    %7075 = vmatprep.subr.mxu0 0.0
    %7076 = vmatpush1.msra.mxu0 0.0
    %7077 = vmatprep.subr.mxu0 0.0
    %7078 = vmatpush1.msra.mxu0 0.0
    %7079 = vmatprep.subr.mxu0 0.0
    %7080 = vmatpush1.msra.mxu0 0.0
    %7081 = vmatprep.subr.mxu0 0.0
    %7082 = vmatpush1.msra.mxu0 0.0
    %7083 = vmatprep.subr.mxu0 0.0
    %7084 = vmatpush1.msra.mxu0 0.0
    %7085 = vmatprep.subr.mxu0 0.0
    %7086 = vmatpush1.msra.mxu0 0.0
    %7087 = vmatprep.subr.mxu0 0.0
    %7088 = vmatpush1.msra.mxu0 0.0
    %7089 = vmatprep.subr.mxu0 0.0
    %7090 = vmatpush1.msra.mxu0 0.0
    %7091 = vmatprep.subr.mxu0 0.0
    %7092 = vmatpush1.msra.mxu0 0.0
    %7093 = vmatprep.mubr.f32.mxu0 0.0
    %v7094 = vand.u32 %v6871, 4294901760
    %7095 = vmatmul.mubr.f32.gmra.mrb[0].mxu0 %v7094
    %v7096 = vpop.f32.mrb[0].mxu0
    %v7097 = vadd.f32 %v6961, %v7096
    %v7098 = vpop.f32.mrb[0].mxu0
    %7099 = vmatprep.mubr.f32.mxu0 0.0
    %v7100 = vand.u32 %v6873, 4294901760
    %7101 = vmatmul.mubr.f32.gmra.mrb[0].mxu0 %v7100
    %v7102 = vpop.f32.mrb[0].mxu0
    %v7103 = vadd.f32 %v6971, %v7102
    %v7104 = vpop.f32.mrb[0].mxu0
    %7105 = vdwg.mxu0
    %7106 = vmatprep.subr.mxu0 0.0
    %v7107 = vand.u32 %v4923, 4294901760
    %v7108 = vsub.f32 %v4923, %v7107
    %7109 = vmatpush1.msra.mxu0 %v7108
    %7110 = vmatprep.subr.mxu0 0.0
    %v7111 = vand.u32 %v4924, 4294901760
    %v7112 = vsub.f32 %v4924, %v7111
    %7113 = vmatpush1.msra.mxu0 %v7112
    %7114 = vmatprep.subr.mxu0 0.0
    %v7115 = vand.u32 %v4925, 4294901760
    %v7116 = vsub.f32 %v4925, %v7115
    %7117 = vmatpush1.msra.mxu0 %v7116
    %7118 = vmatprep.subr.mxu0 0.0
    %v7119 = vand.u32 %v4926, 4294901760
    %v7120 = vsub.f32 %v4926, %v7119
    %7121 = vmatpush1.msra.mxu0 %v7120
    %7122 = vmatprep.subr.mxu0 0.0
    %v7123 = vand.u32 %v4927, 4294901760
    %v7124 = vsub.f32 %v4927, %v7123
    %7125 = vmatpush1.msra.mxu0 %v7124
    %7126 = vmatprep.subr.mxu0 0.0
    %v7127 = vand.u32 %v4928, 4294901760
    %v7128 = vsub.f32 %v4928, %v7127
    %7129 = vmatpush1.msra.mxu0 %v7128
    %7130 = vmatprep.subr.mxu0 0.0
    %v7131 = vand.u32 %v4929, 4294901760
    %v7132 = vsub.f32 %v4929, %v7131
    %7133 = vmatpush1.msra.mxu0 %v7132
    %7134 = vmatprep.subr.mxu0 0.0
    %v7135 = vand.u32 %v4930, 4294901760
    %v7136 = vsub.f32 %v4930, %v7135
    %7137 = vmatpush1.msra.mxu0 %v7136
    %7138 = vmatprep.subr.mxu0 0.0
    %v7139 = vand.u32 %v4931, 4294901760
    %v7140 = vsub.f32 %v4931, %v7139
    %7141 = vmatpush1.msra.mxu0 %v7140
    %7142 = vmatprep.subr.mxu0 0.0
    %v7143 = vand.u32 %v4932, 4294901760
    %v7144 = vsub.f32 %v4932, %v7143
    %7145 = vmatpush1.msra.mxu0 %v7144
    %7146 = vmatprep.subr.mxu0 0.0
    %v7147 = vand.u32 %v6876, 4294901760
    %v7148 = vsub.f32 %v6876, %v7147
    %7149 = vmatpush1.msra.mxu0 %v7148
    %7150 = vmatprep.subr.mxu0 0.0
    %7151 = vmatpush1.msra.mxu0 0.0
    %7152 = vmatprep.subr.mxu0 0.0
    %7153 = vmatpush1.msra.mxu0 0.0
    %7154 = vmatprep.subr.mxu0 0.0
    %7155 = vmatpush1.msra.mxu0 0.0
    %7156 = vmatprep.subr.mxu0 0.0
    %7157 = vmatpush1.msra.mxu0 0.0
    %7158 = vmatprep.subr.mxu0 0.0
    %7159 = vmatpush1.msra.mxu0 0.0
    %7160 = vmatprep.subr.mxu0 0.0
    %7161 = vmatpush1.msra.mxu0 0.0
    %7162 = vmatprep.subr.mxu0 0.0
    %7163 = vmatpush1.msra.mxu0 0.0
    %7164 = vmatprep.subr.mxu0 0.0
    %7165 = vmatpush1.msra.mxu0 0.0
    %7166 = vmatprep.subr.mxu0 0.0
    %7167 = vmatpush1.msra.mxu0 0.0
    %7168 = vmatprep.subr.mxu0 0.0
    %7169 = vmatpush1.msra.mxu0 0.0
    %7170 = vmatprep.subr.mxu0 0.0
    %7171 = vmatpush1.msra.mxu0 0.0
    %7172 = vmatprep.subr.mxu0 0.0
    %7173 = vmatpush1.msra.mxu0 0.0
    %7174 = vmatprep.subr.mxu0 0.0
    %7175 = vmatpush1.msra.mxu0 0.0
    %7176 = vmatprep.subr.mxu0 0.0
    %7177 = vmatpush1.msra.mxu0 0.0
    %7178 = vmatprep.subr.mxu0 0.0
    %7179 = vmatpush1.msra.mxu0 0.0
    %7180 = vmatprep.subr.mxu0 0.0
    %7181 = vmatpush1.msra.mxu0 0.0
    %7182 = vmatprep.subr.mxu0 0.0
    %7183 = vmatpush1.msra.mxu0 0.0
    %7184 = vmatprep.subr.mxu0 0.0
    %7185 = vmatpush1.msra.mxu0 0.0
    %7186 = vmatprep.subr.mxu0 0.0
    %7187 = vmatpush1.msra.mxu0 0.0
    %7188 = vmatprep.subr.mxu0 0.0
    %7189 = vmatpush1.msra.mxu0 0.0
    %7190 = vmatprep.subr.mxu0 0.0
    %7191 = vmatpush1.msra.mxu0 0.0
    %7192 = vmatprep.mubr.f32.mxu0 0.0
    %v7193 = vand.u32 %v6871, 4294901760
    %v7194 = vsub.f32 %v6871, %v7193
    %7195 = vmatmul.mubr.f32.gmra.mrb[0].mxu0 %v7194
    %v7196 = vpop.f32.mrb[0].mxu0
    %v7197 = vadd.f32 %v7097, %v7196
    %v7198 = vpop.f32.mrb[0].mxu0
    %7199 = vmatprep.mubr.f32.mxu0 0.0
    %v7200 = vand.u32 %v6873, 4294901760
    %v7201 = vsub.f32 %v6873, %v7200
    %7202 = vmatmul.mubr.f32.gmra.mrb[0].mxu0 %v7201
    %v7203 = vpop.f32.mrb[0].mxu0
    %v7204 = vadd.f32 %v7103, %v7203
    %v7205 = vpop.f32.mrb[0].mxu0
    %7206 = vdwg.mxu0
    %7207 = vmatprep.subr.mxu0 0.0
    %v7208 = vand.u32 %v4923, 4294901760
    %7209 = vmatpush1.msra.mxu0 %v7208
    %7210 = vmatprep.subr.mxu0 0.0
    %v7211 = vand.u32 %v4924, 4294901760
    %7212 = vmatpush1.msra.mxu0 %v7211
    %7213 = vmatprep.subr.mxu0 0.0
    %v7214 = vand.u32 %v4925, 4294901760
    %7215 = vmatpush1.msra.mxu0 %v7214
    %7216 = vmatprep.subr.mxu0 0.0
    %v7217 = vand.u32 %v4926, 4294901760
    %7218 = vmatpush1.msra.mxu0 %v7217
    %7219 = vmatprep.subr.mxu0 0.0
    %v7220 = vand.u32 %v4927, 4294901760
    %7221 = vmatpush1.msra.mxu0 %v7220
    %7222 = vmatprep.subr.mxu0 0.0
    %v7223 = vand.u32 %v4928, 4294901760
    %7224 = vmatpush1.msra.mxu0 %v7223
    %7225 = vmatprep.subr.mxu0 0.0
    %v7226 = vand.u32 %v4929, 4294901760
    %7227 = vmatpush1.msra.mxu0 %v7226
    %7228 = vmatprep.subr.mxu0 0.0
    %v7229 = vand.u32 %v4930, 4294901760
    %7230 = vmatpush1.msra.mxu0 %v7229
    %7231 = vmatprep.subr.mxu0 0.0
    %v7232 = vand.u32 %v4931, 4294901760
    %7233 = vmatpush1.msra.mxu0 %v7232
    %7234 = vmatprep.subr.mxu0 0.0
    %v7235 = vand.u32 %v4932, 4294901760
    %7236 = vmatpush1.msra.mxu0 %v7235
    %7237 = vmatprep.subr.mxu0 0.0
    %v7238 = vand.u32 %v6876, 4294901760
    %7239 = vmatpush1.msra.mxu0 %v7238
    %7240 = vmatprep.subr.mxu0 0.0
    %7241 = vmatpush1.msra.mxu0 0.0
    %7242 = vmatprep.subr.mxu0 0.0
    %7243 = vmatpush1.msra.mxu0 0.0
    %7244 = vmatprep.subr.mxu0 0.0
    %7245 = vmatpush1.msra.mxu0 0.0
    %7246 = vmatprep.subr.mxu0 0.0
    %7247 = vmatpush1.msra.mxu0 0.0
    %7248 = vmatprep.subr.mxu0 0.0
    %7249 = vmatpush1.msra.mxu0 0.0
    %7250 = vmatprep.subr.mxu0 0.0
    %7251 = vmatpush1.msra.mxu0 0.0
    %7252 = vmatprep.subr.mxu0 0.0
    %7253 = vmatpush1.msra.mxu0 0.0
    %7254 = vmatprep.subr.mxu0 0.0
    %7255 = vmatpush1.msra.mxu0 0.0
    %7256 = vmatprep.subr.mxu0 0.0
    %7257 = vmatpush1.msra.mxu0 0.0
    %7258 = vmatprep.subr.mxu0 0.0
    %7259 = vmatpush1.msra.mxu0 0.0
    %7260 = vmatprep.subr.mxu0 0.0
    %7261 = vmatpush1.msra.mxu0 0.0
    %7262 = vmatprep.subr.mxu0 0.0
    %7263 = vmatpush1.msra.mxu0 0.0
    %7264 = vmatprep.subr.mxu0 0.0
    %7265 = vmatpush1.msra.mxu0 0.0
    %7266 = vmatprep.subr.mxu0 0.0
    %7267 = vmatpush1.msra.mxu0 0.0
    %7268 = vmatprep.subr.mxu0 0.0
    %7269 = vmatpush1.msra.mxu0 0.0
    %7270 = vmatprep.subr.mxu0 0.0
    %7271 = vmatpush1.msra.mxu0 0.0
    %7272 = vmatprep.subr.mxu0 0.0
    %7273 = vmatpush1.msra.mxu0 0.0
    %7274 = vmatprep.subr.mxu0 0.0
    %7275 = vmatpush1.msra.mxu0 0.0
    %7276 = vmatprep.subr.mxu0 0.0
    %7277 = vmatpush1.msra.mxu0 0.0
    %7278 = vmatprep.subr.mxu0 0.0
    %7279 = vmatpush1.msra.mxu0 0.0
    %7280 = vmatprep.subr.mxu0 0.0
    %7281 = vmatpush1.msra.mxu0 0.0
    %7282 = vmatprep.mubr.f32.mxu0 0.0
    %v7283 = vand.u32 %v6871, 4294901760
    %v7284 = vsub.f32 %v6871, %v7283
    %v7285 = vand.u32 %v7284, 4294901760
    %7286 = vmatmul.mubr.f32.gmra.mrb[0].mxu0 %v7285
    %v7287 = vpop.f32.mrb[0].mxu0
    %v7288 = vadd.f32 %v7197, %v7287
    %v7289 = vpop.f32.mrb[0].mxu0
    %7290 = vmatprep.mubr.f32.mxu0 0.0
    %v7291 = vand.u32 %v6873, 4294901760
    %v7292 = vsub.f32 %v6873, %v7291
    %v7293 = vand.u32 %v7292, 4294901760
    %7294 = vmatmul.mubr.f32.gmra.mrb[0].mxu0 %v7293
    %v7295 = vpop.f32.mrb[0].mxu0
    %v7296 = vadd.f32 %v7204, %v7295
    %v7297 = vpop.f32.mrb[0].mxu0
    %7298 = vdwg.mxu0
    %7299 = vmatprep.subr.mxu0 0.0
    %v7300 = vand.u32 %v4923, 4294901760
    %v7301 = vsub.f32 %v4923, %v7300
    %v7302 = vand.u32 %v7301, 4294901760
    %7303 = vmatpush1.msra.mxu0 %v7302
    %7304 = vmatprep.subr.mxu0 0.0
    %v7305 = vand.u32 %v4924, 4294901760
    %v7306 = vsub.f32 %v4924, %v7305
    %v7307 = vand.u32 %v7306, 4294901760
    %7308 = vmatpush1.msra.mxu0 %v7307
    %7309 = vmatprep.subr.mxu0 0.0
    %v7310 = vand.u32 %v4925, 4294901760
    %v7311 = vsub.f32 %v4925, %v7310
    %v7312 = vand.u32 %v7311, 4294901760
    %7313 = vmatpush1.msra.mxu0 %v7312
    %7314 = vmatprep.subr.mxu0 0.0
    %v7315 = vand.u32 %v4926, 4294901760
    %v7316 = vsub.f32 %v4926, %v7315
    %v7317 = vand.u32 %v7316, 4294901760
    %7318 = vmatpush1.msra.mxu0 %v7317
    %7319 = vmatprep.subr.mxu0 0.0
    %v7320 = vand.u32 %v4927, 4294901760
    %v7321 = vsub.f32 %v4927, %v7320
    %v7322 = vand.u32 %v7321, 4294901760
    %7323 = vmatpush1.msra.mxu0 %v7322
    %7324 = vmatprep.subr.mxu0 0.0
    %v7325 = vand.u32 %v4928, 4294901760
    %v7326 = vsub.f32 %v4928, %v7325
    %v7327 = vand.u32 %v7326, 4294901760
    %7328 = vmatpush1.msra.mxu0 %v7327
    %7329 = vmatprep.subr.mxu0 0.0
    %v7330 = vand.u32 %v4929, 4294901760
    %v7331 = vsub.f32 %v4929, %v7330
    %v7332 = vand.u32 %v7331, 4294901760
    %7333 = vmatpush1.msra.mxu0 %v7332
    %7334 = vmatprep.subr.mxu0 0.0
    %v7335 = vand.u32 %v4930, 4294901760
    %v7336 = vsub.f32 %v4930, %v7335
    %v7337 = vand.u32 %v7336, 4294901760
    %7338 = vmatpush1.msra.mxu0 %v7337
    %7339 = vmatprep.subr.mxu0 0.0
    %v7340 = vand.u32 %v4931, 4294901760
    %v7341 = vsub.f32 %v4931, %v7340
    %v7342 = vand.u32 %v7341, 4294901760
    %7343 = vmatpush1.msra.mxu0 %v7342
    %7344 = vmatprep.subr.mxu0 0.0
    %v7345 = vand.u32 %v4932, 4294901760
    %v7346 = vsub.f32 %v4932, %v7345
    %v7347 = vand.u32 %v7346, 4294901760
    %7348 = vmatpush1.msra.mxu0 %v7347
    %7349 = vmatprep.subr.mxu0 0.0
    %v7350 = vand.u32 %v6876, 4294901760
    %v7351 = vsub.f32 %v6876, %v7350
    %v7352 = vand.u32 %v7351, 4294901760
    %7353 = vmatpush1.msra.mxu0 %v7352
    %7354 = vmatprep.subr.mxu0 0.0
    %7355 = vmatpush1.msra.mxu0 0.0
    %7356 = vmatprep.subr.mxu0 0.0
    %7357 = vmatpush1.msra.mxu0 0.0
    %7358 = vmatprep.subr.mxu0 0.0
    %7359 = vmatpush1.msra.mxu0 0.0
    %7360 = vmatprep.subr.mxu0 0.0
    %7361 = vmatpush1.msra.mxu0 0.0
    %7362 = vmatprep.subr.mxu0 0.0
    %7363 = vmatpush1.msra.mxu0 0.0
    %7364 = vmatprep.subr.mxu0 0.0
    %7365 = vmatpush1.msra.mxu0 0.0
    %7366 = vmatprep.subr.mxu0 0.0
    %7367 = vmatpush1.msra.mxu0 0.0
    %7368 = vmatprep.subr.mxu0 0.0
    %7369 = vmatpush1.msra.mxu0 0.0
    %7370 = vmatprep.subr.mxu0 0.0
    %7371 = vmatpush1.msra.mxu0 0.0
    %7372 = vmatprep.subr.mxu0 0.0
    %7373 = vmatpush1.msra.mxu0 0.0
    %7374 = vmatprep.subr.mxu0 0.0
    %7375 = vmatpush1.msra.mxu0 0.0
    %7376 = vmatprep.subr.mxu0 0.0
    %7377 = vmatpush1.msra.mxu0 0.0
    %7378 = vmatprep.subr.mxu0 0.0
    %7379 = vmatpush1.msra.mxu0 0.0
    %7380 = vmatprep.subr.mxu0 0.0
    %7381 = vmatpush1.msra.mxu0 0.0
    %7382 = vmatprep.subr.mxu0 0.0
    %7383 = vmatpush1.msra.mxu0 0.0
    %7384 = vmatprep.subr.mxu0 0.0
    %7385 = vmatpush1.msra.mxu0 0.0
    %7386 = vmatprep.subr.mxu0 0.0
    %7387 = vmatpush1.msra.mxu0 0.0
    %7388 = vmatprep.subr.mxu0 0.0
    %7389 = vmatpush1.msra.mxu0 0.0
    %7390 = vmatprep.subr.mxu0 0.0
    %7391 = vmatpush1.msra.mxu0 0.0
    %7392 = vmatprep.subr.mxu0 0.0
    %7393 = vmatpush1.msra.mxu0 0.0
    %7394 = vmatprep.subr.mxu0 0.0
    %7395 = vmatpush1.msra.mxu0 0.0
    %7396 = vmatprep.mubr.f32.mxu0 0.0
    %v7397 = vand.u32 %v6871, 4294901760
    %7398 = vmatmul.mubr.f32.gmra.mrb[0].mxu0 %v7397
    %v7399 = vpop.f32.mrb[0].mxu0
    %v7400 = vadd.f32 %v7288, %v7399
    %v7401 = vpop.f32.mrb[0].mxu0
    %7402 = vmatprep.mubr.f32.mxu0 0.0
    %v7403 = vand.u32 %v6873, 4294901760
    %7404 = vmatmul.mubr.f32.gmra.mrb[0].mxu0 %v7403
    %v7405 = vpop.f32.mrb[0].mxu0
    %v7406 = vadd.f32 %v7296, %v7405
    %v7407 = vpop.f32.mrb[0].mxu0
    %7408 = vdwg.mxu0
    %7409 = vmatprep.subr.mxu0 0.0
    %v7410 = vand.u32 %v4923, 4294901760
    %7411 = vmatpush1.msra.mxu0 %v7410
    %7412 = vmatprep.subr.mxu0 0.0
    %v7413 = vand.u32 %v4924, 4294901760
    %7414 = vmatpush1.msra.mxu0 %v7413
    %7415 = vmatprep.subr.mxu0 0.0
    %v7416 = vand.u32 %v4925, 4294901760
    %7417 = vmatpush1.msra.mxu0 %v7416
    %7418 = vmatprep.subr.mxu0 0.0
    %v7419 = vand.u32 %v4926, 4294901760
    %7420 = vmatpush1.msra.mxu0 %v7419
    %7421 = vmatprep.subr.mxu0 0.0
    %v7422 = vand.u32 %v4927, 4294901760
    %7423 = vmatpush1.msra.mxu0 %v7422
    %7424 = vmatprep.subr.mxu0 0.0
    %v7425 = vand.u32 %v4928, 4294901760
    %7426 = vmatpush1.msra.mxu0 %v7425
    %7427 = vmatprep.subr.mxu0 0.0
    %v7428 = vand.u32 %v4929, 4294901760
    %7429 = vmatpush1.msra.mxu0 %v7428
    %7430 = vmatprep.subr.mxu0 0.0
    %v7431 = vand.u32 %v4930, 4294901760
    %7432 = vmatpush1.msra.mxu0 %v7431
    %7433 = vmatprep.subr.mxu0 0.0
    %v7434 = vand.u32 %v4931, 4294901760
    %7435 = vmatpush1.msra.mxu0 %v7434
    %7436 = vmatprep.subr.mxu0 0.0
    %v7437 = vand.u32 %v4932, 4294901760
    %7438 = vmatpush1.msra.mxu0 %v7437
    %7439 = vmatprep.subr.mxu0 0.0
    %v7440 = vand.u32 %v6876, 4294901760
    %7441 = vmatpush1.msra.mxu0 %v7440
    %7442 = vmatprep.subr.mxu0 0.0
    %7443 = vmatpush1.msra.mxu0 0.0
    %7444 = vmatprep.subr.mxu0 0.0
    %7445 = vmatpush1.msra.mxu0 0.0
    %7446 = vmatprep.subr.mxu0 0.0
    %7447 = vmatpush1.msra.mxu0 0.0
    %7448 = vmatprep.subr.mxu0 0.0
    %7449 = vmatpush1.msra.mxu0 0.0
    %7450 = vmatprep.subr.mxu0 0.0
    %7451 = vmatpush1.msra.mxu0 0.0
    %7452 = vmatprep.subr.mxu0 0.0
    %7453 = vmatpush1.msra.mxu0 0.0
    %7454 = vmatprep.subr.mxu0 0.0
    %7455 = vmatpush1.msra.mxu0 0.0
    %7456 = vmatprep.subr.mxu0 0.0
    %7457 = vmatpush1.msra.mxu0 0.0
    %7458 = vmatprep.subr.mxu0 0.0
    %7459 = vmatpush1.msra.mxu0 0.0
    %7460 = vmatprep.subr.mxu0 0.0
    %7461 = vmatpush1.msra.mxu0 0.0
    %7462 = vmatprep.subr.mxu0 0.0
    %7463 = vmatpush1.msra.mxu0 0.0
    %7464 = vmatprep.subr.mxu0 0.0
    %7465 = vmatpush1.msra.mxu0 0.0
    %7466 = vmatprep.subr.mxu0 0.0
    %7467 = vmatpush1.msra.mxu0 0.0
    %7468 = vmatprep.subr.mxu0 0.0
    %7469 = vmatpush1.msra.mxu0 0.0
    %7470 = vmatprep.subr.mxu0 0.0
    %7471 = vmatpush1.msra.mxu0 0.0
    %7472 = vmatprep.subr.mxu0 0.0
    %7473 = vmatpush1.msra.mxu0 0.0
    %7474 = vmatprep.subr.mxu0 0.0
    %7475 = vmatpush1.msra.mxu0 0.0
    %7476 = vmatprep.subr.mxu0 0.0
    %7477 = vmatpush1.msra.mxu0 0.0
    %7478 = vmatprep.subr.mxu0 0.0
    %7479 = vmatpush1.msra.mxu0 0.0
    %7480 = vmatprep.subr.mxu0 0.0
    %7481 = vmatpush1.msra.mxu0 0.0
    %7482 = vmatprep.subr.mxu0 0.0
    %7483 = vmatpush1.msra.mxu0 0.0
    %7484 = vmatprep.mubr.f32.mxu0 0.0
    %v7485 = vand.u32 %v6871, 4294901760
    %7486 = vmatmul.mubr.f32.gmra.mrb[0].mxu0 %v7485
    %v7487 = vpop.f32.mrb[0].mxu0
    %v7488 = vadd.f32 %v7400, %v7487
    %v7489 = vpop.f32.mrb[0].mxu0
    %7490 = vmatprep.mubr.f32.mxu0 0.0
    %v7491 = vand.u32 %v6873, 4294901760
    %7492 = vmatmul.mubr.f32.gmra.mrb[0].mxu0 %v7491
    %v7493 = vpop.f32.mrb[0].mxu0
    %v7494 = vadd.f32 %v7406, %v7493
    %v7495 = vpop.f32.mrb[0].mxu0
    %7496 = vdwg.mxu0
    %v7497 = vrot.slane %v4921, 2
    %v7498 = vrot.slane %v4922, 2
    %v7499 = vsel %vm2915, %v7497, %v7498
    %v7500 = vsel %vm4908, %v7499, 0
    %v7502 = vsel %vm4908, %v7498, 0
    %v7505 = vsel %vm1511, %v5588, 0
    %7507 = vmatprep.subr.mxu0 0.0
    %v7508 = vand.u32 %v5578, 4294901760
    %7509 = vmatpush1.msra.mxu0 %v7508
    %7510 = vmatprep.subr.mxu0 0.0
    %v7511 = vand.u32 %v5579, 4294901760
    %7512 = vmatpush1.msra.mxu0 %v7511
    %7513 = vmatprep.subr.mxu0 0.0
    %v7514 = vand.u32 %v5580, 4294901760
    %7515 = vmatpush1.msra.mxu0 %v7514
    %7516 = vmatprep.subr.mxu0 0.0
    %v7517 = vand.u32 %v5581, 4294901760
    %7518 = vmatpush1.msra.mxu0 %v7517
    %7519 = vmatprep.subr.mxu0 0.0
    %v7520 = vand.u32 %v5582, 4294901760
    %7521 = vmatpush1.msra.mxu0 %v7520
    %7522 = vmatprep.subr.mxu0 0.0
    %v7523 = vand.u32 %v5583, 4294901760
    %7524 = vmatpush1.msra.mxu0 %v7523
    %7525 = vmatprep.subr.mxu0 0.0
    %v7526 = vand.u32 %v5584, 4294901760
    %7527 = vmatpush1.msra.mxu0 %v7526
    %7528 = vmatprep.subr.mxu0 0.0
    %v7529 = vand.u32 %v5585, 4294901760
    %7530 = vmatpush1.msra.mxu0 %v7529
    %7531 = vmatprep.subr.mxu0 0.0
    %v7532 = vand.u32 %v5586, 4294901760
    %7533 = vmatpush1.msra.mxu0 %v7532
    %7534 = vmatprep.subr.mxu0 0.0
    %v7535 = vand.u32 %v5587, 4294901760
    %7536 = vmatpush1.msra.mxu0 %v7535
    %7537 = vmatprep.subr.mxu0 0.0
    %v7538 = vand.u32 %v7505, 4294901760
    %7539 = vmatpush1.msra.mxu0 %v7538
    %7540 = vmatprep.subr.mxu0 0.0
    %7541 = vmatpush1.msra.mxu0 0.0
    %7542 = vmatprep.subr.mxu0 0.0
    %7543 = vmatpush1.msra.mxu0 0.0
    %7544 = vmatprep.subr.mxu0 0.0
    %7545 = vmatpush1.msra.mxu0 0.0
    %7546 = vmatprep.subr.mxu0 0.0
    %7547 = vmatpush1.msra.mxu0 0.0
    %7548 = vmatprep.subr.mxu0 0.0
    %7549 = vmatpush1.msra.mxu0 0.0
    %7550 = vmatprep.subr.mxu0 0.0
    %7551 = vmatpush1.msra.mxu0 0.0
    %7552 = vmatprep.subr.mxu0 0.0
    %7553 = vmatpush1.msra.mxu0 0.0
    %7554 = vmatprep.subr.mxu0 0.0
    %7555 = vmatpush1.msra.mxu0 0.0
    %7556 = vmatprep.subr.mxu0 0.0
    %7557 = vmatpush1.msra.mxu0 0.0
    %7558 = vmatprep.subr.mxu0 0.0
    %7559 = vmatpush1.msra.mxu0 0.0
    %7560 = vmatprep.subr.mxu0 0.0
    %7561 = vmatpush1.msra.mxu0 0.0
    %7562 = vmatprep.subr.mxu0 0.0
    %7563 = vmatpush1.msra.mxu0 0.0
    %7564 = vmatprep.subr.mxu0 0.0
    %7565 = vmatpush1.msra.mxu0 0.0
    %7566 = vmatprep.subr.mxu0 0.0
    %7567 = vmatpush1.msra.mxu0 0.0
    %7568 = vmatprep.subr.mxu0 0.0
    %7569 = vmatpush1.msra.mxu0 0.0
    %7570 = vmatprep.subr.mxu0 0.0
    %7571 = vmatpush1.msra.mxu0 0.0
    %7572 = vmatprep.subr.mxu0 0.0
    %7573 = vmatpush1.msra.mxu0 0.0
    %7574 = vmatprep.subr.mxu0 0.0
    %7575 = vmatpush1.msra.mxu0 0.0
    %7576 = vmatprep.subr.mxu0 0.0
    %7577 = vmatpush1.msra.mxu0 0.0
    %7578 = vmatprep.subr.mxu0 0.0
    %7579 = vmatpush1.msra.mxu0 0.0
    %7580 = vmatprep.subr.mxu0 0.0
    %7581 = vmatpush1.msra.mxu0 0.0
    %7582 = vmatprep.mubr.f32.mxu0 0.0
    %v7583 = vand.u32 %v7500, 4294901760
    %v7584 = vsub.f32 %v7500, %v7583
    %v7585 = vand.u32 %v7584, 4294901760
    %v7586 = vsub.f32 %v7584, %v7585
    %v7587 = vand.u32 %v7586, 4294901760
    %7588 = vmatmul.mubr.f32.gmra.mrb[0].mxu0 %v7587
    %v7589 = vpop.f32.mrb[0].mxu0
    %v7590 = vadd.f32 %v6221, %v7589
    %v7591 = vpop.f32.mrb[0].mxu0
    %7592 = vmatprep.mubr.f32.mxu0 0.0
    %v7593 = vand.u32 %v7502, 4294901760
    %v7594 = vsub.f32 %v7502, %v7593
    %v7595 = vand.u32 %v7594, 4294901760
    %v7596 = vsub.f32 %v7594, %v7595
    %v7597 = vand.u32 %v7596, 4294901760
    %7598 = vmatmul.mubr.f32.gmra.mrb[0].mxu0 %v7597
    %v7599 = vpop.f32.mrb[0].mxu0
    %v7600 = vadd.f32 %v6227, %v7599
    %v7601 = vpop.f32.mrb[0].mxu0
    %7602 = vdwg.mxu0
    %7603 = vmatprep.subr.mxu0 0.0
    %v7604 = vand.u32 %v5578, 4294901760
    %v7605 = vsub.f32 %v5578, %v7604
    %v7606 = vand.u32 %v7605, 4294901760
    %v7607 = vsub.f32 %v7605, %v7606
    %v7608 = vand.u32 %v7607, 4294901760
    %7609 = vmatpush1.msra.mxu0 %v7608
    %7610 = vmatprep.subr.mxu0 0.0
    %v7611 = vand.u32 %v5579, 4294901760
    %v7612 = vsub.f32 %v5579, %v7611
    %v7613 = vand.u32 %v7612, 4294901760
    %v7614 = vsub.f32 %v7612, %v7613
    %v7615 = vand.u32 %v7614, 4294901760
    %7616 = vmatpush1.msra.mxu0 %v7615
    %7617 = vmatprep.subr.mxu0 0.0
    %v7618 = vand.u32 %v5580, 4294901760
    %v7619 = vsub.f32 %v5580, %v7618
    %v7620 = vand.u32 %v7619, 4294901760
    %v7621 = vsub.f32 %v7619, %v7620
    %v7622 = vand.u32 %v7621, 4294901760
    %7623 = vmatpush1.msra.mxu0 %v7622
    %7624 = vmatprep.subr.mxu0 0.0
    %v7625 = vand.u32 %v5581, 4294901760
    %v7626 = vsub.f32 %v5581, %v7625
    %v7627 = vand.u32 %v7626, 4294901760
    %v7628 = vsub.f32 %v7626, %v7627
    %v7629 = vand.u32 %v7628, 4294901760
    %7630 = vmatpush1.msra.mxu0 %v7629
    %7631 = vmatprep.subr.mxu0 0.0
    %v7632 = vand.u32 %v5582, 4294901760
    %v7633 = vsub.f32 %v5582, %v7632
    %v7634 = vand.u32 %v7633, 4294901760
    %v7635 = vsub.f32 %v7633, %v7634
    %v7636 = vand.u32 %v7635, 4294901760
    %7637 = vmatpush1.msra.mxu0 %v7636
    %7638 = vmatprep.subr.mxu0 0.0
    %v7639 = vand.u32 %v5583, 4294901760
    %v7640 = vsub.f32 %v5583, %v7639
    %v7641 = vand.u32 %v7640, 4294901760
    %v7642 = vsub.f32 %v7640, %v7641
    %v7643 = vand.u32 %v7642, 4294901760
    %7644 = vmatpush1.msra.mxu0 %v7643
    %7645 = vmatprep.subr.mxu0 0.0
    %v7646 = vand.u32 %v5584, 4294901760
    %v7647 = vsub.f32 %v5584, %v7646
    %v7648 = vand.u32 %v7647, 4294901760
    %v7649 = vsub.f32 %v7647, %v7648
    %v7650 = vand.u32 %v7649, 4294901760
    %7651 = vmatpush1.msra.mxu0 %v7650
    %7652 = vmatprep.subr.mxu0 0.0
    %v7653 = vand.u32 %v5585, 4294901760
    %v7654 = vsub.f32 %v5585, %v7653
    %v7655 = vand.u32 %v7654, 4294901760
    %v7656 = vsub.f32 %v7654, %v7655
    %v7657 = vand.u32 %v7656, 4294901760
    %7658 = vmatpush1.msra.mxu0 %v7657
    %7659 = vmatprep.subr.mxu0 0.0
    %v7660 = vand.u32 %v5586, 4294901760
    %v7661 = vsub.f32 %v5586, %v7660
    %v7662 = vand.u32 %v7661, 4294901760
    %v7663 = vsub.f32 %v7661, %v7662
    %v7664 = vand.u32 %v7663, 4294901760
    %7665 = vmatpush1.msra.mxu0 %v7664
    %7666 = vmatprep.subr.mxu0 0.0
    %v7667 = vand.u32 %v5587, 4294901760
    %v7668 = vsub.f32 %v5587, %v7667
    %v7669 = vand.u32 %v7668, 4294901760
    %v7670 = vsub.f32 %v7668, %v7669
    %v7671 = vand.u32 %v7670, 4294901760
    %7672 = vmatpush1.msra.mxu0 %v7671
    %7673 = vmatprep.subr.mxu0 0.0
    %v7674 = vand.u32 %v7505, 4294901760
    %v7675 = vsub.f32 %v7505, %v7674
    %v7676 = vand.u32 %v7675, 4294901760
    %v7677 = vsub.f32 %v7675, %v7676
    %v7678 = vand.u32 %v7677, 4294901760
    %7679 = vmatpush1.msra.mxu0 %v7678
    %7680 = vmatprep.subr.mxu0 0.0
    %7681 = vmatpush1.msra.mxu0 0.0
    %7682 = vmatprep.subr.mxu0 0.0
    %7683 = vmatpush1.msra.mxu0 0.0
    %7684 = vmatprep.subr.mxu0 0.0
    %7685 = vmatpush1.msra.mxu0 0.0
    %7686 = vmatprep.subr.mxu0 0.0
    %7687 = vmatpush1.msra.mxu0 0.0
    %7688 = vmatprep.subr.mxu0 0.0
    %7689 = vmatpush1.msra.mxu0 0.0
    %7690 = vmatprep.subr.mxu0 0.0
    %7691 = vmatpush1.msra.mxu0 0.0
    %7692 = vmatprep.subr.mxu0 0.0
    %7693 = vmatpush1.msra.mxu0 0.0
    %7694 = vmatprep.subr.mxu0 0.0
    %7695 = vmatpush1.msra.mxu0 0.0
    %7696 = vmatprep.subr.mxu0 0.0
    %7697 = vmatpush1.msra.mxu0 0.0
    %7698 = vmatprep.subr.mxu0 0.0
    %7699 = vmatpush1.msra.mxu0 0.0
    %7700 = vmatprep.subr.mxu0 0.0
    %7701 = vmatpush1.msra.mxu0 0.0
    %7702 = vmatprep.subr.mxu0 0.0
    %7703 = vmatpush1.msra.mxu0 0.0
    %7704 = vmatprep.subr.mxu0 0.0
    %7705 = vmatpush1.msra.mxu0 0.0
    %7706 = vmatprep.subr.mxu0 0.0
    %7707 = vmatpush1.msra.mxu0 0.0
    %7708 = vmatprep.subr.mxu0 0.0
    %7709 = vmatpush1.msra.mxu0 0.0
    %7710 = vmatprep.subr.mxu0 0.0
    %7711 = vmatpush1.msra.mxu0 0.0
    %7712 = vmatprep.subr.mxu0 0.0
    %7713 = vmatpush1.msra.mxu0 0.0
    %7714 = vmatprep.subr.mxu0 0.0
    %7715 = vmatpush1.msra.mxu0 0.0
    %7716 = vmatprep.subr.mxu0 0.0
    %7717 = vmatpush1.msra.mxu0 0.0
    %7718 = vmatprep.subr.mxu0 0.0
    %7719 = vmatpush1.msra.mxu0 0.0
    %7720 = vmatprep.subr.mxu0 0.0
    %7721 = vmatpush1.msra.mxu0 0.0
    %7722 = vmatprep.mubr.f32.mxu0 0.0
    %v7723 = vand.u32 %v7500, 4294901760
    %7724 = vmatmul.mubr.f32.gmra.mrb[0].mxu0 %v7723
    %v7725 = vpop.f32.mrb[0].mxu0
    %v7726 = vadd.f32 %v7590, %v7725
    %v7727 = vpop.f32.mrb[0].mxu0
    %7728 = vmatprep.mubr.f32.mxu0 0.0
    %v7729 = vand.u32 %v7502, 4294901760
    %7730 = vmatmul.mubr.f32.gmra.mrb[0].mxu0 %v7729
    %v7731 = vpop.f32.mrb[0].mxu0
    %v7732 = vadd.f32 %v7600, %v7731
    %v7733 = vpop.f32.mrb[0].mxu0
    %7734 = vdwg.mxu0
    %7735 = vmatprep.subr.mxu0 0.0
    %v7736 = vand.u32 %v5578, 4294901760
    %v7737 = vsub.f32 %v5578, %v7736
    %7738 = vmatpush1.msra.mxu0 %v7737
    %7739 = vmatprep.subr.mxu0 0.0
    %v7740 = vand.u32 %v5579, 4294901760
    %v7741 = vsub.f32 %v5579, %v7740
    %7742 = vmatpush1.msra.mxu0 %v7741
    %7743 = vmatprep.subr.mxu0 0.0
    %v7744 = vand.u32 %v5580, 4294901760
    %v7745 = vsub.f32 %v5580, %v7744
    %7746 = vmatpush1.msra.mxu0 %v7745
    %7747 = vmatprep.subr.mxu0 0.0
    %v7748 = vand.u32 %v5581, 4294901760
    %v7749 = vsub.f32 %v5581, %v7748
    %7750 = vmatpush1.msra.mxu0 %v7749
    %7751 = vmatprep.subr.mxu0 0.0
    %v7752 = vand.u32 %v5582, 4294901760
    %v7753 = vsub.f32 %v5582, %v7752
    %7754 = vmatpush1.msra.mxu0 %v7753
    %7755 = vmatprep.subr.mxu0 0.0
    %v7756 = vand.u32 %v5583, 4294901760
    %v7757 = vsub.f32 %v5583, %v7756
    %7758 = vmatpush1.msra.mxu0 %v7757
    %7759 = vmatprep.subr.mxu0 0.0
    %v7760 = vand.u32 %v5584, 4294901760
    %v7761 = vsub.f32 %v5584, %v7760
    %7762 = vmatpush1.msra.mxu0 %v7761
    %7763 = vmatprep.subr.mxu0 0.0
    %v7764 = vand.u32 %v5585, 4294901760
    %v7765 = vsub.f32 %v5585, %v7764
    %7766 = vmatpush1.msra.mxu0 %v7765
    %7767 = vmatprep.subr.mxu0 0.0
    %v7768 = vand.u32 %v5586, 4294901760
    %v7769 = vsub.f32 %v5586, %v7768
    %7770 = vmatpush1.msra.mxu0 %v7769
    %7771 = vmatprep.subr.mxu0 0.0
    %v7772 = vand.u32 %v5587, 4294901760
    %v7773 = vsub.f32 %v5587, %v7772
    %7774 = vmatpush1.msra.mxu0 %v7773
    %7775 = vmatprep.subr.mxu0 0.0
    %v7776 = vand.u32 %v7505, 4294901760
    %v7777 = vsub.f32 %v7505, %v7776
    %7778 = vmatpush1.msra.mxu0 %v7777
    %7779 = vmatprep.subr.mxu0 0.0
    %7780 = vmatpush1.msra.mxu0 0.0
    %7781 = vmatprep.subr.mxu0 0.0
    %7782 = vmatpush1.msra.mxu0 0.0
    %7783 = vmatprep.subr.mxu0 0.0
    %7784 = vmatpush1.msra.mxu0 0.0
    %7785 = vmatprep.subr.mxu0 0.0
    %7786 = vmatpush1.msra.mxu0 0.0
    %7787 = vmatprep.subr.mxu0 0.0
    %7788 = vmatpush1.msra.mxu0 0.0
    %7789 = vmatprep.subr.mxu0 0.0
    %7790 = vmatpush1.msra.mxu0 0.0
    %7791 = vmatprep.subr.mxu0 0.0
    %7792 = vmatpush1.msra.mxu0 0.0
    %7793 = vmatprep.subr.mxu0 0.0
    %7794 = vmatpush1.msra.mxu0 0.0
    %7795 = vmatprep.subr.mxu0 0.0
    %7796 = vmatpush1.msra.mxu0 0.0
    %7797 = vmatprep.subr.mxu0 0.0
    %7798 = vmatpush1.msra.mxu0 0.0
    %7799 = vmatprep.subr.mxu0 0.0
    %7800 = vmatpush1.msra.mxu0 0.0
    %7801 = vmatprep.subr.mxu0 0.0
    %7802 = vmatpush1.msra.mxu0 0.0
    %7803 = vmatprep.subr.mxu0 0.0
    %7804 = vmatpush1.msra.mxu0 0.0
    %7805 = vmatprep.subr.mxu0 0.0
    %7806 = vmatpush1.msra.mxu0 0.0
    %7807 = vmatprep.subr.mxu0 0.0
    %7808 = vmatpush1.msra.mxu0 0.0
    %7809 = vmatprep.subr.mxu0 0.0
    %7810 = vmatpush1.msra.mxu0 0.0
    %7811 = vmatprep.subr.mxu0 0.0
    %7812 = vmatpush1.msra.mxu0 0.0
    %7813 = vmatprep.subr.mxu0 0.0
    %7814 = vmatpush1.msra.mxu0 0.0
    %7815 = vmatprep.subr.mxu0 0.0
    %7816 = vmatpush1.msra.mxu0 0.0
    %7817 = vmatprep.subr.mxu0 0.0
    %7818 = vmatpush1.msra.mxu0 0.0
    %7819 = vmatprep.subr.mxu0 0.0
    %7820 = vmatpush1.msra.mxu0 0.0
    %7821 = vmatprep.mubr.f32.mxu0 0.0
    %v7822 = vand.u32 %v7500, 4294901760
    %v7823 = vsub.f32 %v7500, %v7822
    %7824 = vmatmul.mubr.f32.gmra.mrb[0].mxu0 %v7823
    %v7825 = vpop.f32.mrb[0].mxu0
    %v7826 = vadd.f32 %v7726, %v7825
    %v7827 = vpop.f32.mrb[0].mxu0
    %7828 = vmatprep.mubr.f32.mxu0 0.0
    %v7829 = vand.u32 %v7502, 4294901760
    %v7830 = vsub.f32 %v7502, %v7829
    %7831 = vmatmul.mubr.f32.gmra.mrb[0].mxu0 %v7830
    %v7832 = vpop.f32.mrb[0].mxu0
    %v7833 = vadd.f32 %v7732, %v7832
    %v7834 = vpop.f32.mrb[0].mxu0
    %7835 = vdwg.mxu0
    %7836 = vmatprep.subr.mxu0 0.0
    %v7837 = vand.u32 %v5578, 4294901760
    %7838 = vmatpush1.msra.mxu0 %v7837
    %7839 = vmatprep.subr.mxu0 0.0
    %v7840 = vand.u32 %v5579, 4294901760
    %7841 = vmatpush1.msra.mxu0 %v7840
    %7842 = vmatprep.subr.mxu0 0.0
    %v7843 = vand.u32 %v5580, 4294901760
    %7844 = vmatpush1.msra.mxu0 %v7843
    %7845 = vmatprep.subr.mxu0 0.0
    %v7846 = vand.u32 %v5581, 4294901760
    %7847 = vmatpush1.msra.mxu0 %v7846
    %7848 = vmatprep.subr.mxu0 0.0
    %v7849 = vand.u32 %v5582, 4294901760
    %7850 = vmatpush1.msra.mxu0 %v7849
    %7851 = vmatprep.subr.mxu0 0.0
    %v7852 = vand.u32 %v5583, 4294901760
    %7853 = vmatpush1.msra.mxu0 %v7852
    %7854 = vmatprep.subr.mxu0 0.0
    %v7855 = vand.u32 %v5584, 4294901760
    %7856 = vmatpush1.msra.mxu0 %v7855
    %7857 = vmatprep.subr.mxu0 0.0
    %v7858 = vand.u32 %v5585, 4294901760
    %7859 = vmatpush1.msra.mxu0 %v7858
    %7860 = vmatprep.subr.mxu0 0.0
    %v7861 = vand.u32 %v5586, 4294901760
    %7862 = vmatpush1.msra.mxu0 %v7861
    %7863 = vmatprep.subr.mxu0 0.0
    %v7864 = vand.u32 %v5587, 4294901760
    %7865 = vmatpush1.msra.mxu0 %v7864
    %7866 = vmatprep.subr.mxu0 0.0
    %v7867 = vand.u32 %v7505, 4294901760
    %7868 = vmatpush1.msra.mxu0 %v7867
    %7869 = vmatprep.subr.mxu0 0.0
    %7870 = vmatpush1.msra.mxu0 0.0
    %7871 = vmatprep.subr.mxu0 0.0
    %7872 = vmatpush1.msra.mxu0 0.0
    %7873 = vmatprep.subr.mxu0 0.0
    %7874 = vmatpush1.msra.mxu0 0.0
    %7875 = vmatprep.subr.mxu0 0.0
    %7876 = vmatpush1.msra.mxu0 0.0
    %7877 = vmatprep.subr.mxu0 0.0
    %7878 = vmatpush1.msra.mxu0 0.0
    %7879 = vmatprep.subr.mxu0 0.0
    %7880 = vmatpush1.msra.mxu0 0.0
    %7881 = vmatprep.subr.mxu0 0.0
    %7882 = vmatpush1.msra.mxu0 0.0
    %7883 = vmatprep.subr.mxu0 0.0
    %7884 = vmatpush1.msra.mxu0 0.0
    %7885 = vmatprep.subr.mxu0 0.0
    %7886 = vmatpush1.msra.mxu0 0.0
    %7887 = vmatprep.subr.mxu0 0.0
    %7888 = vmatpush1.msra.mxu0 0.0
    %7889 = vmatprep.subr.mxu0 0.0
    %7890 = vmatpush1.msra.mxu0 0.0
    %7891 = vmatprep.subr.mxu0 0.0
    %7892 = vmatpush1.msra.mxu0 0.0
    %7893 = vmatprep.subr.mxu0 0.0
    %7894 = vmatpush1.msra.mxu0 0.0
    %7895 = vmatprep.subr.mxu0 0.0
    %7896 = vmatpush1.msra.mxu0 0.0
    %7897 = vmatprep.subr.mxu0 0.0
    %7898 = vmatpush1.msra.mxu0 0.0
    %7899 = vmatprep.subr.mxu0 0.0
    %7900 = vmatpush1.msra.mxu0 0.0
    %7901 = vmatprep.subr.mxu0 0.0
    %7902 = vmatpush1.msra.mxu0 0.0
    %7903 = vmatprep.subr.mxu0 0.0
    %7904 = vmatpush1.msra.mxu0 0.0
    %7905 = vmatprep.subr.mxu0 0.0
    %7906 = vmatpush1.msra.mxu0 0.0
    %7907 = vmatprep.subr.mxu0 0.0
    %7908 = vmatpush1.msra.mxu0 0.0
    %7909 = vmatprep.subr.mxu0 0.0
    %7910 = vmatpush1.msra.mxu0 0.0
    %7911 = vmatprep.mubr.f32.mxu0 0.0
    %v7912 = vand.u32 %v7500, 4294901760
    %v7913 = vsub.f32 %v7500, %v7912
    %v7914 = vand.u32 %v7913, 4294901760
    %7915 = vmatmul.mubr.f32.gmra.mrb[0].mxu0 %v7914
    %v7916 = vpop.f32.mrb[0].mxu0
    %v7917 = vadd.f32 %v7826, %v7916
    %v7918 = vpop.f32.mrb[0].mxu0
    %7919 = vmatprep.mubr.f32.mxu0 0.0
    %v7920 = vand.u32 %v7502, 4294901760
    %v7921 = vsub.f32 %v7502, %v7920
    %v7922 = vand.u32 %v7921, 4294901760
    %7923 = vmatmul.mubr.f32.gmra.mrb[0].mxu0 %v7922
    %v7924 = vpop.f32.mrb[0].mxu0
    %v7925 = vadd.f32 %v7833, %v7924
    %v7926 = vpop.f32.mrb[0].mxu0
    %7927 = vdwg.mxu0
    %7928 = vmatprep.subr.mxu0 0.0
    %v7929 = vand.u32 %v5578, 4294901760
    %v7930 = vsub.f32 %v5578, %v7929
    %v7931 = vand.u32 %v7930, 4294901760
    %7932 = vmatpush1.msra.mxu0 %v7931
    %7933 = vmatprep.subr.mxu0 0.0
    %v7934 = vand.u32 %v5579, 4294901760
    %v7935 = vsub.f32 %v5579, %v7934
    %v7936 = vand.u32 %v7935, 4294901760
    %7937 = vmatpush1.msra.mxu0 %v7936
    %7938 = vmatprep.subr.mxu0 0.0
    %v7939 = vand.u32 %v5580, 4294901760
    %v7940 = vsub.f32 %v5580, %v7939
    %v7941 = vand.u32 %v7940, 4294901760
    %7942 = vmatpush1.msra.mxu0 %v7941
    %7943 = vmatprep.subr.mxu0 0.0
    %v7944 = vand.u32 %v5581, 4294901760
    %v7945 = vsub.f32 %v5581, %v7944
    %v7946 = vand.u32 %v7945, 4294901760
    %7947 = vmatpush1.msra.mxu0 %v7946
    %7948 = vmatprep.subr.mxu0 0.0
    %v7949 = vand.u32 %v5582, 4294901760
    %v7950 = vsub.f32 %v5582, %v7949
    %v7951 = vand.u32 %v7950, 4294901760
    %7952 = vmatpush1.msra.mxu0 %v7951
    %7953 = vmatprep.subr.mxu0 0.0
    %v7954 = vand.u32 %v5583, 4294901760
    %v7955 = vsub.f32 %v5583, %v7954
    %v7956 = vand.u32 %v7955, 4294901760
    %7957 = vmatpush1.msra.mxu0 %v7956
    %7958 = vmatprep.subr.mxu0 0.0
    %v7959 = vand.u32 %v5584, 4294901760
    %v7960 = vsub.f32 %v5584, %v7959
    %v7961 = vand.u32 %v7960, 4294901760
    %7962 = vmatpush1.msra.mxu0 %v7961
    %7963 = vmatprep.subr.mxu0 0.0
    %v7964 = vand.u32 %v5585, 4294901760
    %v7965 = vsub.f32 %v5585, %v7964
    %v7966 = vand.u32 %v7965, 4294901760
    %7967 = vmatpush1.msra.mxu0 %v7966
    %7968 = vmatprep.subr.mxu0 0.0
    %v7969 = vand.u32 %v5586, 4294901760
    %v7970 = vsub.f32 %v5586, %v7969
    %v7971 = vand.u32 %v7970, 4294901760
    %7972 = vmatpush1.msra.mxu0 %v7971
    %7973 = vmatprep.subr.mxu0 0.0
    %v7974 = vand.u32 %v5587, 4294901760
    %v7975 = vsub.f32 %v5587, %v7974
    %v7976 = vand.u32 %v7975, 4294901760
    %7977 = vmatpush1.msra.mxu0 %v7976
    %7978 = vmatprep.subr.mxu0 0.0
    %v7979 = vand.u32 %v7505, 4294901760
    %v7980 = vsub.f32 %v7505, %v7979
    %v7981 = vand.u32 %v7980, 4294901760
    %7982 = vmatpush1.msra.mxu0 %v7981
    %7983 = vmatprep.subr.mxu0 0.0
    %7984 = vmatpush1.msra.mxu0 0.0
    %7985 = vmatprep.subr.mxu0 0.0
    %7986 = vmatpush1.msra.mxu0 0.0
    %7987 = vmatprep.subr.mxu0 0.0
    %7988 = vmatpush1.msra.mxu0 0.0
    %7989 = vmatprep.subr.mxu0 0.0
    %7990 = vmatpush1.msra.mxu0 0.0
    %7991 = vmatprep.subr.mxu0 0.0
    %7992 = vmatpush1.msra.mxu0 0.0
    %7993 = vmatprep.subr.mxu0 0.0
    %7994 = vmatpush1.msra.mxu0 0.0
    %7995 = vmatprep.subr.mxu0 0.0
    %7996 = vmatpush1.msra.mxu0 0.0
    %7997 = vmatprep.subr.mxu0 0.0
    %7998 = vmatpush1.msra.mxu0 0.0
    %7999 = vmatprep.subr.mxu0 0.0
    %8000 = vmatpush1.msra.mxu0 0.0
    %8001 = vmatprep.subr.mxu0 0.0
    %8002 = vmatpush1.msra.mxu0 0.0
    %8003 = vmatprep.subr.mxu0 0.0
    %8004 = vmatpush1.msra.mxu0 0.0
    %8005 = vmatprep.subr.mxu0 0.0
    %8006 = vmatpush1.msra.mxu0 0.0
    %8007 = vmatprep.subr.mxu0 0.0
    %8008 = vmatpush1.msra.mxu0 0.0
    %8009 = vmatprep.subr.mxu0 0.0
    %8010 = vmatpush1.msra.mxu0 0.0
    %8011 = vmatprep.subr.mxu0 0.0
    %8012 = vmatpush1.msra.mxu0 0.0
    %8013 = vmatprep.subr.mxu0 0.0
    %8014 = vmatpush1.msra.mxu0 0.0
    %8015 = vmatprep.subr.mxu0 0.0
    %8016 = vmatpush1.msra.mxu0 0.0
    %8017 = vmatprep.subr.mxu0 0.0
    %8018 = vmatpush1.msra.mxu0 0.0
    %8019 = vmatprep.subr.mxu0 0.0
    %8020 = vmatpush1.msra.mxu0 0.0
    %8021 = vmatprep.subr.mxu0 0.0
    %8022 = vmatpush1.msra.mxu0 0.0
    %8023 = vmatprep.subr.mxu0 0.0
    %8024 = vmatpush1.msra.mxu0 0.0
    %8025 = vmatprep.mubr.f32.mxu0 0.0
    %v8026 = vand.u32 %v7500, 4294901760
    %8027 = vmatmul.mubr.f32.gmra.mrb[0].mxu0 %v8026
    %v8028 = vpop.f32.mrb[0].mxu0
    %v8029 = vadd.f32 %v7917, %v8028
    %v8030 = vpop.f32.mrb[0].mxu0
    %8031 = vmatprep.mubr.f32.mxu0 0.0
    %v8032 = vand.u32 %v7502, 4294901760
    %8033 = vmatmul.mubr.f32.gmra.mrb[0].mxu0 %v8032
    %v8034 = vpop.f32.mrb[0].mxu0
    %v8035 = vadd.f32 %v7925, %v8034
    %v8036 = vpop.f32.mrb[0].mxu0
    %8037 = vdwg.mxu0
    %8038 = vmatprep.subr.mxu0 0.0
    %v8039 = vand.u32 %v5578, 4294901760
    %8040 = vmatpush1.msra.mxu0 %v8039
    %8041 = vmatprep.subr.mxu0 0.0
    %v8042 = vand.u32 %v5579, 4294901760
    %8043 = vmatpush1.msra.mxu0 %v8042
    %8044 = vmatprep.subr.mxu0 0.0
    %v8045 = vand.u32 %v5580, 4294901760
    %8046 = vmatpush1.msra.mxu0 %v8045
    %8047 = vmatprep.subr.mxu0 0.0
    %v8048 = vand.u32 %v5581, 4294901760
    %8049 = vmatpush1.msra.mxu0 %v8048
    %8050 = vmatprep.subr.mxu0 0.0
    %v8051 = vand.u32 %v5582, 4294901760
    %8052 = vmatpush1.msra.mxu0 %v8051
    %8053 = vmatprep.subr.mxu0 0.0
    %v8054 = vand.u32 %v5583, 4294901760
    %8055 = vmatpush1.msra.mxu0 %v8054
    %8056 = vmatprep.subr.mxu0 0.0
    %v8057 = vand.u32 %v5584, 4294901760
    %8058 = vmatpush1.msra.mxu0 %v8057
    %8059 = vmatprep.subr.mxu0 0.0
    %v8060 = vand.u32 %v5585, 4294901760
    %8061 = vmatpush1.msra.mxu0 %v8060
    %8062 = vmatprep.subr.mxu0 0.0
    %v8063 = vand.u32 %v5586, 4294901760
    %8064 = vmatpush1.msra.mxu0 %v8063
    %8065 = vmatprep.subr.mxu0 0.0
    %v8066 = vand.u32 %v5587, 4294901760
    %8067 = vmatpush1.msra.mxu0 %v8066
    %8068 = vmatprep.subr.mxu0 0.0
    %v8069 = vand.u32 %v7505, 4294901760
    %8070 = vmatpush1.msra.mxu0 %v8069
    %8071 = vmatprep.subr.mxu0 0.0
    %8072 = vmatpush1.msra.mxu0 0.0
    %8073 = vmatprep.subr.mxu0 0.0
    %8074 = vmatpush1.msra.mxu0 0.0
    %8075 = vmatprep.subr.mxu0 0.0
    %8076 = vmatpush1.msra.mxu0 0.0
    %8077 = vmatprep.subr.mxu0 0.0
    %8078 = vmatpush1.msra.mxu0 0.0
    %8079 = vmatprep.subr.mxu0 0.0
    %8080 = vmatpush1.msra.mxu0 0.0
    %8081 = vmatprep.subr.mxu0 0.0
    %8082 = vmatpush1.msra.mxu0 0.0
    %8083 = vmatprep.subr.mxu0 0.0
    %8084 = vmatpush1.msra.mxu0 0.0
    %8085 = vmatprep.subr.mxu0 0.0
    %8086 = vmatpush1.msra.mxu0 0.0
    %8087 = vmatprep.subr.mxu0 0.0
    %8088 = vmatpush1.msra.mxu0 0.0
    %8089 = vmatprep.subr.mxu0 0.0
    %8090 = vmatpush1.msra.mxu0 0.0
    %8091 = vmatprep.subr.mxu0 0.0
    %8092 = vmatpush1.msra.mxu0 0.0
    %8093 = vmatprep.subr.mxu0 0.0
    %8094 = vmatpush1.msra.mxu0 0.0
    %8095 = vmatprep.subr.mxu0 0.0
    %8096 = vmatpush1.msra.mxu0 0.0
    %8097 = vmatprep.subr.mxu0 0.0
    %8098 = vmatpush1.msra.mxu0 0.0
    %8099 = vmatprep.subr.mxu0 0.0
    %8100 = vmatpush1.msra.mxu0 0.0
    %8101 = vmatprep.subr.mxu0 0.0
    %8102 = vmatpush1.msra.mxu0 0.0
    %8103 = vmatprep.subr.mxu0 0.0
    %8104 = vmatpush1.msra.mxu0 0.0
    %8105 = vmatprep.subr.mxu0 0.0
    %8106 = vmatpush1.msra.mxu0 0.0
    %8107 = vmatprep.subr.mxu0 0.0
    %8108 = vmatpush1.msra.mxu0 0.0
    %8109 = vmatprep.subr.mxu0 0.0
    %8110 = vmatpush1.msra.mxu0 0.0
    %8111 = vmatprep.subr.mxu0 0.0
    %8112 = vmatpush1.msra.mxu0 0.0
    %8113 = vmatprep.mubr.f32.mxu0 0.0
    %v8114 = vand.u32 %v7500, 4294901760
    %8115 = vmatmul.mubr.f32.gmra.mrb[0].mxu0 %v8114
    %v8116 = vpop.f32.mrb[0].mxu0
    %v8117 = vadd.f32 %v8029, %v8116
    %v8118 = vpop.f32.mrb[0].mxu0
    %8119 = vmatprep.mubr.f32.mxu0 0.0
    %v8120 = vand.u32 %v7502, 4294901760
    %8121 = vmatmul.mubr.f32.gmra.mrb[0].mxu0 %v8120
    %v8122 = vpop.f32.mrb[0].mxu0
    %v8123 = vadd.f32 %v8035, %v8122
    %v8124 = vpop.f32.mrb[0].mxu0
    %8125 = vdwg.mxu0
    %v8126 = vadd.f32 %v7488, %v8117
    %v8127 = vadd.f32 %v7494, %v8123
    %v8128 = vadd.f32 %v8126, %v6862
    %v8129 = vadd.f32 %v8127, %v6868
    %v8130 = vld [vmem:[%s5] sm:$0x1]
    %v8132 = vlaneseq
    %v8133 = vshrl.u32 %v8132, 7
    %v8134 = vsub.s32 0, %v8133
    %v8135 = vrot.slane %v8130, %v8134
    %v8137 = vadd.f32 %v8128, %v8135
    %v8138 = vadd.f32 %v8129, %v8135
    %v8139 = vmax.f32 %v8137, 0.0
    %v8140 = vmax.f32 %v8138, 0.0
    %v8141 = vld [vmem:[%s6] sm:$0xff]
    %v8142 = vld [vmem:[%s6 + $0x8] sm:$0xff]
    %v8143 = vld [vmem:[%s6 + $0x10] sm:$0xff]
    %v8144 = vld [vmem:[%s6 + $0x18] sm:$0xff]
    %v8145 = vld [vmem:[%s6 + $0x20] sm:$0xff]
    %v8146 = vld [vmem:[%s6 + $0x28] sm:$0xff]
    %v8147 = vld [vmem:[%s6 + $0x30] sm:$0xff]
    %v8148 = vld [vmem:[%s6 + $0x38] sm:$0xff]
    %v8149 = vld [vmem:[%s6 + $0x40] sm:$0xff]
    %v8150 = vld [vmem:[%s6 + $0x48] sm:$0xff]
    %v8151 = vld [vmem:[%s6 + $0x50] sm:$0xff]
    %v8152 = vld [vmem:[%s6 + $0x58] sm:$0xff]
    %v8153 = vld [vmem:[%s6 + $0x60] sm:$0xff]
    %v8154 = vld [vmem:[%s6 + $0x68] sm:$0xff]
    %v8155 = vld [vmem:[%s6 + $0x70] sm:$0xff]
    %v8156 = vld [vmem:[%s6 + $0x78] sm:$0xff]
    %v8157 = vld [vmem:[%s6 + $0x80] sm:$0xff]
    %v8158 = vld [vmem:[%s6 + $0x88] sm:$0xff]
    %v8159 = vld [vmem:[%s6 + $0x90] sm:$0xff]
    %v8160 = vld [vmem:[%s6 + $0x98] sm:$0xff]
    %v8161 = vld [vmem:[%s6 + $0xa0] sm:$0xff]
    %v8162 = vld [vmem:[%s6 + $0xa8] sm:$0xff]
    %v8163 = vld [vmem:[%s6 + $0xb0] sm:$0xff]
    %v8164 = vld [vmem:[%s6 + $0xb8] sm:$0xff]
    %v8165 = vld [vmem:[%s6 + $0xc0] sm:$0xf]
    %v8166 = vld [vmem:[%s6 + $0xc8] sm:$0xf]
    %vm8167 = vcmask 818176
    %v8169 = vsel %vm8167, %v8139, 0
    %v8172 = vsel %vm8167, %v8140, 0
    %v8175 = vsel %vm1511, %v8165, 0
    %v8178 = vsel %vm1511, %v8166, 0
    %v8180 = vand.u32 %v8142, 4294901760
    %8181 = vmatprep.subr.mxu0 %v8180
    %v8182 = vand.u32 %v8141, 4294901760
    %8183 = vmatpush1.msra.mxu0 %v8182
    %v8184 = vand.u32 %v8144, 4294901760
    %8185 = vmatprep.subr.mxu0 %v8184
    %v8186 = vand.u32 %v8143, 4294901760
    %8187 = vmatpush1.msra.mxu0 %v8186
    %v8188 = vand.u32 %v8146, 4294901760
    %8189 = vmatprep.subr.mxu0 %v8188
    %v8190 = vand.u32 %v8145, 4294901760
    %8191 = vmatpush1.msra.mxu0 %v8190
    %v8192 = vand.u32 %v8148, 4294901760
    %8193 = vmatprep.subr.mxu0 %v8192
    %v8194 = vand.u32 %v8147, 4294901760
    %8195 = vmatpush1.msra.mxu0 %v8194
    %v8196 = vand.u32 %v8150, 4294901760
    %8197 = vmatprep.subr.mxu0 %v8196
    %v8198 = vand.u32 %v8149, 4294901760
    %8199 = vmatpush1.msra.mxu0 %v8198
    %v8200 = vand.u32 %v8152, 4294901760
    %8201 = vmatprep.subr.mxu0 %v8200
    %v8202 = vand.u32 %v8151, 4294901760
    %8203 = vmatpush1.msra.mxu0 %v8202
    %v8204 = vand.u32 %v8154, 4294901760
    %8205 = vmatprep.subr.mxu0 %v8204
    %v8206 = vand.u32 %v8153, 4294901760
    %8207 = vmatpush1.msra.mxu0 %v8206
    %v8208 = vand.u32 %v8156, 4294901760
    %8209 = vmatprep.subr.mxu0 %v8208
    %v8210 = vand.u32 %v8155, 4294901760
    %8211 = vmatpush1.msra.mxu0 %v8210
    %v8212 = vand.u32 %v8158, 4294901760
    %8213 = vmatprep.subr.mxu0 %v8212
    %v8214 = vand.u32 %v8157, 4294901760
    %8215 = vmatpush1.msra.mxu0 %v8214
    %v8216 = vand.u32 %v8160, 4294901760
    %8217 = vmatprep.subr.mxu0 %v8216
    %v8218 = vand.u32 %v8159, 4294901760
    %8219 = vmatpush1.msra.mxu0 %v8218
    %v8220 = vand.u32 %v8162, 4294901760
    %8221 = vmatprep.subr.mxu0 %v8220
    %v8222 = vand.u32 %v8161, 4294901760
    %8223 = vmatpush1.msra.mxu0 %v8222
    %v8224 = vand.u32 %v8164, 4294901760
    %8225 = vmatprep.subr.mxu0 %v8224
    %v8226 = vand.u32 %v8163, 4294901760
    %8227 = vmatpush1.msra.mxu0 %v8226
    %v8228 = vand.u32 %v8178, 4294901760
    %8229 = vmatprep.subr.mxu0 %v8228
    %v8230 = vand.u32 %v8175, 4294901760
    %8231 = vmatpush1.msra.mxu0 %v8230
    %8232 = vmatprep.subr.mxu0 0.0
    %8233 = vmatpush1.msra.mxu0 0.0
    %8234 = vmatprep.subr.mxu0 0.0
    %8235 = vmatpush1.msra.mxu0 0.0
    %8236 = vmatprep.subr.mxu0 0.0
    %8237 = vmatpush1.msra.mxu0 0.0
    %8238 = vmatprep.subr.mxu0 0.0
    %8239 = vmatpush1.msra.mxu0 0.0
    %8240 = vmatprep.subr.mxu0 0.0
    %8241 = vmatpush1.msra.mxu0 0.0
    %8242 = vmatprep.subr.mxu0 0.0
    %8243 = vmatpush1.msra.mxu0 0.0
    %8244 = vmatprep.subr.mxu0 0.0
    %8245 = vmatpush1.msra.mxu0 0.0
    %8246 = vmatprep.subr.mxu0 0.0
    %8247 = vmatpush1.msra.mxu0 0.0
    %8248 = vmatprep.subr.mxu0 0.0
    %8249 = vmatpush1.msra.mxu0 0.0
    %8250 = vmatprep.subr.mxu0 0.0
    %8251 = vmatpush1.msra.mxu0 0.0
    %8252 = vmatprep.subr.mxu0 0.0
    %8253 = vmatpush1.msra.mxu0 0.0
    %8254 = vmatprep.subr.mxu0 0.0
    %8255 = vmatpush1.msra.mxu0 0.0
    %8256 = vmatprep.subr.mxu0 0.0
    %8257 = vmatpush1.msra.mxu0 0.0
    %8258 = vmatprep.subr.mxu0 0.0
    %8259 = vmatpush1.msra.mxu0 0.0
    %8260 = vmatprep.subr.mxu0 0.0
    %8261 = vmatpush1.msra.mxu0 0.0
    %8262 = vmatprep.subr.mxu0 0.0
    %8263 = vmatpush1.msra.mxu0 0.0
    %8264 = vmatprep.subr.mxu0 0.0
    %8265 = vmatpush1.msra.mxu0 0.0
    %8266 = vmatprep.subr.mxu0 0.0
    %8267 = vmatpush1.msra.mxu0 0.0
    %8268 = vmatprep.subr.mxu0 0.0
    %8269 = vmatpush1.msra.mxu0 0.0
    %8270 = vmatprep.mubr.f32.mxu0 0.0
    %v8271 = vand.u32 %v8169, 4294901760
    %v8272 = vsub.f32 %v8169, %v8271
    %v8273 = vand.u32 %v8272, 4294901760
    %v8274 = vsub.f32 %v8272, %v8273
    %v8275 = vand.u32 %v8274, 4294901760
    %8276 = vmatmul.mubr.f32.gmra.mrb[0].mxu0 %v8275
    %v8277 = vpop.f32.mrb[0].mxu0
    %v8278 = vadd.f32 0.0, %v8277
    %v8279 = vpop.f32.mrb[0].mxu0
    %v8280 = vadd.f32 0.0, %v8279
    %8281 = vmatprep.mubr.f32.mxu0 0.0
    %v8282 = vand.u32 %v8172, 4294901760
    %v8283 = vsub.f32 %v8172, %v8282
    %v8284 = vand.u32 %v8283, 4294901760
    %v8285 = vsub.f32 %v8283, %v8284
    %v8286 = vand.u32 %v8285, 4294901760
    %8287 = vmatmul.mubr.f32.gmra.mrb[0].mxu0 %v8286
    %v8288 = vpop.f32.mrb[0].mxu0
    %v8289 = vadd.f32 0.0, %v8288
    %v8290 = vpop.f32.mrb[0].mxu0
    %v8291 = vadd.f32 0.0, %v8290
    %8292 = vdwg.mxu0
    %v8293 = vand.u32 %v8142, 4294901760
    %v8294 = vsub.f32 %v8142, %v8293
    %v8295 = vand.u32 %v8294, 4294901760
    %v8296 = vsub.f32 %v8294, %v8295
    %v8297 = vand.u32 %v8296, 4294901760
    %8298 = vmatprep.subr.mxu0 %v8297
    %v8299 = vand.u32 %v8141, 4294901760
    %v8300 = vsub.f32 %v8141, %v8299
    %v8301 = vand.u32 %v8300, 4294901760
    %v8302 = vsub.f32 %v8300, %v8301
    %v8303 = vand.u32 %v8302, 4294901760
    %8304 = vmatpush1.msra.mxu0 %v8303
    %v8305 = vand.u32 %v8144, 4294901760
    %v8306 = vsub.f32 %v8144, %v8305
    %v8307 = vand.u32 %v8306, 4294901760
    %v8308 = vsub.f32 %v8306, %v8307
    %v8309 = vand.u32 %v8308, 4294901760
    %8310 = vmatprep.subr.mxu0 %v8309
    %v8311 = vand.u32 %v8143, 4294901760
    %v8312 = vsub.f32 %v8143, %v8311
    %v8313 = vand.u32 %v8312, 4294901760
    %v8314 = vsub.f32 %v8312, %v8313
    %v8315 = vand.u32 %v8314, 4294901760
    %8316 = vmatpush1.msra.mxu0 %v8315
    %v8317 = vand.u32 %v8146, 4294901760
    %v8318 = vsub.f32 %v8146, %v8317
    %v8319 = vand.u32 %v8318, 4294901760
    %v8320 = vsub.f32 %v8318, %v8319
    %v8321 = vand.u32 %v8320, 4294901760
    %8322 = vmatprep.subr.mxu0 %v8321
    %v8323 = vand.u32 %v8145, 4294901760
    %v8324 = vsub.f32 %v8145, %v8323
    %v8325 = vand.u32 %v8324, 4294901760
    %v8326 = vsub.f32 %v8324, %v8325
    %v8327 = vand.u32 %v8326, 4294901760
    %8328 = vmatpush1.msra.mxu0 %v8327
    %v8329 = vand.u32 %v8148, 4294901760
    %v8330 = vsub.f32 %v8148, %v8329
    %v8331 = vand.u32 %v8330, 4294901760
    %v8332 = vsub.f32 %v8330, %v8331
    %v8333 = vand.u32 %v8332, 4294901760
    %8334 = vmatprep.subr.mxu0 %v8333
    %v8335 = vand.u32 %v8147, 4294901760
    %v8336 = vsub.f32 %v8147, %v8335
    %v8337 = vand.u32 %v8336, 4294901760
    %v8338 = vsub.f32 %v8336, %v8337
    %v8339 = vand.u32 %v8338, 4294901760
    %8340 = vmatpush1.msra.mxu0 %v8339
    %v8341 = vand.u32 %v8150, 4294901760
    %v8342 = vsub.f32 %v8150, %v8341
    %v8343 = vand.u32 %v8342, 4294901760
    %v8344 = vsub.f32 %v8342, %v8343
    %v8345 = vand.u32 %v8344, 4294901760
    %8346 = vmatprep.subr.mxu0 %v8345
    %v8347 = vand.u32 %v8149, 4294901760
    %v8348 = vsub.f32 %v8149, %v8347
    %v8349 = vand.u32 %v8348, 4294901760
    %v8350 = vsub.f32 %v8348, %v8349
    %v8351 = vand.u32 %v8350, 4294901760
    %8352 = vmatpush1.msra.mxu0 %v8351
    %v8353 = vand.u32 %v8152, 4294901760
    %v8354 = vsub.f32 %v8152, %v8353
    %v8355 = vand.u32 %v8354, 4294901760
    %v8356 = vsub.f32 %v8354, %v8355
    %v8357 = vand.u32 %v8356, 4294901760
    %8358 = vmatprep.subr.mxu0 %v8357
    %v8359 = vand.u32 %v8151, 4294901760
    %v8360 = vsub.f32 %v8151, %v8359
    %v8361 = vand.u32 %v8360, 4294901760
    %v8362 = vsub.f32 %v8360, %v8361
    %v8363 = vand.u32 %v8362, 4294901760
    %8364 = vmatpush1.msra.mxu0 %v8363
    %v8365 = vand.u32 %v8154, 4294901760
    %v8366 = vsub.f32 %v8154, %v8365
    %v8367 = vand.u32 %v8366, 4294901760
    %v8368 = vsub.f32 %v8366, %v8367
    %v8369 = vand.u32 %v8368, 4294901760
    %8370 = vmatprep.subr.mxu0 %v8369
    %v8371 = vand.u32 %v8153, 4294901760
    %v8372 = vsub.f32 %v8153, %v8371
    %v8373 = vand.u32 %v8372, 4294901760
    %v8374 = vsub.f32 %v8372, %v8373
    %v8375 = vand.u32 %v8374, 4294901760
    %8376 = vmatpush1.msra.mxu0 %v8375
    %v8377 = vand.u32 %v8156, 4294901760
    %v8378 = vsub.f32 %v8156, %v8377
    %v8379 = vand.u32 %v8378, 4294901760
    %v8380 = vsub.f32 %v8378, %v8379
    %v8381 = vand.u32 %v8380, 4294901760
    %8382 = vmatprep.subr.mxu0 %v8381
    %v8383 = vand.u32 %v8155, 4294901760
    %v8384 = vsub.f32 %v8155, %v8383
    %v8385 = vand.u32 %v8384, 4294901760
    %v8386 = vsub.f32 %v8384, %v8385
    %v8387 = vand.u32 %v8386, 4294901760
    %8388 = vmatpush1.msra.mxu0 %v8387
    %v8389 = vand.u32 %v8158, 4294901760
    %v8390 = vsub.f32 %v8158, %v8389
    %v8391 = vand.u32 %v8390, 4294901760
    %v8392 = vsub.f32 %v8390, %v8391
    %v8393 = vand.u32 %v8392, 4294901760
    %8394 = vmatprep.subr.mxu0 %v8393
    %v8395 = vand.u32 %v8157, 4294901760
    %v8396 = vsub.f32 %v8157, %v8395
    %v8397 = vand.u32 %v8396, 4294901760
    %v8398 = vsub.f32 %v8396, %v8397
    %v8399 = vand.u32 %v8398, 4294901760
    %8400 = vmatpush1.msra.mxu0 %v8399
    %v8401 = vand.u32 %v8160, 4294901760
    %v8402 = vsub.f32 %v8160, %v8401
    %v8403 = vand.u32 %v8402, 4294901760
    %v8404 = vsub.f32 %v8402, %v8403
    %v8405 = vand.u32 %v8404, 4294901760
    %8406 = vmatprep.subr.mxu0 %v8405
    %v8407 = vand.u32 %v8159, 4294901760
    %v8408 = vsub.f32 %v8159, %v8407
    %v8409 = vand.u32 %v8408, 4294901760
    %v8410 = vsub.f32 %v8408, %v8409
    %v8411 = vand.u32 %v8410, 4294901760
    %8412 = vmatpush1.msra.mxu0 %v8411
    %v8413 = vand.u32 %v8162, 4294901760
    %v8414 = vsub.f32 %v8162, %v8413
    %v8415 = vand.u32 %v8414, 4294901760
    %v8416 = vsub.f32 %v8414, %v8415
    %v8417 = vand.u32 %v8416, 4294901760
    %8418 = vmatprep.subr.mxu0 %v8417
    %v8419 = vand.u32 %v8161, 4294901760
    %v8420 = vsub.f32 %v8161, %v8419
    %v8421 = vand.u32 %v8420, 4294901760
    %v8422 = vsub.f32 %v8420, %v8421
    %v8423 = vand.u32 %v8422, 4294901760
    %8424 = vmatpush1.msra.mxu0 %v8423
    %v8425 = vand.u32 %v8164, 4294901760
    %v8426 = vsub.f32 %v8164, %v8425
    %v8427 = vand.u32 %v8426, 4294901760
    %v8428 = vsub.f32 %v8426, %v8427
    %v8429 = vand.u32 %v8428, 4294901760
    %8430 = vmatprep.subr.mxu0 %v8429
    %v8431 = vand.u32 %v8163, 4294901760
    %v8432 = vsub.f32 %v8163, %v8431
    %v8433 = vand.u32 %v8432, 4294901760
    %v8434 = vsub.f32 %v8432, %v8433
    %v8435 = vand.u32 %v8434, 4294901760
    %8436 = vmatpush1.msra.mxu0 %v8435
    %v8437 = vand.u32 %v8178, 4294901760
    %v8438 = vsub.f32 %v8178, %v8437
    %v8439 = vand.u32 %v8438, 4294901760
    %v8440 = vsub.f32 %v8438, %v8439
    %v8441 = vand.u32 %v8440, 4294901760
    %8442 = vmatprep.subr.mxu0 %v8441
    %v8443 = vand.u32 %v8175, 4294901760
    %v8444 = vsub.f32 %v8175, %v8443
    %v8445 = vand.u32 %v8444, 4294901760
    %v8446 = vsub.f32 %v8444, %v8445
    %v8447 = vand.u32 %v8446, 4294901760
    %8448 = vmatpush1.msra.mxu0 %v8447
    %8449 = vmatprep.subr.mxu0 0.0
    %8450 = vmatpush1.msra.mxu0 0.0
    %8451 = vmatprep.subr.mxu0 0.0
    %8452 = vmatpush1.msra.mxu0 0.0
    %8453 = vmatprep.subr.mxu0 0.0
    %8454 = vmatpush1.msra.mxu0 0.0
    %8455 = vmatprep.subr.mxu0 0.0
    %8456 = vmatpush1.msra.mxu0 0.0
    %8457 = vmatprep.subr.mxu0 0.0
    %8458 = vmatpush1.msra.mxu0 0.0
    %8459 = vmatprep.subr.mxu0 0.0
    %8460 = vmatpush1.msra.mxu0 0.0
    %8461 = vmatprep.subr.mxu0 0.0
    %8462 = vmatpush1.msra.mxu0 0.0
    %8463 = vmatprep.subr.mxu0 0.0
    %8464 = vmatpush1.msra.mxu0 0.0
    %8465 = vmatprep.subr.mxu0 0.0
    %8466 = vmatpush1.msra.mxu0 0.0
    %8467 = vmatprep.subr.mxu0 0.0
    %8468 = vmatpush1.msra.mxu0 0.0
    %8469 = vmatprep.subr.mxu0 0.0
    %8470 = vmatpush1.msra.mxu0 0.0
    %8471 = vmatprep.subr.mxu0 0.0
    %8472 = vmatpush1.msra.mxu0 0.0
    %8473 = vmatprep.subr.mxu0 0.0
    %8474 = vmatpush1.msra.mxu0 0.0
    %8475 = vmatprep.subr.mxu0 0.0
    %8476 = vmatpush1.msra.mxu0 0.0
    %8477 = vmatprep.subr.mxu0 0.0
    %8478 = vmatpush1.msra.mxu0 0.0
    %8479 = vmatprep.subr.mxu0 0.0
    %8480 = vmatpush1.msra.mxu0 0.0
    %8481 = vmatprep.subr.mxu0 0.0
    %8482 = vmatpush1.msra.mxu0 0.0
    %8483 = vmatprep.subr.mxu0 0.0
    %8484 = vmatpush1.msra.mxu0 0.0
    %8485 = vmatprep.subr.mxu0 0.0
    %8486 = vmatpush1.msra.mxu0 0.0
    %8487 = vmatprep.mubr.f32.mxu0 0.0
    %v8488 = vand.u32 %v8169, 4294901760
    %8489 = vmatmul.mubr.f32.gmra.mrb[0].mxu0 %v8488
    %v8490 = vpop.f32.mrb[0].mxu0
    %v8491 = vadd.f32 %v8278, %v8490
    %v8492 = vpop.f32.mrb[0].mxu0
    %v8493 = vadd.f32 %v8280, %v8492
    %8494 = vmatprep.mubr.f32.mxu0 0.0
    %v8495 = vand.u32 %v8172, 4294901760
    %8496 = vmatmul.mubr.f32.gmra.mrb[0].mxu0 %v8495
    %v8497 = vpop.f32.mrb[0].mxu0
    %v8498 = vadd.f32 %v8289, %v8497
    %v8499 = vpop.f32.mrb[0].mxu0
    %v8500 = vadd.f32 %v8291, %v8499
    %8501 = vdwg.mxu0
    %v8502 = vand.u32 %v8142, 4294901760
    %v8503 = vsub.f32 %v8142, %v8502
    %8504 = vmatprep.subr.mxu0 %v8503
    %v8505 = vand.u32 %v8141, 4294901760
    %v8506 = vsub.f32 %v8141, %v8505
    %8507 = vmatpush1.msra.mxu0 %v8506
    %v8508 = vand.u32 %v8144, 4294901760
    %v8509 = vsub.f32 %v8144, %v8508
    %8510 = vmatprep.subr.mxu0 %v8509
    %v8511 = vand.u32 %v8143, 4294901760
    %v8512 = vsub.f32 %v8143, %v8511
    %8513 = vmatpush1.msra.mxu0 %v8512
    %v8514 = vand.u32 %v8146, 4294901760
    %v8515 = vsub.f32 %v8146, %v8514
    %8516 = vmatprep.subr.mxu0 %v8515
    %v8517 = vand.u32 %v8145, 4294901760
    %v8518 = vsub.f32 %v8145, %v8517
    %8519 = vmatpush1.msra.mxu0 %v8518
    %v8520 = vand.u32 %v8148, 4294901760
    %v8521 = vsub.f32 %v8148, %v8520
    %8522 = vmatprep.subr.mxu0 %v8521
    %v8523 = vand.u32 %v8147, 4294901760
    %v8524 = vsub.f32 %v8147, %v8523
    %8525 = vmatpush1.msra.mxu0 %v8524
    %v8526 = vand.u32 %v8150, 4294901760
    %v8527 = vsub.f32 %v8150, %v8526
    %8528 = vmatprep.subr.mxu0 %v8527
    %v8529 = vand.u32 %v8149, 4294901760
    %v8530 = vsub.f32 %v8149, %v8529
    %8531 = vmatpush1.msra.mxu0 %v8530
    %v8532 = vand.u32 %v8152, 4294901760
    %v8533 = vsub.f32 %v8152, %v8532
    %8534 = vmatprep.subr.mxu0 %v8533
    %v8535 = vand.u32 %v8151, 4294901760
    %v8536 = vsub.f32 %v8151, %v8535
    %8537 = vmatpush1.msra.mxu0 %v8536
    %v8538 = vand.u32 %v8154, 4294901760
    %v8539 = vsub.f32 %v8154, %v8538
    %8540 = vmatprep.subr.mxu0 %v8539
    %v8541 = vand.u32 %v8153, 4294901760
    %v8542 = vsub.f32 %v8153, %v8541
    %8543 = vmatpush1.msra.mxu0 %v8542
    %v8544 = vand.u32 %v8156, 4294901760
    %v8545 = vsub.f32 %v8156, %v8544
    %8546 = vmatprep.subr.mxu0 %v8545
    %v8547 = vand.u32 %v8155, 4294901760
    %v8548 = vsub.f32 %v8155, %v8547
    %8549 = vmatpush1.msra.mxu0 %v8548
    %v8550 = vand.u32 %v8158, 4294901760
    %v8551 = vsub.f32 %v8158, %v8550
    %8552 = vmatprep.subr.mxu0 %v8551
    %v8553 = vand.u32 %v8157, 4294901760
    %v8554 = vsub.f32 %v8157, %v8553
    %8555 = vmatpush1.msra.mxu0 %v8554
    %v8556 = vand.u32 %v8160, 4294901760
    %v8557 = vsub.f32 %v8160, %v8556
    %8558 = vmatprep.subr.mxu0 %v8557
    %v8559 = vand.u32 %v8159, 4294901760
    %v8560 = vsub.f32 %v8159, %v8559
    %8561 = vmatpush1.msra.mxu0 %v8560
    %v8562 = vand.u32 %v8162, 4294901760
    %v8563 = vsub.f32 %v8162, %v8562
    %8564 = vmatprep.subr.mxu0 %v8563
    %v8565 = vand.u32 %v8161, 4294901760
    %v8566 = vsub.f32 %v8161, %v8565
    %8567 = vmatpush1.msra.mxu0 %v8566
    %v8568 = vand.u32 %v8164, 4294901760
    %v8569 = vsub.f32 %v8164, %v8568
    %8570 = vmatprep.subr.mxu0 %v8569
    %v8571 = vand.u32 %v8163, 4294901760
    %v8572 = vsub.f32 %v8163, %v8571
    %8573 = vmatpush1.msra.mxu0 %v8572
    %v8574 = vand.u32 %v8178, 4294901760
    %v8575 = vsub.f32 %v8178, %v8574
    %8576 = vmatprep.subr.mxu0 %v8575
    %v8577 = vand.u32 %v8175, 4294901760
    %v8578 = vsub.f32 %v8175, %v8577
    %8579 = vmatpush1.msra.mxu0 %v8578
    %8580 = vmatprep.subr.mxu0 0.0
    %8581 = vmatpush1.msra.mxu0 0.0
    %8582 = vmatprep.subr.mxu0 0.0
    %8583 = vmatpush1.msra.mxu0 0.0
    %8584 = vmatprep.subr.mxu0 0.0
    %8585 = vmatpush1.msra.mxu0 0.0
    %8586 = vmatprep.subr.mxu0 0.0
    %8587 = vmatpush1.msra.mxu0 0.0
    %8588 = vmatprep.subr.mxu0 0.0
    %8589 = vmatpush1.msra.mxu0 0.0
    %8590 = vmatprep.subr.mxu0 0.0
    %8591 = vmatpush1.msra.mxu0 0.0
    %8592 = vmatprep.subr.mxu0 0.0
    %8593 = vmatpush1.msra.mxu0 0.0
    %8594 = vmatprep.subr.mxu0 0.0
    %8595 = vmatpush1.msra.mxu0 0.0
    %8596 = vmatprep.subr.mxu0 0.0
    %8597 = vmatpush1.msra.mxu0 0.0
    %8598 = vmatprep.subr.mxu0 0.0
    %8599 = vmatpush1.msra.mxu0 0.0
    %8600 = vmatprep.subr.mxu0 0.0
    %8601 = vmatpush1.msra.mxu0 0.0
    %8602 = vmatprep.subr.mxu0 0.0
    %8603 = vmatpush1.msra.mxu0 0.0
    %8604 = vmatprep.subr.mxu0 0.0
    %8605 = vmatpush1.msra.mxu0 0.0
    %8606 = vmatprep.subr.mxu0 0.0
    %8607 = vmatpush1.msra.mxu0 0.0
    %8608 = vmatprep.subr.mxu0 0.0
    %8609 = vmatpush1.msra.mxu0 0.0
    %8610 = vmatprep.subr.mxu0 0.0
    %8611 = vmatpush1.msra.mxu0 0.0
    %8612 = vmatprep.subr.mxu0 0.0
    %8613 = vmatpush1.msra.mxu0 0.0
    %8614 = vmatprep.subr.mxu0 0.0
    %8615 = vmatpush1.msra.mxu0 0.0
    %8616 = vmatprep.subr.mxu0 0.0
    %8617 = vmatpush1.msra.mxu0 0.0
    %8618 = vmatprep.mubr.f32.mxu0 0.0
    %v8619 = vand.u32 %v8169, 4294901760
    %v8620 = vsub.f32 %v8169, %v8619
    %8621 = vmatmul.mubr.f32.gmra.mrb[0].mxu0 %v8620
    %v8622 = vpop.f32.mrb[0].mxu0
    %v8623 = vadd.f32 %v8491, %v8622
    %v8624 = vpop.f32.mrb[0].mxu0
    %v8625 = vadd.f32 %v8493, %v8624
    %8626 = vmatprep.mubr.f32.mxu0 0.0
    %v8627 = vand.u32 %v8172, 4294901760
    %v8628 = vsub.f32 %v8172, %v8627
    %8629 = vmatmul.mubr.f32.gmra.mrb[0].mxu0 %v8628
    %v8630 = vpop.f32.mrb[0].mxu0
    %v8631 = vadd.f32 %v8498, %v8630
    %v8632 = vpop.f32.mrb[0].mxu0
    %v8633 = vadd.f32 %v8500, %v8632
    %8634 = vdwg.mxu0
    %v8635 = vand.u32 %v8142, 4294901760
    %8636 = vmatprep.subr.mxu0 %v8635
    %v8637 = vand.u32 %v8141, 4294901760
    %8638 = vmatpush1.msra.mxu0 %v8637
    %v8639 = vand.u32 %v8144, 4294901760
    %8640 = vmatprep.subr.mxu0 %v8639
    %v8641 = vand.u32 %v8143, 4294901760
    %8642 = vmatpush1.msra.mxu0 %v8641
    %v8643 = vand.u32 %v8146, 4294901760
    %8644 = vmatprep.subr.mxu0 %v8643
    %v8645 = vand.u32 %v8145, 4294901760
    %8646 = vmatpush1.msra.mxu0 %v8645
    %v8647 = vand.u32 %v8148, 4294901760
    %8648 = vmatprep.subr.mxu0 %v8647
    %v8649 = vand.u32 %v8147, 4294901760
    %8650 = vmatpush1.msra.mxu0 %v8649
    %v8651 = vand.u32 %v8150, 4294901760
    %8652 = vmatprep.subr.mxu0 %v8651
    %v8653 = vand.u32 %v8149, 4294901760
    %8654 = vmatpush1.msra.mxu0 %v8653
    %v8655 = vand.u32 %v8152, 4294901760
    %8656 = vmatprep.subr.mxu0 %v8655
    %v8657 = vand.u32 %v8151, 4294901760
    %8658 = vmatpush1.msra.mxu0 %v8657
    %v8659 = vand.u32 %v8154, 4294901760
    %8660 = vmatprep.subr.mxu0 %v8659
    %v8661 = vand.u32 %v8153, 4294901760
    %8662 = vmatpush1.msra.mxu0 %v8661
    %v8663 = vand.u32 %v8156, 4294901760
    %8664 = vmatprep.subr.mxu0 %v8663
    %v8665 = vand.u32 %v8155, 4294901760
    %8666 = vmatpush1.msra.mxu0 %v8665
    %v8667 = vand.u32 %v8158, 4294901760
    %8668 = vmatprep.subr.mxu0 %v8667
    %v8669 = vand.u32 %v8157, 4294901760
    %8670 = vmatpush1.msra.mxu0 %v8669
    %v8671 = vand.u32 %v8160, 4294901760
    %8672 = vmatprep.subr.mxu0 %v8671
    %v8673 = vand.u32 %v8159, 4294901760
    %8674 = vmatpush1.msra.mxu0 %v8673
    %v8675 = vand.u32 %v8162, 4294901760
    %8676 = vmatprep.subr.mxu0 %v8675
    %v8677 = vand.u32 %v8161, 4294901760
    %8678 = vmatpush1.msra.mxu0 %v8677
    %v8679 = vand.u32 %v8164, 4294901760
    %8680 = vmatprep.subr.mxu0 %v8679
    %v8681 = vand.u32 %v8163, 4294901760
    %8682 = vmatpush1.msra.mxu0 %v8681
    %v8683 = vand.u32 %v8178, 4294901760
    %8684 = vmatprep.subr.mxu0 %v8683
    %v8685 = vand.u32 %v8175, 4294901760
    %8686 = vmatpush1.msra.mxu0 %v8685
    %8687 = vmatprep.subr.mxu0 0.0
    %8688 = vmatpush1.msra.mxu0 0.0
    %8689 = vmatprep.subr.mxu0 0.0
    %8690 = vmatpush1.msra.mxu0 0.0
    %8691 = vmatprep.subr.mxu0 0.0
    %8692 = vmatpush1.msra.mxu0 0.0
    %8693 = vmatprep.subr.mxu0 0.0
    %8694 = vmatpush1.msra.mxu0 0.0
    %8695 = vmatprep.subr.mxu0 0.0
    %8696 = vmatpush1.msra.mxu0 0.0
    %8697 = vmatprep.subr.mxu0 0.0
    %8698 = vmatpush1.msra.mxu0 0.0
    %8699 = vmatprep.subr.mxu0 0.0
    %8700 = vmatpush1.msra.mxu0 0.0
    %8701 = vmatprep.subr.mxu0 0.0
    %8702 = vmatpush1.msra.mxu0 0.0
    %8703 = vmatprep.subr.mxu0 0.0
    %8704 = vmatpush1.msra.mxu0 0.0
    %8705 = vmatprep.subr.mxu0 0.0
    %8706 = vmatpush1.msra.mxu0 0.0
    %8707 = vmatprep.subr.mxu0 0.0
    %8708 = vmatpush1.msra.mxu0 0.0
    %8709 = vmatprep.subr.mxu0 0.0
    %8710 = vmatpush1.msra.mxu0 0.0
    %8711 = vmatprep.subr.mxu0 0.0
    %8712 = vmatpush1.msra.mxu0 0.0
    %8713 = vmatprep.subr.mxu0 0.0
    %8714 = vmatpush1.msra.mxu0 0.0
    %8715 = vmatprep.subr.mxu0 0.0
    %8716 = vmatpush1.msra.mxu0 0.0
    %8717 = vmatprep.subr.mxu0 0.0
    %8718 = vmatpush1.msra.mxu0 0.0
    %8719 = vmatprep.subr.mxu0 0.0
    %8720 = vmatpush1.msra.mxu0 0.0
    %8721 = vmatprep.subr.mxu0 0.0
    %8722 = vmatpush1.msra.mxu0 0.0
    %8723 = vmatprep.subr.mxu0 0.0
    %8724 = vmatpush1.msra.mxu0 0.0
    %8725 = vmatprep.mubr.f32.mxu0 0.0
    %v8726 = vand.u32 %v8169, 4294901760
    %v8727 = vsub.f32 %v8169, %v8726
    %v8728 = vand.u32 %v8727, 4294901760
    %8729 = vmatmul.mubr.f32.gmra.mrb[0].mxu0 %v8728
    %v8730 = vpop.f32.mrb[0].mxu0
    %v8731 = vadd.f32 %v8623, %v8730
    %v8732 = vpop.f32.mrb[0].mxu0
    %v8733 = vadd.f32 %v8625, %v8732
    %8734 = vmatprep.mubr.f32.mxu0 0.0
    %v8735 = vand.u32 %v8172, 4294901760
    %v8736 = vsub.f32 %v8172, %v8735
    %v8737 = vand.u32 %v8736, 4294901760
    %8738 = vmatmul.mubr.f32.gmra.mrb[0].mxu0 %v8737
    %v8739 = vpop.f32.mrb[0].mxu0
    %v8740 = vadd.f32 %v8631, %v8739
    %v8741 = vpop.f32.mrb[0].mxu0
    %v8742 = vadd.f32 %v8633, %v8741
    %8743 = vdwg.mxu0
    %v8744 = vand.u32 %v8142, 4294901760
    %v8745 = vsub.f32 %v8142, %v8744
    %v8746 = vand.u32 %v8745, 4294901760
    %8747 = vmatprep.subr.mxu0 %v8746
    %v8748 = vand.u32 %v8141, 4294901760
    %v8749 = vsub.f32 %v8141, %v8748
    %v8750 = vand.u32 %v8749, 4294901760
    %8751 = vmatpush1.msra.mxu0 %v8750
    %v8752 = vand.u32 %v8144, 4294901760
    %v8753 = vsub.f32 %v8144, %v8752
    %v8754 = vand.u32 %v8753, 4294901760
    %8755 = vmatprep.subr.mxu0 %v8754
    %v8756 = vand.u32 %v8143, 4294901760
    %v8757 = vsub.f32 %v8143, %v8756
    %v8758 = vand.u32 %v8757, 4294901760
    %8759 = vmatpush1.msra.mxu0 %v8758
    %v8760 = vand.u32 %v8146, 4294901760
    %v8761 = vsub.f32 %v8146, %v8760
    %v8762 = vand.u32 %v8761, 4294901760
    %8763 = vmatprep.subr.mxu0 %v8762
    %v8764 = vand.u32 %v8145, 4294901760
    %v8765 = vsub.f32 %v8145, %v8764
    %v8766 = vand.u32 %v8765, 4294901760
    %8767 = vmatpush1.msra.mxu0 %v8766
    %v8768 = vand.u32 %v8148, 4294901760
    %v8769 = vsub.f32 %v8148, %v8768
    %v8770 = vand.u32 %v8769, 4294901760
    %8771 = vmatprep.subr.mxu0 %v8770
    %v8772 = vand.u32 %v8147, 4294901760
    %v8773 = vsub.f32 %v8147, %v8772
    %v8774 = vand.u32 %v8773, 4294901760
    %8775 = vmatpush1.msra.mxu0 %v8774
    %v8776 = vand.u32 %v8150, 4294901760
    %v8777 = vsub.f32 %v8150, %v8776
    %v8778 = vand.u32 %v8777, 4294901760
    %8779 = vmatprep.subr.mxu0 %v8778
    %v8780 = vand.u32 %v8149, 4294901760
    %v8781 = vsub.f32 %v8149, %v8780
    %v8782 = vand.u32 %v8781, 4294901760
    %8783 = vmatpush1.msra.mxu0 %v8782
    %v8784 = vand.u32 %v8152, 4294901760
    %v8785 = vsub.f32 %v8152, %v8784
    %v8786 = vand.u32 %v8785, 4294901760
    %8787 = vmatprep.subr.mxu0 %v8786
    %v8788 = vand.u32 %v8151, 4294901760
    %v8789 = vsub.f32 %v8151, %v8788
    %v8790 = vand.u32 %v8789, 4294901760
    %8791 = vmatpush1.msra.mxu0 %v8790
    %v8792 = vand.u32 %v8154, 4294901760
    %v8793 = vsub.f32 %v8154, %v8792
    %v8794 = vand.u32 %v8793, 4294901760
    %8795 = vmatprep.subr.mxu0 %v8794
    %v8796 = vand.u32 %v8153, 4294901760
    %v8797 = vsub.f32 %v8153, %v8796
    %v8798 = vand.u32 %v8797, 4294901760
    %8799 = vmatpush1.msra.mxu0 %v8798
    %v8800 = vand.u32 %v8156, 4294901760
    %v8801 = vsub.f32 %v8156, %v8800
    %v8802 = vand.u32 %v8801, 4294901760
    %8803 = vmatprep.subr.mxu0 %v8802
    %v8804 = vand.u32 %v8155, 4294901760
    %v8805 = vsub.f32 %v8155, %v8804
    %v8806 = vand.u32 %v8805, 4294901760
    %8807 = vmatpush1.msra.mxu0 %v8806
    %v8808 = vand.u32 %v8158, 4294901760
    %v8809 = vsub.f32 %v8158, %v8808
    %v8810 = vand.u32 %v8809, 4294901760
    %8811 = vmatprep.subr.mxu0 %v8810
    %v8812 = vand.u32 %v8157, 4294901760
    %v8813 = vsub.f32 %v8157, %v8812
    %v8814 = vand.u32 %v8813, 4294901760
    %8815 = vmatpush1.msra.mxu0 %v8814
    %v8816 = vand.u32 %v8160, 4294901760
    %v8817 = vsub.f32 %v8160, %v8816
    %v8818 = vand.u32 %v8817, 4294901760
    %8819 = vmatprep.subr.mxu0 %v8818
    %v8820 = vand.u32 %v8159, 4294901760
    %v8821 = vsub.f32 %v8159, %v8820
    %v8822 = vand.u32 %v8821, 4294901760
    %8823 = vmatpush1.msra.mxu0 %v8822
    %v8824 = vand.u32 %v8162, 4294901760
    %v8825 = vsub.f32 %v8162, %v8824
    %v8826 = vand.u32 %v8825, 4294901760
    %8827 = vmatprep.subr.mxu0 %v8826
    %v8828 = vand.u32 %v8161, 4294901760
    %v8829 = vsub.f32 %v8161, %v8828
    %v8830 = vand.u32 %v8829, 4294901760
    %8831 = vmatpush1.msra.mxu0 %v8830
    %v8832 = vand.u32 %v8164, 4294901760
    %v8833 = vsub.f32 %v8164, %v8832
    %v8834 = vand.u32 %v8833, 4294901760
    %8835 = vmatprep.subr.mxu0 %v8834
    %v8836 = vand.u32 %v8163, 4294901760
    %v8837 = vsub.f32 %v8163, %v8836
    %v8838 = vand.u32 %v8837, 4294901760
    %8839 = vmatpush1.msra.mxu0 %v8838
    %v8840 = vand.u32 %v8178, 4294901760
    %v8841 = vsub.f32 %v8178, %v8840
    %v8842 = vand.u32 %v8841, 4294901760
    %8843 = vmatprep.subr.mxu0 %v8842
    %v8844 = vand.u32 %v8175, 4294901760
    %v8845 = vsub.f32 %v8175, %v8844
    %v8846 = vand.u32 %v8845, 4294901760
    %8847 = vmatpush1.msra.mxu0 %v8846
    %8848 = vmatprep.subr.mxu0 0.0
    %8849 = vmatpush1.msra.mxu0 0.0
    %8850 = vmatprep.subr.mxu0 0.0
    %8851 = vmatpush1.msra.mxu0 0.0
    %8852 = vmatprep.subr.mxu0 0.0
    %8853 = vmatpush1.msra.mxu0 0.0
    %8854 = vmatprep.subr.mxu0 0.0
    %8855 = vmatpush1.msra.mxu0 0.0
    %8856 = vmatprep.subr.mxu0 0.0
    %8857 = vmatpush1.msra.mxu0 0.0
    %8858 = vmatprep.subr.mxu0 0.0
    %8859 = vmatpush1.msra.mxu0 0.0
    %8860 = vmatprep.subr.mxu0 0.0
    %8861 = vmatpush1.msra.mxu0 0.0
    %8862 = vmatprep.subr.mxu0 0.0
    %8863 = vmatpush1.msra.mxu0 0.0
    %8864 = vmatprep.subr.mxu0 0.0
    %8865 = vmatpush1.msra.mxu0 0.0
    %8866 = vmatprep.subr.mxu0 0.0
    %8867 = vmatpush1.msra.mxu0 0.0
    %8868 = vmatprep.subr.mxu0 0.0
    %8869 = vmatpush1.msra.mxu0 0.0
    %8870 = vmatprep.subr.mxu0 0.0
    %8871 = vmatpush1.msra.mxu0 0.0
    %8872 = vmatprep.subr.mxu0 0.0
    %8873 = vmatpush1.msra.mxu0 0.0
    %8874 = vmatprep.subr.mxu0 0.0
    %8875 = vmatpush1.msra.mxu0 0.0
    %8876 = vmatprep.subr.mxu0 0.0
    %8877 = vmatpush1.msra.mxu0 0.0
    %8878 = vmatprep.subr.mxu0 0.0
    %8879 = vmatpush1.msra.mxu0 0.0
    %8880 = vmatprep.subr.mxu0 0.0
    %8881 = vmatpush1.msra.mxu0 0.0
    %8882 = vmatprep.subr.mxu0 0.0
    %8883 = vmatpush1.msra.mxu0 0.0
    %8884 = vmatprep.subr.mxu0 0.0
    %8885 = vmatpush1.msra.mxu0 0.0
    %8886 = vmatprep.mubr.f32.mxu0 0.0
    %v8887 = vand.u32 %v8169, 4294901760
    %8888 = vmatmul.mubr.f32.gmra.mrb[0].mxu0 %v8887
    %v8889 = vpop.f32.mrb[0].mxu0
    %v8890 = vadd.f32 %v8731, %v8889
    %v8891 = vpop.f32.mrb[0].mxu0
    %v8892 = vadd.f32 %v8733, %v8891
    %8893 = vmatprep.mubr.f32.mxu0 0.0
    %v8894 = vand.u32 %v8172, 4294901760
    %8895 = vmatmul.mubr.f32.gmra.mrb[0].mxu0 %v8894
    %v8896 = vpop.f32.mrb[0].mxu0
    %v8897 = vadd.f32 %v8740, %v8896
    %v8898 = vpop.f32.mrb[0].mxu0
    %v8899 = vadd.f32 %v8742, %v8898
    %8900 = vdwg.mxu0
    %v8901 = vand.u32 %v8142, 4294901760
    %8902 = vmatprep.subr.mxu0 %v8901
    %v8903 = vand.u32 %v8141, 4294901760
    %8904 = vmatpush1.msra.mxu0 %v8903
    %v8905 = vand.u32 %v8144, 4294901760
    %8906 = vmatprep.subr.mxu0 %v8905
    %v8907 = vand.u32 %v8143, 4294901760
    %8908 = vmatpush1.msra.mxu0 %v8907
    %v8909 = vand.u32 %v8146, 4294901760
    %8910 = vmatprep.subr.mxu0 %v8909
    %v8911 = vand.u32 %v8145, 4294901760
    %8912 = vmatpush1.msra.mxu0 %v8911
    %v8913 = vand.u32 %v8148, 4294901760
    %8914 = vmatprep.subr.mxu0 %v8913
    %v8915 = vand.u32 %v8147, 4294901760
    %8916 = vmatpush1.msra.mxu0 %v8915
    %v8917 = vand.u32 %v8150, 4294901760
    %8918 = vmatprep.subr.mxu0 %v8917
    %v8919 = vand.u32 %v8149, 4294901760
    %8920 = vmatpush1.msra.mxu0 %v8919
    %v8921 = vand.u32 %v8152, 4294901760
    %8922 = vmatprep.subr.mxu0 %v8921
    %v8923 = vand.u32 %v8151, 4294901760
    %8924 = vmatpush1.msra.mxu0 %v8923
    %v8925 = vand.u32 %v8154, 4294901760
    %8926 = vmatprep.subr.mxu0 %v8925
    %v8927 = vand.u32 %v8153, 4294901760
    %8928 = vmatpush1.msra.mxu0 %v8927
    %v8929 = vand.u32 %v8156, 4294901760
    %8930 = vmatprep.subr.mxu0 %v8929
    %v8931 = vand.u32 %v8155, 4294901760
    %8932 = vmatpush1.msra.mxu0 %v8931
    %v8933 = vand.u32 %v8158, 4294901760
    %8934 = vmatprep.subr.mxu0 %v8933
    %v8935 = vand.u32 %v8157, 4294901760
    %8936 = vmatpush1.msra.mxu0 %v8935
    %v8937 = vand.u32 %v8160, 4294901760
    %8938 = vmatprep.subr.mxu0 %v8937
    %v8939 = vand.u32 %v8159, 4294901760
    %8940 = vmatpush1.msra.mxu0 %v8939
    %v8941 = vand.u32 %v8162, 4294901760
    %8942 = vmatprep.subr.mxu0 %v8941
    %v8943 = vand.u32 %v8161, 4294901760
    %8944 = vmatpush1.msra.mxu0 %v8943
    %v8945 = vand.u32 %v8164, 4294901760
    %8946 = vmatprep.subr.mxu0 %v8945
    %v8947 = vand.u32 %v8163, 4294901760
    %8948 = vmatpush1.msra.mxu0 %v8947
    %v8949 = vand.u32 %v8178, 4294901760
    %8950 = vmatprep.subr.mxu0 %v8949
    %v8951 = vand.u32 %v8175, 4294901760
    %8952 = vmatpush1.msra.mxu0 %v8951
    %8953 = vmatprep.subr.mxu0 0.0
    %8954 = vmatpush1.msra.mxu0 0.0
    %8955 = vmatprep.subr.mxu0 0.0
    %8956 = vmatpush1.msra.mxu0 0.0
    %8957 = vmatprep.subr.mxu0 0.0
    %8958 = vmatpush1.msra.mxu0 0.0
    %8959 = vmatprep.subr.mxu0 0.0
    %8960 = vmatpush1.msra.mxu0 0.0
    %8961 = vmatprep.subr.mxu0 0.0
    %8962 = vmatpush1.msra.mxu0 0.0
    %8963 = vmatprep.subr.mxu0 0.0
    %8964 = vmatpush1.msra.mxu0 0.0
    %8965 = vmatprep.subr.mxu0 0.0
    %8966 = vmatpush1.msra.mxu0 0.0
    %8967 = vmatprep.subr.mxu0 0.0
    %8968 = vmatpush1.msra.mxu0 0.0
    %8969 = vmatprep.subr.mxu0 0.0
    %8970 = vmatpush1.msra.mxu0 0.0
    %8971 = vmatprep.subr.mxu0 0.0
    %8972 = vmatpush1.msra.mxu0 0.0
    %8973 = vmatprep.subr.mxu0 0.0
    %8974 = vmatpush1.msra.mxu0 0.0
    %8975 = vmatprep.subr.mxu0 0.0
    %8976 = vmatpush1.msra.mxu0 0.0
    %8977 = vmatprep.subr.mxu0 0.0
    %8978 = vmatpush1.msra.mxu0 0.0
    %8979 = vmatprep.subr.mxu0 0.0
    %8980 = vmatpush1.msra.mxu0 0.0
    %8981 = vmatprep.subr.mxu0 0.0
    %8982 = vmatpush1.msra.mxu0 0.0
    %8983 = vmatprep.subr.mxu0 0.0
    %8984 = vmatpush1.msra.mxu0 0.0
    %8985 = vmatprep.subr.mxu0 0.0
    %8986 = vmatpush1.msra.mxu0 0.0
    %8987 = vmatprep.subr.mxu0 0.0
    %8988 = vmatpush1.msra.mxu0 0.0
    %8989 = vmatprep.subr.mxu0 0.0
    %8990 = vmatpush1.msra.mxu0 0.0
    %8991 = vmatprep.mubr.f32.mxu0 0.0
    %v8992 = vand.u32 %v8169, 4294901760
    %8993 = vmatmul.mubr.f32.gmra.mrb[0].mxu0 %v8992
    %v8994 = vpop.f32.mrb[0].mxu0
    %v8995 = vadd.f32 %v8890, %v8994
    %v8996 = vpop.f32.mrb[0].mxu0
    %v8997 = vadd.f32 %v8892, %v8996
    %8998 = vmatprep.mubr.f32.mxu0 0.0
    %v8999 = vand.u32 %v8172, 4294901760
    %9000 = vmatmul.mubr.f32.gmra.mrb[0].mxu0 %v8999
    %v9001 = vpop.f32.mrb[0].mxu0
    %v9002 = vadd.f32 %v8897, %v9001
    %v9003 = vpop.f32.mrb[0].mxu0
    %v9004 = vadd.f32 %v8899, %v9003
    %9005 = vdwg.mxu0
    %v9006 = vmax.f32 %v8995, %v8997
    %v9007 = vmax.f32 %v9002, %v9004
    %vm9008 = vcmask 408576
    %9009 = vst.msk [vmem:[#allocation3] sm:$0xff] %vm9008, %v9006
    %vm9010 = vcmask 402432
    %9011 = vst.msk [vmem:[#allocation3 + $0x8] sm:$0x3] %vm9010, %v9007
    %v9012 = vld [vmem:[#allocation3] ss:$2 sm:$0x1f]
    %s9013 = scalar_lea.vmem [#allocation3], 1
    %v9014 = vld [vmem:[%s9013] ss:$2 sm:$0x1f]
    %v9015 = vmax.f32 %v9012, %v9014
    %s9016 = smul.u32 %s39, 8
    %s9017 = scalar_lea.vmem [#allocation4], %s9016
    %vm9018 = vcmask 405504
    %9019 = vst.msk [vmem:[%s9017] sm:$0x1f] %vm9018, %v9015
  $region50: #{cnn_forward.1} parent=0 // loop_footer
    %s43 = sadd.s32 1, %s39
  $region51: #{cnn_forward.1} parent=0 // loop_footer_branch
    %38 = sbr.rel target = $region47
  $region52: #{cnn_forward.1} parent=0 // loop_exit
    _
  %v9020 = vld [vmem:[#allocation4] ss:$8 sm:$0xf]
  %v9021 = vld [vmem:[#allocation4] ss:$8 sm:$0xf0]
  %v9022 = vor.u32 %v9020, %v9021
  %v9023 = vld [vmem:[%s7] sm:$0xff]
  %v9024 = vld [vmem:[%s7 + $0x8] sm:$0xff]
  %v9025 = vld [vmem:[%s7 + $0x10] sm:$0xff]
  %v9026 = vld [vmem:[%s7 + $0x18] sm:$0xff]
  %v9027 = vld [vmem:[%s7 + $0x20] sm:$0xff]
  %v9028 = vld [vmem:[%s7 + $0x28] sm:$0xff]
  %v9029 = vld [vmem:[%s7 + $0x30] sm:$0x3]
  %s9030 = scalar_lea.vmem [#allocation4], 1
  %v9031 = vld [vmem:[%s9030] ss:$8 sm:$0xf]
  %v9032 = vld [vmem:[%s9030] ss:$8 sm:$0xf0]
  %v9033 = vor.u32 %v9031, %v9032
  %s9034 = scalar_lea.vmem %s7, 56
  %v9035 = vld [vmem:[%s9034] sm:$0xff]
  %v9036 = vld [vmem:[%s9034 + $0x8] sm:$0xff]
  %v9037 = vld [vmem:[%s9034 + $0x10] sm:$0xff]
  %v9038 = vld [vmem:[%s9034 + $0x18] sm:$0xff]
  %v9039 = vld [vmem:[%s9034 + $0x20] sm:$0xff]
  %v9040 = vld [vmem:[%s9034 + $0x28] sm:$0xff]
  %v9041 = vld [vmem:[%s9034 + $0x30] sm:$0x3]
  %vm9042 = vcmask 408576
  %v9044 = vsel %vm9042, %v9033, 0
  %vm9046 = vcmask 1041408
  %v9048 = vsel %vm9046, %v9041, 0
  %9050 = vmatprep.subr.mxu0 0.0
  %v9051 = vand.u32 %v9035, 4294901760
  %9052 = vmatpush1.msra.mxu0 %v9051
  %9053 = vmatprep.subr.mxu0 0.0
  %v9054 = vand.u32 %v9036, 4294901760
  %9055 = vmatpush1.msra.mxu0 %v9054
  %9056 = vmatprep.subr.mxu0 0.0
  %v9057 = vand.u32 %v9037, 4294901760
  %9058 = vmatpush1.msra.mxu0 %v9057
  %9059 = vmatprep.subr.mxu0 0.0
  %v9060 = vand.u32 %v9038, 4294901760
  %9061 = vmatpush1.msra.mxu0 %v9060
  %9062 = vmatprep.subr.mxu0 0.0
  %v9063 = vand.u32 %v9039, 4294901760
  %9064 = vmatpush1.msra.mxu0 %v9063
  %9065 = vmatprep.subr.mxu0 0.0
  %v9066 = vand.u32 %v9040, 4294901760
  %9067 = vmatpush1.msra.mxu0 %v9066
  %9068 = vmatprep.subr.mxu0 0.0
  %v9069 = vand.u32 %v9048, 4294901760
  %9070 = vmatpush1.msra.mxu0 %v9069
  %9071 = vmatprep.subr.mxu0 0.0
  %9072 = vmatpush1.msra.mxu0 0.0
  %9073 = vmatprep.subr.mxu0 0.0
  %9074 = vmatpush1.msra.mxu0 0.0
  %9075 = vmatprep.subr.mxu0 0.0
  %9076 = vmatpush1.msra.mxu0 0.0
  %9077 = vmatprep.subr.mxu0 0.0
  %9078 = vmatpush1.msra.mxu0 0.0
  %9079 = vmatprep.subr.mxu0 0.0
  %9080 = vmatpush1.msra.mxu0 0.0
  %9081 = vmatprep.subr.mxu0 0.0
  %9082 = vmatpush1.msra.mxu0 0.0
  %9083 = vmatprep.subr.mxu0 0.0
  %9084 = vmatpush1.msra.mxu0 0.0
  %9085 = vmatprep.subr.mxu0 0.0
  %9086 = vmatpush1.msra.mxu0 0.0
  %9087 = vmatprep.subr.mxu0 0.0
  %9088 = vmatpush1.msra.mxu0 0.0
  %9089 = vmatprep.subr.mxu0 0.0
  %9090 = vmatpush1.msra.mxu0 0.0
  %9091 = vmatprep.subr.mxu0 0.0
  %9092 = vmatpush1.msra.mxu0 0.0
  %9093 = vmatprep.subr.mxu0 0.0
  %9094 = vmatpush1.msra.mxu0 0.0
  %9095 = vmatprep.subr.mxu0 0.0
  %9096 = vmatpush1.msra.mxu0 0.0
  %9097 = vmatprep.subr.mxu0 0.0
  %9098 = vmatpush1.msra.mxu0 0.0
  %9099 = vmatprep.subr.mxu0 0.0
  %9100 = vmatpush1.msra.mxu0 0.0
  %9101 = vmatprep.subr.mxu0 0.0
  %9102 = vmatpush1.msra.mxu0 0.0
  %9103 = vmatprep.subr.mxu0 0.0
  %9104 = vmatpush1.msra.mxu0 0.0
  %9105 = vmatprep.subr.mxu0 0.0
  %9106 = vmatpush1.msra.mxu0 0.0
  %9107 = vmatprep.subr.mxu0 0.0
  %9108 = vmatpush1.msra.mxu0 0.0
  %9109 = vmatprep.subr.mxu0 0.0
  %9110 = vmatpush1.msra.mxu0 0.0
  %9111 = vmatprep.subr.mxu0 0.0
  %9112 = vmatpush1.msra.mxu0 0.0
  %9113 = vmatprep.subr.mxu0 0.0
  %9114 = vmatpush1.msra.mxu0 0.0
  %9115 = vmatprep.subr.mxu0 0.0
  %9116 = vmatpush1.msra.mxu0 0.0
  %9117 = vmatprep.subr.mxu0 0.0
  %9118 = vmatpush1.msra.mxu0 0.0
  %9119 = vmatprep.subr.mxu0 0.0
  %9120 = vmatpush1.msra.mxu0 0.0
  %9121 = vmatprep.mubr.f32.mxu0 0.0
  %v9122 = vand.u32 %v9044, 4294901760
  %v9123 = vsub.f32 %v9044, %v9122
  %v9124 = vand.u32 %v9123, 4294901760
  %v9125 = vsub.f32 %v9123, %v9124
  %v9126 = vand.u32 %v9125, 4294901760
  %9127 = vmatmul.mubr.f32.gmra.mrb[0].mxu0 %v9126
  %v9128 = vpop.f32.mrb[0].mxu0
  %v9129 = vadd.f32 0.0, %v9128
  %v9130 = vpop.f32.mrb[0].mxu0
  %9131 = vdwg.mxu0
  %9132 = vmatprep.subr.mxu0 0.0
  %v9133 = vand.u32 %v9035, 4294901760
  %v9134 = vsub.f32 %v9035, %v9133
  %v9135 = vand.u32 %v9134, 4294901760
  %v9136 = vsub.f32 %v9134, %v9135
  %v9137 = vand.u32 %v9136, 4294901760
  %9138 = vmatpush1.msra.mxu0 %v9137
  %9139 = vmatprep.subr.mxu0 0.0
  %v9140 = vand.u32 %v9036, 4294901760
  %v9141 = vsub.f32 %v9036, %v9140
  %v9142 = vand.u32 %v9141, 4294901760
  %v9143 = vsub.f32 %v9141, %v9142
  %v9144 = vand.u32 %v9143, 4294901760
  %9145 = vmatpush1.msra.mxu0 %v9144
  %9146 = vmatprep.subr.mxu0 0.0
  %v9147 = vand.u32 %v9037, 4294901760
  %v9148 = vsub.f32 %v9037, %v9147
  %v9149 = vand.u32 %v9148, 4294901760
  %v9150 = vsub.f32 %v9148, %v9149
  %v9151 = vand.u32 %v9150, 4294901760
  %9152 = vmatpush1.msra.mxu0 %v9151
  %9153 = vmatprep.subr.mxu0 0.0
  %v9154 = vand.u32 %v9038, 4294901760
  %v9155 = vsub.f32 %v9038, %v9154
  %v9156 = vand.u32 %v9155, 4294901760
  %v9157 = vsub.f32 %v9155, %v9156
  %v9158 = vand.u32 %v9157, 4294901760
  %9159 = vmatpush1.msra.mxu0 %v9158
  %9160 = vmatprep.subr.mxu0 0.0
  %v9161 = vand.u32 %v9039, 4294901760
  %v9162 = vsub.f32 %v9039, %v9161
  %v9163 = vand.u32 %v9162, 4294901760
  %v9164 = vsub.f32 %v9162, %v9163
  %v9165 = vand.u32 %v9164, 4294901760
  %9166 = vmatpush1.msra.mxu0 %v9165
  %9167 = vmatprep.subr.mxu0 0.0
  %v9168 = vand.u32 %v9040, 4294901760
  %v9169 = vsub.f32 %v9040, %v9168
  %v9170 = vand.u32 %v9169, 4294901760
  %v9171 = vsub.f32 %v9169, %v9170
  %v9172 = vand.u32 %v9171, 4294901760
  %9173 = vmatpush1.msra.mxu0 %v9172
  %9174 = vmatprep.subr.mxu0 0.0
  %v9175 = vand.u32 %v9048, 4294901760
  %v9176 = vsub.f32 %v9048, %v9175
  %v9177 = vand.u32 %v9176, 4294901760
  %v9178 = vsub.f32 %v9176, %v9177
  %v9179 = vand.u32 %v9178, 4294901760
  %9180 = vmatpush1.msra.mxu0 %v9179
  %9181 = vmatprep.subr.mxu0 0.0
  %9182 = vmatpush1.msra.mxu0 0.0
  %9183 = vmatprep.subr.mxu0 0.0
  %9184 = vmatpush1.msra.mxu0 0.0
  %9185 = vmatprep.subr.mxu0 0.0
  %9186 = vmatpush1.msra.mxu0 0.0
  %9187 = vmatprep.subr.mxu0 0.0
  %9188 = vmatpush1.msra.mxu0 0.0
  %9189 = vmatprep.subr.mxu0 0.0
  %9190 = vmatpush1.msra.mxu0 0.0
  %9191 = vmatprep.subr.mxu0 0.0
  %9192 = vmatpush1.msra.mxu0 0.0
  %9193 = vmatprep.subr.mxu0 0.0
  %9194 = vmatpush1.msra.mxu0 0.0
  %9195 = vmatprep.subr.mxu0 0.0
  %9196 = vmatpush1.msra.mxu0 0.0
  %9197 = vmatprep.subr.mxu0 0.0
  %9198 = vmatpush1.msra.mxu0 0.0
  %9199 = vmatprep.subr.mxu0 0.0
  %9200 = vmatpush1.msra.mxu0 0.0
  %9201 = vmatprep.subr.mxu0 0.0
  %9202 = vmatpush1.msra.mxu0 0.0
  %9203 = vmatprep.subr.mxu0 0.0
  %9204 = vmatpush1.msra.mxu0 0.0
  %9205 = vmatprep.subr.mxu0 0.0
  %9206 = vmatpush1.msra.mxu0 0.0
  %9207 = vmatprep.subr.mxu0 0.0
  %9208 = vmatpush1.msra.mxu0 0.0
  %9209 = vmatprep.subr.mxu0 0.0
  %9210 = vmatpush1.msra.mxu0 0.0
  %9211 = vmatprep.subr.mxu0 0.0
  %9212 = vmatpush1.msra.mxu0 0.0
  %9213 = vmatprep.subr.mxu0 0.0
  %9214 = vmatpush1.msra.mxu0 0.0
  %9215 = vmatprep.subr.mxu0 0.0
  %9216 = vmatpush1.msra.mxu0 0.0
  %9217 = vmatprep.subr.mxu0 0.0
  %9218 = vmatpush1.msra.mxu0 0.0
  %9219 = vmatprep.subr.mxu0 0.0
  %9220 = vmatpush1.msra.mxu0 0.0
  %9221 = vmatprep.subr.mxu0 0.0
  %9222 = vmatpush1.msra.mxu0 0.0
  %9223 = vmatprep.subr.mxu0 0.0
  %9224 = vmatpush1.msra.mxu0 0.0
  %9225 = vmatprep.subr.mxu0 0.0
  %9226 = vmatpush1.msra.mxu0 0.0
  %9227 = vmatprep.subr.mxu0 0.0
  %9228 = vmatpush1.msra.mxu0 0.0
  %9229 = vmatprep.subr.mxu0 0.0
  %9230 = vmatpush1.msra.mxu0 0.0
  %9231 = vmatprep.mubr.f32.mxu0 0.0
  %v9232 = vand.u32 %v9044, 4294901760
  %9233 = vmatmul.mubr.f32.gmra.mrb[0].mxu0 %v9232
  %v9234 = vpop.f32.mrb[0].mxu0
  %v9235 = vadd.f32 %v9129, %v9234
  %v9236 = vpop.f32.mrb[0].mxu0
  %9237 = vdwg.mxu0
  %9238 = vmatprep.subr.mxu0 0.0
  %v9239 = vand.u32 %v9035, 4294901760
  %v9240 = vsub.f32 %v9035, %v9239
  %9241 = vmatpush1.msra.mxu0 %v9240
  %9242 = vmatprep.subr.mxu0 0.0
  %v9243 = vand.u32 %v9036, 4294901760
  %v9244 = vsub.f32 %v9036, %v9243
  %9245 = vmatpush1.msra.mxu0 %v9244
  %9246 = vmatprep.subr.mxu0 0.0
  %v9247 = vand.u32 %v9037, 4294901760
  %v9248 = vsub.f32 %v9037, %v9247
  %9249 = vmatpush1.msra.mxu0 %v9248
  %9250 = vmatprep.subr.mxu0 0.0
  %v9251 = vand.u32 %v9038, 4294901760
  %v9252 = vsub.f32 %v9038, %v9251
  %9253 = vmatpush1.msra.mxu0 %v9252
  %9254 = vmatprep.subr.mxu0 0.0
  %v9255 = vand.u32 %v9039, 4294901760
  %v9256 = vsub.f32 %v9039, %v9255
  %9257 = vmatpush1.msra.mxu0 %v9256
  %9258 = vmatprep.subr.mxu0 0.0
  %v9259 = vand.u32 %v9040, 4294901760
  %v9260 = vsub.f32 %v9040, %v9259
  %9261 = vmatpush1.msra.mxu0 %v9260
  %9262 = vmatprep.subr.mxu0 0.0
  %v9263 = vand.u32 %v9048, 4294901760
  %v9264 = vsub.f32 %v9048, %v9263
  %9265 = vmatpush1.msra.mxu0 %v9264
  %9266 = vmatprep.subr.mxu0 0.0
  %9267 = vmatpush1.msra.mxu0 0.0
  %9268 = vmatprep.subr.mxu0 0.0
  %9269 = vmatpush1.msra.mxu0 0.0
  %9270 = vmatprep.subr.mxu0 0.0
  %9271 = vmatpush1.msra.mxu0 0.0
  %9272 = vmatprep.subr.mxu0 0.0
  %9273 = vmatpush1.msra.mxu0 0.0
  %9274 = vmatprep.subr.mxu0 0.0
  %9275 = vmatpush1.msra.mxu0 0.0
  %9276 = vmatprep.subr.mxu0 0.0
  %9277 = vmatpush1.msra.mxu0 0.0
  %9278 = vmatprep.subr.mxu0 0.0
  %9279 = vmatpush1.msra.mxu0 0.0
  %9280 = vmatprep.subr.mxu0 0.0
  %9281 = vmatpush1.msra.mxu0 0.0
  %9282 = vmatprep.subr.mxu0 0.0
  %9283 = vmatpush1.msra.mxu0 0.0
  %9284 = vmatprep.subr.mxu0 0.0
  %9285 = vmatpush1.msra.mxu0 0.0
  %9286 = vmatprep.subr.mxu0 0.0
  %9287 = vmatpush1.msra.mxu0 0.0
  %9288 = vmatprep.subr.mxu0 0.0
  %9289 = vmatpush1.msra.mxu0 0.0
  %9290 = vmatprep.subr.mxu0 0.0
  %9291 = vmatpush1.msra.mxu0 0.0
  %9292 = vmatprep.subr.mxu0 0.0
  %9293 = vmatpush1.msra.mxu0 0.0
  %9294 = vmatprep.subr.mxu0 0.0
  %9295 = vmatpush1.msra.mxu0 0.0
  %9296 = vmatprep.subr.mxu0 0.0
  %9297 = vmatpush1.msra.mxu0 0.0
  %9298 = vmatprep.subr.mxu0 0.0
  %9299 = vmatpush1.msra.mxu0 0.0
  %9300 = vmatprep.subr.mxu0 0.0
  %9301 = vmatpush1.msra.mxu0 0.0
  %9302 = vmatprep.subr.mxu0 0.0
  %9303 = vmatpush1.msra.mxu0 0.0
  %9304 = vmatprep.subr.mxu0 0.0
  %9305 = vmatpush1.msra.mxu0 0.0
  %9306 = vmatprep.subr.mxu0 0.0
  %9307 = vmatpush1.msra.mxu0 0.0
  %9308 = vmatprep.subr.mxu0 0.0
  %9309 = vmatpush1.msra.mxu0 0.0
  %9310 = vmatprep.subr.mxu0 0.0
  %9311 = vmatpush1.msra.mxu0 0.0
  %9312 = vmatprep.subr.mxu0 0.0
  %9313 = vmatpush1.msra.mxu0 0.0
  %9314 = vmatprep.subr.mxu0 0.0
  %9315 = vmatpush1.msra.mxu0 0.0
  %9316 = vmatprep.mubr.f32.mxu0 0.0
  %v9317 = vand.u32 %v9044, 4294901760
  %v9318 = vsub.f32 %v9044, %v9317
  %9319 = vmatmul.mubr.f32.gmra.mrb[0].mxu0 %v9318
  %v9320 = vpop.f32.mrb[0].mxu0
  %v9321 = vadd.f32 %v9235, %v9320
  %v9322 = vpop.f32.mrb[0].mxu0
  %9323 = vdwg.mxu0
  %9324 = vmatprep.subr.mxu0 0.0
  %v9325 = vand.u32 %v9035, 4294901760
  %9326 = vmatpush1.msra.mxu0 %v9325
  %9327 = vmatprep.subr.mxu0 0.0
  %v9328 = vand.u32 %v9036, 4294901760
  %9329 = vmatpush1.msra.mxu0 %v9328
  %9330 = vmatprep.subr.mxu0 0.0
  %v9331 = vand.u32 %v9037, 4294901760
  %9332 = vmatpush1.msra.mxu0 %v9331
  %9333 = vmatprep.subr.mxu0 0.0
  %v9334 = vand.u32 %v9038, 4294901760
  %9335 = vmatpush1.msra.mxu0 %v9334
  %9336 = vmatprep.subr.mxu0 0.0
  %v9337 = vand.u32 %v9039, 4294901760
  %9338 = vmatpush1.msra.mxu0 %v9337
  %9339 = vmatprep.subr.mxu0 0.0
  %v9340 = vand.u32 %v9040, 4294901760
  %9341 = vmatpush1.msra.mxu0 %v9340
  %9342 = vmatprep.subr.mxu0 0.0
  %v9343 = vand.u32 %v9048, 4294901760
  %9344 = vmatpush1.msra.mxu0 %v9343
  %9345 = vmatprep.subr.mxu0 0.0
  %9346 = vmatpush1.msra.mxu0 0.0
  %9347 = vmatprep.subr.mxu0 0.0
  %9348 = vmatpush1.msra.mxu0 0.0
  %9349 = vmatprep.subr.mxu0 0.0
  %9350 = vmatpush1.msra.mxu0 0.0
  %9351 = vmatprep.subr.mxu0 0.0
  %9352 = vmatpush1.msra.mxu0 0.0
  %9353 = vmatprep.subr.mxu0 0.0
  %9354 = vmatpush1.msra.mxu0 0.0
  %9355 = vmatprep.subr.mxu0 0.0
  %9356 = vmatpush1.msra.mxu0 0.0
  %9357 = vmatprep.subr.mxu0 0.0
  %9358 = vmatpush1.msra.mxu0 0.0
  %9359 = vmatprep.subr.mxu0 0.0
  %9360 = vmatpush1.msra.mxu0 0.0
  %9361 = vmatprep.subr.mxu0 0.0
  %9362 = vmatpush1.msra.mxu0 0.0
  %9363 = vmatprep.subr.mxu0 0.0
  %9364 = vmatpush1.msra.mxu0 0.0
  %9365 = vmatprep.subr.mxu0 0.0
  %9366 = vmatpush1.msra.mxu0 0.0
  %9367 = vmatprep.subr.mxu0 0.0
  %9368 = vmatpush1.msra.mxu0 0.0
  %9369 = vmatprep.subr.mxu0 0.0
  %9370 = vmatpush1.msra.mxu0 0.0
  %9371 = vmatprep.subr.mxu0 0.0
  %9372 = vmatpush1.msra.mxu0 0.0
  %9373 = vmatprep.subr.mxu0 0.0
  %9374 = vmatpush1.msra.mxu0 0.0
  %9375 = vmatprep.subr.mxu0 0.0
  %9376 = vmatpush1.msra.mxu0 0.0
  %9377 = vmatprep.subr.mxu0 0.0
  %9378 = vmatpush1.msra.mxu0 0.0
  %9379 = vmatprep.subr.mxu0 0.0
  %9380 = vmatpush1.msra.mxu0 0.0
  %9381 = vmatprep.subr.mxu0 0.0
  %9382 = vmatpush1.msra.mxu0 0.0
  %9383 = vmatprep.subr.mxu0 0.0
  %9384 = vmatpush1.msra.mxu0 0.0
  %9385 = vmatprep.subr.mxu0 0.0
  %9386 = vmatpush1.msra.mxu0 0.0
  %9387 = vmatprep.subr.mxu0 0.0
  %9388 = vmatpush1.msra.mxu0 0.0
  %9389 = vmatprep.subr.mxu0 0.0
  %9390 = vmatpush1.msra.mxu0 0.0
  %9391 = vmatprep.subr.mxu0 0.0
  %9392 = vmatpush1.msra.mxu0 0.0
  %9393 = vmatprep.subr.mxu0 0.0
  %9394 = vmatpush1.msra.mxu0 0.0
  %9395 = vmatprep.mubr.f32.mxu0 0.0
  %v9396 = vand.u32 %v9044, 4294901760
  %v9397 = vsub.f32 %v9044, %v9396
  %v9398 = vand.u32 %v9397, 4294901760
  %9399 = vmatmul.mubr.f32.gmra.mrb[0].mxu0 %v9398
  %v9400 = vpop.f32.mrb[0].mxu0
  %v9401 = vadd.f32 %v9321, %v9400
  %v9402 = vpop.f32.mrb[0].mxu0
  %9403 = vdwg.mxu0
  %9404 = vmatprep.subr.mxu0 0.0
  %v9405 = vand.u32 %v9035, 4294901760
  %v9406 = vsub.f32 %v9035, %v9405
  %v9407 = vand.u32 %v9406, 4294901760
  %9408 = vmatpush1.msra.mxu0 %v9407
  %9409 = vmatprep.subr.mxu0 0.0
  %v9410 = vand.u32 %v9036, 4294901760
  %v9411 = vsub.f32 %v9036, %v9410
  %v9412 = vand.u32 %v9411, 4294901760
  %9413 = vmatpush1.msra.mxu0 %v9412
  %9414 = vmatprep.subr.mxu0 0.0
  %v9415 = vand.u32 %v9037, 4294901760
  %v9416 = vsub.f32 %v9037, %v9415
  %v9417 = vand.u32 %v9416, 4294901760
  %9418 = vmatpush1.msra.mxu0 %v9417
  %9419 = vmatprep.subr.mxu0 0.0
  %v9420 = vand.u32 %v9038, 4294901760
  %v9421 = vsub.f32 %v9038, %v9420
  %v9422 = vand.u32 %v9421, 4294901760
  %9423 = vmatpush1.msra.mxu0 %v9422
  %9424 = vmatprep.subr.mxu0 0.0
  %v9425 = vand.u32 %v9039, 4294901760
  %v9426 = vsub.f32 %v9039, %v9425
  %v9427 = vand.u32 %v9426, 4294901760
  %9428 = vmatpush1.msra.mxu0 %v9427
  %9429 = vmatprep.subr.mxu0 0.0
  %v9430 = vand.u32 %v9040, 4294901760
  %v9431 = vsub.f32 %v9040, %v9430
  %v9432 = vand.u32 %v9431, 4294901760
  %9433 = vmatpush1.msra.mxu0 %v9432
  %9434 = vmatprep.subr.mxu0 0.0
  %v9435 = vand.u32 %v9048, 4294901760
  %v9436 = vsub.f32 %v9048, %v9435
  %v9437 = vand.u32 %v9436, 4294901760
  %9438 = vmatpush1.msra.mxu0 %v9437
  %9439 = vmatprep.subr.mxu0 0.0
  %9440 = vmatpush1.msra.mxu0 0.0
  %9441 = vmatprep.subr.mxu0 0.0
  %9442 = vmatpush1.msra.mxu0 0.0
  %9443 = vmatprep.subr.mxu0 0.0
  %9444 = vmatpush1.msra.mxu0 0.0
  %9445 = vmatprep.subr.mxu0 0.0
  %9446 = vmatpush1.msra.mxu0 0.0
  %9447 = vmatprep.subr.mxu0 0.0
  %9448 = vmatpush1.msra.mxu0 0.0
  %9449 = vmatprep.subr.mxu0 0.0
  %9450 = vmatpush1.msra.mxu0 0.0
  %9451 = vmatprep.subr.mxu0 0.0
  %9452 = vmatpush1.msra.mxu0 0.0
  %9453 = vmatprep.subr.mxu0 0.0
  %9454 = vmatpush1.msra.mxu0 0.0
  %9455 = vmatprep.subr.mxu0 0.0
  %9456 = vmatpush1.msra.mxu0 0.0
  %9457 = vmatprep.subr.mxu0 0.0
  %9458 = vmatpush1.msra.mxu0 0.0
  %9459 = vmatprep.subr.mxu0 0.0
  %9460 = vmatpush1.msra.mxu0 0.0
  %9461 = vmatprep.subr.mxu0 0.0
  %9462 = vmatpush1.msra.mxu0 0.0
  %9463 = vmatprep.subr.mxu0 0.0
  %9464 = vmatpush1.msra.mxu0 0.0
  %9465 = vmatprep.subr.mxu0 0.0
  %9466 = vmatpush1.msra.mxu0 0.0
  %9467 = vmatprep.subr.mxu0 0.0
  %9468 = vmatpush1.msra.mxu0 0.0
  %9469 = vmatprep.subr.mxu0 0.0
  %9470 = vmatpush1.msra.mxu0 0.0
  %9471 = vmatprep.subr.mxu0 0.0
  %9472 = vmatpush1.msra.mxu0 0.0
  %9473 = vmatprep.subr.mxu0 0.0
  %9474 = vmatpush1.msra.mxu0 0.0
  %9475 = vmatprep.subr.mxu0 0.0
  %9476 = vmatpush1.msra.mxu0 0.0
  %9477 = vmatprep.subr.mxu0 0.0
  %9478 = vmatpush1.msra.mxu0 0.0
  %9479 = vmatprep.subr.mxu0 0.0
  %9480 = vmatpush1.msra.mxu0 0.0
  %9481 = vmatprep.subr.mxu0 0.0
  %9482 = vmatpush1.msra.mxu0 0.0
  %9483 = vmatprep.subr.mxu0 0.0
  %9484 = vmatpush1.msra.mxu0 0.0
  %9485 = vmatprep.subr.mxu0 0.0
  %9486 = vmatpush1.msra.mxu0 0.0
  %9487 = vmatprep.subr.mxu0 0.0
  %9488 = vmatpush1.msra.mxu0 0.0
  %9489 = vmatprep.mubr.f32.mxu0 0.0
  %v9490 = vand.u32 %v9044, 4294901760
  %9491 = vmatmul.mubr.f32.gmra.mrb[0].mxu0 %v9490
  %v9492 = vpop.f32.mrb[0].mxu0
  %v9493 = vadd.f32 %v9401, %v9492
  %v9494 = vpop.f32.mrb[0].mxu0
  %9495 = vdwg.mxu0
  %9496 = vmatprep.subr.mxu0 0.0
  %v9497 = vand.u32 %v9035, 4294901760
  %9498 = vmatpush1.msra.mxu0 %v9497
  %9499 = vmatprep.subr.mxu0 0.0
  %v9500 = vand.u32 %v9036, 4294901760
  %9501 = vmatpush1.msra.mxu0 %v9500
  %9502 = vmatprep.subr.mxu0 0.0
  %v9503 = vand.u32 %v9037, 4294901760
  %9504 = vmatpush1.msra.mxu0 %v9503
  %9505 = vmatprep.subr.mxu0 0.0
  %v9506 = vand.u32 %v9038, 4294901760
  %9507 = vmatpush1.msra.mxu0 %v9506
  %9508 = vmatprep.subr.mxu0 0.0
  %v9509 = vand.u32 %v9039, 4294901760
  %9510 = vmatpush1.msra.mxu0 %v9509
  %9511 = vmatprep.subr.mxu0 0.0
  %v9512 = vand.u32 %v9040, 4294901760
  %9513 = vmatpush1.msra.mxu0 %v9512
  %9514 = vmatprep.subr.mxu0 0.0
  %v9515 = vand.u32 %v9048, 4294901760
  %9516 = vmatpush1.msra.mxu0 %v9515
  %9517 = vmatprep.subr.mxu0 0.0
  %9518 = vmatpush1.msra.mxu0 0.0
  %9519 = vmatprep.subr.mxu0 0.0
  %9520 = vmatpush1.msra.mxu0 0.0
  %9521 = vmatprep.subr.mxu0 0.0
  %9522 = vmatpush1.msra.mxu0 0.0
  %9523 = vmatprep.subr.mxu0 0.0
  %9524 = vmatpush1.msra.mxu0 0.0
  %9525 = vmatprep.subr.mxu0 0.0
  %9526 = vmatpush1.msra.mxu0 0.0
  %9527 = vmatprep.subr.mxu0 0.0
  %9528 = vmatpush1.msra.mxu0 0.0
  %9529 = vmatprep.subr.mxu0 0.0
  %9530 = vmatpush1.msra.mxu0 0.0
  %9531 = vmatprep.subr.mxu0 0.0
  %9532 = vmatpush1.msra.mxu0 0.0
  %9533 = vmatprep.subr.mxu0 0.0
  %9534 = vmatpush1.msra.mxu0 0.0
  %9535 = vmatprep.subr.mxu0 0.0
  %9536 = vmatpush1.msra.mxu0 0.0
  %9537 = vmatprep.subr.mxu0 0.0
  %9538 = vmatpush1.msra.mxu0 0.0
  %9539 = vmatprep.subr.mxu0 0.0
  %9540 = vmatpush1.msra.mxu0 0.0
  %9541 = vmatprep.subr.mxu0 0.0
  %9542 = vmatpush1.msra.mxu0 0.0
  %9543 = vmatprep.subr.mxu0 0.0
  %9544 = vmatpush1.msra.mxu0 0.0
  %9545 = vmatprep.subr.mxu0 0.0
  %9546 = vmatpush1.msra.mxu0 0.0
  %9547 = vmatprep.subr.mxu0 0.0
  %9548 = vmatpush1.msra.mxu0 0.0
  %9549 = vmatprep.subr.mxu0 0.0
  %9550 = vmatpush1.msra.mxu0 0.0
  %9551 = vmatprep.subr.mxu0 0.0
  %9552 = vmatpush1.msra.mxu0 0.0
  %9553 = vmatprep.subr.mxu0 0.0
  %9554 = vmatpush1.msra.mxu0 0.0
  %9555 = vmatprep.subr.mxu0 0.0
  %9556 = vmatpush1.msra.mxu0 0.0
  %9557 = vmatprep.subr.mxu0 0.0
  %9558 = vmatpush1.msra.mxu0 0.0
  %9559 = vmatprep.subr.mxu0 0.0
  %9560 = vmatpush1.msra.mxu0 0.0
  %9561 = vmatprep.subr.mxu0 0.0
  %9562 = vmatpush1.msra.mxu0 0.0
  %9563 = vmatprep.subr.mxu0 0.0
  %9564 = vmatpush1.msra.mxu0 0.0
  %9565 = vmatprep.subr.mxu0 0.0
  %9566 = vmatpush1.msra.mxu0 0.0
  %9567 = vmatprep.mubr.f32.mxu0 0.0
  %v9568 = vand.u32 %v9044, 4294901760
  %9569 = vmatmul.mubr.f32.gmra.mrb[0].mxu0 %v9568
  %v9570 = vpop.f32.mrb[0].mxu0
  %v9571 = vadd.f32 %v9493, %v9570
  %v9572 = vpop.f32.mrb[0].mxu0
  %9573 = vdwg.mxu0
  %v9575 = vsel %vm9042, %v9022, 0
  %v9578 = vsel %vm9046, %v9029, 0
  %9580 = vmatprep.subr.mxu0 0.0
  %v9581 = vand.u32 %v9023, 4294901760
  %9582 = vmatpush1.msra.mxu0 %v9581
  %9583 = vmatprep.subr.mxu0 0.0
  %v9584 = vand.u32 %v9024, 4294901760
  %9585 = vmatpush1.msra.mxu0 %v9584
  %9586 = vmatprep.subr.mxu0 0.0
  %v9587 = vand.u32 %v9025, 4294901760
  %9588 = vmatpush1.msra.mxu0 %v9587
  %9589 = vmatprep.subr.mxu0 0.0
  %v9590 = vand.u32 %v9026, 4294901760
  %9591 = vmatpush1.msra.mxu0 %v9590
  %9592 = vmatprep.subr.mxu0 0.0
  %v9593 = vand.u32 %v9027, 4294901760
  %9594 = vmatpush1.msra.mxu0 %v9593
  %9595 = vmatprep.subr.mxu0 0.0
  %v9596 = vand.u32 %v9028, 4294901760
  %9597 = vmatpush1.msra.mxu0 %v9596
  %9598 = vmatprep.subr.mxu0 0.0
  %v9599 = vand.u32 %v9578, 4294901760
  %9600 = vmatpush1.msra.mxu0 %v9599
  %9601 = vmatprep.subr.mxu0 0.0
  %9602 = vmatpush1.msra.mxu0 0.0
  %9603 = vmatprep.subr.mxu0 0.0
  %9604 = vmatpush1.msra.mxu0 0.0
  %9605 = vmatprep.subr.mxu0 0.0
  %9606 = vmatpush1.msra.mxu0 0.0
  %9607 = vmatprep.subr.mxu0 0.0
  %9608 = vmatpush1.msra.mxu0 0.0
  %9609 = vmatprep.subr.mxu0 0.0
  %9610 = vmatpush1.msra.mxu0 0.0
  %9611 = vmatprep.subr.mxu0 0.0
  %9612 = vmatpush1.msra.mxu0 0.0
  %9613 = vmatprep.subr.mxu0 0.0
  %9614 = vmatpush1.msra.mxu0 0.0
  %9615 = vmatprep.subr.mxu0 0.0
  %9616 = vmatpush1.msra.mxu0 0.0
  %9617 = vmatprep.subr.mxu0 0.0
  %9618 = vmatpush1.msra.mxu0 0.0
  %9619 = vmatprep.subr.mxu0 0.0
  %9620 = vmatpush1.msra.mxu0 0.0
  %9621 = vmatprep.subr.mxu0 0.0
  %9622 = vmatpush1.msra.mxu0 0.0
  %9623 = vmatprep.subr.mxu0 0.0
  %9624 = vmatpush1.msra.mxu0 0.0
  %9625 = vmatprep.subr.mxu0 0.0
  %9626 = vmatpush1.msra.mxu0 0.0
  %9627 = vmatprep.subr.mxu0 0.0
  %9628 = vmatpush1.msra.mxu0 0.0
  %9629 = vmatprep.subr.mxu0 0.0
  %9630 = vmatpush1.msra.mxu0 0.0
  %9631 = vmatprep.subr.mxu0 0.0
  %9632 = vmatpush1.msra.mxu0 0.0
  %9633 = vmatprep.subr.mxu0 0.0
  %9634 = vmatpush1.msra.mxu0 0.0
  %9635 = vmatprep.subr.mxu0 0.0
  %9636 = vmatpush1.msra.mxu0 0.0
  %9637 = vmatprep.subr.mxu0 0.0
  %9638 = vmatpush1.msra.mxu0 0.0
  %9639 = vmatprep.subr.mxu0 0.0
  %9640 = vmatpush1.msra.mxu0 0.0
  %9641 = vmatprep.subr.mxu0 0.0
  %9642 = vmatpush1.msra.mxu0 0.0
  %9643 = vmatprep.subr.mxu0 0.0
  %9644 = vmatpush1.msra.mxu0 0.0
  %9645 = vmatprep.subr.mxu0 0.0
  %9646 = vmatpush1.msra.mxu0 0.0
  %9647 = vmatprep.subr.mxu0 0.0
  %9648 = vmatpush1.msra.mxu0 0.0
  %9649 = vmatprep.subr.mxu0 0.0
  %9650 = vmatpush1.msra.mxu0 0.0
  %9651 = vmatprep.mubr.f32.mxu0 0.0
  %v9652 = vand.u32 %v9575, 4294901760
  %v9653 = vsub.f32 %v9575, %v9652
  %v9654 = vand.u32 %v9653, 4294901760
  %v9655 = vsub.f32 %v9653, %v9654
  %v9656 = vand.u32 %v9655, 4294901760
  %9657 = vmatmul.mubr.f32.gmra.mrb[0].mxu0 %v9656
  %v9658 = vpop.f32.mrb[0].mxu0
  %v9659 = vadd.f32 %v9571, %v9658
  %v9660 = vpop.f32.mrb[0].mxu0
  %9661 = vdwg.mxu0
  %9662 = vmatprep.subr.mxu0 0.0
  %v9663 = vand.u32 %v9023, 4294901760
  %v9664 = vsub.f32 %v9023, %v9663
  %v9665 = vand.u32 %v9664, 4294901760
  %v9666 = vsub.f32 %v9664, %v9665
  %v9667 = vand.u32 %v9666, 4294901760
  %9668 = vmatpush1.msra.mxu0 %v9667
  %9669 = vmatprep.subr.mxu0 0.0
  %v9670 = vand.u32 %v9024, 4294901760
  %v9671 = vsub.f32 %v9024, %v9670
  %v9672 = vand.u32 %v9671, 4294901760
  %v9673 = vsub.f32 %v9671, %v9672
  %v9674 = vand.u32 %v9673, 4294901760
  %9675 = vmatpush1.msra.mxu0 %v9674
  %9676 = vmatprep.subr.mxu0 0.0
  %v9677 = vand.u32 %v9025, 4294901760
  %v9678 = vsub.f32 %v9025, %v9677
  %v9679 = vand.u32 %v9678, 4294901760
  %v9680 = vsub.f32 %v9678, %v9679
  %v9681 = vand.u32 %v9680, 4294901760
  %9682 = vmatpush1.msra.mxu0 %v9681
  %9683 = vmatprep.subr.mxu0 0.0
  %v9684 = vand.u32 %v9026, 4294901760
  %v9685 = vsub.f32 %v9026, %v9684
  %v9686 = vand.u32 %v9685, 4294901760
  %v9687 = vsub.f32 %v9685, %v9686
  %v9688 = vand.u32 %v9687, 4294901760
  %9689 = vmatpush1.msra.mxu0 %v9688
  %9690 = vmatprep.subr.mxu0 0.0
  %v9691 = vand.u32 %v9027, 4294901760
  %v9692 = vsub.f32 %v9027, %v9691
  %v9693 = vand.u32 %v9692, 4294901760
  %v9694 = vsub.f32 %v9692, %v9693
  %v9695 = vand.u32 %v9694, 4294901760
  %9696 = vmatpush1.msra.mxu0 %v9695
  %9697 = vmatprep.subr.mxu0 0.0
  %v9698 = vand.u32 %v9028, 4294901760
  %v9699 = vsub.f32 %v9028, %v9698
  %v9700 = vand.u32 %v9699, 4294901760
  %v9701 = vsub.f32 %v9699, %v9700
  %v9702 = vand.u32 %v9701, 4294901760
  %9703 = vmatpush1.msra.mxu0 %v9702
  %9704 = vmatprep.subr.mxu0 0.0
  %v9705 = vand.u32 %v9578, 4294901760
  %v9706 = vsub.f32 %v9578, %v9705
  %v9707 = vand.u32 %v9706, 4294901760
  %v9708 = vsub.f32 %v9706, %v9707
  %v9709 = vand.u32 %v9708, 4294901760
  %9710 = vmatpush1.msra.mxu0 %v9709
  %9711 = vmatprep.subr.mxu0 0.0
  %9712 = vmatpush1.msra.mxu0 0.0
  %9713 = vmatprep.subr.mxu0 0.0
  %9714 = vmatpush1.msra.mxu0 0.0
  %9715 = vmatprep.subr.mxu0 0.0
  %9716 = vmatpush1.msra.mxu0 0.0
  %9717 = vmatprep.subr.mxu0 0.0
  %9718 = vmatpush1.msra.mxu0 0.0
  %9719 = vmatprep.subr.mxu0 0.0
  %9720 = vmatpush1.msra.mxu0 0.0
  %9721 = vmatprep.subr.mxu0 0.0
  %9722 = vmatpush1.msra.mxu0 0.0
  %9723 = vmatprep.subr.mxu0 0.0
  %9724 = vmatpush1.msra.mxu0 0.0
  %9725 = vmatprep.subr.mxu0 0.0
  %9726 = vmatpush1.msra.mxu0 0.0
  %9727 = vmatprep.subr.mxu0 0.0
  %9728 = vmatpush1.msra.mxu0 0.0
  %9729 = vmatprep.subr.mxu0 0.0
  %9730 = vmatpush1.msra.mxu0 0.0
  %9731 = vmatprep.subr.mxu0 0.0
  %9732 = vmatpush1.msra.mxu0 0.0
  %9733 = vmatprep.subr.mxu0 0.0
  %9734 = vmatpush1.msra.mxu0 0.0
  %9735 = vmatprep.subr.mxu0 0.0
  %9736 = vmatpush1.msra.mxu0 0.0
  %9737 = vmatprep.subr.mxu0 0.0
  %9738 = vmatpush1.msra.mxu0 0.0
  %9739 = vmatprep.subr.mxu0 0.0
  %9740 = vmatpush1.msra.mxu0 0.0
  %9741 = vmatprep.subr.mxu0 0.0
  %9742 = vmatpush1.msra.mxu0 0.0
  %9743 = vmatprep.subr.mxu0 0.0
  %9744 = vmatpush1.msra.mxu0 0.0
  %9745 = vmatprep.subr.mxu0 0.0
  %9746 = vmatpush1.msra.mxu0 0.0
  %9747 = vmatprep.subr.mxu0 0.0
  %9748 = vmatpush1.msra.mxu0 0.0
  %9749 = vmatprep.subr.mxu0 0.0
  %9750 = vmatpush1.msra.mxu0 0.0
  %9751 = vmatprep.subr.mxu0 0.0
  %9752 = vmatpush1.msra.mxu0 0.0
  %9753 = vmatprep.subr.mxu0 0.0
  %9754 = vmatpush1.msra.mxu0 0.0
  %9755 = vmatprep.subr.mxu0 0.0
  %9756 = vmatpush1.msra.mxu0 0.0
  %9757 = vmatprep.subr.mxu0 0.0
  %9758 = vmatpush1.msra.mxu0 0.0
  %9759 = vmatprep.subr.mxu0 0.0
  %9760 = vmatpush1.msra.mxu0 0.0
  %9761 = vmatprep.mubr.f32.mxu0 0.0
  %v9762 = vand.u32 %v9575, 4294901760
  %9763 = vmatmul.mubr.f32.gmra.mrb[0].mxu0 %v9762
  %v9764 = vpop.f32.mrb[0].mxu0
  %v9765 = vadd.f32 %v9659, %v9764
  %v9766 = vpop.f32.mrb[0].mxu0
  %9767 = vdwg.mxu0
  %9768 = vmatprep.subr.mxu0 0.0
  %v9769 = vand.u32 %v9023, 4294901760
  %v9770 = vsub.f32 %v9023, %v9769
  %9771 = vmatpush1.msra.mxu0 %v9770
  %9772 = vmatprep.subr.mxu0 0.0
  %v9773 = vand.u32 %v9024, 4294901760
  %v9774 = vsub.f32 %v9024, %v9773
  %9775 = vmatpush1.msra.mxu0 %v9774
  %9776 = vmatprep.subr.mxu0 0.0
  %v9777 = vand.u32 %v9025, 4294901760
  %v9778 = vsub.f32 %v9025, %v9777
  %9779 = vmatpush1.msra.mxu0 %v9778
  %9780 = vmatprep.subr.mxu0 0.0
  %v9781 = vand.u32 %v9026, 4294901760
  %v9782 = vsub.f32 %v9026, %v9781
  %9783 = vmatpush1.msra.mxu0 %v9782
  %9784 = vmatprep.subr.mxu0 0.0
  %v9785 = vand.u32 %v9027, 4294901760
  %v9786 = vsub.f32 %v9027, %v9785
  %9787 = vmatpush1.msra.mxu0 %v9786
  %9788 = vmatprep.subr.mxu0 0.0
  %v9789 = vand.u32 %v9028, 4294901760
  %v9790 = vsub.f32 %v9028, %v9789
  %9791 = vmatpush1.msra.mxu0 %v9790
  %9792 = vmatprep.subr.mxu0 0.0
  %v9793 = vand.u32 %v9578, 4294901760
  %v9794 = vsub.f32 %v9578, %v9793
  %9795 = vmatpush1.msra.mxu0 %v9794
  %9796 = vmatprep.subr.mxu0 0.0
  %9797 = vmatpush1.msra.mxu0 0.0
  %9798 = vmatprep.subr.mxu0 0.0
  %9799 = vmatpush1.msra.mxu0 0.0
  %9800 = vmatprep.subr.mxu0 0.0
  %9801 = vmatpush1.msra.mxu0 0.0
  %9802 = vmatprep.subr.mxu0 0.0
  %9803 = vmatpush1.msra.mxu0 0.0
  %9804 = vmatprep.subr.mxu0 0.0
  %9805 = vmatpush1.msra.mxu0 0.0
  %9806 = vmatprep.subr.mxu0 0.0
  %9807 = vmatpush1.msra.mxu0 0.0
  %9808 = vmatprep.subr.mxu0 0.0
  %9809 = vmatpush1.msra.mxu0 0.0
  %9810 = vmatprep.subr.mxu0 0.0
  %9811 = vmatpush1.msra.mxu0 0.0
  %9812 = vmatprep.subr.mxu0 0.0
  %9813 = vmatpush1.msra.mxu0 0.0
  %9814 = vmatprep.subr.mxu0 0.0
  %9815 = vmatpush1.msra.mxu0 0.0
  %9816 = vmatprep.subr.mxu0 0.0
  %9817 = vmatpush1.msra.mxu0 0.0
  %9818 = vmatprep.subr.mxu0 0.0
  %9819 = vmatpush1.msra.mxu0 0.0
  %9820 = vmatprep.subr.mxu0 0.0
  %9821 = vmatpush1.msra.mxu0 0.0
  %9822 = vmatprep.subr.mxu0 0.0
  %9823 = vmatpush1.msra.mxu0 0.0
  %9824 = vmatprep.subr.mxu0 0.0
  %9825 = vmatpush1.msra.mxu0 0.0
  %9826 = vmatprep.subr.mxu0 0.0
  %9827 = vmatpush1.msra.mxu0 0.0
  %9828 = vmatprep.subr.mxu0 0.0
  %9829 = vmatpush1.msra.mxu0 0.0
  %9830 = vmatprep.subr.mxu0 0.0
  %9831 = vmatpush1.msra.mxu0 0.0
  %9832 = vmatprep.subr.mxu0 0.0
  %9833 = vmatpush1.msra.mxu0 0.0
  %9834 = vmatprep.subr.mxu0 0.0
  %9835 = vmatpush1.msra.mxu0 0.0
  %9836 = vmatprep.subr.mxu0 0.0
  %9837 = vmatpush1.msra.mxu0 0.0
  %9838 = vmatprep.subr.mxu0 0.0
  %9839 = vmatpush1.msra.mxu0 0.0
  %9840 = vmatprep.subr.mxu0 0.0
  %9841 = vmatpush1.msra.mxu0 0.0
  %9842 = vmatprep.subr.mxu0 0.0
  %9843 = vmatpush1.msra.mxu0 0.0
  %9844 = vmatprep.subr.mxu0 0.0
  %9845 = vmatpush1.msra.mxu0 0.0
  %9846 = vmatprep.mubr.f32.mxu0 0.0
  %v9847 = vand.u32 %v9575, 4294901760
  %v9848 = vsub.f32 %v9575, %v9847
  %9849 = vmatmul.mubr.f32.gmra.mrb[0].mxu0 %v9848
  %v9850 = vpop.f32.mrb[0].mxu0
  %v9851 = vadd.f32 %v9765, %v9850
  %v9852 = vpop.f32.mrb[0].mxu0
  %9853 = vdwg.mxu0
  %9854 = vmatprep.subr.mxu0 0.0
  %v9855 = vand.u32 %v9023, 4294901760
  %9856 = vmatpush1.msra.mxu0 %v9855
  %9857 = vmatprep.subr.mxu0 0.0
  %v9858 = vand.u32 %v9024, 4294901760
  %9859 = vmatpush1.msra.mxu0 %v9858
  %9860 = vmatprep.subr.mxu0 0.0
  %v9861 = vand.u32 %v9025, 4294901760
  %9862 = vmatpush1.msra.mxu0 %v9861
  %9863 = vmatprep.subr.mxu0 0.0
  %v9864 = vand.u32 %v9026, 4294901760
  %9865 = vmatpush1.msra.mxu0 %v9864
  %9866 = vmatprep.subr.mxu0 0.0
  %v9867 = vand.u32 %v9027, 4294901760
  %9868 = vmatpush1.msra.mxu0 %v9867
  %9869 = vmatprep.subr.mxu0 0.0
  %v9870 = vand.u32 %v9028, 4294901760
  %9871 = vmatpush1.msra.mxu0 %v9870
  %9872 = vmatprep.subr.mxu0 0.0
  %v9873 = vand.u32 %v9578, 4294901760
  %9874 = vmatpush1.msra.mxu0 %v9873
  %9875 = vmatprep.subr.mxu0 0.0
  %9876 = vmatpush1.msra.mxu0 0.0
  %9877 = vmatprep.subr.mxu0 0.0
  %9878 = vmatpush1.msra.mxu0 0.0
  %9879 = vmatprep.subr.mxu0 0.0
  %9880 = vmatpush1.msra.mxu0 0.0
  %9881 = vmatprep.subr.mxu0 0.0
  %9882 = vmatpush1.msra.mxu0 0.0
  %9883 = vmatprep.subr.mxu0 0.0
  %9884 = vmatpush1.msra.mxu0 0.0
  %9885 = vmatprep.subr.mxu0 0.0
  %9886 = vmatpush1.msra.mxu0 0.0
  %9887 = vmatprep.subr.mxu0 0.0
  %9888 = vmatpush1.msra.mxu0 0.0
  %9889 = vmatprep.subr.mxu0 0.0
  %9890 = vmatpush1.msra.mxu0 0.0
  %9891 = vmatprep.subr.mxu0 0.0
  %9892 = vmatpush1.msra.mxu0 0.0
  %9893 = vmatprep.subr.mxu0 0.0
  %9894 = vmatpush1.msra.mxu0 0.0
  %9895 = vmatprep.subr.mxu0 0.0
  %9896 = vmatpush1.msra.mxu0 0.0
  %9897 = vmatprep.subr.mxu0 0.0
  %9898 = vmatpush1.msra.mxu0 0.0
  %9899 = vmatprep.subr.mxu0 0.0
  %9900 = vmatpush1.msra.mxu0 0.0
  %9901 = vmatprep.subr.mxu0 0.0
  %9902 = vmatpush1.msra.mxu0 0.0
  %9903 = vmatprep.subr.mxu0 0.0
  %9904 = vmatpush1.msra.mxu0 0.0
  %9905 = vmatprep.subr.mxu0 0.0
  %9906 = vmatpush1.msra.mxu0 0.0
  %9907 = vmatprep.subr.mxu0 0.0
  %9908 = vmatpush1.msra.mxu0 0.0
  %9909 = vmatprep.subr.mxu0 0.0
  %9910 = vmatpush1.msra.mxu0 0.0
  %9911 = vmatprep.subr.mxu0 0.0
  %9912 = vmatpush1.msra.mxu0 0.0
  %9913 = vmatprep.subr.mxu0 0.0
  %9914 = vmatpush1.msra.mxu0 0.0
  %9915 = vmatprep.subr.mxu0 0.0
  %9916 = vmatpush1.msra.mxu0 0.0
  %9917 = vmatprep.subr.mxu0 0.0
  %9918 = vmatpush1.msra.mxu0 0.0
  %9919 = vmatprep.subr.mxu0 0.0
  %9920 = vmatpush1.msra.mxu0 0.0
  %9921 = vmatprep.subr.mxu0 0.0
  %9922 = vmatpush1.msra.mxu0 0.0
  %9923 = vmatprep.subr.mxu0 0.0
  %9924 = vmatpush1.msra.mxu0 0.0
  %9925 = vmatprep.mubr.f32.mxu0 0.0
  %v9926 = vand.u32 %v9575, 4294901760
  %v9927 = vsub.f32 %v9575, %v9926
  %v9928 = vand.u32 %v9927, 4294901760
  %9929 = vmatmul.mubr.f32.gmra.mrb[0].mxu0 %v9928
  %v9930 = vpop.f32.mrb[0].mxu0
  %v9931 = vadd.f32 %v9851, %v9930
  %v9932 = vpop.f32.mrb[0].mxu0
  %9933 = vdwg.mxu0
  %9934 = vmatprep.subr.mxu0 0.0
  %v9935 = vand.u32 %v9023, 4294901760
  %v9936 = vsub.f32 %v9023, %v9935
  %v9937 = vand.u32 %v9936, 4294901760
  %9938 = vmatpush1.msra.mxu0 %v9937
  %9939 = vmatprep.subr.mxu0 0.0
  %v9940 = vand.u32 %v9024, 4294901760
  %v9941 = vsub.f32 %v9024, %v9940
  %v9942 = vand.u32 %v9941, 4294901760
  %9943 = vmatpush1.msra.mxu0 %v9942
  %9944 = vmatprep.subr.mxu0 0.0
  %v9945 = vand.u32 %v9025, 4294901760
  %v9946 = vsub.f32 %v9025, %v9945
  %v9947 = vand.u32 %v9946, 4294901760
  %9948 = vmatpush1.msra.mxu0 %v9947
  %9949 = vmatprep.subr.mxu0 0.0
  %v9950 = vand.u32 %v9026, 4294901760
  %v9951 = vsub.f32 %v9026, %v9950
  %v9952 = vand.u32 %v9951, 4294901760
  %9953 = vmatpush1.msra.mxu0 %v9952
  %9954 = vmatprep.subr.mxu0 0.0
  %v9955 = vand.u32 %v9027, 4294901760
  %v9956 = vsub.f32 %v9027, %v9955
  %v9957 = vand.u32 %v9956, 4294901760
  %9958 = vmatpush1.msra.mxu0 %v9957
  %9959 = vmatprep.subr.mxu0 0.0
  %v9960 = vand.u32 %v9028, 4294901760
  %v9961 = vsub.f32 %v9028, %v9960
  %v9962 = vand.u32 %v9961, 4294901760
  %9963 = vmatpush1.msra.mxu0 %v9962
  %9964 = vmatprep.subr.mxu0 0.0
  %v9965 = vand.u32 %v9578, 4294901760
  %v9966 = vsub.f32 %v9578, %v9965
  %v9967 = vand.u32 %v9966, 4294901760
  %9968 = vmatpush1.msra.mxu0 %v9967
  %9969 = vmatprep.subr.mxu0 0.0
  %9970 = vmatpush1.msra.mxu0 0.0
  %9971 = vmatprep.subr.mxu0 0.0
  %9972 = vmatpush1.msra.mxu0 0.0
  %9973 = vmatprep.subr.mxu0 0.0
  %9974 = vmatpush1.msra.mxu0 0.0
  %9975 = vmatprep.subr.mxu0 0.0
  %9976 = vmatpush1.msra.mxu0 0.0
  %9977 = vmatprep.subr.mxu0 0.0
  %9978 = vmatpush1.msra.mxu0 0.0
  %9979 = vmatprep.subr.mxu0 0.0
  %9980 = vmatpush1.msra.mxu0 0.0
  %9981 = vmatprep.subr.mxu0 0.0
  %9982 = vmatpush1.msra.mxu0 0.0
  %9983 = vmatprep.subr.mxu0 0.0
  %9984 = vmatpush1.msra.mxu0 0.0
  %9985 = vmatprep.subr.mxu0 0.0
  %9986 = vmatpush1.msra.mxu0 0.0
  %9987 = vmatprep.subr.mxu0 0.0
  %9988 = vmatpush1.msra.mxu0 0.0
  %9989 = vmatprep.subr.mxu0 0.0
  %9990 = vmatpush1.msra.mxu0 0.0
  %9991 = vmatprep.subr.mxu0 0.0
  %9992 = vmatpush1.msra.mxu0 0.0
  %9993 = vmatprep.subr.mxu0 0.0
  %9994 = vmatpush1.msra.mxu0 0.0
  %9995 = vmatprep.subr.mxu0 0.0
  %9996 = vmatpush1.msra.mxu0 0.0
  %9997 = vmatprep.subr.mxu0 0.0
  %9998 = vmatpush1.msra.mxu0 0.0
  %9999 = vmatprep.subr.mxu0 0.0
  %10000 = vmatpush1.msra.mxu0 0.0
  %10001 = vmatprep.subr.mxu0 0.0
  %10002 = vmatpush1.msra.mxu0 0.0
  %10003 = vmatprep.subr.mxu0 0.0
  %10004 = vmatpush1.msra.mxu0 0.0
  %10005 = vmatprep.subr.mxu0 0.0
  %10006 = vmatpush1.msra.mxu0 0.0
  %10007 = vmatprep.subr.mxu0 0.0
  %10008 = vmatpush1.msra.mxu0 0.0
  %10009 = vmatprep.subr.mxu0 0.0
  %10010 = vmatpush1.msra.mxu0 0.0
  %10011 = vmatprep.subr.mxu0 0.0
  %10012 = vmatpush1.msra.mxu0 0.0
  %10013 = vmatprep.subr.mxu0 0.0
  %10014 = vmatpush1.msra.mxu0 0.0
  %10015 = vmatprep.subr.mxu0 0.0
  %10016 = vmatpush1.msra.mxu0 0.0
  %10017 = vmatprep.subr.mxu0 0.0
  %10018 = vmatpush1.msra.mxu0 0.0
  %10019 = vmatprep.mubr.f32.mxu0 0.0
  %v10020 = vand.u32 %v9575, 4294901760
  %10021 = vmatmul.mubr.f32.gmra.mrb[0].mxu0 %v10020
  %v10022 = vpop.f32.mrb[0].mxu0
  %v10023 = vadd.f32 %v9931, %v10022
  %v10024 = vpop.f32.mrb[0].mxu0
  %10025 = vdwg.mxu0
  %10026 = vmatprep.subr.mxu0 0.0
  %v10027 = vand.u32 %v9023, 4294901760
  %10028 = vmatpush1.msra.mxu0 %v10027
  %10029 = vmatprep.subr.mxu0 0.0
  %v10030 = vand.u32 %v9024, 4294901760
  %10031 = vmatpush1.msra.mxu0 %v10030
  %10032 = vmatprep.subr.mxu0 0.0
  %v10033 = vand.u32 %v9025, 4294901760
  %10034 = vmatpush1.msra.mxu0 %v10033
  %10035 = vmatprep.subr.mxu0 0.0
  %v10036 = vand.u32 %v9026, 4294901760
  %10037 = vmatpush1.msra.mxu0 %v10036
  %10038 = vmatprep.subr.mxu0 0.0
  %v10039 = vand.u32 %v9027, 4294901760
  %10040 = vmatpush1.msra.mxu0 %v10039
  %10041 = vmatprep.subr.mxu0 0.0
  %v10042 = vand.u32 %v9028, 4294901760
  %10043 = vmatpush1.msra.mxu0 %v10042
  %10044 = vmatprep.subr.mxu0 0.0
  %v10045 = vand.u32 %v9578, 4294901760
  %10046 = vmatpush1.msra.mxu0 %v10045
  %10047 = vmatprep.subr.mxu0 0.0
  %10048 = vmatpush1.msra.mxu0 0.0
  %10049 = vmatprep.subr.mxu0 0.0
  %10050 = vmatpush1.msra.mxu0 0.0
  %10051 = vmatprep.subr.mxu0 0.0
  %10052 = vmatpush1.msra.mxu0 0.0
  %10053 = vmatprep.subr.mxu0 0.0
  %10054 = vmatpush1.msra.mxu0 0.0
  %10055 = vmatprep.subr.mxu0 0.0
  %10056 = vmatpush1.msra.mxu0 0.0
  %10057 = vmatprep.subr.mxu0 0.0
  %10058 = vmatpush1.msra.mxu0 0.0
  %10059 = vmatprep.subr.mxu0 0.0
  %10060 = vmatpush1.msra.mxu0 0.0
  %10061 = vmatprep.subr.mxu0 0.0
  %10062 = vmatpush1.msra.mxu0 0.0
  %10063 = vmatprep.subr.mxu0 0.0
  %10064 = vmatpush1.msra.mxu0 0.0
  %10065 = vmatprep.subr.mxu0 0.0
  %10066 = vmatpush1.msra.mxu0 0.0
  %10067 = vmatprep.subr.mxu0 0.0
  %10068 = vmatpush1.msra.mxu0 0.0
  %10069 = vmatprep.subr.mxu0 0.0
  %10070 = vmatpush1.msra.mxu0 0.0
  %10071 = vmatprep.subr.mxu0 0.0
  %10072 = vmatpush1.msra.mxu0 0.0
  %10073 = vmatprep.subr.mxu0 0.0
  %10074 = vmatpush1.msra.mxu0 0.0
  %10075 = vmatprep.subr.mxu0 0.0
  %10076 = vmatpush1.msra.mxu0 0.0
  %10077 = vmatprep.subr.mxu0 0.0
  %10078 = vmatpush1.msra.mxu0 0.0
  %10079 = vmatprep.subr.mxu0 0.0
  %10080 = vmatpush1.msra.mxu0 0.0
  %10081 = vmatprep.subr.mxu0 0.0
  %10082 = vmatpush1.msra.mxu0 0.0
  %10083 = vmatprep.subr.mxu0 0.0
  %10084 = vmatpush1.msra.mxu0 0.0
  %10085 = vmatprep.subr.mxu0 0.0
  %10086 = vmatpush1.msra.mxu0 0.0
  %10087 = vmatprep.subr.mxu0 0.0
  %10088 = vmatpush1.msra.mxu0 0.0
  %10089 = vmatprep.subr.mxu0 0.0
  %10090 = vmatpush1.msra.mxu0 0.0
  %10091 = vmatprep.subr.mxu0 0.0
  %10092 = vmatpush1.msra.mxu0 0.0
  %10093 = vmatprep.subr.mxu0 0.0
  %10094 = vmatpush1.msra.mxu0 0.0
  %10095 = vmatprep.subr.mxu0 0.0
  %10096 = vmatpush1.msra.mxu0 0.0
  %10097 = vmatprep.mubr.f32.mxu0 0.0
  %v10098 = vand.u32 %v9575, 4294901760
  %10099 = vmatmul.mubr.f32.gmra.mrb[0].mxu0 %v10098
  %v10100 = vpop.f32.mrb[0].mxu0
  %v10101 = vadd.f32 %v10023, %v10100
  %v10102 = vpop.f32.mrb[0].mxu0
  %10103 = vdwg.mxu0
  %s10104 = scalar_lea.vmem [#allocation4], 2
  %v10105 = vld [vmem:[%s10104] ss:$8 sm:$0xf]
  %v10106 = vld [vmem:[%s10104] ss:$8 sm:$0xf0]
  %v10107 = vor.u32 %v10105, %v10106
  %s10108 = scalar_lea.vmem %s7, 112
  %v10109 = vld [vmem:[%s10108] sm:$0xff]
  %v10110 = vld [vmem:[%s10108 + $0x8] sm:$0xff]
  %v10111 = vld [vmem:[%s10108 + $0x10] sm:$0xff]
  %v10112 = vld [vmem:[%s10108 + $0x18] sm:$0xff]
  %v10113 = vld [vmem:[%s10108 + $0x20] sm:$0xff]
  %v10114 = vld [vmem:[%s10108 + $0x28] sm:$0xff]
  %v10115 = vld [vmem:[%s10108 + $0x30] sm:$0x3]
  %v10117 = vsel %vm9042, %v10107, 0
  %v10120 = vsel %vm9046, %v10115, 0
  %10122 = vmatprep.subr.mxu0 0.0
  %v10123 = vand.u32 %v10109, 4294901760
  %10124 = vmatpush1.msra.mxu0 %v10123
  %10125 = vmatprep.subr.mxu0 0.0
  %v10126 = vand.u32 %v10110, 4294901760
  %10127 = vmatpush1.msra.mxu0 %v10126
  %10128 = vmatprep.subr.mxu0 0.0
  %v10129 = vand.u32 %v10111, 4294901760
  %10130 = vmatpush1.msra.mxu0 %v10129
  %10131 = vmatprep.subr.mxu0 0.0
  %v10132 = vand.u32 %v10112, 4294901760
  %10133 = vmatpush1.msra.mxu0 %v10132
  %10134 = vmatprep.subr.mxu0 0.0
  %v10135 = vand.u32 %v10113, 4294901760
  %10136 = vmatpush1.msra.mxu0 %v10135
  %10137 = vmatprep.subr.mxu0 0.0
  %v10138 = vand.u32 %v10114, 4294901760
  %10139 = vmatpush1.msra.mxu0 %v10138
  %10140 = vmatprep.subr.mxu0 0.0
  %v10141 = vand.u32 %v10120, 4294901760
  %10142 = vmatpush1.msra.mxu0 %v10141
  %10143 = vmatprep.subr.mxu0 0.0
  %10144 = vmatpush1.msra.mxu0 0.0
  %10145 = vmatprep.subr.mxu0 0.0
  %10146 = vmatpush1.msra.mxu0 0.0
  %10147 = vmatprep.subr.mxu0 0.0
  %10148 = vmatpush1.msra.mxu0 0.0
  %10149 = vmatprep.subr.mxu0 0.0
  %10150 = vmatpush1.msra.mxu0 0.0
  %10151 = vmatprep.subr.mxu0 0.0
  %10152 = vmatpush1.msra.mxu0 0.0
  %10153 = vmatprep.subr.mxu0 0.0
  %10154 = vmatpush1.msra.mxu0 0.0
  %10155 = vmatprep.subr.mxu0 0.0
  %10156 = vmatpush1.msra.mxu0 0.0
  %10157 = vmatprep.subr.mxu0 0.0
  %10158 = vmatpush1.msra.mxu0 0.0
  %10159 = vmatprep.subr.mxu0 0.0
  %10160 = vmatpush1.msra.mxu0 0.0
  %10161 = vmatprep.subr.mxu0 0.0
  %10162 = vmatpush1.msra.mxu0 0.0
  %10163 = vmatprep.subr.mxu0 0.0
  %10164 = vmatpush1.msra.mxu0 0.0
  %10165 = vmatprep.subr.mxu0 0.0
  %10166 = vmatpush1.msra.mxu0 0.0
  %10167 = vmatprep.subr.mxu0 0.0
  %10168 = vmatpush1.msra.mxu0 0.0
  %10169 = vmatprep.subr.mxu0 0.0
  %10170 = vmatpush1.msra.mxu0 0.0
  %10171 = vmatprep.subr.mxu0 0.0
  %10172 = vmatpush1.msra.mxu0 0.0
  %10173 = vmatprep.subr.mxu0 0.0
  %10174 = vmatpush1.msra.mxu0 0.0
  %10175 = vmatprep.subr.mxu0 0.0
  %10176 = vmatpush1.msra.mxu0 0.0
  %10177 = vmatprep.subr.mxu0 0.0
  %10178 = vmatpush1.msra.mxu0 0.0
  %10179 = vmatprep.subr.mxu0 0.0
  %10180 = vmatpush1.msra.mxu0 0.0
  %10181 = vmatprep.subr.mxu0 0.0
  %10182 = vmatpush1.msra.mxu0 0.0
  %10183 = vmatprep.subr.mxu0 0.0
  %10184 = vmatpush1.msra.mxu0 0.0
  %10185 = vmatprep.subr.mxu0 0.0
  %10186 = vmatpush1.msra.mxu0 0.0
  %10187 = vmatprep.subr.mxu0 0.0
  %10188 = vmatpush1.msra.mxu0 0.0
  %10189 = vmatprep.subr.mxu0 0.0
  %10190 = vmatpush1.msra.mxu0 0.0
  %10191 = vmatprep.subr.mxu0 0.0
  %10192 = vmatpush1.msra.mxu0 0.0
  %10193 = vmatprep.mubr.f32.mxu0 0.0
  %v10194 = vand.u32 %v10117, 4294901760
  %v10195 = vsub.f32 %v10117, %v10194
  %v10196 = vand.u32 %v10195, 4294901760
  %v10197 = vsub.f32 %v10195, %v10196
  %v10198 = vand.u32 %v10197, 4294901760
  %10199 = vmatmul.mubr.f32.gmra.mrb[0].mxu0 %v10198
  %v10200 = vpop.f32.mrb[0].mxu0
  %v10201 = vadd.f32 0.0, %v10200
  %v10202 = vpop.f32.mrb[0].mxu0
  %10203 = vdwg.mxu0
  %10204 = vmatprep.subr.mxu0 0.0
  %v10205 = vand.u32 %v10109, 4294901760
  %v10206 = vsub.f32 %v10109, %v10205
  %v10207 = vand.u32 %v10206, 4294901760
  %v10208 = vsub.f32 %v10206, %v10207
  %v10209 = vand.u32 %v10208, 4294901760
  %10210 = vmatpush1.msra.mxu0 %v10209
  %10211 = vmatprep.subr.mxu0 0.0
  %v10212 = vand.u32 %v10110, 4294901760
  %v10213 = vsub.f32 %v10110, %v10212
  %v10214 = vand.u32 %v10213, 4294901760
  %v10215 = vsub.f32 %v10213, %v10214
  %v10216 = vand.u32 %v10215, 4294901760
  %10217 = vmatpush1.msra.mxu0 %v10216
  %10218 = vmatprep.subr.mxu0 0.0
  %v10219 = vand.u32 %v10111, 4294901760
  %v10220 = vsub.f32 %v10111, %v10219
  %v10221 = vand.u32 %v10220, 4294901760
  %v10222 = vsub.f32 %v10220, %v10221
  %v10223 = vand.u32 %v10222, 4294901760
  %10224 = vmatpush1.msra.mxu0 %v10223
  %10225 = vmatprep.subr.mxu0 0.0
  %v10226 = vand.u32 %v10112, 4294901760
  %v10227 = vsub.f32 %v10112, %v10226
  %v10228 = vand.u32 %v10227, 4294901760
  %v10229 = vsub.f32 %v10227, %v10228
  %v10230 = vand.u32 %v10229, 4294901760
  %10231 = vmatpush1.msra.mxu0 %v10230
  %10232 = vmatprep.subr.mxu0 0.0
  %v10233 = vand.u32 %v10113, 4294901760
  %v10234 = vsub.f32 %v10113, %v10233
  %v10235 = vand.u32 %v10234, 4294901760
  %v10236 = vsub.f32 %v10234, %v10235
  %v10237 = vand.u32 %v10236, 4294901760
  %10238 = vmatpush1.msra.mxu0 %v10237
  %10239 = vmatprep.subr.mxu0 0.0
  %v10240 = vand.u32 %v10114, 4294901760
  %v10241 = vsub.f32 %v10114, %v10240
  %v10242 = vand.u32 %v10241, 4294901760
  %v10243 = vsub.f32 %v10241, %v10242
  %v10244 = vand.u32 %v10243, 4294901760
  %10245 = vmatpush1.msra.mxu0 %v10244
  %10246 = vmatprep.subr.mxu0 0.0
  %v10247 = vand.u32 %v10120, 4294901760
  %v10248 = vsub.f32 %v10120, %v10247
  %v10249 = vand.u32 %v10248, 4294901760
  %v10250 = vsub.f32 %v10248, %v10249
  %v10251 = vand.u32 %v10250, 4294901760
  %10252 = vmatpush1.msra.mxu0 %v10251
  %10253 = vmatprep.subr.mxu0 0.0
  %10254 = vmatpush1.msra.mxu0 0.0
  %10255 = vmatprep.subr.mxu0 0.0
  %10256 = vmatpush1.msra.mxu0 0.0
  %10257 = vmatprep.subr.mxu0 0.0
  %10258 = vmatpush1.msra.mxu0 0.0
  %10259 = vmatprep.subr.mxu0 0.0
  %10260 = vmatpush1.msra.mxu0 0.0
  %10261 = vmatprep.subr.mxu0 0.0
  %10262 = vmatpush1.msra.mxu0 0.0
  %10263 = vmatprep.subr.mxu0 0.0
  %10264 = vmatpush1.msra.mxu0 0.0
  %10265 = vmatprep.subr.mxu0 0.0
  %10266 = vmatpush1.msra.mxu0 0.0
  %10267 = vmatprep.subr.mxu0 0.0
  %10268 = vmatpush1.msra.mxu0 0.0
  %10269 = vmatprep.subr.mxu0 0.0
  %10270 = vmatpush1.msra.mxu0 0.0
  %10271 = vmatprep.subr.mxu0 0.0
  %10272 = vmatpush1.msra.mxu0 0.0
  %10273 = vmatprep.subr.mxu0 0.0
  %10274 = vmatpush1.msra.mxu0 0.0
  %10275 = vmatprep.subr.mxu0 0.0
  %10276 = vmatpush1.msra.mxu0 0.0
  %10277 = vmatprep.subr.mxu0 0.0
  %10278 = vmatpush1.msra.mxu0 0.0
  %10279 = vmatprep.subr.mxu0 0.0
  %10280 = vmatpush1.msra.mxu0 0.0
  %10281 = vmatprep.subr.mxu0 0.0
  %10282 = vmatpush1.msra.mxu0 0.0
  %10283 = vmatprep.subr.mxu0 0.0
  %10284 = vmatpush1.msra.mxu0 0.0
  %10285 = vmatprep.subr.mxu0 0.0
  %10286 = vmatpush1.msra.mxu0 0.0
  %10287 = vmatprep.subr.mxu0 0.0
  %10288 = vmatpush1.msra.mxu0 0.0
  %10289 = vmatprep.subr.mxu0 0.0
  %10290 = vmatpush1.msra.mxu0 0.0
  %10291 = vmatprep.subr.mxu0 0.0
  %10292 = vmatpush1.msra.mxu0 0.0
  %10293 = vmatprep.subr.mxu0 0.0
  %10294 = vmatpush1.msra.mxu0 0.0
  %10295 = vmatprep.subr.mxu0 0.0
  %10296 = vmatpush1.msra.mxu0 0.0
  %10297 = vmatprep.subr.mxu0 0.0
  %10298 = vmatpush1.msra.mxu0 0.0
  %10299 = vmatprep.subr.mxu0 0.0
  %10300 = vmatpush1.msra.mxu0 0.0
  %10301 = vmatprep.subr.mxu0 0.0
  %10302 = vmatpush1.msra.mxu0 0.0
  %10303 = vmatprep.mubr.f32.mxu0 0.0
  %v10304 = vand.u32 %v10117, 4294901760
  %10305 = vmatmul.mubr.f32.gmra.mrb[0].mxu0 %v10304
  %v10306 = vpop.f32.mrb[0].mxu0
  %v10307 = vadd.f32 %v10201, %v10306
  %v10308 = vpop.f32.mrb[0].mxu0
  %10309 = vdwg.mxu0
  %10310 = vmatprep.subr.mxu0 0.0
  %v10311 = vand.u32 %v10109, 4294901760
  %v10312 = vsub.f32 %v10109, %v10311
  %10313 = vmatpush1.msra.mxu0 %v10312
  %10314 = vmatprep.subr.mxu0 0.0
  %v10315 = vand.u32 %v10110, 4294901760
  %v10316 = vsub.f32 %v10110, %v10315
  %10317 = vmatpush1.msra.mxu0 %v10316
  %10318 = vmatprep.subr.mxu0 0.0
  %v10319 = vand.u32 %v10111, 4294901760
  %v10320 = vsub.f32 %v10111, %v10319
  %10321 = vmatpush1.msra.mxu0 %v10320
  %10322 = vmatprep.subr.mxu0 0.0
  %v10323 = vand.u32 %v10112, 4294901760
  %v10324 = vsub.f32 %v10112, %v10323
  %10325 = vmatpush1.msra.mxu0 %v10324
  %10326 = vmatprep.subr.mxu0 0.0
  %v10327 = vand.u32 %v10113, 4294901760
  %v10328 = vsub.f32 %v10113, %v10327
  %10329 = vmatpush1.msra.mxu0 %v10328
  %10330 = vmatprep.subr.mxu0 0.0
  %v10331 = vand.u32 %v10114, 4294901760
  %v10332 = vsub.f32 %v10114, %v10331
  %10333 = vmatpush1.msra.mxu0 %v10332
  %10334 = vmatprep.subr.mxu0 0.0
  %v10335 = vand.u32 %v10120, 4294901760
  %v10336 = vsub.f32 %v10120, %v10335
  %10337 = vmatpush1.msra.mxu0 %v10336
  %10338 = vmatprep.subr.mxu0 0.0
  %10339 = vmatpush1.msra.mxu0 0.0
  %10340 = vmatprep.subr.mxu0 0.0
  %10341 = vmatpush1.msra.mxu0 0.0
  %10342 = vmatprep.subr.mxu0 0.0
  %10343 = vmatpush1.msra.mxu0 0.0
  %10344 = vmatprep.subr.mxu0 0.0
  %10345 = vmatpush1.msra.mxu0 0.0
  %10346 = vmatprep.subr.mxu0 0.0
  %10347 = vmatpush1.msra.mxu0 0.0
  %10348 = vmatprep.subr.mxu0 0.0
  %10349 = vmatpush1.msra.mxu0 0.0
  %10350 = vmatprep.subr.mxu0 0.0
  %10351 = vmatpush1.msra.mxu0 0.0
  %10352 = vmatprep.subr.mxu0 0.0
  %10353 = vmatpush1.msra.mxu0 0.0
  %10354 = vmatprep.subr.mxu0 0.0
  %10355 = vmatpush1.msra.mxu0 0.0
  %10356 = vmatprep.subr.mxu0 0.0
  %10357 = vmatpush1.msra.mxu0 0.0
  %10358 = vmatprep.subr.mxu0 0.0
  %10359 = vmatpush1.msra.mxu0 0.0
  %10360 = vmatprep.subr.mxu0 0.0
  %10361 = vmatpush1.msra.mxu0 0.0
  %10362 = vmatprep.subr.mxu0 0.0
  %10363 = vmatpush1.msra.mxu0 0.0
  %10364 = vmatprep.subr.mxu0 0.0
  %10365 = vmatpush1.msra.mxu0 0.0
  %10366 = vmatprep.subr.mxu0 0.0
  %10367 = vmatpush1.msra.mxu0 0.0
  %10368 = vmatprep.subr.mxu0 0.0
  %10369 = vmatpush1.msra.mxu0 0.0
  %10370 = vmatprep.subr.mxu0 0.0
  %10371 = vmatpush1.msra.mxu0 0.0
  %10372 = vmatprep.subr.mxu0 0.0
  %10373 = vmatpush1.msra.mxu0 0.0
  %10374 = vmatprep.subr.mxu0 0.0
  %10375 = vmatpush1.msra.mxu0 0.0
  %10376 = vmatprep.subr.mxu0 0.0
  %10377 = vmatpush1.msra.mxu0 0.0
  %10378 = vmatprep.subr.mxu0 0.0
  %10379 = vmatpush1.msra.mxu0 0.0
  %10380 = vmatprep.subr.mxu0 0.0
  %10381 = vmatpush1.msra.mxu0 0.0
  %10382 = vmatprep.subr.mxu0 0.0
  %10383 = vmatpush1.msra.mxu0 0.0
  %10384 = vmatprep.subr.mxu0 0.0
  %10385 = vmatpush1.msra.mxu0 0.0
  %10386 = vmatprep.subr.mxu0 0.0
  %10387 = vmatpush1.msra.mxu0 0.0
  %10388 = vmatprep.mubr.f32.mxu0 0.0
  %v10389 = vand.u32 %v10117, 4294901760
  %v10390 = vsub.f32 %v10117, %v10389
  %10391 = vmatmul.mubr.f32.gmra.mrb[0].mxu0 %v10390
  %v10392 = vpop.f32.mrb[0].mxu0
  %v10393 = vadd.f32 %v10307, %v10392
  %v10394 = vpop.f32.mrb[0].mxu0
  %10395 = vdwg.mxu0
  %10396 = vmatprep.subr.mxu0 0.0
  %v10397 = vand.u32 %v10109, 4294901760
  %10398 = vmatpush1.msra.mxu0 %v10397
  %10399 = vmatprep.subr.mxu0 0.0
  %v10400 = vand.u32 %v10110, 4294901760
  %10401 = vmatpush1.msra.mxu0 %v10400
  %10402 = vmatprep.subr.mxu0 0.0
  %v10403 = vand.u32 %v10111, 4294901760
  %10404 = vmatpush1.msra.mxu0 %v10403
  %10405 = vmatprep.subr.mxu0 0.0
  %v10406 = vand.u32 %v10112, 4294901760
  %10407 = vmatpush1.msra.mxu0 %v10406
  %10408 = vmatprep.subr.mxu0 0.0
  %v10409 = vand.u32 %v10113, 4294901760
  %10410 = vmatpush1.msra.mxu0 %v10409
  %10411 = vmatprep.subr.mxu0 0.0
  %v10412 = vand.u32 %v10114, 4294901760
  %10413 = vmatpush1.msra.mxu0 %v10412
  %10414 = vmatprep.subr.mxu0 0.0
  %v10415 = vand.u32 %v10120, 4294901760
  %10416 = vmatpush1.msra.mxu0 %v10415
  %10417 = vmatprep.subr.mxu0 0.0
  %10418 = vmatpush1.msra.mxu0 0.0
  %10419 = vmatprep.subr.mxu0 0.0
  %10420 = vmatpush1.msra.mxu0 0.0
  %10421 = vmatprep.subr.mxu0 0.0
  %10422 = vmatpush1.msra.mxu0 0.0
  %10423 = vmatprep.subr.mxu0 0.0
  %10424 = vmatpush1.msra.mxu0 0.0
  %10425 = vmatprep.subr.mxu0 0.0
  %10426 = vmatpush1.msra.mxu0 0.0
  %10427 = vmatprep.subr.mxu0 0.0
  %10428 = vmatpush1.msra.mxu0 0.0
  %10429 = vmatprep.subr.mxu0 0.0
  %10430 = vmatpush1.msra.mxu0 0.0
  %10431 = vmatprep.subr.mxu0 0.0
  %10432 = vmatpush1.msra.mxu0 0.0
  %10433 = vmatprep.subr.mxu0 0.0
  %10434 = vmatpush1.msra.mxu0 0.0
  %10435 = vmatprep.subr.mxu0 0.0
  %10436 = vmatpush1.msra.mxu0 0.0
  %10437 = vmatprep.subr.mxu0 0.0
  %10438 = vmatpush1.msra.mxu0 0.0
  %10439 = vmatprep.subr.mxu0 0.0
  %10440 = vmatpush1.msra.mxu0 0.0
  %10441 = vmatprep.subr.mxu0 0.0
  %10442 = vmatpush1.msra.mxu0 0.0
  %10443 = vmatprep.subr.mxu0 0.0
  %10444 = vmatpush1.msra.mxu0 0.0
  %10445 = vmatprep.subr.mxu0 0.0
  %10446 = vmatpush1.msra.mxu0 0.0
  %10447 = vmatprep.subr.mxu0 0.0
  %10448 = vmatpush1.msra.mxu0 0.0
  %10449 = vmatprep.subr.mxu0 0.0
  %10450 = vmatpush1.msra.mxu0 0.0
  %10451 = vmatprep.subr.mxu0 0.0
  %10452 = vmatpush1.msra.mxu0 0.0
  %10453 = vmatprep.subr.mxu0 0.0
  %10454 = vmatpush1.msra.mxu0 0.0
  %10455 = vmatprep.subr.mxu0 0.0
  %10456 = vmatpush1.msra.mxu0 0.0
  %10457 = vmatprep.subr.mxu0 0.0
  %10458 = vmatpush1.msra.mxu0 0.0
  %10459 = vmatprep.subr.mxu0 0.0
  %10460 = vmatpush1.msra.mxu0 0.0
  %10461 = vmatprep.subr.mxu0 0.0
  %10462 = vmatpush1.msra.mxu0 0.0
  %10463 = vmatprep.subr.mxu0 0.0
  %10464 = vmatpush1.msra.mxu0 0.0
  %10465 = vmatprep.subr.mxu0 0.0
  %10466 = vmatpush1.msra.mxu0 0.0
  %10467 = vmatprep.mubr.f32.mxu0 0.0
  %v10468 = vand.u32 %v10117, 4294901760
  %v10469 = vsub.f32 %v10117, %v10468
  %v10470 = vand.u32 %v10469, 4294901760
  %10471 = vmatmul.mubr.f32.gmra.mrb[0].mxu0 %v10470
  %v10472 = vpop.f32.mrb[0].mxu0
  %v10473 = vadd.f32 %v10393, %v10472
  %v10474 = vpop.f32.mrb[0].mxu0
  %10475 = vdwg.mxu0
  %10476 = vmatprep.subr.mxu0 0.0
  %v10477 = vand.u32 %v10109, 4294901760
  %v10478 = vsub.f32 %v10109, %v10477
  %v10479 = vand.u32 %v10478, 4294901760
  %10480 = vmatpush1.msra.mxu0 %v10479
  %10481 = vmatprep.subr.mxu0 0.0
  %v10482 = vand.u32 %v10110, 4294901760
  %v10483 = vsub.f32 %v10110, %v10482
  %v10484 = vand.u32 %v10483, 4294901760
  %10485 = vmatpush1.msra.mxu0 %v10484
  %10486 = vmatprep.subr.mxu0 0.0
  %v10487 = vand.u32 %v10111, 4294901760
  %v10488 = vsub.f32 %v10111, %v10487
  %v10489 = vand.u32 %v10488, 4294901760
  %10490 = vmatpush1.msra.mxu0 %v10489
  %10491 = vmatprep.subr.mxu0 0.0
  %v10492 = vand.u32 %v10112, 4294901760
  %v10493 = vsub.f32 %v10112, %v10492
  %v10494 = vand.u32 %v10493, 4294901760
  %10495 = vmatpush1.msra.mxu0 %v10494
  %10496 = vmatprep.subr.mxu0 0.0
  %v10497 = vand.u32 %v10113, 4294901760
  %v10498 = vsub.f32 %v10113, %v10497
  %v10499 = vand.u32 %v10498, 4294901760
  %10500 = vmatpush1.msra.mxu0 %v10499
  %10501 = vmatprep.subr.mxu0 0.0
  %v10502 = vand.u32 %v10114, 4294901760
  %v10503 = vsub.f32 %v10114, %v10502
  %v10504 = vand.u32 %v10503, 4294901760
  %10505 = vmatpush1.msra.mxu0 %v10504
  %10506 = vmatprep.subr.mxu0 0.0
  %v10507 = vand.u32 %v10120, 4294901760
  %v10508 = vsub.f32 %v10120, %v10507
  %v10509 = vand.u32 %v10508, 4294901760
  %10510 = vmatpush1.msra.mxu0 %v10509
  %10511 = vmatprep.subr.mxu0 0.0
  %10512 = vmatpush1.msra.mxu0 0.0
  %10513 = vmatprep.subr.mxu0 0.0
  %10514 = vmatpush1.msra.mxu0 0.0
  %10515 = vmatprep.subr.mxu0 0.0
  %10516 = vmatpush1.msra.mxu0 0.0
  %10517 = vmatprep.subr.mxu0 0.0
  %10518 = vmatpush1.msra.mxu0 0.0
  %10519 = vmatprep.subr.mxu0 0.0
  %10520 = vmatpush1.msra.mxu0 0.0
  %10521 = vmatprep.subr.mxu0 0.0
  %10522 = vmatpush1.msra.mxu0 0.0
  %10523 = vmatprep.subr.mxu0 0.0
  %10524 = vmatpush1.msra.mxu0 0.0
  %10525 = vmatprep.subr.mxu0 0.0
  %10526 = vmatpush1.msra.mxu0 0.0
  %10527 = vmatprep.subr.mxu0 0.0
  %10528 = vmatpush1.msra.mxu0 0.0
  %10529 = vmatprep.subr.mxu0 0.0
  %10530 = vmatpush1.msra.mxu0 0.0
  %10531 = vmatprep.subr.mxu0 0.0
  %10532 = vmatpush1.msra.mxu0 0.0
  %10533 = vmatprep.subr.mxu0 0.0
  %10534 = vmatpush1.msra.mxu0 0.0
  %10535 = vmatprep.subr.mxu0 0.0
  %10536 = vmatpush1.msra.mxu0 0.0
  %10537 = vmatprep.subr.mxu0 0.0
  %10538 = vmatpush1.msra.mxu0 0.0
  %10539 = vmatprep.subr.mxu0 0.0
  %10540 = vmatpush1.msra.mxu0 0.0
  %10541 = vmatprep.subr.mxu0 0.0
  %10542 = vmatpush1.msra.mxu0 0.0
  %10543 = vmatprep.subr.mxu0 0.0
  %10544 = vmatpush1.msra.mxu0 0.0
  %10545 = vmatprep.subr.mxu0 0.0
  %10546 = vmatpush1.msra.mxu0 0.0
  %10547 = vmatprep.subr.mxu0 0.0
  %10548 = vmatpush1.msra.mxu0 0.0
  %10549 = vmatprep.subr.mxu0 0.0
  %10550 = vmatpush1.msra.mxu0 0.0
  %10551 = vmatprep.subr.mxu0 0.0
  %10552 = vmatpush1.msra.mxu0 0.0
  %10553 = vmatprep.subr.mxu0 0.0
  %10554 = vmatpush1.msra.mxu0 0.0
  %10555 = vmatprep.subr.mxu0 0.0
  %10556 = vmatpush1.msra.mxu0 0.0
  %10557 = vmatprep.subr.mxu0 0.0
  %10558 = vmatpush1.msra.mxu0 0.0
  %10559 = vmatprep.subr.mxu0 0.0
  %10560 = vmatpush1.msra.mxu0 0.0
  %10561 = vmatprep.mubr.f32.mxu0 0.0
  %v10562 = vand.u32 %v10117, 4294901760
  %10563 = vmatmul.mubr.f32.gmra.mrb[0].mxu0 %v10562
  %v10564 = vpop.f32.mrb[0].mxu0
  %v10565 = vadd.f32 %v10473, %v10564
  %v10566 = vpop.f32.mrb[0].mxu0
  %10567 = vdwg.mxu0
  %10568 = vmatprep.subr.mxu0 0.0
  %v10569 = vand.u32 %v10109, 4294901760
  %10570 = vmatpush1.msra.mxu0 %v10569
  %10571 = vmatprep.subr.mxu0 0.0
  %v10572 = vand.u32 %v10110, 4294901760
  %10573 = vmatpush1.msra.mxu0 %v10572
  %10574 = vmatprep.subr.mxu0 0.0
  %v10575 = vand.u32 %v10111, 4294901760
  %10576 = vmatpush1.msra.mxu0 %v10575
  %10577 = vmatprep.subr.mxu0 0.0
  %v10578 = vand.u32 %v10112, 4294901760
  %10579 = vmatpush1.msra.mxu0 %v10578
  %10580 = vmatprep.subr.mxu0 0.0
  %v10581 = vand.u32 %v10113, 4294901760
  %10582 = vmatpush1.msra.mxu0 %v10581
  %10583 = vmatprep.subr.mxu0 0.0
  %v10584 = vand.u32 %v10114, 4294901760
  %10585 = vmatpush1.msra.mxu0 %v10584
  %10586 = vmatprep.subr.mxu0 0.0
  %v10587 = vand.u32 %v10120, 4294901760
  %10588 = vmatpush1.msra.mxu0 %v10587
  %10589 = vmatprep.subr.mxu0 0.0
  %10590 = vmatpush1.msra.mxu0 0.0
  %10591 = vmatprep.subr.mxu0 0.0
  %10592 = vmatpush1.msra.mxu0 0.0
  %10593 = vmatprep.subr.mxu0 0.0
  %10594 = vmatpush1.msra.mxu0 0.0
  %10595 = vmatprep.subr.mxu0 0.0
  %10596 = vmatpush1.msra.mxu0 0.0
  %10597 = vmatprep.subr.mxu0 0.0
  %10598 = vmatpush1.msra.mxu0 0.0
  %10599 = vmatprep.subr.mxu0 0.0
  %10600 = vmatpush1.msra.mxu0 0.0
  %10601 = vmatprep.subr.mxu0 0.0
  %10602 = vmatpush1.msra.mxu0 0.0
  %10603 = vmatprep.subr.mxu0 0.0
  %10604 = vmatpush1.msra.mxu0 0.0
  %10605 = vmatprep.subr.mxu0 0.0
  %10606 = vmatpush1.msra.mxu0 0.0
  %10607 = vmatprep.subr.mxu0 0.0
  %10608 = vmatpush1.msra.mxu0 0.0
  %10609 = vmatprep.subr.mxu0 0.0
  %10610 = vmatpush1.msra.mxu0 0.0
  %10611 = vmatprep.subr.mxu0 0.0
  %10612 = vmatpush1.msra.mxu0 0.0
  %10613 = vmatprep.subr.mxu0 0.0
  %10614 = vmatpush1.msra.mxu0 0.0
  %10615 = vmatprep.subr.mxu0 0.0
  %10616 = vmatpush1.msra.mxu0 0.0
  %10617 = vmatprep.subr.mxu0 0.0
  %10618 = vmatpush1.msra.mxu0 0.0
  %10619 = vmatprep.subr.mxu0 0.0
  %10620 = vmatpush1.msra.mxu0 0.0
  %10621 = vmatprep.subr.mxu0 0.0
  %10622 = vmatpush1.msra.mxu0 0.0
  %10623 = vmatprep.subr.mxu0 0.0
  %10624 = vmatpush1.msra.mxu0 0.0
  %10625 = vmatprep.subr.mxu0 0.0
  %10626 = vmatpush1.msra.mxu0 0.0
  %10627 = vmatprep.subr.mxu0 0.0
  %10628 = vmatpush1.msra.mxu0 0.0
  %10629 = vmatprep.subr.mxu0 0.0
  %10630 = vmatpush1.msra.mxu0 0.0
  %10631 = vmatprep.subr.mxu0 0.0
  %10632 = vmatpush1.msra.mxu0 0.0
  %10633 = vmatprep.subr.mxu0 0.0
  %10634 = vmatpush1.msra.mxu0 0.0
  %10635 = vmatprep.subr.mxu0 0.0
  %10636 = vmatpush1.msra.mxu0 0.0
  %10637 = vmatprep.subr.mxu0 0.0
  %10638 = vmatpush1.msra.mxu0 0.0
  %10639 = vmatprep.mubr.f32.mxu0 0.0
  %v10640 = vand.u32 %v10117, 4294901760
  %10641 = vmatmul.mubr.f32.gmra.mrb[0].mxu0 %v10640
  %v10642 = vpop.f32.mrb[0].mxu0
  %v10643 = vadd.f32 %v10565, %v10642
  %v10644 = vpop.f32.mrb[0].mxu0
  %10645 = vdwg.mxu0
  %v10646 = vadd.f32 %v10101, %v10643
  %s10647 = scalar_lea.vmem [#allocation4], 3
  %v10648 = vld [vmem:[%s10647] ss:$8 sm:$0xf]
  %v10649 = vld [vmem:[%s10647] ss:$8 sm:$0xf0]
  %v10650 = vor.u32 %v10648, %v10649
  %s10651 = scalar_lea.vmem %s7, 168
  %v10652 = vld [vmem:[%s10651] sm:$0xff]
  %v10653 = vld [vmem:[%s10651 + $0x8] sm:$0xff]
  %v10654 = vld [vmem:[%s10651 + $0x10] sm:$0xff]
  %v10655 = vld [vmem:[%s10651 + $0x18] sm:$0xff]
  %v10656 = vld [vmem:[%s10651 + $0x20] sm:$0xff]
  %v10657 = vld [vmem:[%s10651 + $0x28] sm:$0xff]
  %v10658 = vld [vmem:[%s10651 + $0x30] sm:$0x3]
  %v10660 = vsel %vm9042, %v10650, 0
  %v10663 = vsel %vm9046, %v10658, 0
  %10665 = vmatprep.subr.mxu0 0.0
  %v10666 = vand.u32 %v10652, 4294901760
  %10667 = vmatpush1.msra.mxu0 %v10666
  %10668 = vmatprep.subr.mxu0 0.0
  %v10669 = vand.u32 %v10653, 4294901760
  %10670 = vmatpush1.msra.mxu0 %v10669
  %10671 = vmatprep.subr.mxu0 0.0
  %v10672 = vand.u32 %v10654, 4294901760
  %10673 = vmatpush1.msra.mxu0 %v10672
  %10674 = vmatprep.subr.mxu0 0.0
  %v10675 = vand.u32 %v10655, 4294901760
  %10676 = vmatpush1.msra.mxu0 %v10675
  %10677 = vmatprep.subr.mxu0 0.0
  %v10678 = vand.u32 %v10656, 4294901760
  %10679 = vmatpush1.msra.mxu0 %v10678
  %10680 = vmatprep.subr.mxu0 0.0
  %v10681 = vand.u32 %v10657, 4294901760
  %10682 = vmatpush1.msra.mxu0 %v10681
  %10683 = vmatprep.subr.mxu0 0.0
  %v10684 = vand.u32 %v10663, 4294901760
  %10685 = vmatpush1.msra.mxu0 %v10684
  %10686 = vmatprep.subr.mxu0 0.0
  %10687 = vmatpush1.msra.mxu0 0.0
  %10688 = vmatprep.subr.mxu0 0.0
  %10689 = vmatpush1.msra.mxu0 0.0
  %10690 = vmatprep.subr.mxu0 0.0
  %10691 = vmatpush1.msra.mxu0 0.0
  %10692 = vmatprep.subr.mxu0 0.0
  %10693 = vmatpush1.msra.mxu0 0.0
  %10694 = vmatprep.subr.mxu0 0.0
  %10695 = vmatpush1.msra.mxu0 0.0
  %10696 = vmatprep.subr.mxu0 0.0
  %10697 = vmatpush1.msra.mxu0 0.0
  %10698 = vmatprep.subr.mxu0 0.0
  %10699 = vmatpush1.msra.mxu0 0.0
  %10700 = vmatprep.subr.mxu0 0.0
  %10701 = vmatpush1.msra.mxu0 0.0
  %10702 = vmatprep.subr.mxu0 0.0
  %10703 = vmatpush1.msra.mxu0 0.0
  %10704 = vmatprep.subr.mxu0 0.0
  %10705 = vmatpush1.msra.mxu0 0.0
  %10706 = vmatprep.subr.mxu0 0.0
  %10707 = vmatpush1.msra.mxu0 0.0
  %10708 = vmatprep.subr.mxu0 0.0
  %10709 = vmatpush1.msra.mxu0 0.0
  %10710 = vmatprep.subr.mxu0 0.0
  %10711 = vmatpush1.msra.mxu0 0.0
  %10712 = vmatprep.subr.mxu0 0.0
  %10713 = vmatpush1.msra.mxu0 0.0
  %10714 = vmatprep.subr.mxu0 0.0
  %10715 = vmatpush1.msra.mxu0 0.0
  %10716 = vmatprep.subr.mxu0 0.0
  %10717 = vmatpush1.msra.mxu0 0.0
  %10718 = vmatprep.subr.mxu0 0.0
  %10719 = vmatpush1.msra.mxu0 0.0
  %10720 = vmatprep.subr.mxu0 0.0
  %10721 = vmatpush1.msra.mxu0 0.0
  %10722 = vmatprep.subr.mxu0 0.0
  %10723 = vmatpush1.msra.mxu0 0.0
  %10724 = vmatprep.subr.mxu0 0.0
  %10725 = vmatpush1.msra.mxu0 0.0
  %10726 = vmatprep.subr.mxu0 0.0
  %10727 = vmatpush1.msra.mxu0 0.0
  %10728 = vmatprep.subr.mxu0 0.0
  %10729 = vmatpush1.msra.mxu0 0.0
  %10730 = vmatprep.subr.mxu0 0.0
  %10731 = vmatpush1.msra.mxu0 0.0
  %10732 = vmatprep.subr.mxu0 0.0
  %10733 = vmatpush1.msra.mxu0 0.0
  %10734 = vmatprep.subr.mxu0 0.0
  %10735 = vmatpush1.msra.mxu0 0.0
  %10736 = vmatprep.mubr.f32.mxu0 0.0
  %v10737 = vand.u32 %v10660, 4294901760
  %v10738 = vsub.f32 %v10660, %v10737
  %v10739 = vand.u32 %v10738, 4294901760
  %v10740 = vsub.f32 %v10738, %v10739
  %v10741 = vand.u32 %v10740, 4294901760
  %10742 = vmatmul.mubr.f32.gmra.mrb[0].mxu0 %v10741
  %v10743 = vpop.f32.mrb[0].mxu0
  %v10744 = vadd.f32 0.0, %v10743
  %v10745 = vpop.f32.mrb[0].mxu0
  %10746 = vdwg.mxu0
  %10747 = vmatprep.subr.mxu0 0.0
  %v10748 = vand.u32 %v10652, 4294901760
  %v10749 = vsub.f32 %v10652, %v10748
  %v10750 = vand.u32 %v10749, 4294901760
  %v10751 = vsub.f32 %v10749, %v10750
  %v10752 = vand.u32 %v10751, 4294901760
  %10753 = vmatpush1.msra.mxu0 %v10752
  %10754 = vmatprep.subr.mxu0 0.0
  %v10755 = vand.u32 %v10653, 4294901760
  %v10756 = vsub.f32 %v10653, %v10755
  %v10757 = vand.u32 %v10756, 4294901760
  %v10758 = vsub.f32 %v10756, %v10757
  %v10759 = vand.u32 %v10758, 4294901760
  %10760 = vmatpush1.msra.mxu0 %v10759
  %10761 = vmatprep.subr.mxu0 0.0
  %v10762 = vand.u32 %v10654, 4294901760
  %v10763 = vsub.f32 %v10654, %v10762
  %v10764 = vand.u32 %v10763, 4294901760
  %v10765 = vsub.f32 %v10763, %v10764
  %v10766 = vand.u32 %v10765, 4294901760
  %10767 = vmatpush1.msra.mxu0 %v10766
  %10768 = vmatprep.subr.mxu0 0.0
  %v10769 = vand.u32 %v10655, 4294901760
  %v10770 = vsub.f32 %v10655, %v10769
  %v10771 = vand.u32 %v10770, 4294901760
  %v10772 = vsub.f32 %v10770, %v10771
  %v10773 = vand.u32 %v10772, 4294901760
  %10774 = vmatpush1.msra.mxu0 %v10773
  %10775 = vmatprep.subr.mxu0 0.0
  %v10776 = vand.u32 %v10656, 4294901760
  %v10777 = vsub.f32 %v10656, %v10776
  %v10778 = vand.u32 %v10777, 4294901760
  %v10779 = vsub.f32 %v10777, %v10778
  %v10780 = vand.u32 %v10779, 4294901760
  %10781 = vmatpush1.msra.mxu0 %v10780
  %10782 = vmatprep.subr.mxu0 0.0
  %v10783 = vand.u32 %v10657, 4294901760
  %v10784 = vsub.f32 %v10657, %v10783
  %v10785 = vand.u32 %v10784, 4294901760
  %v10786 = vsub.f32 %v10784, %v10785
  %v10787 = vand.u32 %v10786, 4294901760
  %10788 = vmatpush1.msra.mxu0 %v10787
  %10789 = vmatprep.subr.mxu0 0.0
  %v10790 = vand.u32 %v10663, 4294901760
  %v10791 = vsub.f32 %v10663, %v10790
  %v10792 = vand.u32 %v10791, 4294901760
  %v10793 = vsub.f32 %v10791, %v10792
  %v10794 = vand.u32 %v10793, 4294901760
  %10795 = vmatpush1.msra.mxu0 %v10794
  %10796 = vmatprep.subr.mxu0 0.0
  %10797 = vmatpush1.msra.mxu0 0.0
  %10798 = vmatprep.subr.mxu0 0.0
  %10799 = vmatpush1.msra.mxu0 0.0
  %10800 = vmatprep.subr.mxu0 0.0
  %10801 = vmatpush1.msra.mxu0 0.0
  %10802 = vmatprep.subr.mxu0 0.0
  %10803 = vmatpush1.msra.mxu0 0.0
  %10804 = vmatprep.subr.mxu0 0.0
  %10805 = vmatpush1.msra.mxu0 0.0
  %10806 = vmatprep.subr.mxu0 0.0
  %10807 = vmatpush1.msra.mxu0 0.0
  %10808 = vmatprep.subr.mxu0 0.0
  %10809 = vmatpush1.msra.mxu0 0.0
  %10810 = vmatprep.subr.mxu0 0.0
  %10811 = vmatpush1.msra.mxu0 0.0
  %10812 = vmatprep.subr.mxu0 0.0
  %10813 = vmatpush1.msra.mxu0 0.0
  %10814 = vmatprep.subr.mxu0 0.0
  %10815 = vmatpush1.msra.mxu0 0.0
  %10816 = vmatprep.subr.mxu0 0.0
  %10817 = vmatpush1.msra.mxu0 0.0
  %10818 = vmatprep.subr.mxu0 0.0
  %10819 = vmatpush1.msra.mxu0 0.0
  %10820 = vmatprep.subr.mxu0 0.0
  %10821 = vmatpush1.msra.mxu0 0.0
  %10822 = vmatprep.subr.mxu0 0.0
  %10823 = vmatpush1.msra.mxu0 0.0
  %10824 = vmatprep.subr.mxu0 0.0
  %10825 = vmatpush1.msra.mxu0 0.0
  %10826 = vmatprep.subr.mxu0 0.0
  %10827 = vmatpush1.msra.mxu0 0.0
  %10828 = vmatprep.subr.mxu0 0.0
  %10829 = vmatpush1.msra.mxu0 0.0
  %10830 = vmatprep.subr.mxu0 0.0
  %10831 = vmatpush1.msra.mxu0 0.0
  %10832 = vmatprep.subr.mxu0 0.0
  %10833 = vmatpush1.msra.mxu0 0.0
  %10834 = vmatprep.subr.mxu0 0.0
  %10835 = vmatpush1.msra.mxu0 0.0
  %10836 = vmatprep.subr.mxu0 0.0
  %10837 = vmatpush1.msra.mxu0 0.0
  %10838 = vmatprep.subr.mxu0 0.0
  %10839 = vmatpush1.msra.mxu0 0.0
  %10840 = vmatprep.subr.mxu0 0.0
  %10841 = vmatpush1.msra.mxu0 0.0
  %10842 = vmatprep.subr.mxu0 0.0
  %10843 = vmatpush1.msra.mxu0 0.0
  %10844 = vmatprep.subr.mxu0 0.0
  %10845 = vmatpush1.msra.mxu0 0.0
  %10846 = vmatprep.mubr.f32.mxu0 0.0
  %v10847 = vand.u32 %v10660, 4294901760
  %10848 = vmatmul.mubr.f32.gmra.mrb[0].mxu0 %v10847
  %v10849 = vpop.f32.mrb[0].mxu0
  %v10850 = vadd.f32 %v10744, %v10849
  %v10851 = vpop.f32.mrb[0].mxu0
  %10852 = vdwg.mxu0
  %10853 = vmatprep.subr.mxu0 0.0
  %v10854 = vand.u32 %v10652, 4294901760
  %v10855 = vsub.f32 %v10652, %v10854
  %10856 = vmatpush1.msra.mxu0 %v10855
  %10857 = vmatprep.subr.mxu0 0.0
  %v10858 = vand.u32 %v10653, 4294901760
  %v10859 = vsub.f32 %v10653, %v10858
  %10860 = vmatpush1.msra.mxu0 %v10859
  %10861 = vmatprep.subr.mxu0 0.0
  %v10862 = vand.u32 %v10654, 4294901760
  %v10863 = vsub.f32 %v10654, %v10862
  %10864 = vmatpush1.msra.mxu0 %v10863
  %10865 = vmatprep.subr.mxu0 0.0
  %v10866 = vand.u32 %v10655, 4294901760
  %v10867 = vsub.f32 %v10655, %v10866
  %10868 = vmatpush1.msra.mxu0 %v10867
  %10869 = vmatprep.subr.mxu0 0.0
  %v10870 = vand.u32 %v10656, 4294901760
  %v10871 = vsub.f32 %v10656, %v10870
  %10872 = vmatpush1.msra.mxu0 %v10871
  %10873 = vmatprep.subr.mxu0 0.0
  %v10874 = vand.u32 %v10657, 4294901760
  %v10875 = vsub.f32 %v10657, %v10874
  %10876 = vmatpush1.msra.mxu0 %v10875
  %10877 = vmatprep.subr.mxu0 0.0
  %v10878 = vand.u32 %v10663, 4294901760
  %v10879 = vsub.f32 %v10663, %v10878
  %10880 = vmatpush1.msra.mxu0 %v10879
  %10881 = vmatprep.subr.mxu0 0.0
  %10882 = vmatpush1.msra.mxu0 0.0
  %10883 = vmatprep.subr.mxu0 0.0
  %10884 = vmatpush1.msra.mxu0 0.0
  %10885 = vmatprep.subr.mxu0 0.0
  %10886 = vmatpush1.msra.mxu0 0.0
  %10887 = vmatprep.subr.mxu0 0.0
  %10888 = vmatpush1.msra.mxu0 0.0
  %10889 = vmatprep.subr.mxu0 0.0
  %10890 = vmatpush1.msra.mxu0 0.0
  %10891 = vmatprep.subr.mxu0 0.0
  %10892 = vmatpush1.msra.mxu0 0.0
  %10893 = vmatprep.subr.mxu0 0.0
  %10894 = vmatpush1.msra.mxu0 0.0
  %10895 = vmatprep.subr.mxu0 0.0
  %10896 = vmatpush1.msra.mxu0 0.0
  %10897 = vmatprep.subr.mxu0 0.0
  %10898 = vmatpush1.msra.mxu0 0.0
  %10899 = vmatprep.subr.mxu0 0.0
  %10900 = vmatpush1.msra.mxu0 0.0
  %10901 = vmatprep.subr.mxu0 0.0
  %10902 = vmatpush1.msra.mxu0 0.0
  %10903 = vmatprep.subr.mxu0 0.0
  %10904 = vmatpush1.msra.mxu0 0.0
  %10905 = vmatprep.subr.mxu0 0.0
  %10906 = vmatpush1.msra.mxu0 0.0
  %10907 = vmatprep.subr.mxu0 0.0
  %10908 = vmatpush1.msra.mxu0 0.0
  %10909 = vmatprep.subr.mxu0 0.0
  %10910 = vmatpush1.msra.mxu0 0.0
  %10911 = vmatprep.subr.mxu0 0.0
  %10912 = vmatpush1.msra.mxu0 0.0
  %10913 = vmatprep.subr.mxu0 0.0
  %10914 = vmatpush1.msra.mxu0 0.0
  %10915 = vmatprep.subr.mxu0 0.0
  %10916 = vmatpush1.msra.mxu0 0.0
  %10917 = vmatprep.subr.mxu0 0.0
  %10918 = vmatpush1.msra.mxu0 0.0
  %10919 = vmatprep.subr.mxu0 0.0
  %10920 = vmatpush1.msra.mxu0 0.0
  %10921 = vmatprep.subr.mxu0 0.0
  %10922 = vmatpush1.msra.mxu0 0.0
  %10923 = vmatprep.subr.mxu0 0.0
  %10924 = vmatpush1.msra.mxu0 0.0
  %10925 = vmatprep.subr.mxu0 0.0
  %10926 = vmatpush1.msra.mxu0 0.0
  %10927 = vmatprep.subr.mxu0 0.0
  %10928 = vmatpush1.msra.mxu0 0.0
  %10929 = vmatprep.subr.mxu0 0.0
  %10930 = vmatpush1.msra.mxu0 0.0
  %10931 = vmatprep.mubr.f32.mxu0 0.0
  %v10932 = vand.u32 %v10660, 4294901760
  %v10933 = vsub.f32 %v10660, %v10932
  %10934 = vmatmul.mubr.f32.gmra.mrb[0].mxu0 %v10933
  %v10935 = vpop.f32.mrb[0].mxu0
  %v10936 = vadd.f32 %v10850, %v10935
  %v10937 = vpop.f32.mrb[0].mxu0
  %10938 = vdwg.mxu0
  %10939 = vmatprep.subr.mxu0 0.0
  %v10940 = vand.u32 %v10652, 4294901760
  %10941 = vmatpush1.msra.mxu0 %v10940
  %10942 = vmatprep.subr.mxu0 0.0
  %v10943 = vand.u32 %v10653, 4294901760
  %10944 = vmatpush1.msra.mxu0 %v10943
  %10945 = vmatprep.subr.mxu0 0.0
  %v10946 = vand.u32 %v10654, 4294901760
  %10947 = vmatpush1.msra.mxu0 %v10946
  %10948 = vmatprep.subr.mxu0 0.0
  %v10949 = vand.u32 %v10655, 4294901760
  %10950 = vmatpush1.msra.mxu0 %v10949
  %10951 = vmatprep.subr.mxu0 0.0
  %v10952 = vand.u32 %v10656, 4294901760
  %10953 = vmatpush1.msra.mxu0 %v10952
  %10954 = vmatprep.subr.mxu0 0.0
  %v10955 = vand.u32 %v10657, 4294901760
  %10956 = vmatpush1.msra.mxu0 %v10955
  %10957 = vmatprep.subr.mxu0 0.0
  %v10958 = vand.u32 %v10663, 4294901760
  %10959 = vmatpush1.msra.mxu0 %v10958
  %10960 = vmatprep.subr.mxu0 0.0
  %10961 = vmatpush1.msra.mxu0 0.0
  %10962 = vmatprep.subr.mxu0 0.0
  %10963 = vmatpush1.msra.mxu0 0.0
  %10964 = vmatprep.subr.mxu0 0.0
  %10965 = vmatpush1.msra.mxu0 0.0
  %10966 = vmatprep.subr.mxu0 0.0
  %10967 = vmatpush1.msra.mxu0 0.0
  %10968 = vmatprep.subr.mxu0 0.0
  %10969 = vmatpush1.msra.mxu0 0.0
  %10970 = vmatprep.subr.mxu0 0.0
  %10971 = vmatpush1.msra.mxu0 0.0
  %10972 = vmatprep.subr.mxu0 0.0
  %10973 = vmatpush1.msra.mxu0 0.0
  %10974 = vmatprep.subr.mxu0 0.0
  %10975 = vmatpush1.msra.mxu0 0.0
  %10976 = vmatprep.subr.mxu0 0.0
  %10977 = vmatpush1.msra.mxu0 0.0
  %10978 = vmatprep.subr.mxu0 0.0
  %10979 = vmatpush1.msra.mxu0 0.0
  %10980 = vmatprep.subr.mxu0 0.0
  %10981 = vmatpush1.msra.mxu0 0.0
  %10982 = vmatprep.subr.mxu0 0.0
  %10983 = vmatpush1.msra.mxu0 0.0
  %10984 = vmatprep.subr.mxu0 0.0
  %10985 = vmatpush1.msra.mxu0 0.0
  %10986 = vmatprep.subr.mxu0 0.0
  %10987 = vmatpush1.msra.mxu0 0.0
  %10988 = vmatprep.subr.mxu0 0.0
  %10989 = vmatpush1.msra.mxu0 0.0
  %10990 = vmatprep.subr.mxu0 0.0
  %10991 = vmatpush1.msra.mxu0 0.0
  %10992 = vmatprep.subr.mxu0 0.0
  %10993 = vmatpush1.msra.mxu0 0.0
  %10994 = vmatprep.subr.mxu0 0.0
  %10995 = vmatpush1.msra.mxu0 0.0
  %10996 = vmatprep.subr.mxu0 0.0
  %10997 = vmatpush1.msra.mxu0 0.0
  %10998 = vmatprep.subr.mxu0 0.0
  %10999 = vmatpush1.msra.mxu0 0.0
  %11000 = vmatprep.subr.mxu0 0.0
  %11001 = vmatpush1.msra.mxu0 0.0
  %11002 = vmatprep.subr.mxu0 0.0
  %11003 = vmatpush1.msra.mxu0 0.0
  %11004 = vmatprep.subr.mxu0 0.0
  %11005 = vmatpush1.msra.mxu0 0.0
  %11006 = vmatprep.subr.mxu0 0.0
  %11007 = vmatpush1.msra.mxu0 0.0
  %11008 = vmatprep.subr.mxu0 0.0
  %11009 = vmatpush1.msra.mxu0 0.0
  %11010 = vmatprep.mubr.f32.mxu0 0.0
  %v11011 = vand.u32 %v10660, 4294901760
  %v11012 = vsub.f32 %v10660, %v11011
  %v11013 = vand.u32 %v11012, 4294901760
  %11014 = vmatmul.mubr.f32.gmra.mrb[0].mxu0 %v11013
  %v11015 = vpop.f32.mrb[0].mxu0
  %v11016 = vadd.f32 %v10936, %v11015
  %v11017 = vpop.f32.mrb[0].mxu0
  %11018 = vdwg.mxu0
  %11019 = vmatprep.subr.mxu0 0.0
  %v11020 = vand.u32 %v10652, 4294901760
  %v11021 = vsub.f32 %v10652, %v11020
  %v11022 = vand.u32 %v11021, 4294901760
  %11023 = vmatpush1.msra.mxu0 %v11022
  %11024 = vmatprep.subr.mxu0 0.0
  %v11025 = vand.u32 %v10653, 4294901760
  %v11026 = vsub.f32 %v10653, %v11025
  %v11027 = vand.u32 %v11026, 4294901760
  %11028 = vmatpush1.msra.mxu0 %v11027
  %11029 = vmatprep.subr.mxu0 0.0
  %v11030 = vand.u32 %v10654, 4294901760
  %v11031 = vsub.f32 %v10654, %v11030
  %v11032 = vand.u32 %v11031, 4294901760
  %11033 = vmatpush1.msra.mxu0 %v11032
  %11034 = vmatprep.subr.mxu0 0.0
  %v11035 = vand.u32 %v10655, 4294901760
  %v11036 = vsub.f32 %v10655, %v11035
  %v11037 = vand.u32 %v11036, 4294901760
  %11038 = vmatpush1.msra.mxu0 %v11037
  %11039 = vmatprep.subr.mxu0 0.0
  %v11040 = vand.u32 %v10656, 4294901760
  %v11041 = vsub.f32 %v10656, %v11040
  %v11042 = vand.u32 %v11041, 4294901760
  %11043 = vmatpush1.msra.mxu0 %v11042
  %11044 = vmatprep.subr.mxu0 0.0
  %v11045 = vand.u32 %v10657, 4294901760
  %v11046 = vsub.f32 %v10657, %v11045
  %v11047 = vand.u32 %v11046, 4294901760
  %11048 = vmatpush1.msra.mxu0 %v11047
  %11049 = vmatprep.subr.mxu0 0.0
  %v11050 = vand.u32 %v10663, 4294901760
  %v11051 = vsub.f32 %v10663, %v11050
  %v11052 = vand.u32 %v11051, 4294901760
  %11053 = vmatpush1.msra.mxu0 %v11052
  %11054 = vmatprep.subr.mxu0 0.0
  %11055 = vmatpush1.msra.mxu0 0.0
  %11056 = vmatprep.subr.mxu0 0.0
  %11057 = vmatpush1.msra.mxu0 0.0
  %11058 = vmatprep.subr.mxu0 0.0
  %11059 = vmatpush1.msra.mxu0 0.0
  %11060 = vmatprep.subr.mxu0 0.0
  %11061 = vmatpush1.msra.mxu0 0.0
  %11062 = vmatprep.subr.mxu0 0.0
  %11063 = vmatpush1.msra.mxu0 0.0
  %11064 = vmatprep.subr.mxu0 0.0
  %11065 = vmatpush1.msra.mxu0 0.0
  %11066 = vmatprep.subr.mxu0 0.0
  %11067 = vmatpush1.msra.mxu0 0.0
  %11068 = vmatprep.subr.mxu0 0.0
  %11069 = vmatpush1.msra.mxu0 0.0
  %11070 = vmatprep.subr.mxu0 0.0
  %11071 = vmatpush1.msra.mxu0 0.0
  %11072 = vmatprep.subr.mxu0 0.0
  %11073 = vmatpush1.msra.mxu0 0.0
  %11074 = vmatprep.subr.mxu0 0.0
  %11075 = vmatpush1.msra.mxu0 0.0
  %11076 = vmatprep.subr.mxu0 0.0
  %11077 = vmatpush1.msra.mxu0 0.0
  %11078 = vmatprep.subr.mxu0 0.0
  %11079 = vmatpush1.msra.mxu0 0.0
  %11080 = vmatprep.subr.mxu0 0.0
  %11081 = vmatpush1.msra.mxu0 0.0
  %11082 = vmatprep.subr.mxu0 0.0
  %11083 = vmatpush1.msra.mxu0 0.0
  %11084 = vmatprep.subr.mxu0 0.0
  %11085 = vmatpush1.msra.mxu0 0.0
  %11086 = vmatprep.subr.mxu0 0.0
  %11087 = vmatpush1.msra.mxu0 0.0
  %11088 = vmatprep.subr.mxu0 0.0
  %11089 = vmatpush1.msra.mxu0 0.0
  %11090 = vmatprep.subr.mxu0 0.0
  %11091 = vmatpush1.msra.mxu0 0.0
  %11092 = vmatprep.subr.mxu0 0.0
  %11093 = vmatpush1.msra.mxu0 0.0
  %11094 = vmatprep.subr.mxu0 0.0
  %11095 = vmatpush1.msra.mxu0 0.0
  %11096 = vmatprep.subr.mxu0 0.0
  %11097 = vmatpush1.msra.mxu0 0.0
  %11098 = vmatprep.subr.mxu0 0.0
  %11099 = vmatpush1.msra.mxu0 0.0
  %11100 = vmatprep.subr.mxu0 0.0
  %11101 = vmatpush1.msra.mxu0 0.0
  %11102 = vmatprep.subr.mxu0 0.0
  %11103 = vmatpush1.msra.mxu0 0.0
  %11104 = vmatprep.mubr.f32.mxu0 0.0
  %v11105 = vand.u32 %v10660, 4294901760
  %11106 = vmatmul.mubr.f32.gmra.mrb[0].mxu0 %v11105
  %v11107 = vpop.f32.mrb[0].mxu0
  %v11108 = vadd.f32 %v11016, %v11107
  %v11109 = vpop.f32.mrb[0].mxu0
  %11110 = vdwg.mxu0
  %11111 = vmatprep.subr.mxu0 0.0
  %v11112 = vand.u32 %v10652, 4294901760
  %11113 = vmatpush1.msra.mxu0 %v11112
  %11114 = vmatprep.subr.mxu0 0.0
  %v11115 = vand.u32 %v10653, 4294901760
  %11116 = vmatpush1.msra.mxu0 %v11115
  %11117 = vmatprep.subr.mxu0 0.0
  %v11118 = vand.u32 %v10654, 4294901760
  %11119 = vmatpush1.msra.mxu0 %v11118
  %11120 = vmatprep.subr.mxu0 0.0
  %v11121 = vand.u32 %v10655, 4294901760
  %11122 = vmatpush1.msra.mxu0 %v11121
  %11123 = vmatprep.subr.mxu0 0.0
  %v11124 = vand.u32 %v10656, 4294901760
  %11125 = vmatpush1.msra.mxu0 %v11124
  %11126 = vmatprep.subr.mxu0 0.0
  %v11127 = vand.u32 %v10657, 4294901760
  %11128 = vmatpush1.msra.mxu0 %v11127
  %11129 = vmatprep.subr.mxu0 0.0
  %v11130 = vand.u32 %v10663, 4294901760
  %11131 = vmatpush1.msra.mxu0 %v11130
  %11132 = vmatprep.subr.mxu0 0.0
  %11133 = vmatpush1.msra.mxu0 0.0
  %11134 = vmatprep.subr.mxu0 0.0
  %11135 = vmatpush1.msra.mxu0 0.0
  %11136 = vmatprep.subr.mxu0 0.0
  %11137 = vmatpush1.msra.mxu0 0.0
  %11138 = vmatprep.subr.mxu0 0.0
  %11139 = vmatpush1.msra.mxu0 0.0
  %11140 = vmatprep.subr.mxu0 0.0
  %11141 = vmatpush1.msra.mxu0 0.0
  %11142 = vmatprep.subr.mxu0 0.0
  %11143 = vmatpush1.msra.mxu0 0.0
  %11144 = vmatprep.subr.mxu0 0.0
  %11145 = vmatpush1.msra.mxu0 0.0
  %11146 = vmatprep.subr.mxu0 0.0
  %11147 = vmatpush1.msra.mxu0 0.0
  %11148 = vmatprep.subr.mxu0 0.0
  %11149 = vmatpush1.msra.mxu0 0.0
  %11150 = vmatprep.subr.mxu0 0.0
  %11151 = vmatpush1.msra.mxu0 0.0
  %11152 = vmatprep.subr.mxu0 0.0
  %11153 = vmatpush1.msra.mxu0 0.0
  %11154 = vmatprep.subr.mxu0 0.0
  %11155 = vmatpush1.msra.mxu0 0.0
  %11156 = vmatprep.subr.mxu0 0.0
  %11157 = vmatpush1.msra.mxu0 0.0
  %11158 = vmatprep.subr.mxu0 0.0
  %11159 = vmatpush1.msra.mxu0 0.0
  %11160 = vmatprep.subr.mxu0 0.0
  %11161 = vmatpush1.msra.mxu0 0.0
  %11162 = vmatprep.subr.mxu0 0.0
  %11163 = vmatpush1.msra.mxu0 0.0
  %11164 = vmatprep.subr.mxu0 0.0
  %11165 = vmatpush1.msra.mxu0 0.0
  %11166 = vmatprep.subr.mxu0 0.0
  %11167 = vmatpush1.msra.mxu0 0.0
  %11168 = vmatprep.subr.mxu0 0.0
  %11169 = vmatpush1.msra.mxu0 0.0
  %11170 = vmatprep.subr.mxu0 0.0
  %11171 = vmatpush1.msra.mxu0 0.0
  %11172 = vmatprep.subr.mxu0 0.0
  %11173 = vmatpush1.msra.mxu0 0.0
  %11174 = vmatprep.subr.mxu0 0.0
  %11175 = vmatpush1.msra.mxu0 0.0
  %11176 = vmatprep.subr.mxu0 0.0
  %11177 = vmatpush1.msra.mxu0 0.0
  %11178 = vmatprep.subr.mxu0 0.0
  %11179 = vmatpush1.msra.mxu0 0.0
  %11180 = vmatprep.subr.mxu0 0.0
  %11181 = vmatpush1.msra.mxu0 0.0
  %11182 = vmatprep.mubr.f32.mxu0 0.0
  %v11183 = vand.u32 %v10660, 4294901760
  %11184 = vmatmul.mubr.f32.gmra.mrb[0].mxu0 %v11183
  %v11185 = vpop.f32.mrb[0].mxu0
  %v11186 = vadd.f32 %v11108, %v11185
  %v11187 = vpop.f32.mrb[0].mxu0
  %11188 = vdwg.mxu0
  %v11189 = vadd.f32 %v10646, %v11186
  %s11190 = scalar_lea.vmem [#allocation4], 4
  %v11191 = vld [vmem:[%s11190] ss:$8 sm:$0xf]
  %v11192 = vld [vmem:[%s11190] ss:$8 sm:$0xf0]
  %v11193 = vor.u32 %v11191, %v11192
  %s11194 = scalar_lea.vmem %s7, 224
  %v11195 = vld [vmem:[%s11194] sm:$0xff]
  %v11196 = vld [vmem:[%s11194 + $0x8] sm:$0xff]
  %v11197 = vld [vmem:[%s11194 + $0x10] sm:$0xff]
  %v11198 = vld [vmem:[%s11194 + $0x18] sm:$0xff]
  %v11199 = vld [vmem:[%s11194 + $0x20] sm:$0xff]
  %v11200 = vld [vmem:[%s11194 + $0x28] sm:$0xff]
  %v11201 = vld [vmem:[%s11194 + $0x30] sm:$0x3]
  %v11203 = vsel %vm9042, %v11193, 0
  %v11206 = vsel %vm9046, %v11201, 0
  %11208 = vmatprep.subr.mxu0 0.0
  %v11209 = vand.u32 %v11195, 4294901760
  %11210 = vmatpush1.msra.mxu0 %v11209
  %11211 = vmatprep.subr.mxu0 0.0
  %v11212 = vand.u32 %v11196, 4294901760
  %11213 = vmatpush1.msra.mxu0 %v11212
  %11214 = vmatprep.subr.mxu0 0.0
  %v11215 = vand.u32 %v11197, 4294901760
  %11216 = vmatpush1.msra.mxu0 %v11215
  %11217 = vmatprep.subr.mxu0 0.0
  %v11218 = vand.u32 %v11198, 4294901760
  %11219 = vmatpush1.msra.mxu0 %v11218
  %11220 = vmatprep.subr.mxu0 0.0
  %v11221 = vand.u32 %v11199, 4294901760
  %11222 = vmatpush1.msra.mxu0 %v11221
  %11223 = vmatprep.subr.mxu0 0.0
  %v11224 = vand.u32 %v11200, 4294901760
  %11225 = vmatpush1.msra.mxu0 %v11224
  %11226 = vmatprep.subr.mxu0 0.0
  %v11227 = vand.u32 %v11206, 4294901760
  %11228 = vmatpush1.msra.mxu0 %v11227
  %11229 = vmatprep.subr.mxu0 0.0
  %11230 = vmatpush1.msra.mxu0 0.0
  %11231 = vmatprep.subr.mxu0 0.0
  %11232 = vmatpush1.msra.mxu0 0.0
  %11233 = vmatprep.subr.mxu0 0.0
  %11234 = vmatpush1.msra.mxu0 0.0
  %11235 = vmatprep.subr.mxu0 0.0
  %11236 = vmatpush1.msra.mxu0 0.0
  %11237 = vmatprep.subr.mxu0 0.0
  %11238 = vmatpush1.msra.mxu0 0.0
  %11239 = vmatprep.subr.mxu0 0.0
  %11240 = vmatpush1.msra.mxu0 0.0
  %11241 = vmatprep.subr.mxu0 0.0
  %11242 = vmatpush1.msra.mxu0 0.0
  %11243 = vmatprep.subr.mxu0 0.0
  %11244 = vmatpush1.msra.mxu0 0.0
  %11245 = vmatprep.subr.mxu0 0.0
  %11246 = vmatpush1.msra.mxu0 0.0
  %11247 = vmatprep.subr.mxu0 0.0
  %11248 = vmatpush1.msra.mxu0 0.0
  %11249 = vmatprep.subr.mxu0 0.0
  %11250 = vmatpush1.msra.mxu0 0.0
  %11251 = vmatprep.subr.mxu0 0.0
  %11252 = vmatpush1.msra.mxu0 0.0
  %11253 = vmatprep.subr.mxu0 0.0
  %11254 = vmatpush1.msra.mxu0 0.0
  %11255 = vmatprep.subr.mxu0 0.0
  %11256 = vmatpush1.msra.mxu0 0.0
  %11257 = vmatprep.subr.mxu0 0.0
  %11258 = vmatpush1.msra.mxu0 0.0
  %11259 = vmatprep.subr.mxu0 0.0
  %11260 = vmatpush1.msra.mxu0 0.0
  %11261 = vmatprep.subr.mxu0 0.0
  %11262 = vmatpush1.msra.mxu0 0.0
  %11263 = vmatprep.subr.mxu0 0.0
  %11264 = vmatpush1.msra.mxu0 0.0
  %11265 = vmatprep.subr.mxu0 0.0
  %11266 = vmatpush1.msra.mxu0 0.0
  %11267 = vmatprep.subr.mxu0 0.0
  %11268 = vmatpush1.msra.mxu0 0.0
  %11269 = vmatprep.subr.mxu0 0.0
  %11270 = vmatpush1.msra.mxu0 0.0
  %11271 = vmatprep.subr.mxu0 0.0
  %11272 = vmatpush1.msra.mxu0 0.0
  %11273 = vmatprep.subr.mxu0 0.0
  %11274 = vmatpush1.msra.mxu0 0.0
  %11275 = vmatprep.subr.mxu0 0.0
  %11276 = vmatpush1.msra.mxu0 0.0
  %11277 = vmatprep.subr.mxu0 0.0
  %11278 = vmatpush1.msra.mxu0 0.0
  %11279 = vmatprep.mubr.f32.mxu0 0.0
  %v11280 = vand.u32 %v11203, 4294901760
  %v11281 = vsub.f32 %v11203, %v11280
  %v11282 = vand.u32 %v11281, 4294901760
  %v11283 = vsub.f32 %v11281, %v11282
  %v11284 = vand.u32 %v11283, 4294901760
  %11285 = vmatmul.mubr.f32.gmra.mrb[0].mxu0 %v11284
  %v11286 = vpop.f32.mrb[0].mxu0
  %v11287 = vadd.f32 0.0, %v11286
  %v11288 = vpop.f32.mrb[0].mxu0
  %11289 = vdwg.mxu0
  %11290 = vmatprep.subr.mxu0 0.0
  %v11291 = vand.u32 %v11195, 4294901760
  %v11292 = vsub.f32 %v11195, %v11291
  %v11293 = vand.u32 %v11292, 4294901760
  %v11294 = vsub.f32 %v11292, %v11293
  %v11295 = vand.u32 %v11294, 4294901760
  %11296 = vmatpush1.msra.mxu0 %v11295
  %11297 = vmatprep.subr.mxu0 0.0
  %v11298 = vand.u32 %v11196, 4294901760
  %v11299 = vsub.f32 %v11196, %v11298
  %v11300 = vand.u32 %v11299, 4294901760
  %v11301 = vsub.f32 %v11299, %v11300
  %v11302 = vand.u32 %v11301, 4294901760
  %11303 = vmatpush1.msra.mxu0 %v11302
  %11304 = vmatprep.subr.mxu0 0.0
  %v11305 = vand.u32 %v11197, 4294901760
  %v11306 = vsub.f32 %v11197, %v11305
  %v11307 = vand.u32 %v11306, 4294901760
  %v11308 = vsub.f32 %v11306, %v11307
  %v11309 = vand.u32 %v11308, 4294901760
  %11310 = vmatpush1.msra.mxu0 %v11309
  %11311 = vmatprep.subr.mxu0 0.0
  %v11312 = vand.u32 %v11198, 4294901760
  %v11313 = vsub.f32 %v11198, %v11312
  %v11314 = vand.u32 %v11313, 4294901760
  %v11315 = vsub.f32 %v11313, %v11314
  %v11316 = vand.u32 %v11315, 4294901760
  %11317 = vmatpush1.msra.mxu0 %v11316
  %11318 = vmatprep.subr.mxu0 0.0
  %v11319 = vand.u32 %v11199, 4294901760
  %v11320 = vsub.f32 %v11199, %v11319
  %v11321 = vand.u32 %v11320, 4294901760
  %v11322 = vsub.f32 %v11320, %v11321
  %v11323 = vand.u32 %v11322, 4294901760
  %11324 = vmatpush1.msra.mxu0 %v11323
  %11325 = vmatprep.subr.mxu0 0.0
  %v11326 = vand.u32 %v11200, 4294901760
  %v11327 = vsub.f32 %v11200, %v11326
  %v11328 = vand.u32 %v11327, 4294901760
  %v11329 = vsub.f32 %v11327, %v11328
  %v11330 = vand.u32 %v11329, 4294901760
  %11331 = vmatpush1.msra.mxu0 %v11330
  %11332 = vmatprep.subr.mxu0 0.0
  %v11333 = vand.u32 %v11206, 4294901760
  %v11334 = vsub.f32 %v11206, %v11333
  %v11335 = vand.u32 %v11334, 4294901760
  %v11336 = vsub.f32 %v11334, %v11335
  %v11337 = vand.u32 %v11336, 4294901760
  %11338 = vmatpush1.msra.mxu0 %v11337
  %11339 = vmatprep.subr.mxu0 0.0
  %11340 = vmatpush1.msra.mxu0 0.0
  %11341 = vmatprep.subr.mxu0 0.0
  %11342 = vmatpush1.msra.mxu0 0.0
  %11343 = vmatprep.subr.mxu0 0.0
  %11344 = vmatpush1.msra.mxu0 0.0
  %11345 = vmatprep.subr.mxu0 0.0
  %11346 = vmatpush1.msra.mxu0 0.0
  %11347 = vmatprep.subr.mxu0 0.0
  %11348 = vmatpush1.msra.mxu0 0.0
  %11349 = vmatprep.subr.mxu0 0.0
  %11350 = vmatpush1.msra.mxu0 0.0
  %11351 = vmatprep.subr.mxu0 0.0
  %11352 = vmatpush1.msra.mxu0 0.0
  %11353 = vmatprep.subr.mxu0 0.0
  %11354 = vmatpush1.msra.mxu0 0.0
  %11355 = vmatprep.subr.mxu0 0.0
  %11356 = vmatpush1.msra.mxu0 0.0
  %11357 = vmatprep.subr.mxu0 0.0
  %11358 = vmatpush1.msra.mxu0 0.0
  %11359 = vmatprep.subr.mxu0 0.0
  %11360 = vmatpush1.msra.mxu0 0.0
  %11361 = vmatprep.subr.mxu0 0.0
  %11362 = vmatpush1.msra.mxu0 0.0
  %11363 = vmatprep.subr.mxu0 0.0
  %11364 = vmatpush1.msra.mxu0 0.0
  %11365 = vmatprep.subr.mxu0 0.0
  %11366 = vmatpush1.msra.mxu0 0.0
  %11367 = vmatprep.subr.mxu0 0.0
  %11368 = vmatpush1.msra.mxu0 0.0
  %11369 = vmatprep.subr.mxu0 0.0
  %11370 = vmatpush1.msra.mxu0 0.0
  %11371 = vmatprep.subr.mxu0 0.0
  %11372 = vmatpush1.msra.mxu0 0.0
  %11373 = vmatprep.subr.mxu0 0.0
  %11374 = vmatpush1.msra.mxu0 0.0
  %11375 = vmatprep.subr.mxu0 0.0
  %11376 = vmatpush1.msra.mxu0 0.0
  %11377 = vmatprep.subr.mxu0 0.0
  %11378 = vmatpush1.msra.mxu0 0.0
  %11379 = vmatprep.subr.mxu0 0.0
  %11380 = vmatpush1.msra.mxu0 0.0
  %11381 = vmatprep.subr.mxu0 0.0
  %11382 = vmatpush1.msra.mxu0 0.0
  %11383 = vmatprep.subr.mxu0 0.0
  %11384 = vmatpush1.msra.mxu0 0.0
  %11385 = vmatprep.subr.mxu0 0.0
  %11386 = vmatpush1.msra.mxu0 0.0
  %11387 = vmatprep.subr.mxu0 0.0
  %11388 = vmatpush1.msra.mxu0 0.0
  %11389 = vmatprep.mubr.f32.mxu0 0.0
  %v11390 = vand.u32 %v11203, 4294901760
  %11391 = vmatmul.mubr.f32.gmra.mrb[0].mxu0 %v11390
  %v11392 = vpop.f32.mrb[0].mxu0
  %v11393 = vadd.f32 %v11287, %v11392
  %v11394 = vpop.f32.mrb[0].mxu0
  %11395 = vdwg.mxu0
  %11396 = vmatprep.subr.mxu0 0.0
  %v11397 = vand.u32 %v11195, 4294901760
  %v11398 = vsub.f32 %v11195, %v11397
  %11399 = vmatpush1.msra.mxu0 %v11398
  %11400 = vmatprep.subr.mxu0 0.0
  %v11401 = vand.u32 %v11196, 4294901760
  %v11402 = vsub.f32 %v11196, %v11401
  %11403 = vmatpush1.msra.mxu0 %v11402
  %11404 = vmatprep.subr.mxu0 0.0
  %v11405 = vand.u32 %v11197, 4294901760
  %v11406 = vsub.f32 %v11197, %v11405
  %11407 = vmatpush1.msra.mxu0 %v11406
  %11408 = vmatprep.subr.mxu0 0.0
  %v11409 = vand.u32 %v11198, 4294901760
  %v11410 = vsub.f32 %v11198, %v11409
  %11411 = vmatpush1.msra.mxu0 %v11410
  %11412 = vmatprep.subr.mxu0 0.0
  %v11413 = vand.u32 %v11199, 4294901760
  %v11414 = vsub.f32 %v11199, %v11413
  %11415 = vmatpush1.msra.mxu0 %v11414
  %11416 = vmatprep.subr.mxu0 0.0
  %v11417 = vand.u32 %v11200, 4294901760
  %v11418 = vsub.f32 %v11200, %v11417
  %11419 = vmatpush1.msra.mxu0 %v11418
  %11420 = vmatprep.subr.mxu0 0.0
  %v11421 = vand.u32 %v11206, 4294901760
  %v11422 = vsub.f32 %v11206, %v11421
  %11423 = vmatpush1.msra.mxu0 %v11422
  %11424 = vmatprep.subr.mxu0 0.0
  %11425 = vmatpush1.msra.mxu0 0.0
  %11426 = vmatprep.subr.mxu0 0.0
  %11427 = vmatpush1.msra.mxu0 0.0
  %11428 = vmatprep.subr.mxu0 0.0
  %11429 = vmatpush1.msra.mxu0 0.0
  %11430 = vmatprep.subr.mxu0 0.0
  %11431 = vmatpush1.msra.mxu0 0.0
  %11432 = vmatprep.subr.mxu0 0.0
  %11433 = vmatpush1.msra.mxu0 0.0
  %11434 = vmatprep.subr.mxu0 0.0
  %11435 = vmatpush1.msra.mxu0 0.0
  %11436 = vmatprep.subr.mxu0 0.0
  %11437 = vmatpush1.msra.mxu0 0.0
  %11438 = vmatprep.subr.mxu0 0.0
  %11439 = vmatpush1.msra.mxu0 0.0
  %11440 = vmatprep.subr.mxu0 0.0
  %11441 = vmatpush1.msra.mxu0 0.0
  %11442 = vmatprep.subr.mxu0 0.0
  %11443 = vmatpush1.msra.mxu0 0.0
  %11444 = vmatprep.subr.mxu0 0.0
  %11445 = vmatpush1.msra.mxu0 0.0
  %11446 = vmatprep.subr.mxu0 0.0
  %11447 = vmatpush1.msra.mxu0 0.0
  %11448 = vmatprep.subr.mxu0 0.0
  %11449 = vmatpush1.msra.mxu0 0.0
  %11450 = vmatprep.subr.mxu0 0.0
  %11451 = vmatpush1.msra.mxu0 0.0
  %11452 = vmatprep.subr.mxu0 0.0
  %11453 = vmatpush1.msra.mxu0 0.0
  %11454 = vmatprep.subr.mxu0 0.0
  %11455 = vmatpush1.msra.mxu0 0.0
  %11456 = vmatprep.subr.mxu0 0.0
  %11457 = vmatpush1.msra.mxu0 0.0
  %11458 = vmatprep.subr.mxu0 0.0
  %11459 = vmatpush1.msra.mxu0 0.0
  %11460 = vmatprep.subr.mxu0 0.0
  %11461 = vmatpush1.msra.mxu0 0.0
  %11462 = vmatprep.subr.mxu0 0.0
  %11463 = vmatpush1.msra.mxu0 0.0
  %11464 = vmatprep.subr.mxu0 0.0
  %11465 = vmatpush1.msra.mxu0 0.0
  %11466 = vmatprep.subr.mxu0 0.0
  %11467 = vmatpush1.msra.mxu0 0.0
  %11468 = vmatprep.subr.mxu0 0.0
  %11469 = vmatpush1.msra.mxu0 0.0
  %11470 = vmatprep.subr.mxu0 0.0
  %11471 = vmatpush1.msra.mxu0 0.0
  %11472 = vmatprep.subr.mxu0 0.0
  %11473 = vmatpush1.msra.mxu0 0.0
  %11474 = vmatprep.mubr.f32.mxu0 0.0
  %v11475 = vand.u32 %v11203, 4294901760
  %v11476 = vsub.f32 %v11203, %v11475
  %11477 = vmatmul.mubr.f32.gmra.mrb[0].mxu0 %v11476
  %v11478 = vpop.f32.mrb[0].mxu0
  %v11479 = vadd.f32 %v11393, %v11478
  %v11480 = vpop.f32.mrb[0].mxu0
  %11481 = vdwg.mxu0
  %11482 = vmatprep.subr.mxu0 0.0
  %v11483 = vand.u32 %v11195, 4294901760
  %11484 = vmatpush1.msra.mxu0 %v11483
  %11485 = vmatprep.subr.mxu0 0.0
  %v11486 = vand.u32 %v11196, 4294901760
  %11487 = vmatpush1.msra.mxu0 %v11486
  %11488 = vmatprep.subr.mxu0 0.0
  %v11489 = vand.u32 %v11197, 4294901760
  %11490 = vmatpush1.msra.mxu0 %v11489
  %11491 = vmatprep.subr.mxu0 0.0
  %v11492 = vand.u32 %v11198, 4294901760
  %11493 = vmatpush1.msra.mxu0 %v11492
  %11494 = vmatprep.subr.mxu0 0.0
  %v11495 = vand.u32 %v11199, 4294901760
  %11496 = vmatpush1.msra.mxu0 %v11495
  %11497 = vmatprep.subr.mxu0 0.0
  %v11498 = vand.u32 %v11200, 4294901760
  %11499 = vmatpush1.msra.mxu0 %v11498
  %11500 = vmatprep.subr.mxu0 0.0
  %v11501 = vand.u32 %v11206, 4294901760
  %11502 = vmatpush1.msra.mxu0 %v11501
  %11503 = vmatprep.subr.mxu0 0.0
  %11504 = vmatpush1.msra.mxu0 0.0
  %11505 = vmatprep.subr.mxu0 0.0
  %11506 = vmatpush1.msra.mxu0 0.0
  %11507 = vmatprep.subr.mxu0 0.0
  %11508 = vmatpush1.msra.mxu0 0.0
  %11509 = vmatprep.subr.mxu0 0.0
  %11510 = vmatpush1.msra.mxu0 0.0
  %11511 = vmatprep.subr.mxu0 0.0
  %11512 = vmatpush1.msra.mxu0 0.0
  %11513 = vmatprep.subr.mxu0 0.0
  %11514 = vmatpush1.msra.mxu0 0.0
  %11515 = vmatprep.subr.mxu0 0.0
  %11516 = vmatpush1.msra.mxu0 0.0
  %11517 = vmatprep.subr.mxu0 0.0
  %11518 = vmatpush1.msra.mxu0 0.0
  %11519 = vmatprep.subr.mxu0 0.0
  %11520 = vmatpush1.msra.mxu0 0.0
  %11521 = vmatprep.subr.mxu0 0.0
  %11522 = vmatpush1.msra.mxu0 0.0
  %11523 = vmatprep.subr.mxu0 0.0
  %11524 = vmatpush1.msra.mxu0 0.0
  %11525 = vmatprep.subr.mxu0 0.0
  %11526 = vmatpush1.msra.mxu0 0.0
  %11527 = vmatprep.subr.mxu0 0.0
  %11528 = vmatpush1.msra.mxu0 0.0
  %11529 = vmatprep.subr.mxu0 0.0
  %11530 = vmatpush1.msra.mxu0 0.0
  %11531 = vmatprep.subr.mxu0 0.0
  %11532 = vmatpush1.msra.mxu0 0.0
  %11533 = vmatprep.subr.mxu0 0.0
  %11534 = vmatpush1.msra.mxu0 0.0
  %11535 = vmatprep.subr.mxu0 0.0
  %11536 = vmatpush1.msra.mxu0 0.0
  %11537 = vmatprep.subr.mxu0 0.0
  %11538 = vmatpush1.msra.mxu0 0.0
  %11539 = vmatprep.subr.mxu0 0.0
  %11540 = vmatpush1.msra.mxu0 0.0
  %11541 = vmatprep.subr.mxu0 0.0
  %11542 = vmatpush1.msra.mxu0 0.0
  %11543 = vmatprep.subr.mxu0 0.0
  %11544 = vmatpush1.msra.mxu0 0.0
  %11545 = vmatprep.subr.mxu0 0.0
  %11546 = vmatpush1.msra.mxu0 0.0
  %11547 = vmatprep.subr.mxu0 0.0
  %11548 = vmatpush1.msra.mxu0 0.0
  %11549 = vmatprep.subr.mxu0 0.0
  %11550 = vmatpush1.msra.mxu0 0.0
  %11551 = vmatprep.subr.mxu0 0.0
  %11552 = vmatpush1.msra.mxu0 0.0
  %11553 = vmatprep.mubr.f32.mxu0 0.0
  %v11554 = vand.u32 %v11203, 4294901760
  %v11555 = vsub.f32 %v11203, %v11554
  %v11556 = vand.u32 %v11555, 4294901760
  %11557 = vmatmul.mubr.f32.gmra.mrb[0].mxu0 %v11556
  %v11558 = vpop.f32.mrb[0].mxu0
  %v11559 = vadd.f32 %v11479, %v11558
  %v11560 = vpop.f32.mrb[0].mxu0
  %11561 = vdwg.mxu0
  %11562 = vmatprep.subr.mxu0 0.0
  %v11563 = vand.u32 %v11195, 4294901760
  %v11564 = vsub.f32 %v11195, %v11563
  %v11565 = vand.u32 %v11564, 4294901760
  %11566 = vmatpush1.msra.mxu0 %v11565
  %11567 = vmatprep.subr.mxu0 0.0
  %v11568 = vand.u32 %v11196, 4294901760
  %v11569 = vsub.f32 %v11196, %v11568
  %v11570 = vand.u32 %v11569, 4294901760
  %11571 = vmatpush1.msra.mxu0 %v11570
  %11572 = vmatprep.subr.mxu0 0.0
  %v11573 = vand.u32 %v11197, 4294901760
  %v11574 = vsub.f32 %v11197, %v11573
  %v11575 = vand.u32 %v11574, 4294901760
  %11576 = vmatpush1.msra.mxu0 %v11575
  %11577 = vmatprep.subr.mxu0 0.0
  %v11578 = vand.u32 %v11198, 4294901760
  %v11579 = vsub.f32 %v11198, %v11578
  %v11580 = vand.u32 %v11579, 4294901760
  %11581 = vmatpush1.msra.mxu0 %v11580
  %11582 = vmatprep.subr.mxu0 0.0
  %v11583 = vand.u32 %v11199, 4294901760
  %v11584 = vsub.f32 %v11199, %v11583
  %v11585 = vand.u32 %v11584, 4294901760
  %11586 = vmatpush1.msra.mxu0 %v11585
  %11587 = vmatprep.subr.mxu0 0.0
  %v11588 = vand.u32 %v11200, 4294901760
  %v11589 = vsub.f32 %v11200, %v11588
  %v11590 = vand.u32 %v11589, 4294901760
  %11591 = vmatpush1.msra.mxu0 %v11590
  %11592 = vmatprep.subr.mxu0 0.0
  %v11593 = vand.u32 %v11206, 4294901760
  %v11594 = vsub.f32 %v11206, %v11593
  %v11595 = vand.u32 %v11594, 4294901760
  %11596 = vmatpush1.msra.mxu0 %v11595
  %11597 = vmatprep.subr.mxu0 0.0
  %11598 = vmatpush1.msra.mxu0 0.0
  %11599 = vmatprep.subr.mxu0 0.0
  %11600 = vmatpush1.msra.mxu0 0.0
  %11601 = vmatprep.subr.mxu0 0.0
  %11602 = vmatpush1.msra.mxu0 0.0
  %11603 = vmatprep.subr.mxu0 0.0
  %11604 = vmatpush1.msra.mxu0 0.0
  %11605 = vmatprep.subr.mxu0 0.0
  %11606 = vmatpush1.msra.mxu0 0.0
  %11607 = vmatprep.subr.mxu0 0.0
  %11608 = vmatpush1.msra.mxu0 0.0
  %11609 = vmatprep.subr.mxu0 0.0
  %11610 = vmatpush1.msra.mxu0 0.0
  %11611 = vmatprep.subr.mxu0 0.0
  %11612 = vmatpush1.msra.mxu0 0.0
  %11613 = vmatprep.subr.mxu0 0.0
  %11614 = vmatpush1.msra.mxu0 0.0
  %11615 = vmatprep.subr.mxu0 0.0
  %11616 = vmatpush1.msra.mxu0 0.0
  %11617 = vmatprep.subr.mxu0 0.0
  %11618 = vmatpush1.msra.mxu0 0.0
  %11619 = vmatprep.subr.mxu0 0.0
  %11620 = vmatpush1.msra.mxu0 0.0
  %11621 = vmatprep.subr.mxu0 0.0
  %11622 = vmatpush1.msra.mxu0 0.0
  %11623 = vmatprep.subr.mxu0 0.0
  %11624 = vmatpush1.msra.mxu0 0.0
  %11625 = vmatprep.subr.mxu0 0.0
  %11626 = vmatpush1.msra.mxu0 0.0
  %11627 = vmatprep.subr.mxu0 0.0
  %11628 = vmatpush1.msra.mxu0 0.0
  %11629 = vmatprep.subr.mxu0 0.0
  %11630 = vmatpush1.msra.mxu0 0.0
  %11631 = vmatprep.subr.mxu0 0.0
  %11632 = vmatpush1.msra.mxu0 0.0
  %11633 = vmatprep.subr.mxu0 0.0
  %11634 = vmatpush1.msra.mxu0 0.0
  %11635 = vmatprep.subr.mxu0 0.0
  %11636 = vmatpush1.msra.mxu0 0.0
  %11637 = vmatprep.subr.mxu0 0.0
  %11638 = vmatpush1.msra.mxu0 0.0
  %11639 = vmatprep.subr.mxu0 0.0
  %11640 = vmatpush1.msra.mxu0 0.0
  %11641 = vmatprep.subr.mxu0 0.0
  %11642 = vmatpush1.msra.mxu0 0.0
  %11643 = vmatprep.subr.mxu0 0.0
  %11644 = vmatpush1.msra.mxu0 0.0
  %11645 = vmatprep.subr.mxu0 0.0
  %11646 = vmatpush1.msra.mxu0 0.0
  %11647 = vmatprep.mubr.f32.mxu0 0.0
  %v11648 = vand.u32 %v11203, 4294901760
  %11649 = vmatmul.mubr.f32.gmra.mrb[0].mxu0 %v11648
  %v11650 = vpop.f32.mrb[0].mxu0
  %v11651 = vadd.f32 %v11559, %v11650
  %v11652 = vpop.f32.mrb[0].mxu0
  %11653 = vdwg.mxu0
  %11654 = vmatprep.subr.mxu0 0.0
  %v11655 = vand.u32 %v11195, 4294901760
  %11656 = vmatpush1.msra.mxu0 %v11655
  %11657 = vmatprep.subr.mxu0 0.0
  %v11658 = vand.u32 %v11196, 4294901760
  %11659 = vmatpush1.msra.mxu0 %v11658
  %11660 = vmatprep.subr.mxu0 0.0
  %v11661 = vand.u32 %v11197, 4294901760
  %11662 = vmatpush1.msra.mxu0 %v11661
  %11663 = vmatprep.subr.mxu0 0.0
  %v11664 = vand.u32 %v11198, 4294901760
  %11665 = vmatpush1.msra.mxu0 %v11664
  %11666 = vmatprep.subr.mxu0 0.0
  %v11667 = vand.u32 %v11199, 4294901760
  %11668 = vmatpush1.msra.mxu0 %v11667
  %11669 = vmatprep.subr.mxu0 0.0
  %v11670 = vand.u32 %v11200, 4294901760
  %11671 = vmatpush1.msra.mxu0 %v11670
  %11672 = vmatprep.subr.mxu0 0.0
  %v11673 = vand.u32 %v11206, 4294901760
  %11674 = vmatpush1.msra.mxu0 %v11673
  %11675 = vmatprep.subr.mxu0 0.0
  %11676 = vmatpush1.msra.mxu0 0.0
  %11677 = vmatprep.subr.mxu0 0.0
  %11678 = vmatpush1.msra.mxu0 0.0
  %11679 = vmatprep.subr.mxu0 0.0
  %11680 = vmatpush1.msra.mxu0 0.0
  %11681 = vmatprep.subr.mxu0 0.0
  %11682 = vmatpush1.msra.mxu0 0.0
  %11683 = vmatprep.subr.mxu0 0.0
  %11684 = vmatpush1.msra.mxu0 0.0
  %11685 = vmatprep.subr.mxu0 0.0
  %11686 = vmatpush1.msra.mxu0 0.0
  %11687 = vmatprep.subr.mxu0 0.0
  %11688 = vmatpush1.msra.mxu0 0.0
  %11689 = vmatprep.subr.mxu0 0.0
  %11690 = vmatpush1.msra.mxu0 0.0
  %11691 = vmatprep.subr.mxu0 0.0
  %11692 = vmatpush1.msra.mxu0 0.0
  %11693 = vmatprep.subr.mxu0 0.0
  %11694 = vmatpush1.msra.mxu0 0.0
  %11695 = vmatprep.subr.mxu0 0.0
  %11696 = vmatpush1.msra.mxu0 0.0
  %11697 = vmatprep.subr.mxu0 0.0
  %11698 = vmatpush1.msra.mxu0 0.0
  %11699 = vmatprep.subr.mxu0 0.0
  %11700 = vmatpush1.msra.mxu0 0.0
  %11701 = vmatprep.subr.mxu0 0.0
  %11702 = vmatpush1.msra.mxu0 0.0
  %11703 = vmatprep.subr.mxu0 0.0
  %11704 = vmatpush1.msra.mxu0 0.0
  %11705 = vmatprep.subr.mxu0 0.0
  %11706 = vmatpush1.msra.mxu0 0.0
  %11707 = vmatprep.subr.mxu0 0.0
  %11708 = vmatpush1.msra.mxu0 0.0
  %11709 = vmatprep.subr.mxu0 0.0
  %11710 = vmatpush1.msra.mxu0 0.0
  %11711 = vmatprep.subr.mxu0 0.0
  %11712 = vmatpush1.msra.mxu0 0.0
  %11713 = vmatprep.subr.mxu0 0.0
  %11714 = vmatpush1.msra.mxu0 0.0
  %11715 = vmatprep.subr.mxu0 0.0
  %11716 = vmatpush1.msra.mxu0 0.0
  %11717 = vmatprep.subr.mxu0 0.0
  %11718 = vmatpush1.msra.mxu0 0.0
  %11719 = vmatprep.subr.mxu0 0.0
  %11720 = vmatpush1.msra.mxu0 0.0
  %11721 = vmatprep.subr.mxu0 0.0
  %11722 = vmatpush1.msra.mxu0 0.0
  %11723 = vmatprep.subr.mxu0 0.0
  %11724 = vmatpush1.msra.mxu0 0.0
  %11725 = vmatprep.mubr.f32.mxu0 0.0
  %v11726 = vand.u32 %v11203, 4294901760
  %11727 = vmatmul.mubr.f32.gmra.mrb[0].mxu0 %v11726
  %v11728 = vpop.f32.mrb[0].mxu0
  %v11729 = vadd.f32 %v11651, %v11728
  %v11730 = vpop.f32.mrb[0].mxu0
  %11731 = vdwg.mxu0
  %v11732 = vadd.f32 %v11189, %v11729
  %v11733 = vld [vmem:[%s8] sm:$0x1]
  %v11735 = vlaneseq
  %v11736 = vshrl.u32 %v11735, 7
  %v11737 = vsub.s32 0, %v11736
  %v11738 = vrot.slane %v11733, %v11737
  %v11740 = vadd.f32 %v11732, %v11738
  %v11741 = vmax.f32 %v11740, 0.0
  %v11742 = vld [vmem:[%s9] sm:$0xff]
  %v11743 = vld [vmem:[%s9 + $0x8] sm:$0xff]
  %v11744 = vld [vmem:[%s9 + $0x10] sm:$0xf]
  %v11745 = vld [vmem:[%s10] sm:$0x1]
  %v11747 = vlaneseq
  %v11748 = vshrl.u32 %v11747, 7
  %v11749 = vsub.s32 0, %v11748
  %v11750 = vrot.slane %v11745, %v11749
  %vm11752 = vcmask 162816
  %v11754 = vsel %vm11752, %v11741, 0
  %vm11756 = vcmask 1043456
  %v11758 = vsel %vm11756, %v11744, 0
  %11760 = vmatprep.subr.mxu0 0.0
  %v11761 = vand.u32 %v11742, 4294901760
  %11762 = vmatpush1.msra.mxu0 %v11761
  %11763 = vmatprep.subr.mxu0 0.0
  %v11764 = vand.u32 %v11743, 4294901760
  %11765 = vmatpush1.msra.mxu0 %v11764
  %11766 = vmatprep.subr.mxu0 0.0
  %v11767 = vand.u32 %v11758, 4294901760
  %11768 = vmatpush1.msra.mxu0 %v11767
  %11769 = vmatprep.subr.mxu0 0.0
  %11770 = vmatpush1.msra.mxu0 0.0
  %11771 = vmatprep.subr.mxu0 0.0
  %11772 = vmatpush1.msra.mxu0 0.0
  %11773 = vmatprep.subr.mxu0 0.0
  %11774 = vmatpush1.msra.mxu0 0.0
  %11775 = vmatprep.subr.mxu0 0.0
  %11776 = vmatpush1.msra.mxu0 0.0
  %11777 = vmatprep.subr.mxu0 0.0
  %11778 = vmatpush1.msra.mxu0 0.0
  %11779 = vmatprep.subr.mxu0 0.0
  %11780 = vmatpush1.msra.mxu0 0.0
  %11781 = vmatprep.subr.mxu0 0.0
  %11782 = vmatpush1.msra.mxu0 0.0
  %11783 = vmatprep.subr.mxu0 0.0
  %11784 = vmatpush1.msra.mxu0 0.0
  %11785 = vmatprep.subr.mxu0 0.0
  %11786 = vmatpush1.msra.mxu0 0.0
  %11787 = vmatprep.subr.mxu0 0.0
  %11788 = vmatpush1.msra.mxu0 0.0
  %11789 = vmatprep.subr.mxu0 0.0
  %11790 = vmatpush1.msra.mxu0 0.0
  %11791 = vmatprep.subr.mxu0 0.0
  %11792 = vmatpush1.msra.mxu0 0.0
  %11793 = vmatprep.subr.mxu0 0.0
  %11794 = vmatpush1.msra.mxu0 0.0
  %11795 = vmatprep.subr.mxu0 0.0
  %11796 = vmatpush1.msra.mxu0 0.0
  %11797 = vmatprep.subr.mxu0 0.0
  %11798 = vmatpush1.msra.mxu0 0.0
  %11799 = vmatprep.subr.mxu0 0.0
  %11800 = vmatpush1.msra.mxu0 0.0
  %11801 = vmatprep.subr.mxu0 0.0
  %11802 = vmatpush1.msra.mxu0 0.0
  %11803 = vmatprep.subr.mxu0 0.0
  %11804 = vmatpush1.msra.mxu0 0.0
  %11805 = vmatprep.subr.mxu0 0.0
  %11806 = vmatpush1.msra.mxu0 0.0
  %11807 = vmatprep.subr.mxu0 0.0
  %11808 = vmatpush1.msra.mxu0 0.0
  %11809 = vmatprep.subr.mxu0 0.0
  %11810 = vmatpush1.msra.mxu0 0.0
  %11811 = vmatprep.subr.mxu0 0.0
  %11812 = vmatpush1.msra.mxu0 0.0
  %11813 = vmatprep.subr.mxu0 0.0
  %11814 = vmatpush1.msra.mxu0 0.0
  %11815 = vmatprep.subr.mxu0 0.0
  %11816 = vmatpush1.msra.mxu0 0.0
  %11817 = vmatprep.subr.mxu0 0.0
  %11818 = vmatpush1.msra.mxu0 0.0
  %11819 = vmatprep.subr.mxu0 0.0
  %11820 = vmatpush1.msra.mxu0 0.0
  %11821 = vmatprep.subr.mxu0 0.0
  %11822 = vmatpush1.msra.mxu0 0.0
  %11823 = vmatprep.subr.mxu0 0.0
  %11824 = vmatpush1.msra.mxu0 0.0
  %11825 = vmatprep.subr.mxu0 0.0
  %11826 = vmatpush1.msra.mxu0 0.0
  %11827 = vmatprep.mubr.f32.mxu0 0.0
  %v11828 = vand.u32 %v11754, 4294901760
  %v11829 = vsub.f32 %v11754, %v11828
  %v11830 = vand.u32 %v11829, 4294901760
  %v11831 = vsub.f32 %v11829, %v11830
  %v11832 = vand.u32 %v11831, 4294901760
  %11833 = vmatmul.mubr.f32.gmra.mrb[0].mxu0 %v11832
  %v11834 = vpop.f32.mrb[0].mxu0
  %v11835 = vadd.f32 %v11750, %v11834
  %v11836 = vpop.f32.mrb[0].mxu0
  %11837 = vdwg.mxu0
  %11838 = vmatprep.subr.mxu0 0.0
  %v11839 = vand.u32 %v11742, 4294901760
  %v11840 = vsub.f32 %v11742, %v11839
  %v11841 = vand.u32 %v11840, 4294901760
  %v11842 = vsub.f32 %v11840, %v11841
  %v11843 = vand.u32 %v11842, 4294901760
  %11844 = vmatpush1.msra.mxu0 %v11843
  %11845 = vmatprep.subr.mxu0 0.0
  %v11846 = vand.u32 %v11743, 4294901760
  %v11847 = vsub.f32 %v11743, %v11846
  %v11848 = vand.u32 %v11847, 4294901760
  %v11849 = vsub.f32 %v11847, %v11848
  %v11850 = vand.u32 %v11849, 4294901760
  %11851 = vmatpush1.msra.mxu0 %v11850
  %11852 = vmatprep.subr.mxu0 0.0
  %v11853 = vand.u32 %v11758, 4294901760
  %v11854 = vsub.f32 %v11758, %v11853
  %v11855 = vand.u32 %v11854, 4294901760
  %v11856 = vsub.f32 %v11854, %v11855
  %v11857 = vand.u32 %v11856, 4294901760
  %11858 = vmatpush1.msra.mxu0 %v11857
  %11859 = vmatprep.subr.mxu0 0.0
  %11860 = vmatpush1.msra.mxu0 0.0
  %11861 = vmatprep.subr.mxu0 0.0
  %11862 = vmatpush1.msra.mxu0 0.0
  %11863 = vmatprep.subr.mxu0 0.0
  %11864 = vmatpush1.msra.mxu0 0.0
  %11865 = vmatprep.subr.mxu0 0.0
  %11866 = vmatpush1.msra.mxu0 0.0
  %11867 = vmatprep.subr.mxu0 0.0
  %11868 = vmatpush1.msra.mxu0 0.0
  %11869 = vmatprep.subr.mxu0 0.0
  %11870 = vmatpush1.msra.mxu0 0.0
  %11871 = vmatprep.subr.mxu0 0.0
  %11872 = vmatpush1.msra.mxu0 0.0
  %11873 = vmatprep.subr.mxu0 0.0
  %11874 = vmatpush1.msra.mxu0 0.0
  %11875 = vmatprep.subr.mxu0 0.0
  %11876 = vmatpush1.msra.mxu0 0.0
  %11877 = vmatprep.subr.mxu0 0.0
  %11878 = vmatpush1.msra.mxu0 0.0
  %11879 = vmatprep.subr.mxu0 0.0
  %11880 = vmatpush1.msra.mxu0 0.0
  %11881 = vmatprep.subr.mxu0 0.0
  %11882 = vmatpush1.msra.mxu0 0.0
  %11883 = vmatprep.subr.mxu0 0.0
  %11884 = vmatpush1.msra.mxu0 0.0
  %11885 = vmatprep.subr.mxu0 0.0
  %11886 = vmatpush1.msra.mxu0 0.0
  %11887 = vmatprep.subr.mxu0 0.0
  %11888 = vmatpush1.msra.mxu0 0.0
  %11889 = vmatprep.subr.mxu0 0.0
  %11890 = vmatpush1.msra.mxu0 0.0
  %11891 = vmatprep.subr.mxu0 0.0
  %11892 = vmatpush1.msra.mxu0 0.0
  %11893 = vmatprep.subr.mxu0 0.0
  %11894 = vmatpush1.msra.mxu0 0.0
  %11895 = vmatprep.subr.mxu0 0.0
  %11896 = vmatpush1.msra.mxu0 0.0
  %11897 = vmatprep.subr.mxu0 0.0
  %11898 = vmatpush1.msra.mxu0 0.0
  %11899 = vmatprep.subr.mxu0 0.0
  %11900 = vmatpush1.msra.mxu0 0.0
  %11901 = vmatprep.subr.mxu0 0.0
  %11902 = vmatpush1.msra.mxu0 0.0
  %11903 = vmatprep.subr.mxu0 0.0
  %11904 = vmatpush1.msra.mxu0 0.0
  %11905 = vmatprep.subr.mxu0 0.0
  %11906 = vmatpush1.msra.mxu0 0.0
  %11907 = vmatprep.subr.mxu0 0.0
  %11908 = vmatpush1.msra.mxu0 0.0
  %11909 = vmatprep.subr.mxu0 0.0
  %11910 = vmatpush1.msra.mxu0 0.0
  %11911 = vmatprep.subr.mxu0 0.0
  %11912 = vmatpush1.msra.mxu0 0.0
  %11913 = vmatprep.subr.mxu0 0.0
  %11914 = vmatpush1.msra.mxu0 0.0
  %11915 = vmatprep.subr.mxu0 0.0
  %11916 = vmatpush1.msra.mxu0 0.0
  %11917 = vmatprep.mubr.f32.mxu0 0.0
  %v11918 = vand.u32 %v11754, 4294901760
  %11919 = vmatmul.mubr.f32.gmra.mrb[0].mxu0 %v11918
  %v11920 = vpop.f32.mrb[0].mxu0
  %v11921 = vadd.f32 %v11835, %v11920
  %v11922 = vpop.f32.mrb[0].mxu0
  %11923 = vdwg.mxu0
  %11924 = vmatprep.subr.mxu0 0.0
  %v11925 = vand.u32 %v11742, 4294901760
  %v11926 = vsub.f32 %v11742, %v11925
  %11927 = vmatpush1.msra.mxu0 %v11926
  %11928 = vmatprep.subr.mxu0 0.0
  %v11929 = vand.u32 %v11743, 4294901760
  %v11930 = vsub.f32 %v11743, %v11929
  %11931 = vmatpush1.msra.mxu0 %v11930
  %11932 = vmatprep.subr.mxu0 0.0
  %v11933 = vand.u32 %v11758, 4294901760
  %v11934 = vsub.f32 %v11758, %v11933
  %11935 = vmatpush1.msra.mxu0 %v11934
  %11936 = vmatprep.subr.mxu0 0.0
  %11937 = vmatpush1.msra.mxu0 0.0
  %11938 = vmatprep.subr.mxu0 0.0
  %11939 = vmatpush1.msra.mxu0 0.0
  %11940 = vmatprep.subr.mxu0 0.0
  %11941 = vmatpush1.msra.mxu0 0.0
  %11942 = vmatprep.subr.mxu0 0.0
  %11943 = vmatpush1.msra.mxu0 0.0
  %11944 = vmatprep.subr.mxu0 0.0
  %11945 = vmatpush1.msra.mxu0 0.0
  %11946 = vmatprep.subr.mxu0 0.0
  %11947 = vmatpush1.msra.mxu0 0.0
  %11948 = vmatprep.subr.mxu0 0.0
  %11949 = vmatpush1.msra.mxu0 0.0
  %11950 = vmatprep.subr.mxu0 0.0
  %11951 = vmatpush1.msra.mxu0 0.0
  %11952 = vmatprep.subr.mxu0 0.0
  %11953 = vmatpush1.msra.mxu0 0.0
  %11954 = vmatprep.subr.mxu0 0.0
  %11955 = vmatpush1.msra.mxu0 0.0
  %11956 = vmatprep.subr.mxu0 0.0
  %11957 = vmatpush1.msra.mxu0 0.0
  %11958 = vmatprep.subr.mxu0 0.0
  %11959 = vmatpush1.msra.mxu0 0.0
  %11960 = vmatprep.subr.mxu0 0.0
  %11961 = vmatpush1.msra.mxu0 0.0
  %11962 = vmatprep.subr.mxu0 0.0
  %11963 = vmatpush1.msra.mxu0 0.0
  %11964 = vmatprep.subr.mxu0 0.0
  %11965 = vmatpush1.msra.mxu0 0.0
  %11966 = vmatprep.subr.mxu0 0.0
  %11967 = vmatpush1.msra.mxu0 0.0
  %11968 = vmatprep.subr.mxu0 0.0
  %11969 = vmatpush1.msra.mxu0 0.0
  %11970 = vmatprep.subr.mxu0 0.0
  %11971 = vmatpush1.msra.mxu0 0.0
  %11972 = vmatprep.subr.mxu0 0.0
  %11973 = vmatpush1.msra.mxu0 0.0
  %11974 = vmatprep.subr.mxu0 0.0
  %11975 = vmatpush1.msra.mxu0 0.0
  %11976 = vmatprep.subr.mxu0 0.0
  %11977 = vmatpush1.msra.mxu0 0.0
  %11978 = vmatprep.subr.mxu0 0.0
  %11979 = vmatpush1.msra.mxu0 0.0
  %11980 = vmatprep.subr.mxu0 0.0
  %11981 = vmatpush1.msra.mxu0 0.0
  %11982 = vmatprep.subr.mxu0 0.0
  %11983 = vmatpush1.msra.mxu0 0.0
  %11984 = vmatprep.subr.mxu0 0.0
  %11985 = vmatpush1.msra.mxu0 0.0
  %11986 = vmatprep.subr.mxu0 0.0
  %11987 = vmatpush1.msra.mxu0 0.0
  %11988 = vmatprep.subr.mxu0 0.0
  %11989 = vmatpush1.msra.mxu0 0.0
  %11990 = vmatprep.subr.mxu0 0.0
  %11991 = vmatpush1.msra.mxu0 0.0
  %11992 = vmatprep.subr.mxu0 0.0
  %11993 = vmatpush1.msra.mxu0 0.0
  %11994 = vmatprep.mubr.f32.mxu0 0.0
  %v11995 = vand.u32 %v11754, 4294901760
  %v11996 = vsub.f32 %v11754, %v11995
  %11997 = vmatmul.mubr.f32.gmra.mrb[0].mxu0 %v11996
  %v11998 = vpop.f32.mrb[0].mxu0
  %v11999 = vadd.f32 %v11921, %v11998
  %v12000 = vpop.f32.mrb[0].mxu0
  %12001 = vdwg.mxu0
  %12002 = vmatprep.subr.mxu0 0.0
  %v12003 = vand.u32 %v11742, 4294901760
  %12004 = vmatpush1.msra.mxu0 %v12003
  %12005 = vmatprep.subr.mxu0 0.0
  %v12006 = vand.u32 %v11743, 4294901760
  %12007 = vmatpush1.msra.mxu0 %v12006
  %12008 = vmatprep.subr.mxu0 0.0
  %v12009 = vand.u32 %v11758, 4294901760
  %12010 = vmatpush1.msra.mxu0 %v12009
  %12011 = vmatprep.subr.mxu0 0.0
  %12012 = vmatpush1.msra.mxu0 0.0
  %12013 = vmatprep.subr.mxu0 0.0
  %12014 = vmatpush1.msra.mxu0 0.0
  %12015 = vmatprep.subr.mxu0 0.0
  %12016 = vmatpush1.msra.mxu0 0.0
  %12017 = vmatprep.subr.mxu0 0.0
  %12018 = vmatpush1.msra.mxu0 0.0
  %12019 = vmatprep.subr.mxu0 0.0
  %12020 = vmatpush1.msra.mxu0 0.0
  %12021 = vmatprep.subr.mxu0 0.0
  %12022 = vmatpush1.msra.mxu0 0.0
  %12023 = vmatprep.subr.mxu0 0.0
  %12024 = vmatpush1.msra.mxu0 0.0
  %12025 = vmatprep.subr.mxu0 0.0
  %12026 = vmatpush1.msra.mxu0 0.0
  %12027 = vmatprep.subr.mxu0 0.0
  %12028 = vmatpush1.msra.mxu0 0.0
  %12029 = vmatprep.subr.mxu0 0.0
  %12030 = vmatpush1.msra.mxu0 0.0
  %12031 = vmatprep.subr.mxu0 0.0
  %12032 = vmatpush1.msra.mxu0 0.0
  %12033 = vmatprep.subr.mxu0 0.0
  %12034 = vmatpush1.msra.mxu0 0.0
  %12035 = vmatprep.subr.mxu0 0.0
  %12036 = vmatpush1.msra.mxu0 0.0
  %12037 = vmatprep.subr.mxu0 0.0
  %12038 = vmatpush1.msra.mxu0 0.0
  %12039 = vmatprep.subr.mxu0 0.0
  %12040 = vmatpush1.msra.mxu0 0.0
  %12041 = vmatprep.subr.mxu0 0.0
  %12042 = vmatpush1.msra.mxu0 0.0
  %12043 = vmatprep.subr.mxu0 0.0
  %12044 = vmatpush1.msra.mxu0 0.0
  %12045 = vmatprep.subr.mxu0 0.0
  %12046 = vmatpush1.msra.mxu0 0.0
  %12047 = vmatprep.subr.mxu0 0.0
  %12048 = vmatpush1.msra.mxu0 0.0
  %12049 = vmatprep.subr.mxu0 0.0
  %12050 = vmatpush1.msra.mxu0 0.0
  %12051 = vmatprep.subr.mxu0 0.0
  %12052 = vmatpush1.msra.mxu0 0.0
  %12053 = vmatprep.subr.mxu0 0.0
  %12054 = vmatpush1.msra.mxu0 0.0
  %12055 = vmatprep.subr.mxu0 0.0
  %12056 = vmatpush1.msra.mxu0 0.0
  %12057 = vmatprep.subr.mxu0 0.0
  %12058 = vmatpush1.msra.mxu0 0.0
  %12059 = vmatprep.subr.mxu0 0.0
  %12060 = vmatpush1.msra.mxu0 0.0
  %12061 = vmatprep.subr.mxu0 0.0
  %12062 = vmatpush1.msra.mxu0 0.0
  %12063 = vmatprep.subr.mxu0 0.0
  %12064 = vmatpush1.msra.mxu0 0.0
  %12065 = vmatprep.subr.mxu0 0.0
  %12066 = vmatpush1.msra.mxu0 0.0
  %12067 = vmatprep.subr.mxu0 0.0
  %12068 = vmatpush1.msra.mxu0 0.0
  %12069 = vmatprep.mubr.f32.mxu0 0.0
  %v12070 = vand.u32 %v11754, 4294901760
  %v12071 = vsub.f32 %v11754, %v12070
  %v12072 = vand.u32 %v12071, 4294901760
  %12073 = vmatmul.mubr.f32.gmra.mrb[0].mxu0 %v12072
  %v12074 = vpop.f32.mrb[0].mxu0
  %v12075 = vadd.f32 %v11999, %v12074
  %v12076 = vpop.f32.mrb[0].mxu0
  %12077 = vdwg.mxu0
  %12078 = vmatprep.subr.mxu0 0.0
  %v12079 = vand.u32 %v11742, 4294901760
  %v12080 = vsub.f32 %v11742, %v12079
  %v12081 = vand.u32 %v12080, 4294901760
  %12082 = vmatpush1.msra.mxu0 %v12081
  %12083 = vmatprep.subr.mxu0 0.0
  %v12084 = vand.u32 %v11743, 4294901760
  %v12085 = vsub.f32 %v11743, %v12084
  %v12086 = vand.u32 %v12085, 4294901760
  %12087 = vmatpush1.msra.mxu0 %v12086
  %12088 = vmatprep.subr.mxu0 0.0
  %v12089 = vand.u32 %v11758, 4294901760
  %v12090 = vsub.f32 %v11758, %v12089
  %v12091 = vand.u32 %v12090, 4294901760
  %12092 = vmatpush1.msra.mxu0 %v12091
  %12093 = vmatprep.subr.mxu0 0.0
  %12094 = vmatpush1.msra.mxu0 0.0
  %12095 = vmatprep.subr.mxu0 0.0
  %12096 = vmatpush1.msra.mxu0 0.0
  %12097 = vmatprep.subr.mxu0 0.0
  %12098 = vmatpush1.msra.mxu0 0.0
  %12099 = vmatprep.subr.mxu0 0.0
  %12100 = vmatpush1.msra.mxu0 0.0
  %12101 = vmatprep.subr.mxu0 0.0
  %12102 = vmatpush1.msra.mxu0 0.0
  %12103 = vmatprep.subr.mxu0 0.0
  %12104 = vmatpush1.msra.mxu0 0.0
  %12105 = vmatprep.subr.mxu0 0.0
  %12106 = vmatpush1.msra.mxu0 0.0
  %12107 = vmatprep.subr.mxu0 0.0
  %12108 = vmatpush1.msra.mxu0 0.0
  %12109 = vmatprep.subr.mxu0 0.0
  %12110 = vmatpush1.msra.mxu0 0.0
  %12111 = vmatprep.subr.mxu0 0.0
  %12112 = vmatpush1.msra.mxu0 0.0
  %12113 = vmatprep.subr.mxu0 0.0
  %12114 = vmatpush1.msra.mxu0 0.0
  %12115 = vmatprep.subr.mxu0 0.0
  %12116 = vmatpush1.msra.mxu0 0.0
  %12117 = vmatprep.subr.mxu0 0.0
  %12118 = vmatpush1.msra.mxu0 0.0
  %12119 = vmatprep.subr.mxu0 0.0
  %12120 = vmatpush1.msra.mxu0 0.0
  %12121 = vmatprep.subr.mxu0 0.0
  %12122 = vmatpush1.msra.mxu0 0.0
  %12123 = vmatprep.subr.mxu0 0.0
  %12124 = vmatpush1.msra.mxu0 0.0
  %12125 = vmatprep.subr.mxu0 0.0
  %12126 = vmatpush1.msra.mxu0 0.0
  %12127 = vmatprep.subr.mxu0 0.0
  %12128 = vmatpush1.msra.mxu0 0.0
  %12129 = vmatprep.subr.mxu0 0.0
  %12130 = vmatpush1.msra.mxu0 0.0
  %12131 = vmatprep.subr.mxu0 0.0
  %12132 = vmatpush1.msra.mxu0 0.0
  %12133 = vmatprep.subr.mxu0 0.0
  %12134 = vmatpush1.msra.mxu0 0.0
  %12135 = vmatprep.subr.mxu0 0.0
  %12136 = vmatpush1.msra.mxu0 0.0
  %12137 = vmatprep.subr.mxu0 0.0
  %12138 = vmatpush1.msra.mxu0 0.0
  %12139 = vmatprep.subr.mxu0 0.0
  %12140 = vmatpush1.msra.mxu0 0.0
  %12141 = vmatprep.subr.mxu0 0.0
  %12142 = vmatpush1.msra.mxu0 0.0
  %12143 = vmatprep.subr.mxu0 0.0
  %12144 = vmatpush1.msra.mxu0 0.0
  %12145 = vmatprep.subr.mxu0 0.0
  %12146 = vmatpush1.msra.mxu0 0.0
  %12147 = vmatprep.subr.mxu0 0.0
  %12148 = vmatpush1.msra.mxu0 0.0
  %12149 = vmatprep.subr.mxu0 0.0
  %12150 = vmatpush1.msra.mxu0 0.0
  %12151 = vmatprep.mubr.f32.mxu0 0.0
  %v12152 = vand.u32 %v11754, 4294901760
  %12153 = vmatmul.mubr.f32.gmra.mrb[0].mxu0 %v12152
  %v12154 = vpop.f32.mrb[0].mxu0
  %v12155 = vadd.f32 %v12075, %v12154
  %v12156 = vpop.f32.mrb[0].mxu0
  %12157 = vdwg.mxu0
  %12158 = vmatprep.subr.mxu0 0.0
  %v12159 = vand.u32 %v11742, 4294901760
  %12160 = vmatpush1.msra.mxu0 %v12159
  %12161 = vmatprep.subr.mxu0 0.0
  %v12162 = vand.u32 %v11743, 4294901760
  %12163 = vmatpush1.msra.mxu0 %v12162
  %12164 = vmatprep.subr.mxu0 0.0
  %v12165 = vand.u32 %v11758, 4294901760
  %12166 = vmatpush1.msra.mxu0 %v12165
  %12167 = vmatprep.subr.mxu0 0.0
  %12168 = vmatpush1.msra.mxu0 0.0
  %12169 = vmatprep.subr.mxu0 0.0
  %12170 = vmatpush1.msra.mxu0 0.0
  %12171 = vmatprep.subr.mxu0 0.0
  %12172 = vmatpush1.msra.mxu0 0.0
  %12173 = vmatprep.subr.mxu0 0.0
  %12174 = vmatpush1.msra.mxu0 0.0
  %12175 = vmatprep.subr.mxu0 0.0
  %12176 = vmatpush1.msra.mxu0 0.0
  %12177 = vmatprep.subr.mxu0 0.0
  %12178 = vmatpush1.msra.mxu0 0.0
  %12179 = vmatprep.subr.mxu0 0.0
  %12180 = vmatpush1.msra.mxu0 0.0
  %12181 = vmatprep.subr.mxu0 0.0
  %12182 = vmatpush1.msra.mxu0 0.0
  %12183 = vmatprep.subr.mxu0 0.0
  %12184 = vmatpush1.msra.mxu0 0.0
  %12185 = vmatprep.subr.mxu0 0.0
  %12186 = vmatpush1.msra.mxu0 0.0
  %12187 = vmatprep.subr.mxu0 0.0
  %12188 = vmatpush1.msra.mxu0 0.0
  %12189 = vmatprep.subr.mxu0 0.0
  %12190 = vmatpush1.msra.mxu0 0.0
  %12191 = vmatprep.subr.mxu0 0.0
  %12192 = vmatpush1.msra.mxu0 0.0
  %12193 = vmatprep.subr.mxu0 0.0
  %12194 = vmatpush1.msra.mxu0 0.0
  %12195 = vmatprep.subr.mxu0 0.0
  %12196 = vmatpush1.msra.mxu0 0.0
  %12197 = vmatprep.subr.mxu0 0.0
  %12198 = vmatpush1.msra.mxu0 0.0
  %12199 = vmatprep.subr.mxu0 0.0
  %12200 = vmatpush1.msra.mxu0 0.0
  %12201 = vmatprep.subr.mxu0 0.0
  %12202 = vmatpush1.msra.mxu0 0.0
  %12203 = vmatprep.subr.mxu0 0.0
  %12204 = vmatpush1.msra.mxu0 0.0
  %12205 = vmatprep.subr.mxu0 0.0
  %12206 = vmatpush1.msra.mxu0 0.0
  %12207 = vmatprep.subr.mxu0 0.0
  %12208 = vmatpush1.msra.mxu0 0.0
  %12209 = vmatprep.subr.mxu0 0.0
  %12210 = vmatpush1.msra.mxu0 0.0
  %12211 = vmatprep.subr.mxu0 0.0
  %12212 = vmatpush1.msra.mxu0 0.0
  %12213 = vmatprep.subr.mxu0 0.0
  %12214 = vmatpush1.msra.mxu0 0.0
  %12215 = vmatprep.subr.mxu0 0.0
  %12216 = vmatpush1.msra.mxu0 0.0
  %12217 = vmatprep.subr.mxu0 0.0
  %12218 = vmatpush1.msra.mxu0 0.0
  %12219 = vmatprep.subr.mxu0 0.0
  %12220 = vmatpush1.msra.mxu0 0.0
  %12221 = vmatprep.subr.mxu0 0.0
  %12222 = vmatpush1.msra.mxu0 0.0
  %12223 = vmatprep.subr.mxu0 0.0
  %12224 = vmatpush1.msra.mxu0 0.0
  %12225 = vmatprep.mubr.f32.mxu0 0.0
  %v12226 = vand.u32 %v11754, 4294901760
  %12227 = vmatmul.mubr.f32.gmra.mrb[0].mxu0 %v12226
  %v12228 = vpop.f32.mrb[0].mxu0
  %v12229 = vadd.f32 %v12155, %v12228
  %v12230 = vpop.f32.mrb[0].mxu0
  %12231 = vdwg.mxu0
  %vm12232 = vcmask 80896
  %12233 = vst.msk [vmem:[%s11] sm:$0xff] %vm12232, %v12229
  // Predicated region
  $region53: #{cnn_forward.1} parent=0 // pred_check
    _
  $region54: #{cnn_forward.1} parent=0 // pred_check_branch
    %12235 = sbr.rel (0) target = $region56
  $region55: #{cnn_forward.1} parent=0 // pred_region
    _
  $region56: #{cnn_forward.1} parent=0 // pred_fallthru
    _
  // Predicated region
  $region57: #{cnn_forward.1} parent=0 // pred_check
    _
  $region58: #{cnn_forward.1} parent=0 // pred_check_branch
    %12237 = sbr.rel (0) target = $region60
  $region59: #{cnn_forward.1} parent=0 // pred_region
    _
  $region60: #{cnn_forward.1} parent=0 // pred_fallthru
    _

</llo_original>
